<compile_context>
chip_gen: v7x
topology: tpu7x:2x2x1
jax: 0.10.0
libtpu: 0.0.40
codegen_flags: <defaults>
</compile_context>

<pallas_src>
import functools

import jax
import jax.numpy as jnp
from jax.experimental import pallas as pl
from jax.experimental.pallas import tpu as pltpu


def _round_up(x, m):
    return ((x + m - 1) // m) * m


def _gru_chunk_kernel(gx_ref, lens_ref, whh_ref, bhh_ref, out_ref, h_ref, *,
                      hidden_pad, chunk):
    """One (batch tile, time chunk) of the GRU recurrence.

    gx_ref  : (Bt, Tc, 3Hp) bf16  precomputed x @ W_ih^T + b_ih for this chunk
    lens_ref: (Bt, 1)       int32 sequence lengths
    whh_ref : (Hp, 3Hp)     bf16  W_hh^T, gate-block aligned (r | z | n)
    bhh_ref : (1, 3Hp)      f32   b_hh, gate-block aligned
    out_ref : (Bt, Tc, Hp)  f32   outputs (batch-first layout)
    h_ref   : (Bt, Hp)      f32   recurrent hidden state (VMEM scratch)
    """
    Hp = hidden_pad
    Bt = h_ref.shape[0]
    t = pl.program_id(1)                      # time-chunk index (axis 0 = batch tile)

    @pl.when(t == 0)                          # keyed on the *time* axis
    def _():
        h_ref[...] = jnp.zeros_like(h_ref)

    h = h_ref[...]                            # (Bt, Hp) f32
    whh_bf = whh_ref[...]                     # (Hp, 3Hp) bf16 MXU operand
    # Hoist the bias broadcast out of the loop (JAX does not CSE it).
    bhh = jnp.broadcast_to(bhh_ref[...], (Bt, 3 * Hp))

    def step(s, h):
        gx = gx_ref[:, s, :].astype(jnp.float32)                     # (Bt, 3Hp)
        gh = jnp.dot(h.astype(jnp.bfloat16), whh_bf,
                     preferred_element_type=jnp.float32) + bhh
        r = jax.nn.sigmoid(gx[:, 0:Hp] + gh[:, 0:Hp])
        z = jax.nn.sigmoid(gx[:, Hp:2 * Hp] + gh[:, Hp:2 * Hp])
        n = jnp.tanh(gx[:, 2 * Hp:3 * Hp] + r * gh[:, 2 * Hp:3 * Hp])
        h = (1.0 - z) * n + z * h
        out_ref[:, s, :] = h.astype(out_ref.dtype)   # raw; masked chunk-wide below
        return h

    if chunk <= 16:
        for s in range(chunk):                       # static unroll, tiny live set
            h = step(s, h)
    else:
        h = jax.lax.fori_loop(0, chunk, step, h, unroll=8)

    h_ref[...] = h

    # pad_packed_sequence semantics: zero outputs at positions t >= length[b].
    # Single chunk-wide VPU pass, off the serial critical path.
    lens = lens_ref[...]                                             # (Bt, 1)
    step_ids = jax.lax.broadcasted_iota(jnp.int32, (Bt, chunk), 1) + t * chunk
    valid = (step_ids < lens).astype(out_ref.dtype)                  # (Bt, Tc)
    out_ref[...] = out_ref[...] * valid[:, :, None]


def seq2seq_encoder_forward(sequences_batch, sequences_lengths,
                            w_ih, w_hh, b_ih, b_hh, *, chunk=None):
    """Pallas implementation of Seq2SeqEncoder.forward (GRU, 1 layer, unidir).

    sequences_batch  : (B, T, D) float32, batch_first
    sequences_lengths: (B,)      int32
    w_ih             : (3H, D), w_hh: (3H, H), b_ih/b_hh: (3H,)
    returns          : (B, T, H) float32, zero-padded past each length
    """
    B, T, D = sequences_batch.shape
    H = w_hh.shape[1]
    f32 = jnp.float32
    bf16 = jnp.bfloat16

    Hp = _round_up(H, 128)                    # lane-aligned hidden (gate slices)
    Dp = _round_up(D, 128)                    # MXU-aligned K for the projection

    # Batch tile: bounds vreg/VMEM pressure; parallel grid axis for v7x's 2 TCs.
    Bt = min(32, _round_up(B, 8))
    Bp = _round_up(B, Bt)

    # Time chunk: multiple of 16 (bf16 sublane tile), sized so double-buffered
    # gx (bf16) + out (f32) blocks stay within a conservative ~12 MiB budget
    # (safe under v5e's 16 MiB scoped default and v7x's 64 MiB physical VMEM).
    if chunk is None:
        per_step_bytes = Bt * (3 * Hp * 2 + Hp * 4) * 2
        budget = 12 * 1024 * 1024
        chunk = max(16, min(128, (budget // per_step_bytes) // 16 * 16))
    Tc = max(16, _round_up(chunk, 16))
    Tc = min(Tc, _round_up(T, 16))
    Tp = _round_up(T, Tc)

    # Gate-block-aligned, padded weight packing: gate g occupies columns
    # [g*Hp, g*Hp + H); padded rows/cols are zero so padded hidden lanes stay 0.
    def pack_weight(w, in_dim, in_dim_pad, dtype):
        out = jnp.zeros((in_dim_pad, 3 * Hp), f32)
        for g in range(3):
            blk = w[g * H:(g + 1) * H, :].astype(f32).T          # (in_dim, H)
            out = out.at[:in_dim, g * Hp:g * Hp + H].set(blk)
        return out.astype(dtype)

    def pack_bias(b):
        out = jnp.zeros((1, 3 * Hp), f32)
        for g in range(3):
            out = out.at[0, g * Hp:g * Hp + H].set(b[g * H:(g + 1) * H].astype(f32))
        return out

    wih_p = pack_weight(w_ih, D, Dp, f32)     # (Dp, 3Hp) f32 (hoisted projection)
    whh_p = pack_weight(w_hh, H, Hp, bf16)    # (Hp, 3Hp) bf16 (recurrent MXU operand)
    bih_p = pack_bias(b_ih)                   # (1, 3Hp) f32
    bhh_p = pack_bias(b_hh)                   # (1, 3Hp) f32

    # Hoisted input projection: one large MXU-aligned matmul outside the
    # recurrence, produced directly in the padded batch-first layout the
    # kernel consumes, streamed as bf16 (halves the dominant HBM/VMEM stream).
    x_pad = jnp.zeros((Bp, Tp, Dp), f32).at[:B, :T, :D].set(sequences_batch.astype(f32))
    gx = (jnp.einsum('btd,dg->btg', x_pad, wih_p,
                     preferred_element_type=f32) + bih_p).astype(bf16)   # (Bp, Tp, 3Hp)

    lens_p = jnp.zeros((Bp, 1), jnp.int32).at[:B, 0].set(
        sequences_lengths.astype(jnp.int32))

    kernel = functools.partial(_gru_chunk_kernel, hidden_pad=Hp, chunk=Tc)

    out_p = pl.pallas_call(
        kernel,
        out_shape=jax.ShapeDtypeStruct((Bp, Tp, Hp), f32),
        grid_spec=pltpu.PrefetchScalarGridSpec(
            num_scalar_prefetch=0,
            grid=(Bp // Bt, Tp // Tc),
            in_specs=[
                pl.BlockSpec((Bt, Tc, 3 * Hp), lambda b, t: (b, t, 0)),  # gx chunk (bf16)
                pl.BlockSpec((Bt, 1), lambda b, t: (b, 0)),              # lengths
                pl.BlockSpec((Hp, 3 * Hp), lambda b, t: (0, 0)),         # W_hh^T (bf16)
                pl.BlockSpec((1, 3 * Hp), lambda b, t: (0, 0)),          # b_hh
            ],
            out_specs=pl.BlockSpec((Bt, Tc, Hp), lambda b, t: (b, t, 0)),
            scratch_shapes=[pltpu.VMEM((Bt, Hp), f32)],                  # hidden h
        ),
        compiler_params=pltpu.CompilerParams(
            dimension_semantics=("parallel", "arbitrary"),  # batch || , time serial
            vmem_limit_bytes=48 * 1024 * 1024),
    )(gx, lens_p, whh_p, bhh_p)

    return out_p[:B, :T, :H]


def _gru_reference(x_btd, lengths, w_ih, w_hh, b_ih, b_hh):
    """Pure-JAX f32 reference (lax.scan) with PyTorch GRU semantics."""
    B, T, D = x_btd.shape
    H = w_hh.shape[1]
    wir, wiz, win = jnp.split(w_ih, 3, axis=0)
    whr, whz, whn = jnp.split(w_hh, 3, axis=0)
    bir, biz, bin_ = jnp.split(b_ih, 3)
    bhr, bhz, bhn = jnp.split(b_hh, 3)

    def step(h, xt):
        r = jax.nn.sigmoid(xt @ wir.T + bir + h @ whr.T + bhr)
        z = jax.nn.sigmoid(xt @ wiz.T + biz + h @ whz.T + bhz)
        n = jnp.tanh(xt @ win.T + bin_ + r * (h @ whn.T + bhn))
        h_new = (1.0 - z) * n + z * h
        return h_new, h_new

    h0 = jnp.zeros((B, H), jnp.float32)
    _, hs = jax.lax.scan(step, h0, jnp.transpose(x_btd, (1, 0, 2)))
    hs = jnp.transpose(hs, (1, 0, 2))                               # (B, T, H)
    mask = jnp.arange(T)[None, :, None] < lengths[:, None, None]
    return jnp.where(mask, hs, 0.0)


if __name__ == "__main__":
    # Small shapes: batch=2, seq_len=8, input_size=16, hidden_size=32
    B, T, D, H = 2, 8, 16, 32

    key = jax.random.PRNGKey(0)
    kx, k1, k2, k3, k4 = jax.random.split(key, 5)

    x = jax.random.normal(kx, (B, T, D), dtype=jnp.float32)
    lengths = jnp.array([8, 5], dtype=jnp.int32)       # unsorted -> exercises masking

    bound = 1.0 / (H ** 0.5)                            # PyTorch GRU default init range
    w_ih = jax.random.uniform(k1, (3 * H, D), minval=-bound, maxval=bound, dtype=jnp.float32)
    w_hh = jax.random.uniform(k2, (3 * H, H), minval=-bound, maxval=bound, dtype=jnp.float32)
    b_ih = jax.random.uniform(k3, (3 * H,), minval=-bound, maxval=bound, dtype=jnp.float32)
    b_hh = jax.random.uniform(k4, (3 * H,), minval=-bound, maxval=bound, dtype=jnp.float32)

    out = seq2seq_encoder_forward(x, lengths, w_ih, w_hh, b_ih, b_hh)
    out = jax.block_until_ready(out)

    ref = _gru_reference(x, lengths, w_ih, w_hh, b_ih, b_hh)
    assert out.shape == (B, T, H)
    # Tolerance loosened (review): bf16 MXU operands for the recurrent matmul
    # and the bf16 gx stream introduce ~1e-3..1e-2 deviation vs the f32 ref.
    assert jnp.allclose(out, ref, atol=3e-2, rtol=3e-2), "mismatch vs JAX reference"

    print("KERNEL_OK")
</pallas_src>

<mosaic_0001>
module attributes {stable_mosaic.version = 11 : i64} {
  func.func @_gru_chunk_kernel(%arg0: i32, %arg1: i32, %arg2: memref<8x16x384xbf16, #tpu.memory_space<vmem>>, %arg3: memref<8x1xi32, #tpu.memory_space<vmem>>, %arg4: memref<128x384xbf16, #tpu.memory_space<vmem>>, %arg5: memref<1x384xf32, #tpu.memory_space<vmem>>, %arg6: memref<8x16x128xf32, #tpu.memory_space<vmem>>, %arg7: memref<8x128xf32, #tpu.memory_space<vmem>>) attributes {dimension_semantics = [#tpu.dimension_semantics<parallel>, #tpu.dimension_semantics<arbitrary>], iteration_bounds = array<i64: 1, 1>, scalar_prefetch = 0 : i64, scratch_operands = 1 : i64, tpu.core_type = #tpu.core_type<tc>, window_params = [{transform_indices = @transform_0, window_bounds = array<i64: 8, 16, 384>}, {transform_indices = @transform_1, window_bounds = array<i64: 8, 1>}, {pipeline_mode = #tpu.pipeline_mode<synchronous>, transform_indices = @transform_2, window_bounds = array<i64: 128, 384>}, {pipeline_mode = #tpu.pipeline_mode<synchronous>, transform_indices = @transform_3, window_bounds = array<i64: 1, 384>}, {transform_indices = @transform_4, window_bounds = array<i64: 8, 16, 128>}]} {
    %c0_i32 = arith.constant 0 : i32
    %0 = arith.cmpi eq, %arg1, %c0_i32 : i32
    %1 = arith.extui %0 : i1 to i32
    %c0_i32_0 = arith.constant 0 : i32
    %2 = arith.cmpi ne, %1, %c0_i32_0 : i32
    scf.if %2 {
      %cst_160 = arith.constant 0.000000e+00 : f32
      %583 = vector.broadcast %cst_160 : f32 to vector<8x128xf32>
      %c0_161 = arith.constant 0 : index
      %c0_162 = arith.constant 0 : index
      %584 = vector.load %arg7[%c0_161, %c0_162] : memref<8x128xf32, #tpu.memory_space<vmem>>, vector<8x128xf32>
      tpu.vector_store %arg7[%c0_161, %c0_162], %583 {strides = array<i32>} : memref<8x128xf32, #tpu.memory_space<vmem>>, vector<8x128xf32>,
    } else {
    }
    %c0 = arith.constant 0 : index
    %c0_1 = arith.constant 0 : index
    %3 = vector.load %arg7[%c0, %c0_1] : memref<8x128xf32, #tpu.memory_space<vmem>>, vector<8x128xf32>
    %c0_2 = arith.constant 0 : index
    %c0_3 = arith.constant 0 : index
    %4 = vector.load %arg4[%c0_2, %c0_3] : memref<128x384xbf16, #tpu.memory_space<vmem>>, vector<128x384xbf16>
    %c0_4 = arith.constant 0 : index
    %c0_5 = arith.constant 0 : index
    %5 = vector.load %arg5[%c0_4, %c0_5] : memref<1x384xf32, #tpu.memory_space<vmem>>, vector<1x384xf32>
    %6 = vector.shape_cast %5 : vector<1x384xf32> to vector<1x384xf32>
    %7 = vector.broadcast %6 : vector<1x384xf32> to vector<8x384xf32>
    %c0_6 = arith.constant 0 : index
    %c0_7 = arith.constant 0 : index
    %c0_8 = arith.constant 0 : index
    %8 = vector.load %arg2[%c0_6, %c0_7, %c0_8] : memref<8x16x384xbf16, #tpu.memory_space<vmem>>, vector<8x1x384xbf16>
    %9 = vector.shape_cast %8 : vector<8x1x384xbf16> to vector<8x384xbf16>
    %10 = arith.extf %9 : vector<8x384xbf16> to vector<8x384xf32>
    %11 = arith.truncf %3 : vector<8x128xf32> to vector<8x128xbf16>
    %cst = arith.constant dense<0.000000e+00> : vector<8x384xf32>
    %12 = tpu.matmul %11, %4, %cst {dimension_numbers = #tpu.dot_dimension_numbers<[1], [0], [0], [1], [0, 0, 1, 1], [], []>} : vector<8x128xbf16>, vector<128x384xbf16>, vector<8x384xf32> -> vector<8x384xf32>
    %13 = arith.addf %12, %7 : vector<8x384xf32>
    %14 = vector.extract_strided_slice %10 {offsets = [0, 0], sizes = [8, 128], strides = [1, 1]} : vector<8x384xf32> to vector<8x128xf32>
    %15 = vector.extract_strided_slice %13 {offsets = [0, 0], sizes = [8, 128], strides = [1, 1]} : vector<8x384xf32> to vector<8x128xf32>
    %16 = arith.addf %14, %15 : vector<8x128xf32>
    %17 = arith.negf %16 : vector<8x128xf32>
    %18 = math.exp %17 : vector<8x128xf32>
    %cst_9 = arith.constant 1.000000e+00 : f32
    %19 = vector.broadcast %cst_9 : f32 to vector<8x128xf32>
    %20 = arith.addf %19, %18 : vector<8x128xf32>
    %21 = arith.divf %19, %20 : vector<8x128xf32>
    %22 = vector.extract_strided_slice %10 {offsets = [0, 128], sizes = [8, 128], strides = [1, 1]} : vector<8x384xf32> to vector<8x128xf32>
    %23 = vector.extract_strided_slice %13 {offsets = [0, 128], sizes = [8, 128], strides = [1, 1]} : vector<8x384xf32> to vector<8x128xf32>
    %24 = arith.addf %22, %23 : vector<8x128xf32>
    %25 = arith.negf %24 : vector<8x128xf32>
    %26 = math.exp %25 : vector<8x128xf32>
    %cst_10 = arith.constant 1.000000e+00 : f32
    %27 = vector.broadcast %cst_10 : f32 to vector<8x128xf32>
    %28 = arith.addf %27, %26 : vector<8x128xf32>
    %29 = arith.divf %27, %28 : vector<8x128xf32>
    %30 = vector.extract_strided_slice %10 {offsets = [0, 256], sizes = [8, 128], strides = [1, 1]} : vector<8x384xf32> to vector<8x128xf32>
    %31 = vector.extract_strided_slice %13 {offsets = [0, 256], sizes = [8, 128], strides = [1, 1]} : vector<8x384xf32> to vector<8x128xf32>
    %32 = arith.mulf %21, %31 : vector<8x128xf32>
    %33 = arith.addf %30, %32 : vector<8x128xf32>
    %34 = math.tanh %33 : vector<8x128xf32>
    %cst_11 = arith.constant 1.000000e+00 : f32
    %35 = vector.broadcast %cst_11 : f32 to vector<8x128xf32>
    %36 = arith.subf %35, %29 : vector<8x128xf32>
    %37 = arith.mulf %36, %34 : vector<8x128xf32>
    %38 = arith.mulf %29, %3 : vector<8x128xf32>
    %39 = arith.addf %37, %38 : vector<8x128xf32>
    %c0_12 = arith.constant 0 : index
    %c0_13 = arith.constant 0 : index
    %c0_14 = arith.constant 0 : index
    %40 = vector.load %arg6[%c0_12, %c0_13, %c0_14] : memref<8x16x128xf32, #tpu.memory_space<vmem>>, vector<8x1x128xf32>
    %41 = vector.shape_cast %40 : vector<8x1x128xf32> to vector<8x128xf32>
    %42 = vector.shape_cast %39 : vector<8x128xf32> to vector<8x1x128xf32>
    tpu.vector_store %arg6[%c0_12, %c0_13, %c0_14], %42 {strides = array<i32>} : memref<8x16x128xf32, #tpu.memory_space<vmem>>, vector<8x1x128xf32>,
    %c0_15 = arith.constant 0 : index
    %c1 = arith.constant 1 : index
    %c0_16 = arith.constant 0 : index
    %43 = vector.load %arg2[%c0_15, %c1, %c0_16] : memref<8x16x384xbf16, #tpu.memory_space<vmem>>, vector<8x1x384xbf16>
    %44 = vector.shape_cast %43 : vector<8x1x384xbf16> to vector<8x384xbf16>
    %45 = arith.extf %44 : vector<8x384xbf16> to vector<8x384xf32>
    %46 = arith.truncf %39 : vector<8x128xf32> to vector<8x128xbf16>
    %cst_17 = arith.constant dense<0.000000e+00> : vector<8x384xf32>
    %47 = tpu.matmul %46, %4, %cst_17 {dimension_numbers = #tpu.dot_dimension_numbers<[1], [0], [0], [1], [0, 0, 1, 1], [], []>} : vector<8x128xbf16>, vector<128x384xbf16>, vector<8x384xf32> -> vector<8x384xf32>
    %48 = arith.addf %47, %7 : vector<8x384xf32>
    %49 = vector.extract_strided_slice %45 {offsets = [0, 0], sizes = [8, 128], strides = [1, 1]} : vector<8x384xf32> to vector<8x128xf32>
    %50 = vector.extract_strided_slice %48 {offsets = [0, 0], sizes = [8, 128], strides = [1, 1]} : vector<8x384xf32> to vector<8x128xf32>
    %51 = arith.addf %49, %50 : vector<8x128xf32>
    %52 = arith.negf %51 : vector<8x128xf32>
    %53 = math.exp %52 : vector<8x128xf32>
    %cst_18 = arith.constant 1.000000e+00 : f32
    %54 = vector.broadcast %cst_18 : f32 to vector<8x128xf32>
    %55 = arith.addf %54, %53 : vector<8x128xf32>
    %56 = arith.divf %54, %55 : vector<8x128xf32>
    %57 = vector.extract_strided_slice %45 {offsets = [0, 128], sizes = [8, 128], strides = [1, 1]} : vector<8x384xf32> to vector<8x128xf32>
    %58 = vector.extract_strided_slice %48 {offsets = [0, 128], sizes = [8, 128], strides = [1, 1]} : vector<8x384xf32> to vector<8x128xf32>
    %59 = arith.addf %57, %58 : vector<8x128xf32>
    %60 = arith.negf %59 : vector<8x128xf32>
    %61 = math.exp %60 : vector<8x128xf32>
    %cst_19 = arith.constant 1.000000e+00 : f32
    %62 = vector.broadcast %cst_19 : f32 to vector<8x128xf32>
    %63 = arith.addf %62, %61 : vector<8x128xf32>
    %64 = arith.divf %62, %63 : vector<8x128xf32>
    %65 = vector.extract_strided_slice %45 {offsets = [0, 256], sizes = [8, 128], strides = [1, 1]} : vector<8x384xf32> to vector<8x128xf32>
    %66 = vector.extract_strided_slice %48 {offsets = [0, 256], sizes = [8, 128], strides = [1, 1]} : vector<8x384xf32> to vector<8x128xf32>
    %67 = arith.mulf %56, %66 : vector<8x128xf32>
    %68 = arith.addf %65, %67 : vector<8x128xf32>
    %69 = math.tanh %68 : vector<8x128xf32>
    %cst_20 = arith.constant 1.000000e+00 : f32
    %70 = vector.broadcast %cst_20 : f32 to vector<8x128xf32>
    %71 = arith.subf %70, %64 : vector<8x128xf32>
    %72 = arith.mulf %71, %69 : vector<8x128xf32>
    %73 = arith.mulf %64, %39 : vector<8x128xf32>
    %74 = arith.addf %72, %73 : vector<8x128xf32>
    %c0_21 = arith.constant 0 : index
    %c1_22 = arith.constant 1 : index
    %c0_23 = arith.constant 0 : index
    %75 = vector.load %arg6[%c0_21, %c1_22, %c0_23] : memref<8x16x128xf32, #tpu.memory_space<vmem>>, vector<8x1x128xf32>
    %76 = vector.shape_cast %75 : vector<8x1x128xf32> to vector<8x128xf32>
    %77 = vector.shape_cast %74 : vector<8x128xf32> to vector<8x1x128xf32>
    tpu.vector_store %arg6[%c0_21, %c1_22, %c0_23], %77 {strides = array<i32>} : memref<8x16x128xf32, #tpu.memory_space<vmem>>, vector<8x1x128xf32>,
    %c0_24 = arith.constant 0 : index
    %c2 = arith.constant 2 : index
    %c0_25 = arith.constant 0 : index
    %78 = vector.load %arg2[%c0_24, %c2, %c0_25] : memref<8x16x384xbf16, #tpu.memory_space<vmem>>, vector<8x1x384xbf16>
    %79 = vector.shape_cast %78 : vector<8x1x384xbf16> to vector<8x384xbf16>
    %80 = arith.extf %79 : vector<8x384xbf16> to vector<8x384xf32>
    %81 = arith.truncf %74 : vector<8x128xf32> to vector<8x128xbf16>
    %cst_26 = arith.constant dense<0.000000e+00> : vector<8x384xf32>
    %82 = tpu.matmul %81, %4, %cst_26 {dimension_numbers = #tpu.dot_dimension_numbers<[1], [0], [0], [1], [0, 0, 1, 1], [], []>} : vector<8x128xbf16>, vector<128x384xbf16>, vector<8x384xf32> -> vector<8x384xf32>
    %83 = arith.addf %82, %7 : vector<8x384xf32>
    %84 = vector.extract_strided_slice %80 {offsets = [0, 0], sizes = [8, 128], strides = [1, 1]} : vector<8x384xf32> to vector<8x128xf32>
    %85 = vector.extract_strided_slice %83 {offsets = [0, 0], sizes = [8, 128], strides = [1, 1]} : vector<8x384xf32> to vector<8x128xf32>
    %86 = arith.addf %84, %85 : vector<8x128xf32>
    %87 = arith.negf %86 : vector<8x128xf32>
    %88 = math.exp %87 : vector<8x128xf32>
    %cst_27 = arith.constant 1.000000e+00 : f32
    %89 = vector.broadcast %cst_27 : f32 to vector<8x128xf32>
    %90 = arith.addf %89, %88 : vector<8x128xf32>
    %91 = arith.divf %89, %90 : vector<8x128xf32>
    %92 = vector.extract_strided_slice %80 {offsets = [0, 128], sizes = [8, 128], strides = [1, 1]} : vector<8x384xf32> to vector<8x128xf32>
    %93 = vector.extract_strided_slice %83 {offsets = [0, 128], sizes = [8, 128], strides = [1, 1]} : vector<8x384xf32> to vector<8x128xf32>
    %94 = arith.addf %92, %93 : vector<8x128xf32>
    %95 = arith.negf %94 : vector<8x128xf32>
    %96 = math.exp %95 : vector<8x128xf32>
    %cst_28 = arith.constant 1.000000e+00 : f32
    %97 = vector.broadcast %cst_28 : f32 to vector<8x128xf32>
    %98 = arith.addf %97, %96 : vector<8x128xf32>
    %99 = arith.divf %97, %98 : vector<8x128xf32>
    %100 = vector.extract_strided_slice %80 {offsets = [0, 256], sizes = [8, 128], strides = [1, 1]} : vector<8x384xf32> to vector<8x128xf32>
    %101 = vector.extract_strided_slice %83 {offsets = [0, 256], sizes = [8, 128], strides = [1, 1]} : vector<8x384xf32> to vector<8x128xf32>
    %102 = arith.mulf %91, %101 : vector<8x128xf32>
    %103 = arith.addf %100, %102 : vector<8x128xf32>
    %104 = math.tanh %103 : vector<8x128xf32>
    %cst_29 = arith.constant 1.000000e+00 : f32
    %105 = vector.broadcast %cst_29 : f32 to vector<8x128xf32>
    %106 = arith.subf %105, %99 : vector<8x128xf32>
    %107 = arith.mulf %106, %104 : vector<8x128xf32>
    %108 = arith.mulf %99, %74 : vector<8x128xf32>
    %109 = arith.addf %107, %108 : vector<8x128xf32>
    %c0_30 = arith.constant 0 : index
    %c2_31 = arith.constant 2 : index
    %c0_32 = arith.constant 0 : index
    %110 = vector.load %arg6[%c0_30, %c2_31, %c0_32] : memref<8x16x128xf32, #tpu.memory_space<vmem>>, vector<8x1x128xf32>
    %111 = vector.shape_cast %110 : vector<8x1x128xf32> to vector<8x128xf32>
    %112 = vector.shape_cast %109 : vector<8x128xf32> to vector<8x1x128xf32>
    tpu.vector_store %arg6[%c0_30, %c2_31, %c0_32], %112 {strides = array<i32>} : memref<8x16x128xf32, #tpu.memory_space<vmem>>, vector<8x1x128xf32>,
    %c0_33 = arith.constant 0 : index
    %c3 = arith.constant 3 : index
    %c0_34 = arith.constant 0 : index
    %113 = vector.load %arg2[%c0_33, %c3, %c0_34] : memref<8x16x384xbf16, #tpu.memory_space<vmem>>, vector<8x1x384xbf16>
    %114 = vector.shape_cast %113 : vector<8x1x384xbf16> to vector<8x384xbf16>
    %115 = arith.extf %114 : vector<8x384xbf16> to vector<8x384xf32>
    %116 = arith.truncf %109 : vector<8x128xf32> to vector<8x128xbf16>
    %cst_35 = arith.constant dense<0.000000e+00> : vector<8x384xf32>
    %117 = tpu.matmul %116, %4, %cst_35 {dimension_numbers = #tpu.dot_dimension_numbers<[1], [0], [0], [1], [0, 0, 1, 1], [], []>} : vector<8x128xbf16>, vector<128x384xbf16>, vector<8x384xf32> -> vector<8x384xf32>
    %118 = arith.addf %117, %7 : vector<8x384xf32>
    %119 = vector.extract_strided_slice %115 {offsets = [0, 0], sizes = [8, 128], strides = [1, 1]} : vector<8x384xf32> to vector<8x128xf32>
    %120 = vector.extract_strided_slice %118 {offsets = [0, 0], sizes = [8, 128], strides = [1, 1]} : vector<8x384xf32> to vector<8x128xf32>
    %121 = arith.addf %119, %120 : vector<8x128xf32>
    %122 = arith.negf %121 : vector<8x128xf32>
    %123 = math.exp %122 : vector<8x128xf32>
    %cst_36 = arith.constant 1.000000e+00 : f32
    %124 = vector.broadcast %cst_36 : f32 to vector<8x128xf32>
    %125 = arith.addf %124, %123 : vector<8x128xf32>
    %126 = arith.divf %124, %125 : vector<8x128xf32>
    %127 = vector.extract_strided_slice %115 {offsets = [0, 128], sizes = [8, 128], strides = [1, 1]} : vector<8x384xf32> to vector<8x128xf32>
    %128 = vector.extract_strided_slice %118 {offsets = [0, 128], sizes = [8, 128], strides = [1, 1]} : vector<8x384xf32> to vector<8x128xf32>
    %129 = arith.addf %127, %128 : vector<8x128xf32>
    %130 = arith.negf %129 : vector<8x128xf32>
    %131 = math.exp %130 : vector<8x128xf32>
    %cst_37 = arith.constant 1.000000e+00 : f32
    %132 = vector.broadcast %cst_37 : f32 to vector<8x128xf32>
    %133 = arith.addf %132, %131 : vector<8x128xf32>
    %134 = arith.divf %132, %133 : vector<8x128xf32>
    %135 = vector.extract_strided_slice %115 {offsets = [0, 256], sizes = [8, 128], strides = [1, 1]} : vector<8x384xf32> to vector<8x128xf32>
    %136 = vector.extract_strided_slice %118 {offsets = [0, 256], sizes = [8, 128], strides = [1, 1]} : vector<8x384xf32> to vector<8x128xf32>
    %137 = arith.mulf %126, %136 : vector<8x128xf32>
    %138 = arith.addf %135, %137 : vector<8x128xf32>
    %139 = math.tanh %138 : vector<8x128xf32>
    %cst_38 = arith.constant 1.000000e+00 : f32
    %140 = vector.broadcast %cst_38 : f32 to vector<8x128xf32>
    %141 = arith.subf %140, %134 : vector<8x128xf32>
    %142 = arith.mulf %141, %139 : vector<8x128xf32>
    %143 = arith.mulf %134, %109 : vector<8x128xf32>
    %144 = arith.addf %142, %143 : vector<8x128xf32>
    %c0_39 = arith.constant 0 : index
    %c3_40 = arith.constant 3 : index
    %c0_41 = arith.constant 0 : index
    %145 = vector.load %arg6[%c0_39, %c3_40, %c0_41] : memref<8x16x128xf32, #tpu.memory_space<vmem>>, vector<8x1x128xf32>
    %146 = vector.shape_cast %145 : vector<8x1x128xf32> to vector<8x128xf32>
    %147 = vector.shape_cast %144 : vector<8x128xf32> to vector<8x1x128xf32>
    tpu.vector_store %arg6[%c0_39, %c3_40, %c0_41], %147 {strides = array<i32>} : memref<8x16x128xf32, #tpu.memory_space<vmem>>, vector<8x1x128xf32>,
    %c0_42 = arith.constant 0 : index
    %c4 = arith.constant 4 : index
    %c0_43 = arith.constant 0 : index
    %148 = vector.load %arg2[%c0_42, %c4, %c0_43] : memref<8x16x384xbf16, #tpu.memory_space<vmem>>, vector<8x1x384xbf16>
    %149 = vector.shape_cast %148 : vector<8x1x384xbf16> to vector<8x384xbf16>
    %150 = arith.extf %149 : vector<8x384xbf16> to vector<8x384xf32>
    %151 = arith.truncf %144 : vector<8x128xf32> to vector<8x128xbf16>
    %cst_44 = arith.constant dense<0.000000e+00> : vector<8x384xf32>
    %152 = tpu.matmul %151, %4, %cst_44 {dimension_numbers = #tpu.dot_dimension_numbers<[1], [0], [0], [1], [0, 0, 1, 1], [], []>} : vector<8x128xbf16>, vector<128x384xbf16>, vector<8x384xf32> -> vector<8x384xf32>
    %153 = arith.addf %152, %7 : vector<8x384xf32>
    %154 = vector.extract_strided_slice %150 {offsets = [0, 0], sizes = [8, 128], strides = [1, 1]} : vector<8x384xf32> to vector<8x128xf32>
    %155 = vector.extract_strided_slice %153 {offsets = [0, 0], sizes = [8, 128], strides = [1, 1]} : vector<8x384xf32> to vector<8x128xf32>
    %156 = arith.addf %154, %155 : vector<8x128xf32>
    %157 = arith.negf %156 : vector<8x128xf32>
    %158 = math.exp %157 : vector<8x128xf32>
    %cst_45 = arith.constant 1.000000e+00 : f32
    %159 = vector.broadcast %cst_45 : f32 to vector<8x128xf32>
    %160 = arith.addf %159, %158 : vector<8x128xf32>
    %161 = arith.divf %159, %160 : vector<8x128xf32>
    %162 = vector.extract_strided_slice %150 {offsets = [0, 128], sizes = [8, 128], strides = [1, 1]} : vector<8x384xf32> to vector<8x128xf32>
    %163 = vector.extract_strided_slice %153 {offsets = [0, 128], sizes = [8, 128], strides = [1, 1]} : vector<8x384xf32> to vector<8x128xf32>
    %164 = arith.addf %162, %163 : vector<8x128xf32>
    %165 = arith.negf %164 : vector<8x128xf32>
    %166 = math.exp %165 : vector<8x128xf32>
    %cst_46 = arith.constant 1.000000e+00 : f32
    %167 = vector.broadcast %cst_46 : f32 to vector<8x128xf32>
    %168 = arith.addf %167, %166 : vector<8x128xf32>
    %169 = arith.divf %167, %168 : vector<8x128xf32>
    %170 = vector.extract_strided_slice %150 {offsets = [0, 256], sizes = [8, 128], strides = [1, 1]} : vector<8x384xf32> to vector<8x128xf32>
    %171 = vector.extract_strided_slice %153 {offsets = [0, 256], sizes = [8, 128], strides = [1, 1]} : vector<8x384xf32> to vector<8x128xf32>
    %172 = arith.mulf %161, %171 : vector<8x128xf32>
    %173 = arith.addf %170, %172 : vector<8x128xf32>
    %174 = math.tanh %173 : vector<8x128xf32>
    %cst_47 = arith.constant 1.000000e+00 : f32
    %175 = vector.broadcast %cst_47 : f32 to vector<8x128xf32>
    %176 = arith.subf %175, %169 : vector<8x128xf32>
    %177 = arith.mulf %176, %174 : vector<8x128xf32>
    %178 = arith.mulf %169, %144 : vector<8x128xf32>
    %179 = arith.addf %177, %178 : vector<8x128xf32>
    %c0_48 = arith.constant 0 : index
    %c4_49 = arith.constant 4 : index
    %c0_50 = arith.constant 0 : index
    %180 = vector.load %arg6[%c0_48, %c4_49, %c0_50] : memref<8x16x128xf32, #tpu.memory_space<vmem>>, vector<8x1x128xf32>
    %181 = vector.shape_cast %180 : vector<8x1x128xf32> to vector<8x128xf32>
    %182 = vector.shape_cast %179 : vector<8x128xf32> to vector<8x1x128xf32>
    tpu.vector_store %arg6[%c0_48, %c4_49, %c0_50], %182 {strides = array<i32>} : memref<8x16x128xf32, #tpu.memory_space<vmem>>, vector<8x1x128xf32>,
    %c0_51 = arith.constant 0 : index
    %c5 = arith.constant 5 : index
    %c0_52 = arith.constant 0 : index
    %183 = vector.load %arg2[%c0_51, %c5, %c0_52] : memref<8x16x384xbf16, #tpu.memory_space<vmem>>, vector<8x1x384xbf16>
    %184 = vector.shape_cast %183 : vector<8x1x384xbf16> to vector<8x384xbf16>
    %185 = arith.extf %184 : vector<8x384xbf16> to vector<8x384xf32>
    %186 = arith.truncf %179 : vector<8x128xf32> to vector<8x128xbf16>
    %cst_53 = arith.constant dense<0.000000e+00> : vector<8x384xf32>
    %187 = tpu.matmul %186, %4, %cst_53 {dimension_numbers = #tpu.dot_dimension_numbers<[1], [0], [0], [1], [0, 0, 1, 1], [], []>} : vector<8x128xbf16>, vector<128x384xbf16>, vector<8x384xf32> -> vector<8x384xf32>
    %188 = arith.addf %187, %7 : vector<8x384xf32>
    %189 = vector.extract_strided_slice %185 {offsets = [0, 0], sizes = [8, 128], strides = [1, 1]} : vector<8x384xf32> to vector<8x128xf32>
    %190 = vector.extract_strided_slice %188 {offsets = [0, 0], sizes = [8, 128], strides = [1, 1]} : vector<8x384xf32> to vector<8x128xf32>
    %191 = arith.addf %189, %190 : vector<8x128xf32>
    %192 = arith.negf %191 : vector<8x128xf32>
    %193 = math.exp %192 : vector<8x128xf32>
    %cst_54 = arith.constant 1.000000e+00 : f32
    %194 = vector.broadcast %cst_54 : f32 to vector<8x128xf32>
    %195 = arith.addf %194, %193 : vector<8x128xf32>
    %196 = arith.divf %194, %195 : vector<8x128xf32>
    %197 = vector.extract_strided_slice %185 {offsets = [0, 128], sizes = [8, 128], strides = [1, 1]} : vector<8x384xf32> to vector<8x128xf32>
    %198 = vector.extract_strided_slice %188 {offsets = [0, 128], sizes = [8, 128], strides = [1, 1]} : vector<8x384xf32> to vector<8x128xf32>
    %199 = arith.addf %197, %198 : vector<8x128xf32>
    %200 = arith.negf %199 : vector<8x128xf32>
    %201 = math.exp %200 : vector<8x128xf32>
    %cst_55 = arith.constant 1.000000e+00 : f32
    %202 = vector.broadcast %cst_55 : f32 to vector<8x128xf32>
    %203 = arith.addf %202, %201 : vector<8x128xf32>
    %204 = arith.divf %202, %203 : vector<8x128xf32>
    %205 = vector.extract_strided_slice %185 {offsets = [0, 256], sizes = [8, 128], strides = [1, 1]} : vector<8x384xf32> to vector<8x128xf32>
    %206 = vector.extract_strided_slice %188 {offsets = [0, 256], sizes = [8, 128], strides = [1, 1]} : vector<8x384xf32> to vector<8x128xf32>
    %207 = arith.mulf %196, %206 : vector<8x128xf32>
    %208 = arith.addf %205, %207 : vector<8x128xf32>
    %209 = math.tanh %208 : vector<8x128xf32>
    %cst_56 = arith.constant 1.000000e+00 : f32
    %210 = vector.broadcast %cst_56 : f32 to vector<8x128xf32>
    %211 = arith.subf %210, %204 : vector<8x128xf32>
    %212 = arith.mulf %211, %209 : vector<8x128xf32>
    %213 = arith.mulf %204, %179 : vector<8x128xf32>
    %214 = arith.addf %212, %213 : vector<8x128xf32>
    %c0_57 = arith.constant 0 : index
    %c5_58 = arith.constant 5 : index
    %c0_59 = arith.constant 0 : index
    %215 = vector.load %arg6[%c0_57, %c5_58, %c0_59] : memref<8x16x128xf32, #tpu.memory_space<vmem>>, vector<8x1x128xf32>
    %216 = vector.shape_cast %215 : vector<8x1x128xf32> to vector<8x128xf32>
    %217 = vector.shape_cast %214 : vector<8x128xf32> to vector<8x1x128xf32>
    tpu.vector_store %arg6[%c0_57, %c5_58, %c0_59], %217 {strides = array<i32>} : memref<8x16x128xf32, #tpu.memory_space<vmem>>, vector<8x1x128xf32>,
    %c0_60 = arith.constant 0 : index
    %c6 = arith.constant 6 : index
    %c0_61 = arith.constant 0 : index
    %218 = vector.load %arg2[%c0_60, %c6, %c0_61] : memref<8x16x384xbf16, #tpu.memory_space<vmem>>, vector<8x1x384xbf16>
    %219 = vector.shape_cast %218 : vector<8x1x384xbf16> to vector<8x384xbf16>
    %220 = arith.extf %219 : vector<8x384xbf16> to vector<8x384xf32>
    %221 = arith.truncf %214 : vector<8x128xf32> to vector<8x128xbf16>
    %cst_62 = arith.constant dense<0.000000e+00> : vector<8x384xf32>
    %222 = tpu.matmul %221, %4, %cst_62 {dimension_numbers = #tpu.dot_dimension_numbers<[1], [0], [0], [1], [0, 0, 1, 1], [], []>} : vector<8x128xbf16>, vector<128x384xbf16>, vector<8x384xf32> -> vector<8x384xf32>
    %223 = arith.addf %222, %7 : vector<8x384xf32>
    %224 = vector.extract_strided_slice %220 {offsets = [0, 0], sizes = [8, 128], strides = [1, 1]} : vector<8x384xf32> to vector<8x128xf32>
    %225 = vector.extract_strided_slice %223 {offsets = [0, 0], sizes = [8, 128], strides = [1, 1]} : vector<8x384xf32> to vector<8x128xf32>
    %226 = arith.addf %224, %225 : vector<8x128xf32>
    %227 = arith.negf %226 : vector<8x128xf32>
    %228 = math.exp %227 : vector<8x128xf32>
    %cst_63 = arith.constant 1.000000e+00 : f32
    %229 = vector.broadcast %cst_63 : f32 to vector<8x128xf32>
    %230 = arith.addf %229, %228 : vector<8x128xf32>
    %231 = arith.divf %229, %230 : vector<8x128xf32>
    %232 = vector.extract_strided_slice %220 {offsets = [0, 128], sizes = [8, 128], strides = [1, 1]} : vector<8x384xf32> to vector<8x128xf32>
    %233 = vector.extract_strided_slice %223 {offsets = [0, 128], sizes = [8, 128], strides = [1, 1]} : vector<8x384xf32> to vector<8x128xf32>
    %234 = arith.addf %232, %233 : vector<8x128xf32>
    %235 = arith.negf %234 : vector<8x128xf32>
    %236 = math.exp %235 : vector<8x128xf32>
    %cst_64 = arith.constant 1.000000e+00 : f32
    %237 = vector.broadcast %cst_64 : f32 to vector<8x128xf32>
    %238 = arith.addf %237, %236 : vector<8x128xf32>
    %239 = arith.divf %237, %238 : vector<8x128xf32>
    %240 = vector.extract_strided_slice %220 {offsets = [0, 256], sizes = [8, 128], strides = [1, 1]} : vector<8x384xf32> to vector<8x128xf32>
    %241 = vector.extract_strided_slice %223 {offsets = [0, 256], sizes = [8, 128], strides = [1, 1]} : vector<8x384xf32> to vector<8x128xf32>
    %242 = arith.mulf %231, %241 : vector<8x128xf32>
    %243 = arith.addf %240, %242 : vector<8x128xf32>
    %244 = math.tanh %243 : vector<8x128xf32>
    %cst_65 = arith.constant 1.000000e+00 : f32
    %245 = vector.broadcast %cst_65 : f32 to vector<8x128xf32>
    %246 = arith.subf %245, %239 : vector<8x128xf32>
    %247 = arith.mulf %246, %244 : vector<8x128xf32>
    %248 = arith.mulf %239, %214 : vector<8x128xf32>
    %249 = arith.addf %247, %248 : vector<8x128xf32>
    %c0_66 = arith.constant 0 : index
    %c6_67 = arith.constant 6 : index
    %c0_68 = arith.constant 0 : index
    %250 = vector.load %arg6[%c0_66, %c6_67, %c0_68] : memref<8x16x128xf32, #tpu.memory_space<vmem>>, vector<8x1x128xf32>
    %251 = vector.shape_cast %250 : vector<8x1x128xf32> to vector<8x128xf32>
    %252 = vector.shape_cast %249 : vector<8x128xf32> to vector<8x1x128xf32>
    tpu.vector_store %arg6[%c0_66, %c6_67, %c0_68], %252 {strides = array<i32>} : memref<8x16x128xf32, #tpu.memory_space<vmem>>, vector<8x1x128xf32>,
    %c0_69 = arith.constant 0 : index
    %c7 = arith.constant 7 : index
    %c0_70 = arith.constant 0 : index
    %253 = vector.load %arg2[%c0_69, %c7, %c0_70] : memref<8x16x384xbf16, #tpu.memory_space<vmem>>, vector<8x1x384xbf16>
    %254 = vector.shape_cast %253 : vector<8x1x384xbf16> to vector<8x384xbf16>
    %255 = arith.extf %254 : vector<8x384xbf16> to vector<8x384xf32>
    %256 = arith.truncf %249 : vector<8x128xf32> to vector<8x128xbf16>
    %cst_71 = arith.constant dense<0.000000e+00> : vector<8x384xf32>
    %257 = tpu.matmul %256, %4, %cst_71 {dimension_numbers = #tpu.dot_dimension_numbers<[1], [0], [0], [1], [0, 0, 1, 1], [], []>} : vector<8x128xbf16>, vector<128x384xbf16>, vector<8x384xf32> -> vector<8x384xf32>
    %258 = arith.addf %257, %7 : vector<8x384xf32>
    %259 = vector.extract_strided_slice %255 {offsets = [0, 0], sizes = [8, 128], strides = [1, 1]} : vector<8x384xf32> to vector<8x128xf32>
    %260 = vector.extract_strided_slice %258 {offsets = [0, 0], sizes = [8, 128], strides = [1, 1]} : vector<8x384xf32> to vector<8x128xf32>
    %261 = arith.addf %259, %260 : vector<8x128xf32>
    %262 = arith.negf %261 : vector<8x128xf32>
    %263 = math.exp %262 : vector<8x128xf32>
    %cst_72 = arith.constant 1.000000e+00 : f32
    %264 = vector.broadcast %cst_72 : f32 to vector<8x128xf32>
    %265 = arith.addf %264, %263 : vector<8x128xf32>
    %266 = arith.divf %264, %265 : vector<8x128xf32>
    %267 = vector.extract_strided_slice %255 {offsets = [0, 128], sizes = [8, 128], strides = [1, 1]} : vector<8x384xf32> to vector<8x128xf32>
    %268 = vector.extract_strided_slice %258 {offsets = [0, 128], sizes = [8, 128], strides = [1, 1]} : vector<8x384xf32> to vector<8x128xf32>
    %269 = arith.addf %267, %268 : vector<8x128xf32>
    %270 = arith.negf %269 : vector<8x128xf32>
    %271 = math.exp %270 : vector<8x128xf32>
    %cst_73 = arith.constant 1.000000e+00 : f32
    %272 = vector.broadcast %cst_73 : f32 to vector<8x128xf32>
    %273 = arith.addf %272, %271 : vector<8x128xf32>
    %274 = arith.divf %272, %273 : vector<8x128xf32>
    %275 = vector.extract_strided_slice %255 {offsets = [0, 256], sizes = [8, 128], strides = [1, 1]} : vector<8x384xf32> to vector<8x128xf32>
    %276 = vector.extract_strided_slice %258 {offsets = [0, 256], sizes = [8, 128], strides = [1, 1]} : vector<8x384xf32> to vector<8x128xf32>
    %277 = arith.mulf %266, %276 : vector<8x128xf32>
    %278 = arith.addf %275, %277 : vector<8x128xf32>
    %279 = math.tanh %278 : vector<8x128xf32>
    %cst_74 = arith.constant 1.000000e+00 : f32
    %280 = vector.broadcast %cst_74 : f32 to vector<8x128xf32>
    %281 = arith.subf %280, %274 : vector<8x128xf32>
    %282 = arith.mulf %281, %279 : vector<8x128xf32>
    %283 = arith.mulf %274, %249 : vector<8x128xf32>
    %284 = arith.addf %282, %283 : vector<8x128xf32>
    %c0_75 = arith.constant 0 : index
    %c7_76 = arith.constant 7 : index
    %c0_77 = arith.constant 0 : index
    %285 = vector.load %arg6[%c0_75, %c7_76, %c0_77] : memref<8x16x128xf32, #tpu.memory_space<vmem>>, vector<8x1x128xf32>
    %286 = vector.shape_cast %285 : vector<8x1x128xf32> to vector<8x128xf32>
    %287 = vector.shape_cast %284 : vector<8x128xf32> to vector<8x1x128xf32>
    tpu.vector_store %arg6[%c0_75, %c7_76, %c0_77], %287 {strides = array<i32>} : memref<8x16x128xf32, #tpu.memory_space<vmem>>, vector<8x1x128xf32>,
    %c0_78 = arith.constant 0 : index
    %c8 = arith.constant 8 : index
    %c0_79 = arith.constant 0 : index
    %288 = vector.load %arg2[%c0_78, %c8, %c0_79] : memref<8x16x384xbf16, #tpu.memory_space<vmem>>, vector<8x1x384xbf16>
    %289 = vector.shape_cast %288 : vector<8x1x384xbf16> to vector<8x384xbf16>
    %290 = arith.extf %289 : vector<8x384xbf16> to vector<8x384xf32>
    %291 = arith.truncf %284 : vector<8x128xf32> to vector<8x128xbf16>
    %cst_80 = arith.constant dense<0.000000e+00> : vector<8x384xf32>
    %292 = tpu.matmul %291, %4, %cst_80 {dimension_numbers = #tpu.dot_dimension_numbers<[1], [0], [0], [1], [0, 0, 1, 1], [], []>} : vector<8x128xbf16>, vector<128x384xbf16>, vector<8x384xf32> -> vector<8x384xf32>
    %293 = arith.addf %292, %7 : vector<8x384xf32>
    %294 = vector.extract_strided_slice %290 {offsets = [0, 0], sizes = [8, 128], strides = [1, 1]} : vector<8x384xf32> to vector<8x128xf32>
    %295 = vector.extract_strided_slice %293 {offsets = [0, 0], sizes = [8, 128], strides = [1, 1]} : vector<8x384xf32> to vector<8x128xf32>
    %296 = arith.addf %294, %295 : vector<8x128xf32>
    %297 = arith.negf %296 : vector<8x128xf32>
    %298 = math.exp %297 : vector<8x128xf32>
    %cst_81 = arith.constant 1.000000e+00 : f32
    %299 = vector.broadcast %cst_81 : f32 to vector<8x128xf32>
    %300 = arith.addf %299, %298 : vector<8x128xf32>
    %301 = arith.divf %299, %300 : vector<8x128xf32>
    %302 = vector.extract_strided_slice %290 {offsets = [0, 128], sizes = [8, 128], strides = [1, 1]} : vector<8x384xf32> to vector<8x128xf32>
    %303 = vector.extract_strided_slice %293 {offsets = [0, 128], sizes = [8, 128], strides = [1, 1]} : vector<8x384xf32> to vector<8x128xf32>
    %304 = arith.addf %302, %303 : vector<8x128xf32>
    %305 = arith.negf %304 : vector<8x128xf32>
    %306 = math.exp %305 : vector<8x128xf32>
    %cst_82 = arith.constant 1.000000e+00 : f32
    %307 = vector.broadcast %cst_82 : f32 to vector<8x128xf32>
    %308 = arith.addf %307, %306 : vector<8x128xf32>
    %309 = arith.divf %307, %308 : vector<8x128xf32>
    %310 = vector.extract_strided_slice %290 {offsets = [0, 256], sizes = [8, 128], strides = [1, 1]} : vector<8x384xf32> to vector<8x128xf32>
    %311 = vector.extract_strided_slice %293 {offsets = [0, 256], sizes = [8, 128], strides = [1, 1]} : vector<8x384xf32> to vector<8x128xf32>
    %312 = arith.mulf %301, %311 : vector<8x128xf32>
    %313 = arith.addf %310, %312 : vector<8x128xf32>
    %314 = math.tanh %313 : vector<8x128xf32>
    %cst_83 = arith.constant 1.000000e+00 : f32
    %315 = vector.broadcast %cst_83 : f32 to vector<8x128xf32>
    %316 = arith.subf %315, %309 : vector<8x128xf32>
    %317 = arith.mulf %316, %314 : vector<8x128xf32>
    %318 = arith.mulf %309, %284 : vector<8x128xf32>
    %319 = arith.addf %317, %318 : vector<8x128xf32>
    %c0_84 = arith.constant 0 : index
    %c8_85 = arith.constant 8 : index
    %c0_86 = arith.constant 0 : index
    %320 = vector.load %arg6[%c0_84, %c8_85, %c0_86] : memref<8x16x128xf32, #tpu.memory_space<vmem>>, vector<8x1x128xf32>
    %321 = vector.shape_cast %320 : vector<8x1x128xf32> to vector<8x128xf32>
    %322 = vector.shape_cast %319 : vector<8x128xf32> to vector<8x1x128xf32>
    tpu.vector_store %arg6[%c0_84, %c8_85, %c0_86], %322 {strides = array<i32>} : memref<8x16x128xf32, #tpu.memory_space<vmem>>, vector<8x1x128xf32>,
    %c0_87 = arith.constant 0 : index
    %c9 = arith.constant 9 : index
    %c0_88 = arith.constant 0 : index
    %323 = vector.load %arg2[%c0_87, %c9, %c0_88] : memref<8x16x384xbf16, #tpu.memory_space<vmem>>, vector<8x1x384xbf16>
    %324 = vector.shape_cast %323 : vector<8x1x384xbf16> to vector<8x384xbf16>
    %325 = arith.extf %324 : vector<8x384xbf16> to vector<8x384xf32>
    %326 = arith.truncf %319 : vector<8x128xf32> to vector<8x128xbf16>
    %cst_89 = arith.constant dense<0.000000e+00> : vector<8x384xf32>
    %327 = tpu.matmul %326, %4, %cst_89 {dimension_numbers = #tpu.dot_dimension_numbers<[1], [0], [0], [1], [0, 0, 1, 1], [], []>} : vector<8x128xbf16>, vector<128x384xbf16>, vector<8x384xf32> -> vector<8x384xf32>
    %328 = arith.addf %327, %7 : vector<8x384xf32>
    %329 = vector.extract_strided_slice %325 {offsets = [0, 0], sizes = [8, 128], strides = [1, 1]} : vector<8x384xf32> to vector<8x128xf32>
    %330 = vector.extract_strided_slice %328 {offsets = [0, 0], sizes = [8, 128], strides = [1, 1]} : vector<8x384xf32> to vector<8x128xf32>
    %331 = arith.addf %329, %330 : vector<8x128xf32>
    %332 = arith.negf %331 : vector<8x128xf32>
    %333 = math.exp %332 : vector<8x128xf32>
    %cst_90 = arith.constant 1.000000e+00 : f32
    %334 = vector.broadcast %cst_90 : f32 to vector<8x128xf32>
    %335 = arith.addf %334, %333 : vector<8x128xf32>
    %336 = arith.divf %334, %335 : vector<8x128xf32>
    %337 = vector.extract_strided_slice %325 {offsets = [0, 128], sizes = [8, 128], strides = [1, 1]} : vector<8x384xf32> to vector<8x128xf32>
    %338 = vector.extract_strided_slice %328 {offsets = [0, 128], sizes = [8, 128], strides = [1, 1]} : vector<8x384xf32> to vector<8x128xf32>
    %339 = arith.addf %337, %338 : vector<8x128xf32>
    %340 = arith.negf %339 : vector<8x128xf32>
    %341 = math.exp %340 : vector<8x128xf32>
    %cst_91 = arith.constant 1.000000e+00 : f32
    %342 = vector.broadcast %cst_91 : f32 to vector<8x128xf32>
    %343 = arith.addf %342, %341 : vector<8x128xf32>
    %344 = arith.divf %342, %343 : vector<8x128xf32>
    %345 = vector.extract_strided_slice %325 {offsets = [0, 256], sizes = [8, 128], strides = [1, 1]} : vector<8x384xf32> to vector<8x128xf32>
    %346 = vector.extract_strided_slice %328 {offsets = [0, 256], sizes = [8, 128], strides = [1, 1]} : vector<8x384xf32> to vector<8x128xf32>
    %347 = arith.mulf %336, %346 : vector<8x128xf32>
    %348 = arith.addf %345, %347 : vector<8x128xf32>
    %349 = math.tanh %348 : vector<8x128xf32>
    %cst_92 = arith.constant 1.000000e+00 : f32
    %350 = vector.broadcast %cst_92 : f32 to vector<8x128xf32>
    %351 = arith.subf %350, %344 : vector<8x128xf32>
    %352 = arith.mulf %351, %349 : vector<8x128xf32>
    %353 = arith.mulf %344, %319 : vector<8x128xf32>
    %354 = arith.addf %352, %353 : vector<8x128xf32>
    %c0_93 = arith.constant 0 : index
    %c9_94 = arith.constant 9 : index
    %c0_95 = arith.constant 0 : index
    %355 = vector.load %arg6[%c0_93, %c9_94, %c0_95] : memref<8x16x128xf32, #tpu.memory_space<vmem>>, vector<8x1x128xf32>
    %356 = vector.shape_cast %355 : vector<8x1x128xf32> to vector<8x128xf32>
    %357 = vector.shape_cast %354 : vector<8x128xf32> to vector<8x1x128xf32>
    tpu.vector_store %arg6[%c0_93, %c9_94, %c0_95], %357 {strides = array<i32>} : memref<8x16x128xf32, #tpu.memory_space<vmem>>, vector<8x1x128xf32>,
    %c0_96 = arith.constant 0 : index
    %c10 = arith.constant 10 : index
    %c0_97 = arith.constant 0 : index
    %358 = vector.load %arg2[%c0_96, %c10, %c0_97] : memref<8x16x384xbf16, #tpu.memory_space<vmem>>, vector<8x1x384xbf16>
    %359 = vector.shape_cast %358 : vector<8x1x384xbf16> to vector<8x384xbf16>
    %360 = arith.extf %359 : vector<8x384xbf16> to vector<8x384xf32>
    %361 = arith.truncf %354 : vector<8x128xf32> to vector<8x128xbf16>
    %cst_98 = arith.constant dense<0.000000e+00> : vector<8x384xf32>
    %362 = tpu.matmul %361, %4, %cst_98 {dimension_numbers = #tpu.dot_dimension_numbers<[1], [0], [0], [1], [0, 0, 1, 1], [], []>} : vector<8x128xbf16>, vector<128x384xbf16>, vector<8x384xf32> -> vector<8x384xf32>
    %363 = arith.addf %362, %7 : vector<8x384xf32>
    %364 = vector.extract_strided_slice %360 {offsets = [0, 0], sizes = [8, 128], strides = [1, 1]} : vector<8x384xf32> to vector<8x128xf32>
    %365 = vector.extract_strided_slice %363 {offsets = [0, 0], sizes = [8, 128], strides = [1, 1]} : vector<8x384xf32> to vector<8x128xf32>
    %366 = arith.addf %364, %365 : vector<8x128xf32>
    %367 = arith.negf %366 : vector<8x128xf32>
    %368 = math.exp %367 : vector<8x128xf32>
    %cst_99 = arith.constant 1.000000e+00 : f32
    %369 = vector.broadcast %cst_99 : f32 to vector<8x128xf32>
    %370 = arith.addf %369, %368 : vector<8x128xf32>
    %371 = arith.divf %369, %370 : vector<8x128xf32>
    %372 = vector.extract_strided_slice %360 {offsets = [0, 128], sizes = [8, 128], strides = [1, 1]} : vector<8x384xf32> to vector<8x128xf32>
    %373 = vector.extract_strided_slice %363 {offsets = [0, 128], sizes = [8, 128], strides = [1, 1]} : vector<8x384xf32> to vector<8x128xf32>
    %374 = arith.addf %372, %373 : vector<8x128xf32>
    %375 = arith.negf %374 : vector<8x128xf32>
    %376 = math.exp %375 : vector<8x128xf32>
    %cst_100 = arith.constant 1.000000e+00 : f32
    %377 = vector.broadcast %cst_100 : f32 to vector<8x128xf32>
    %378 = arith.addf %377, %376 : vector<8x128xf32>
    %379 = arith.divf %377, %378 : vector<8x128xf32>
    %380 = vector.extract_strided_slice %360 {offsets = [0, 256], sizes = [8, 128], strides = [1, 1]} : vector<8x384xf32> to vector<8x128xf32>
    %381 = vector.extract_strided_slice %363 {offsets = [0, 256], sizes = [8, 128], strides = [1, 1]} : vector<8x384xf32> to vector<8x128xf32>
    %382 = arith.mulf %371, %381 : vector<8x128xf32>
    %383 = arith.addf %380, %382 : vector<8x128xf32>
    %384 = math.tanh %383 : vector<8x128xf32>
    %cst_101 = arith.constant 1.000000e+00 : f32
    %385 = vector.broadcast %cst_101 : f32 to vector<8x128xf32>
    %386 = arith.subf %385, %379 : vector<8x128xf32>
    %387 = arith.mulf %386, %384 : vector<8x128xf32>
    %388 = arith.mulf %379, %354 : vector<8x128xf32>
    %389 = arith.addf %387, %388 : vector<8x128xf32>
    %c0_102 = arith.constant 0 : index
    %c10_103 = arith.constant 10 : index
    %c0_104 = arith.constant 0 : index
    %390 = vector.load %arg6[%c0_102, %c10_103, %c0_104] : memref<8x16x128xf32, #tpu.memory_space<vmem>>, vector<8x1x128xf32>
    %391 = vector.shape_cast %390 : vector<8x1x128xf32> to vector<8x128xf32>
    %392 = vector.shape_cast %389 : vector<8x128xf32> to vector<8x1x128xf32>
    tpu.vector_store %arg6[%c0_102, %c10_103, %c0_104], %392 {strides = array<i32>} : memref<8x16x128xf32, #tpu.memory_space<vmem>>, vector<8x1x128xf32>,
    %c0_105 = arith.constant 0 : index
    %c11 = arith.constant 11 : index
    %c0_106 = arith.constant 0 : index
    %393 = vector.load %arg2[%c0_105, %c11, %c0_106] : memref<8x16x384xbf16, #tpu.memory_space<vmem>>, vector<8x1x384xbf16>
    %394 = vector.shape_cast %393 : vector<8x1x384xbf16> to vector<8x384xbf16>
    %395 = arith.extf %394 : vector<8x384xbf16> to vector<8x384xf32>
    %396 = arith.truncf %389 : vector<8x128xf32> to vector<8x128xbf16>
    %cst_107 = arith.constant dense<0.000000e+00> : vector<8x384xf32>
    %397 = tpu.matmul %396, %4, %cst_107 {dimension_numbers = #tpu.dot_dimension_numbers<[1], [0], [0], [1], [0, 0, 1, 1], [], []>} : vector<8x128xbf16>, vector<128x384xbf16>, vector<8x384xf32> -> vector<8x384xf32>
    %398 = arith.addf %397, %7 : vector<8x384xf32>
    %399 = vector.extract_strided_slice %395 {offsets = [0, 0], sizes = [8, 128], strides = [1, 1]} : vector<8x384xf32> to vector<8x128xf32>
    %400 = vector.extract_strided_slice %398 {offsets = [0, 0], sizes = [8, 128], strides = [1, 1]} : vector<8x384xf32> to vector<8x128xf32>
    %401 = arith.addf %399, %400 : vector<8x128xf32>
    %402 = arith.negf %401 : vector<8x128xf32>
    %403 = math.exp %402 : vector<8x128xf32>
    %cst_108 = arith.constant 1.000000e+00 : f32
    %404 = vector.broadcast %cst_108 : f32 to vector<8x128xf32>
    %405 = arith.addf %404, %403 : vector<8x128xf32>
    %406 = arith.divf %404, %405 : vector<8x128xf32>
    %407 = vector.extract_strided_slice %395 {offsets = [0, 128], sizes = [8, 128], strides = [1, 1]} : vector<8x384xf32> to vector<8x128xf32>
    %408 = vector.extract_strided_slice %398 {offsets = [0, 128], sizes = [8, 128], strides = [1, 1]} : vector<8x384xf32> to vector<8x128xf32>
    %409 = arith.addf %407, %408 : vector<8x128xf32>
    %410 = arith.negf %409 : vector<8x128xf32>
    %411 = math.exp %410 : vector<8x128xf32>
    %cst_109 = arith.constant 1.000000e+00 : f32
    %412 = vector.broadcast %cst_109 : f32 to vector<8x128xf32>
    %413 = arith.addf %412, %411 : vector<8x128xf32>
    %414 = arith.divf %412, %413 : vector<8x128xf32>
    %415 = vector.extract_strided_slice %395 {offsets = [0, 256], sizes = [8, 128], strides = [1, 1]} : vector<8x384xf32> to vector<8x128xf32>
    %416 = vector.extract_strided_slice %398 {offsets = [0, 256], sizes = [8, 128], strides = [1, 1]} : vector<8x384xf32> to vector<8x128xf32>
    %417 = arith.mulf %406, %416 : vector<8x128xf32>
    %418 = arith.addf %415, %417 : vector<8x128xf32>
    %419 = math.tanh %418 : vector<8x128xf32>
    %cst_110 = arith.constant 1.000000e+00 : f32
    %420 = vector.broadcast %cst_110 : f32 to vector<8x128xf32>
    %421 = arith.subf %420, %414 : vector<8x128xf32>
    %422 = arith.mulf %421, %419 : vector<8x128xf32>
    %423 = arith.mulf %414, %389 : vector<8x128xf32>
    %424 = arith.addf %422, %423 : vector<8x128xf32>
    %c0_111 = arith.constant 0 : index
    %c11_112 = arith.constant 11 : index
    %c0_113 = arith.constant 0 : index
    %425 = vector.load %arg6[%c0_111, %c11_112, %c0_113] : memref<8x16x128xf32, #tpu.memory_space<vmem>>, vector<8x1x128xf32>
    %426 = vector.shape_cast %425 : vector<8x1x128xf32> to vector<8x128xf32>
    %427 = vector.shape_cast %424 : vector<8x128xf32> to vector<8x1x128xf32>
    tpu.vector_store %arg6[%c0_111, %c11_112, %c0_113], %427 {strides = array<i32>} : memref<8x16x128xf32, #tpu.memory_space<vmem>>, vector<8x1x128xf32>,
    %c0_114 = arith.constant 0 : index
    %c12 = arith.constant 12 : index
    %c0_115 = arith.constant 0 : index
    %428 = vector.load %arg2[%c0_114, %c12, %c0_115] : memref<8x16x384xbf16, #tpu.memory_space<vmem>>, vector<8x1x384xbf16>
    %429 = vector.shape_cast %428 : vector<8x1x384xbf16> to vector<8x384xbf16>
    %430 = arith.extf %429 : vector<8x384xbf16> to vector<8x384xf32>
    %431 = arith.truncf %424 : vector<8x128xf32> to vector<8x128xbf16>
    %cst_116 = arith.constant dense<0.000000e+00> : vector<8x384xf32>
    %432 = tpu.matmul %431, %4, %cst_116 {dimension_numbers = #tpu.dot_dimension_numbers<[1], [0], [0], [1], [0, 0, 1, 1], [], []>} : vector<8x128xbf16>, vector<128x384xbf16>, vector<8x384xf32> -> vector<8x384xf32>
    %433 = arith.addf %432, %7 : vector<8x384xf32>
    %434 = vector.extract_strided_slice %430 {offsets = [0, 0], sizes = [8, 128], strides = [1, 1]} : vector<8x384xf32> to vector<8x128xf32>
    %435 = vector.extract_strided_slice %433 {offsets = [0, 0], sizes = [8, 128], strides = [1, 1]} : vector<8x384xf32> to vector<8x128xf32>
    %436 = arith.addf %434, %435 : vector<8x128xf32>
    %437 = arith.negf %436 : vector<8x128xf32>
    %438 = math.exp %437 : vector<8x128xf32>
    %cst_117 = arith.constant 1.000000e+00 : f32
    %439 = vector.broadcast %cst_117 : f32 to vector<8x128xf32>
    %440 = arith.addf %439, %438 : vector<8x128xf32>
    %441 = arith.divf %439, %440 : vector<8x128xf32>
    %442 = vector.extract_strided_slice %430 {offsets = [0, 128], sizes = [8, 128], strides = [1, 1]} : vector<8x384xf32> to vector<8x128xf32>
    %443 = vector.extract_strided_slice %433 {offsets = [0, 128], sizes = [8, 128], strides = [1, 1]} : vector<8x384xf32> to vector<8x128xf32>
    %444 = arith.addf %442, %443 : vector<8x128xf32>
    %445 = arith.negf %444 : vector<8x128xf32>
    %446 = math.exp %445 : vector<8x128xf32>
    %cst_118 = arith.constant 1.000000e+00 : f32
    %447 = vector.broadcast %cst_118 : f32 to vector<8x128xf32>
    %448 = arith.addf %447, %446 : vector<8x128xf32>
    %449 = arith.divf %447, %448 : vector<8x128xf32>
    %450 = vector.extract_strided_slice %430 {offsets = [0, 256], sizes = [8, 128], strides = [1, 1]} : vector<8x384xf32> to vector<8x128xf32>
    %451 = vector.extract_strided_slice %433 {offsets = [0, 256], sizes = [8, 128], strides = [1, 1]} : vector<8x384xf32> to vector<8x128xf32>
    %452 = arith.mulf %441, %451 : vector<8x128xf32>
    %453 = arith.addf %450, %452 : vector<8x128xf32>
    %454 = math.tanh %453 : vector<8x128xf32>
    %cst_119 = arith.constant 1.000000e+00 : f32
    %455 = vector.broadcast %cst_119 : f32 to vector<8x128xf32>
    %456 = arith.subf %455, %449 : vector<8x128xf32>
    %457 = arith.mulf %456, %454 : vector<8x128xf32>
    %458 = arith.mulf %449, %424 : vector<8x128xf32>
    %459 = arith.addf %457, %458 : vector<8x128xf32>
    %c0_120 = arith.constant 0 : index
    %c12_121 = arith.constant 12 : index
    %c0_122 = arith.constant 0 : index
    %460 = vector.load %arg6[%c0_120, %c12_121, %c0_122] : memref<8x16x128xf32, #tpu.memory_space<vmem>>, vector<8x1x128xf32>
    %461 = vector.shape_cast %460 : vector<8x1x128xf32> to vector<8x128xf32>
    %462 = vector.shape_cast %459 : vector<8x128xf32> to vector<8x1x128xf32>
    tpu.vector_store %arg6[%c0_120, %c12_121, %c0_122], %462 {strides = array<i32>} : memref<8x16x128xf32, #tpu.memory_space<vmem>>, vector<8x1x128xf32>,
    %c0_123 = arith.constant 0 : index
    %c13 = arith.constant 13 : index
    %c0_124 = arith.constant 0 : index
    %463 = vector.load %arg2[%c0_123, %c13, %c0_124] : memref<8x16x384xbf16, #tpu.memory_space<vmem>>, vector<8x1x384xbf16>
    %464 = vector.shape_cast %463 : vector<8x1x384xbf16> to vector<8x384xbf16>
    %465 = arith.extf %464 : vector<8x384xbf16> to vector<8x384xf32>
    %466 = arith.truncf %459 : vector<8x128xf32> to vector<8x128xbf16>
    %cst_125 = arith.constant dense<0.000000e+00> : vector<8x384xf32>
    %467 = tpu.matmul %466, %4, %cst_125 {dimension_numbers = #tpu.dot_dimension_numbers<[1], [0], [0], [1], [0, 0, 1, 1], [], []>} : vector<8x128xbf16>, vector<128x384xbf16>, vector<8x384xf32> -> vector<8x384xf32>
    %468 = arith.addf %467, %7 : vector<8x384xf32>
    %469 = vector.extract_strided_slice %465 {offsets = [0, 0], sizes = [8, 128], strides = [1, 1]} : vector<8x384xf32> to vector<8x128xf32>
    %470 = vector.extract_strided_slice %468 {offsets = [0, 0], sizes = [8, 128], strides = [1, 1]} : vector<8x384xf32> to vector<8x128xf32>
    %471 = arith.addf %469, %470 : vector<8x128xf32>
    %472 = arith.negf %471 : vector<8x128xf32>
    %473 = math.exp %472 : vector<8x128xf32>
    %cst_126 = arith.constant 1.000000e+00 : f32
    %474 = vector.broadcast %cst_126 : f32 to vector<8x128xf32>
    %475 = arith.addf %474, %473 : vector<8x128xf32>
    %476 = arith.divf %474, %475 : vector<8x128xf32>
    %477 = vector.extract_strided_slice %465 {offsets = [0, 128], sizes = [8, 128], strides = [1, 1]} : vector<8x384xf32> to vector<8x128xf32>
    %478 = vector.extract_strided_slice %468 {offsets = [0, 128], sizes = [8, 128], strides = [1, 1]} : vector<8x384xf32> to vector<8x128xf32>
    %479 = arith.addf %477, %478 : vector<8x128xf32>
    %480 = arith.negf %479 : vector<8x128xf32>
    %481 = math.exp %480 : vector<8x128xf32>
    %cst_127 = arith.constant 1.000000e+00 : f32
    %482 = vector.broadcast %cst_127 : f32 to vector<8x128xf32>
    %483 = arith.addf %482, %481 : vector<8x128xf32>
    %484 = arith.divf %482, %483 : vector<8x128xf32>
    %485 = vector.extract_strided_slice %465 {offsets = [0, 256], sizes = [8, 128], strides = [1, 1]} : vector<8x384xf32> to vector<8x128xf32>
    %486 = vector.extract_strided_slice %468 {offsets = [0, 256], sizes = [8, 128], strides = [1, 1]} : vector<8x384xf32> to vector<8x128xf32>
    %487 = arith.mulf %476, %486 : vector<8x128xf32>
    %488 = arith.addf %485, %487 : vector<8x128xf32>
    %489 = math.tanh %488 : vector<8x128xf32>
    %cst_128 = arith.constant 1.000000e+00 : f32
    %490 = vector.broadcast %cst_128 : f32 to vector<8x128xf32>
    %491 = arith.subf %490, %484 : vector<8x128xf32>
    %492 = arith.mulf %491, %489 : vector<8x128xf32>
    %493 = arith.mulf %484, %459 : vector<8x128xf32>
    %494 = arith.addf %492, %493 : vector<8x128xf32>
    %c0_129 = arith.constant 0 : index
    %c13_130 = arith.constant 13 : index
    %c0_131 = arith.constant 0 : index
    %495 = vector.load %arg6[%c0_129, %c13_130, %c0_131] : memref<8x16x128xf32, #tpu.memory_space<vmem>>, vector<8x1x128xf32>
    %496 = vector.shape_cast %495 : vector<8x1x128xf32> to vector<8x128xf32>
    %497 = vector.shape_cast %494 : vector<8x128xf32> to vector<8x1x128xf32>
    tpu.vector_store %arg6[%c0_129, %c13_130, %c0_131], %497 {strides = array<i32>} : memref<8x16x128xf32, #tpu.memory_space<vmem>>, vector<8x1x128xf32>,
    %c0_132 = arith.constant 0 : index
    %c14 = arith.constant 14 : index
    %c0_133 = arith.constant 0 : index
    %498 = vector.load %arg2[%c0_132, %c14, %c0_133] : memref<8x16x384xbf16, #tpu.memory_space<vmem>>, vector<8x1x384xbf16>
    %499 = vector.shape_cast %498 : vector<8x1x384xbf16> to vector<8x384xbf16>
    %500 = arith.extf %499 : vector<8x384xbf16> to vector<8x384xf32>
    %501 = arith.truncf %494 : vector<8x128xf32> to vector<8x128xbf16>
    %cst_134 = arith.constant dense<0.000000e+00> : vector<8x384xf32>
    %502 = tpu.matmul %501, %4, %cst_134 {dimension_numbers = #tpu.dot_dimension_numbers<[1], [0], [0], [1], [0, 0, 1, 1], [], []>} : vector<8x128xbf16>, vector<128x384xbf16>, vector<8x384xf32> -> vector<8x384xf32>
    %503 = arith.addf %502, %7 : vector<8x384xf32>
    %504 = vector.extract_strided_slice %500 {offsets = [0, 0], sizes = [8, 128], strides = [1, 1]} : vector<8x384xf32> to vector<8x128xf32>
    %505 = vector.extract_strided_slice %503 {offsets = [0, 0], sizes = [8, 128], strides = [1, 1]} : vector<8x384xf32> to vector<8x128xf32>
    %506 = arith.addf %504, %505 : vector<8x128xf32>
    %507 = arith.negf %506 : vector<8x128xf32>
    %508 = math.exp %507 : vector<8x128xf32>
    %cst_135 = arith.constant 1.000000e+00 : f32
    %509 = vector.broadcast %cst_135 : f32 to vector<8x128xf32>
    %510 = arith.addf %509, %508 : vector<8x128xf32>
    %511 = arith.divf %509, %510 : vector<8x128xf32>
    %512 = vector.extract_strided_slice %500 {offsets = [0, 128], sizes = [8, 128], strides = [1, 1]} : vector<8x384xf32> to vector<8x128xf32>
    %513 = vector.extract_strided_slice %503 {offsets = [0, 128], sizes = [8, 128], strides = [1, 1]} : vector<8x384xf32> to vector<8x128xf32>
    %514 = arith.addf %512, %513 : vector<8x128xf32>
    %515 = arith.negf %514 : vector<8x128xf32>
    %516 = math.exp %515 : vector<8x128xf32>
    %cst_136 = arith.constant 1.000000e+00 : f32
    %517 = vector.broadcast %cst_136 : f32 to vector<8x128xf32>
    %518 = arith.addf %517, %516 : vector<8x128xf32>
    %519 = arith.divf %517, %518 : vector<8x128xf32>
    %520 = vector.extract_strided_slice %500 {offsets = [0, 256], sizes = [8, 128], strides = [1, 1]} : vector<8x384xf32> to vector<8x128xf32>
    %521 = vector.extract_strided_slice %503 {offsets = [0, 256], sizes = [8, 128], strides = [1, 1]} : vector<8x384xf32> to vector<8x128xf32>
    %522 = arith.mulf %511, %521 : vector<8x128xf32>
    %523 = arith.addf %520, %522 : vector<8x128xf32>
    %524 = math.tanh %523 : vector<8x128xf32>
    %cst_137 = arith.constant 1.000000e+00 : f32
    %525 = vector.broadcast %cst_137 : f32 to vector<8x128xf32>
    %526 = arith.subf %525, %519 : vector<8x128xf32>
    %527 = arith.mulf %526, %524 : vector<8x128xf32>
    %528 = arith.mulf %519, %494 : vector<8x128xf32>
    %529 = arith.addf %527, %528 : vector<8x128xf32>
    %c0_138 = arith.constant 0 : index
    %c14_139 = arith.constant 14 : index
    %c0_140 = arith.constant 0 : index
    %530 = vector.load %arg6[%c0_138, %c14_139, %c0_140] : memref<8x16x128xf32, #tpu.memory_space<vmem>>, vector<8x1x128xf32>
    %531 = vector.shape_cast %530 : vector<8x1x128xf32> to vector<8x128xf32>
    %532 = vector.shape_cast %529 : vector<8x128xf32> to vector<8x1x128xf32>
    tpu.vector_store %arg6[%c0_138, %c14_139, %c0_140], %532 {strides = array<i32>} : memref<8x16x128xf32, #tpu.memory_space<vmem>>, vector<8x1x128xf32>,
    %c0_141 = arith.constant 0 : index
    %c15 = arith.constant 15 : index
    %c0_142 = arith.constant 0 : index
    %533 = vector.load %arg2[%c0_141, %c15, %c0_142] : memref<8x16x384xbf16, #tpu.memory_space<vmem>>, vector<8x1x384xbf16>
    %534 = vector.shape_cast %533 : vector<8x1x384xbf16> to vector<8x384xbf16>
    %535 = arith.extf %534 : vector<8x384xbf16> to vector<8x384xf32>
    %536 = arith.truncf %529 : vector<8x128xf32> to vector<8x128xbf16>
    %cst_143 = arith.constant dense<0.000000e+00> : vector<8x384xf32>
    %537 = tpu.matmul %536, %4, %cst_143 {dimension_numbers = #tpu.dot_dimension_numbers<[1], [0], [0], [1], [0, 0, 1, 1], [], []>} : vector<8x128xbf16>, vector<128x384xbf16>, vector<8x384xf32> -> vector<8x384xf32>
    %538 = arith.addf %537, %7 : vector<8x384xf32>
    %539 = vector.extract_strided_slice %535 {offsets = [0, 0], sizes = [8, 128], strides = [1, 1]} : vector<8x384xf32> to vector<8x128xf32>
    %540 = vector.extract_strided_slice %538 {offsets = [0, 0], sizes = [8, 128], strides = [1, 1]} : vector<8x384xf32> to vector<8x128xf32>
    %541 = arith.addf %539, %540 : vector<8x128xf32>
    %542 = arith.negf %541 : vector<8x128xf32>
    %543 = math.exp %542 : vector<8x128xf32>
    %cst_144 = arith.constant 1.000000e+00 : f32
    %544 = vector.broadcast %cst_144 : f32 to vector<8x128xf32>
    %545 = arith.addf %544, %543 : vector<8x128xf32>
    %546 = arith.divf %544, %545 : vector<8x128xf32>
    %547 = vector.extract_strided_slice %535 {offsets = [0, 128], sizes = [8, 128], strides = [1, 1]} : vector<8x384xf32> to vector<8x128xf32>
    %548 = vector.extract_strided_slice %538 {offsets = [0, 128], sizes = [8, 128], strides = [1, 1]} : vector<8x384xf32> to vector<8x128xf32>
    %549 = arith.addf %547, %548 : vector<8x128xf32>
    %550 = arith.negf %549 : vector<8x128xf32>
    %551 = math.exp %550 : vector<8x128xf32>
    %cst_145 = arith.constant 1.000000e+00 : f32
    %552 = vector.broadcast %cst_145 : f32 to vector<8x128xf32>
    %553 = arith.addf %552, %551 : vector<8x128xf32>
    %554 = arith.divf %552, %553 : vector<8x128xf32>
    %555 = vector.extract_strided_slice %535 {offsets = [0, 256], sizes = [8, 128], strides = [1, 1]} : vector<8x384xf32> to vector<8x128xf32>
    %556 = vector.extract_strided_slice %538 {offsets = [0, 256], sizes = [8, 128], strides = [1, 1]} : vector<8x384xf32> to vector<8x128xf32>
    %557 = arith.mulf %546, %556 : vector<8x128xf32>
    %558 = arith.addf %555, %557 : vector<8x128xf32>
    %559 = math.tanh %558 : vector<8x128xf32>
    %cst_146 = arith.constant 1.000000e+00 : f32
    %560 = vector.broadcast %cst_146 : f32 to vector<8x128xf32>
    %561 = arith.subf %560, %554 : vector<8x128xf32>
    %562 = arith.mulf %561, %559 : vector<8x128xf32>
    %563 = arith.mulf %554, %529 : vector<8x128xf32>
    %564 = arith.addf %562, %563 : vector<8x128xf32>
    %c0_147 = arith.constant 0 : index
    %c15_148 = arith.constant 15 : index
    %c0_149 = arith.constant 0 : index
    %565 = vector.load %arg6[%c0_147, %c15_148, %c0_149] : memref<8x16x128xf32, #tpu.memory_space<vmem>>, vector<8x1x128xf32>
    %566 = vector.shape_cast %565 : vector<8x1x128xf32> to vector<8x128xf32>
    %567 = vector.shape_cast %564 : vector<8x128xf32> to vector<8x1x128xf32>
    tpu.vector_store %arg6[%c0_147, %c15_148, %c0_149], %567 {strides = array<i32>} : memref<8x16x128xf32, #tpu.memory_space<vmem>>, vector<8x1x128xf32>,
    %c0_150 = arith.constant 0 : index
    %c0_151 = arith.constant 0 : index
    %568 = vector.load %arg7[%c0_150, %c0_151] : memref<8x128xf32, #tpu.memory_space<vmem>>, vector<8x128xf32>
    tpu.vector_store %arg7[%c0_150, %c0_151], %564 {strides = array<i32>} : memref<8x128xf32, #tpu.memory_space<vmem>>, vector<8x128xf32>,
    %c0_152 = arith.constant 0 : index
    %c0_153 = arith.constant 0 : index
    %569 = vector.load %arg3[%c0_152, %c0_153] : memref<8x1xi32, #tpu.memory_space<vmem>>, vector<8x1xi32>
    %570 = tpu.iota {dimensions = array<i32: 1>} : vector<8x16xi32>
    %c16_i32 = arith.constant 16 : i32
    %571 = arith.muli %arg1, %c16_i32 : i32
    %572 = vector.broadcast %571 : i32 to vector<8x16xi32>
    %573 = arith.addi %570, %572 : vector<8x16xi32>
    %574 = vector.broadcast %569 : vector<8x1xi32> to vector<8x16xi32>
    %575 = arith.cmpi slt, %573, %574 : vector<8x16xi32>
    %576 = arith.extui %575 : vector<8x16xi1> to vector<8x16xi32>
    %577 = arith.sitofp %576 : vector<8x16xi32> to vector<8x16xf32>
    %c0_154 = arith.constant 0 : index
    %c0_155 = arith.constant 0 : index
    %c0_156 = arith.constant 0 : index
    %578 = vector.load %arg6[%c0_154, %c0_155, %c0_156] : memref<8x16x128xf32, #tpu.memory_space<vmem>>, vector<8x16x128xf32>
    %579 = vector.shape_cast %577 : vector<8x16xf32> to vector<8x16x1xf32>
    %580 = vector.broadcast %579 : vector<8x16x1xf32> to vector<8x16x128xf32>
    %581 = arith.mulf %578, %580 : vector<8x16x128xf32>
    %c0_157 = arith.constant 0 : index
    %c0_158 = arith.constant 0 : index
    %c0_159 = arith.constant 0 : index
    %582 = vector.load %arg6[%c0_157, %c0_158, %c0_159] : memref<8x16x128xf32, #tpu.memory_space<vmem>>, vector<8x16x128xf32>
    tpu.vector_store %arg6[%c0_157, %c0_158, %c0_159], %581 {strides = array<i32>} : memref<8x16x128xf32, #tpu.memory_space<vmem>>, vector<8x16x128xf32>,
    return
  }
  func.func @transform_0(%arg0: i32, %arg1: i32) -> (i32, i32, i32) {
    %c0_i32 = arith.constant 0 : i32
    %c0_i32_0 = arith.constant 0 : i32
    return %arg0, %arg1, %c0_i32 : i32, i32, i32
  }
  func.func @transform_1(%arg0: i32, %arg1: i32) -> (i32, i32) {
    %c0_i32 = arith.constant 0 : i32
    %c0_i32_0 = arith.constant 0 : i32
    return %arg0, %c0_i32 : i32, i32
  }
  func.func @transform_2(%arg0: i32, %arg1: i32) -> (i32, i32) {
    %c0_i32 = arith.constant 0 : i32
    %c0_i32_0 = arith.constant 0 : i32
    %c0_i32_1 = arith.constant 0 : i32
    return %c0_i32, %c0_i32_0 : i32, i32
  }
  func.func @transform_3(%arg0: i32, %arg1: i32) -> (i32, i32) {
    %c0_i32 = arith.constant 0 : i32
    %c0_i32_0 = arith.constant 0 : i32
    %c0_i32_1 = arith.constant 0 : i32
    return %c0_i32, %c0_i32_0 : i32, i32
  }
  func.func @transform_4(%arg0: i32, %arg1: i32) -> (i32, i32, i32) {
    %c0_i32 = arith.constant 0 : i32
    %c0_i32_0 = arith.constant 0 : i32
    return %arg0, %arg1, %c0_i32 : i32, i32, i32
  }
}

</mosaic_0001>

<llo_original>
// kernel: tpu_custom_call.1
$region0: #{tpu_custom_call.1}
  #allocation0 [shape = 'u32[]', space=smem, size = 0x4, offset = 0x4, fixed_abs, tag = 'smem constant byte address 0x4 - core index']
  #allocation1 [shape = 'u32[144,128]{1,0:T(1,128)}', space=vmem, size = 0x12000, scoped, tag = 'internal scratch']
  #allocation2 [shape = 'f32[8,128]{1,0:T(8,128)}', space=vmem, size = 0x1000, scoped, tag = 'scratch operand']
  %s0 = inlined_call_operand.hbm [shape: bf16[8,16,384], index: 0, kind: input, shape index: {}]
  %s1 = inlined_call_operand.vmem [shape: s32[8,1], index: 1, kind: input, shape index: {}]
  %s2 = inlined_call_operand.hbm [shape: bf16[128,384], index: 2, kind: input, shape index: {}]
  %s3 = inlined_call_operand.vmem [shape: f32[1,384], index: 3, kind: input, shape index: {}]
  %s4 = inlined_call_operand.hbm [shape: f32[8,16,128], index: 4, kind: output, shape index: {}]
  %s5 = sld [smem:[#allocation0]]
  $region38: #{tpu_custom_call.1} parent=0
    _
  %s7 = ssub.s32 1, %s5
  %s8 = scalar_select 0, %s7, %s5
  $region1: #{tpu_custom_call.1} parent=0
    #allocation3 [shape = 'u8[98304]{0}', space=vmem, size = 0x18000, scoped, tag = 'input window, operand 0, single buffered']
    #allocation4 [shape = 's32[1]{0}', space=sflag, size = 0x4, scoped, tag = 'scoped memory for tpu_custom_call.1']
    #allocation5 [shape = 's32[1]{0}', space=sflag, size = 0x4, scoped, tag = 'scoped memory for tpu_custom_call.1']
    #allocation6 [shape = 'u8[98304]{0}', space=vmem, size = 0x18000, scoped, tag = 'input window, operand 2, single buffered']
    #allocation7 [shape = 's32[1]{0}', space=sflag, size = 0x4, scoped, tag = 'scoped memory for tpu_custom_call.1']
    #allocation8 [shape = 'u8[65536]{0}', space=vmem, size = 0x10000, scoped, tag = 'output window, operand 0, single buffered']
    %9 = vsyncpa [#allocation4], 0
    %10 = vsyncpa [#allocation7], 0
    %11 = vsyncpa [#allocation5], 0
    // Predicated region
    $region2: #{tpu_custom_call.1} parent=1 // pred_check
      _
    $region3: #{tpu_custom_call.1} parent=1 // pred_check_branch
      %13 = sbr.rel (0) target = $region5
    $region4: #{tpu_custom_call.1} parent=1 // pred_region
      %s15 = ssub.s32 3072, 3072
      %16 = vsyncadd [#allocation4], %s15
      %s17 = sshll.u32 [#allocation3], 4
      %s18 = int_to_ptr.vmem [resolvable:$true] %s17
      %23 = dma.hbm_to_vmem [thread:$0]  %s0, 3072, %s18, [#allocation4], 192, 192, 12
    $region5: #{tpu_custom_call.1} parent=1 // pred_fallthru
      _
    // Predicated region
    $region6: #{tpu_custom_call.1} parent=1 // pred_check
      _
    $region7: #{tpu_custom_call.1} parent=1 // pred_check_branch
      %25 = sbr.rel (0) target = $region9
    $region8: #{tpu_custom_call.1} parent=1 // pred_region
      _
    $region9: #{tpu_custom_call.1} parent=1 // pred_fallthru
      _
    // Predicated region
    $region10: #{tpu_custom_call.1} parent=1 // pred_check
      _
    $region11: #{tpu_custom_call.1} parent=1 // pred_check_branch
      %27 = sbr.rel (0) target = $region13
    $region12: #{tpu_custom_call.1} parent=1 // pred_region
      %s29 = ssub.s32 3072, 3072
      %30 = vsyncadd [#allocation7], %s29
      %s31 = sshll.u32 [#allocation6], 4
      %s32 = int_to_ptr.vmem [resolvable:$true] %s31
      %37 = dma.hbm_to_vmem [thread:$0]  %s2, 3072, %s32, [#allocation7], 192, 192, 12
    $region13: #{tpu_custom_call.1} parent=1 // pred_fallthru
      _
    // Predicated region
    $region14: #{tpu_custom_call.1} parent=1 // pred_check
      _
    $region15: #{tpu_custom_call.1} parent=1 // pred_check_branch
      %39 = sbr.rel (0) target = $region17
    $region16: #{tpu_custom_call.1} parent=1 // pred_region
      _
    $region17: #{tpu_custom_call.1} parent=1 // pred_fallthru
      _
    // Predicated region
    $region18: #{tpu_custom_call.1} parent=1 // pred_check
      _
    $region19: #{tpu_custom_call.1} parent=1 // pred_check_branch
      %41 = sbr.rel (0) target = $region21
    $region20: #{tpu_custom_call.1} parent=1 // pred_region
      %42 = dma.done [#allocation4], 3072
    $region21: #{tpu_custom_call.1} parent=1 // pred_fallthru
      _
    // Predicated region
    $region22: #{tpu_custom_call.1} parent=1 // pred_check
      _
    $region23: #{tpu_custom_call.1} parent=1 // pred_check_branch
      %44 = sbr.rel (0) target = $region25
    $region24: #{tpu_custom_call.1} parent=1 // pred_region
      %45 = dma.done [#allocation7], 3072
    $region25: #{tpu_custom_call.1} parent=1 // pred_fallthru
      _
    %p47 = scmp.eq.s32.totalorder 0, 0
    // Predicated region
    $region26: #{tpu_custom_call.1} parent=1 // pred_check
      %p48 = pneg %p47
    $region27: #{tpu_custom_call.1} parent=1 // pred_check_branch
      %50 = sbr.rel (%p48) target = $region29
    $region28: #{tpu_custom_call.1} parent=1 // pred_region
      %51 = vst [vmem:[#allocation2] sm:$0xff] 0.0
    $region29: #{tpu_custom_call.1} parent=1 // pred_fallthru
      _
    %v52 = vld [vmem:[#allocation2] sm:$0xff]
    %v53 = vld [vmem:[#allocation6] sm:$0xff]
    %v54 = vld [vmem:[#allocation6 + $0x8] sm:$0xf]
    %v55 = vld [vmem:[#allocation6 + $0xc] sm:$0xff]
    %v56 = vld [vmem:[#allocation6 + $0x14] sm:$0xf]
    %v57 = vld [vmem:[#allocation6 + $0x18] sm:$0xff]
    %v58 = vld [vmem:[#allocation6 + $0x20] sm:$0xf]
    %v59 = vld [vmem:[#allocation6 + $0x24] sm:$0xff]
    %v60 = vld [vmem:[#allocation6 + $0x2c] sm:$0xf]
    %v61 = vld [vmem:[#allocation6 + $0x30] sm:$0xff]
    %v62 = vld [vmem:[#allocation6 + $0x38] sm:$0xf]
    %v63 = vld [vmem:[#allocation6 + $0x3c] sm:$0xff]
    %v64 = vld [vmem:[#allocation6 + $0x44] sm:$0xf]
    %v65 = vld [vmem:[#allocation6 + $0x48] sm:$0xff]
    %v66 = vld [vmem:[#allocation6 + $0x50] sm:$0xf]
    %v67 = vld [vmem:[#allocation6 + $0x54] sm:$0xff]
    %v68 = vld [vmem:[#allocation6 + $0x5c] sm:$0xf]
    %v69 = vld [vmem:[#allocation6 + $0x60] sm:$0xff]
    %v70 = vld [vmem:[#allocation6 + $0x68] sm:$0xf]
    %v71 = vld [vmem:[#allocation6 + $0x6c] sm:$0xff]
    %v72 = vld [vmem:[#allocation6 + $0x74] sm:$0xf]
    %v73 = vld [vmem:[#allocation6 + $0x78] sm:$0xff]
    %v74 = vld [vmem:[#allocation6 + $0x80] sm:$0xf]
    %v75 = vld [vmem:[#allocation6 + $0x84] sm:$0xff]
    %v76 = vld [vmem:[#allocation6 + $0x8c] sm:$0xf]
    %v77 = vld [vmem:[#allocation6 + $0x90] sm:$0xff]
    %v78 = vld [vmem:[#allocation6 + $0x98] sm:$0xf]
    %v79 = vld [vmem:[#allocation6 + $0x9c] sm:$0xff]
    %v80 = vld [vmem:[#allocation6 + $0xa4] sm:$0xf]
    %v81 = vld [vmem:[#allocation6 + $0xa8] sm:$0xff]
    %v82 = vld [vmem:[#allocation6 + $0xb0] sm:$0xf]
    %v83 = vld [vmem:[#allocation6 + $0xb4] sm:$0xff]
    %v84 = vld [vmem:[#allocation6 + $0xbc] sm:$0xf]
    %v85 = vld [vmem:[%s3] sm:$0x7]
    %v87 = vlaneseq
    %v88 = vshrl.u32 %v87, 7
    %v89 = vsub.s32 0, %v88
    %v90 = vrot.slane %v85, %v89
    %v91 = vlaneseq
    %v92 = vshrl.u32 %v91, 7
    %v93 = vsub.s32 1, %v92
    %v94 = vrot.slane %v85, %v93
    %v95 = vlaneseq
    %v96 = vshrl.u32 %v95, 7
    %v97 = vsub.s32 2, %v96
    %v98 = vrot.slane %v85, %v97
    %v102 = vld [vmem:[#allocation3] sm:$0x11]
    %v103 = vld [vmem:[#allocation3 + $0x8] sm:$0x1]
    %v104 = vld [vmem:[#allocation3 + $0x18] sm:$0x11]
    %v105 = vld [vmem:[#allocation3 + $0x20] sm:$0x1]
    %v106 = vld [vmem:[#allocation3 + $0x30] sm:$0x11]
    %v107 = vld [vmem:[#allocation3 + $0x38] sm:$0x1]
    %v108 = vld [vmem:[#allocation3 + $0x48] sm:$0x11]
    %v109 = vld [vmem:[#allocation3 + $0x50] sm:$0x1]
    %v110 = vld [vmem:[#allocation3 + $0x60] sm:$0x11]
    %v111 = vld [vmem:[#allocation3 + $0x68] sm:$0x1]
    %v112 = vld [vmem:[#allocation3 + $0x78] sm:$0x11]
    %v113 = vld [vmem:[#allocation3 + $0x80] sm:$0x1]
    %v114 = vld [vmem:[#allocation3 + $0x90] sm:$0x11]
    %v115 = vld [vmem:[#allocation3 + $0x98] sm:$0x1]
    %v116 = vld [vmem:[#allocation3 + $0xa8] sm:$0x11]
    %v117 = vld [vmem:[#allocation3 + $0xb0] sm:$0x1]
    %v118 = vunpack.c.l.bf16 %v102
    %v119 = vunpack.c.h.bf16 %v102
    %v120 = vunpack.c.l.bf16 %v103
    %v121 = vunpack.c.l.bf16 %v104
    %v122 = vunpack.c.h.bf16 %v104
    %v123 = vunpack.c.l.bf16 %v105
    %v124 = vunpack.c.l.bf16 %v106
    %v125 = vunpack.c.h.bf16 %v106
    %v126 = vunpack.c.l.bf16 %v107
    %v127 = vunpack.c.l.bf16 %v108
    %v128 = vunpack.c.h.bf16 %v108
    %v129 = vunpack.c.l.bf16 %v109
    %v130 = vunpack.c.l.bf16 %v110
    %v131 = vunpack.c.h.bf16 %v110
    %v132 = vunpack.c.l.bf16 %v111
    %v133 = vunpack.c.l.bf16 %v112
    %v134 = vunpack.c.h.bf16 %v112
    %v135 = vunpack.c.l.bf16 %v113
    %v136 = vunpack.c.l.bf16 %v114
    %v137 = vunpack.c.h.bf16 %v114
    %v138 = vunpack.c.l.bf16 %v115
    %v139 = vunpack.c.l.bf16 %v116
    %v140 = vunpack.c.h.bf16 %v116
    %v141 = vunpack.c.l.bf16 %v117
    %v142 = vpack.c.bf16 %v52, %v52
    %v175 = vunpack.c.l.b16 %v53
    %v176 = vunpack.c.h.b16 %v53
    %v177 = vunpack.c.l.b16 %v54
    %v178 = vunpack.c.l.b16 %v55
    %v179 = vunpack.c.h.b16 %v55
    %v180 = vunpack.c.l.b16 %v56
    %v181 = vunpack.c.l.b16 %v57
    %v182 = vunpack.c.h.b16 %v57
    %v183 = vunpack.c.l.b16 %v58
    %v184 = vunpack.c.l.b16 %v59
    %v185 = vunpack.c.h.b16 %v59
    %v186 = vunpack.c.l.b16 %v60
    %v187 = vunpack.c.l.b16 %v61
    %v188 = vunpack.c.h.b16 %v61
    %v189 = vunpack.c.l.b16 %v62
    %v190 = vunpack.c.l.b16 %v63
    %v191 = vunpack.c.h.b16 %v63
    %v192 = vunpack.c.l.b16 %v64
    %v193 = vunpack.c.l.b16 %v65
    %v194 = vunpack.c.h.b16 %v65
    %v195 = vunpack.c.l.b16 %v66
    %v196 = vunpack.c.l.b16 %v67
    %v197 = vunpack.c.h.b16 %v67
    %v198 = vunpack.c.l.b16 %v68
    %v199 = vunpack.c.l.b16 %v69
    %v200 = vunpack.c.h.b16 %v69
    %v201 = vunpack.c.l.b16 %v70
    %v202 = vunpack.c.l.b16 %v71
    %v203 = vunpack.c.h.b16 %v71
    %v204 = vunpack.c.l.b16 %v72
    %v205 = vunpack.c.l.b16 %v73
    %v206 = vunpack.c.h.b16 %v73
    %v207 = vunpack.c.l.b16 %v74
    %v208 = vunpack.c.l.b16 %v75
    %v209 = vunpack.c.h.b16 %v75
    %v210 = vunpack.c.l.b16 %v76
    %v211 = vunpack.c.l.b16 %v77
    %v212 = vunpack.c.h.b16 %v77
    %v213 = vunpack.c.l.b16 %v78
    %v214 = vunpack.c.l.b16 %v79
    %v215 = vunpack.c.h.b16 %v79
    %v216 = vunpack.c.l.b16 %v80
    %v217 = vunpack.c.l.b16 %v81
    %v218 = vunpack.c.h.b16 %v81
    %v219 = vunpack.c.l.b16 %v82
    %v220 = vunpack.c.l.b16 %v83
    %v221 = vunpack.c.h.b16 %v83
    %v222 = vunpack.c.l.b16 %v84
    %v223 = vpack.c.b16 %v178, %v175
    %v224 = vpack.c.b16 %v179, %v176
    %v225 = vpack.c.b16 %v180, %v177
    %v226 = vpack.c.b16 %v184, %v181
    %v227 = vpack.c.b16 %v185, %v182
    %v228 = vpack.c.b16 %v186, %v183
    %v229 = vpack.c.b16 %v190, %v187
    %v230 = vpack.c.b16 %v191, %v188
    %v231 = vpack.c.b16 %v192, %v189
    %v232 = vpack.c.b16 %v196, %v193
    %v233 = vpack.c.b16 %v197, %v194
    %v234 = vpack.c.b16 %v198, %v195
    %v235 = vpack.c.b16 %v202, %v199
    %v236 = vpack.c.b16 %v203, %v200
    %v237 = vpack.c.b16 %v204, %v201
    %v238 = vpack.c.b16 %v208, %v205
    %v239 = vpack.c.b16 %v209, %v206
    %v240 = vpack.c.b16 %v210, %v207
    %v241 = vpack.c.b16 %v214, %v211
    %v242 = vpack.c.b16 %v215, %v212
    %v243 = vpack.c.b16 %v216, %v213
    %v244 = vpack.c.b16 %v220, %v217
    %v245 = vpack.c.b16 %v221, %v218
    %v246 = vpack.c.b16 %v222, %v219
    %271 = vmatprep.subr.bf16.mxu0 %v224
    %272 = vmatpush1.bf16.msra.mxu0 %v223
    %273 = vmatprep.subr.bf16.mxu0 %v227
    %274 = vmatpush1.bf16.msra.mxu0 %v226
    %275 = vmatprep.subr.bf16.mxu0 %v230
    %276 = vmatpush1.bf16.msra.mxu0 %v229
    %277 = vmatprep.subr.bf16.mxu0 %v233
    %278 = vmatpush1.bf16.msra.mxu0 %v232
    %279 = vmatprep.subr.bf16.mxu0 %v236
    %280 = vmatpush1.bf16.msra.mxu0 %v235
    %281 = vmatprep.subr.bf16.mxu0 %v239
    %282 = vmatpush1.bf16.msra.mxu0 %v238
    %283 = vmatprep.subr.bf16.mxu0 %v242
    %284 = vmatpush1.bf16.msra.mxu0 %v241
    %285 = vmatprep.subr.bf16.mxu0 %v245
    %286 = vmatpush1.bf16.msra.mxu0 %v244
    %287 = vmatprep.subr.bf16.mxu0 0
    %288 = vmatpush1.bf16.msra.mxu0 0
    %289 = vmatprep.subr.bf16.mxu0 0
    %290 = vmatpush1.bf16.msra.mxu0 0
    %291 = vmatprep.subr.bf16.mxu0 0
    %292 = vmatpush1.bf16.msra.mxu0 0
    %293 = vmatprep.subr.bf16.mxu0 0
    %294 = vmatpush1.bf16.msra.mxu0 0
    %295 = vmatprep.subr.bf16.mxu0 0
    %296 = vmatpush1.bf16.msra.mxu0 0
    %297 = vmatprep.subr.bf16.mxu0 0
    %298 = vmatpush1.bf16.msra.mxu0 0
    %299 = vmatprep.subr.bf16.mxu0 0
    %300 = vmatpush1.bf16.msra.mxu0 0
    %301 = vmatprep.subr.bf16.mxu0 0
    %302 = vmatpush1.bf16.msra.mxu0 0
    %303 = vmatprep.mubr.bf16.mxu0 0
    %304 = vmatmul.mubr.bf16.gmra.mrb[0].mxu0 %v142
    %v305 = vpop.f32.mrb[0].mxu0
    %v306 = vadd.f32 %v90, %v305
    %v307 = vpop.f32.mrb[0].mxu0
    %v308 = vadd.f32 %v94, %v307
    %v309 = vpop.f32.mrb[0].mxu0
    %v310 = vpop.f32.mrb[0].mxu0
    %311 = vdwg.mxu0
    %312 = vmatprep.subr.bf16.mxu0 0
    %313 = vmatpush1.bf16.msra.mxu0 %v225
    %314 = vmatprep.subr.bf16.mxu0 0
    %315 = vmatpush1.bf16.msra.mxu0 %v228
    %316 = vmatprep.subr.bf16.mxu0 0
    %317 = vmatpush1.bf16.msra.mxu0 %v231
    %318 = vmatprep.subr.bf16.mxu0 0
    %319 = vmatpush1.bf16.msra.mxu0 %v234
    %320 = vmatprep.subr.bf16.mxu0 0
    %321 = vmatpush1.bf16.msra.mxu0 %v237
    %322 = vmatprep.subr.bf16.mxu0 0
    %323 = vmatpush1.bf16.msra.mxu0 %v240
    %324 = vmatprep.subr.bf16.mxu0 0
    %325 = vmatpush1.bf16.msra.mxu0 %v243
    %326 = vmatprep.subr.bf16.mxu0 0
    %327 = vmatpush1.bf16.msra.mxu0 %v246
    %328 = vmatprep.subr.bf16.mxu0 0
    %329 = vmatpush1.bf16.msra.mxu0 0
    %330 = vmatprep.subr.bf16.mxu0 0
    %331 = vmatpush1.bf16.msra.mxu0 0
    %332 = vmatprep.subr.bf16.mxu0 0
    %333 = vmatpush1.bf16.msra.mxu0 0
    %334 = vmatprep.subr.bf16.mxu0 0
    %335 = vmatpush1.bf16.msra.mxu0 0
    %336 = vmatprep.subr.bf16.mxu0 0
    %337 = vmatpush1.bf16.msra.mxu0 0
    %338 = vmatprep.subr.bf16.mxu0 0
    %339 = vmatpush1.bf16.msra.mxu0 0
    %340 = vmatprep.subr.bf16.mxu0 0
    %341 = vmatpush1.bf16.msra.mxu0 0
    %342 = vmatprep.subr.bf16.mxu0 0
    %343 = vmatpush1.bf16.msra.mxu0 0
    %344 = vmatprep.mubr.bf16.mxu0 0
    %345 = vmatmul.mubr.bf16.gmra.mrb[0].mxu0 %v142
    %v346 = vpop.f32.mrb[0].mxu0
    %v347 = vadd.f32 %v98, %v346
    %v348 = vpop.f32.mrb[0].mxu0
    %v349 = vpop.f32.mrb[0].mxu0
    %v350 = vpop.f32.mrb[0].mxu0
    %351 = vdwg.mxu0
    %v353 = vrot.slane %v306, 1
    %v354 = vrot.slane %v306, 2
    %v355 = vrot.slane %v306, 3
    %v356 = vrot.slane %v306, 4
    %v357 = vrot.slane %v306, 5
    %v358 = vrot.slane %v306, 6
    %v359 = vrot.slane %v306, 7
    %v368 = vadd.f32 %v118, %v306
    %v369 = vadd.f32 %v121, %v353
    %v370 = vadd.f32 %v124, %v354
    %v371 = vadd.f32 %v127, %v355
    %v372 = vadd.f32 %v130, %v356
    %v373 = vadd.f32 %v133, %v357
    %v374 = vadd.f32 %v136, %v358
    %v375 = vadd.f32 %v139, %v359
    %v376 = vxor.u32 %v368, 2147483648
    %v377 = vxor.u32 %v369, 2147483648
    %v378 = vxor.u32 %v370, 2147483648
    %v379 = vxor.u32 %v371, 2147483648
    %v380 = vxor.u32 %v372, 2147483648
    %v381 = vxor.u32 %v373, 2147483648
    %v382 = vxor.u32 %v374, 2147483648
    %v383 = vxor.u32 %v375, 2147483648
    %v384 = vmul.f32 %v376, 1.442695
    %v385 = vpow.pop %v384
    %v386 = vmul.f32 %v377, 1.442695
    %v387 = vpow.pop %v386
    %v388 = vmul.f32 %v378, 1.442695
    %v389 = vpow.pop %v388
    %v390 = vmul.f32 %v379, 1.442695
    %v391 = vpow.pop %v390
    %v392 = vmul.f32 %v380, 1.442695
    %v393 = vpow.pop %v392
    %v394 = vmul.f32 %v381, 1.442695
    %v395 = vpow.pop %v394
    %v396 = vmul.f32 %v382, 1.442695
    %v397 = vpow.pop %v396
    %v398 = vmul.f32 %v383, 1.442695
    %v399 = vpow.pop %v398
    %v400 = vadd.f32 %v385, 1.0
    %v401 = vadd.f32 %v387, 1.0
    %v402 = vadd.f32 %v389, 1.0
    %v403 = vadd.f32 %v391, 1.0
    %v404 = vadd.f32 %v393, 1.0
    %v405 = vadd.f32 %v395, 1.0
    %v406 = vadd.f32 %v397, 1.0
    %v407 = vadd.f32 %v399, 1.0
    %v408 = vrcp.pop %v400
    %v409 = vmul.f32 1.0, %v408
    %v410 = vrcp.pop %v401
    %v411 = vmul.f32 1.0, %v410
    %v412 = vrcp.pop %v402
    %v413 = vmul.f32 1.0, %v412
    %v414 = vrcp.pop %v403
    %v415 = vmul.f32 1.0, %v414
    %v416 = vrcp.pop %v404
    %v417 = vmul.f32 1.0, %v416
    %v418 = vrcp.pop %v405
    %v419 = vmul.f32 1.0, %v418
    %v420 = vrcp.pop %v406
    %v421 = vmul.f32 1.0, %v420
    %v422 = vrcp.pop %v407
    %v423 = vmul.f32 1.0, %v422
    %v425 = vrot.slane %v308, 1
    %v426 = vrot.slane %v308, 2
    %v427 = vrot.slane %v308, 3
    %v428 = vrot.slane %v308, 4
    %v429 = vrot.slane %v308, 5
    %v430 = vrot.slane %v308, 6
    %v431 = vrot.slane %v308, 7
    %v440 = vadd.f32 %v119, %v308
    %v441 = vadd.f32 %v122, %v425
    %v442 = vadd.f32 %v125, %v426
    %v443 = vadd.f32 %v128, %v427
    %v444 = vadd.f32 %v131, %v428
    %v445 = vadd.f32 %v134, %v429
    %v446 = vadd.f32 %v137, %v430
    %v447 = vadd.f32 %v140, %v431
    %v448 = vxor.u32 %v440, 2147483648
    %v449 = vxor.u32 %v441, 2147483648
    %v450 = vxor.u32 %v442, 2147483648
    %v451 = vxor.u32 %v443, 2147483648
    %v452 = vxor.u32 %v444, 2147483648
    %v453 = vxor.u32 %v445, 2147483648
    %v454 = vxor.u32 %v446, 2147483648
    %v455 = vxor.u32 %v447, 2147483648
    %v456 = vmul.f32 %v448, 1.442695
    %v457 = vpow.pop %v456
    %v458 = vmul.f32 %v449, 1.442695
    %v459 = vpow.pop %v458
    %v460 = vmul.f32 %v450, 1.442695
    %v461 = vpow.pop %v460
    %v462 = vmul.f32 %v451, 1.442695
    %v463 = vpow.pop %v462
    %v464 = vmul.f32 %v452, 1.442695
    %v465 = vpow.pop %v464
    %v466 = vmul.f32 %v453, 1.442695
    %v467 = vpow.pop %v466
    %v468 = vmul.f32 %v454, 1.442695
    %v469 = vpow.pop %v468
    %v470 = vmul.f32 %v455, 1.442695
    %v471 = vpow.pop %v470
    %v472 = vadd.f32 %v457, 1.0
    %v473 = vadd.f32 %v459, 1.0
    %v474 = vadd.f32 %v461, 1.0
    %v475 = vadd.f32 %v463, 1.0
    %v476 = vadd.f32 %v465, 1.0
    %v477 = vadd.f32 %v467, 1.0
    %v478 = vadd.f32 %v469, 1.0
    %v479 = vadd.f32 %v471, 1.0
    %v480 = vrcp.pop %v472
    %v481 = vmul.f32 1.0, %v480
    %v482 = vrcp.pop %v473
    %v483 = vmul.f32 1.0, %v482
    %v484 = vrcp.pop %v474
    %v485 = vmul.f32 1.0, %v484
    %v486 = vrcp.pop %v475
    %v487 = vmul.f32 1.0, %v486
    %v488 = vrcp.pop %v476
    %v489 = vmul.f32 1.0, %v488
    %v490 = vrcp.pop %v477
    %v491 = vmul.f32 1.0, %v490
    %v492 = vrcp.pop %v478
    %v493 = vmul.f32 1.0, %v492
    %v494 = vrcp.pop %v479
    %v495 = vmul.f32 1.0, %v494
    %v497 = vrot.slane %v347, 1
    %v498 = vrot.slane %v347, 2
    %v499 = vrot.slane %v347, 3
    %v500 = vrot.slane %v347, 4
    %v501 = vrot.slane %v347, 5
    %v502 = vrot.slane %v347, 6
    %v503 = vrot.slane %v347, 7
    %v512 = vmul.f32 %v409, %v347
    %v513 = vmul.f32 %v411, %v497
    %v514 = vmul.f32 %v413, %v498
    %v515 = vmul.f32 %v415, %v499
    %v516 = vmul.f32 %v417, %v500
    %v517 = vmul.f32 %v419, %v501
    %v518 = vmul.f32 %v421, %v502
    %v519 = vmul.f32 %v423, %v503
    %v520 = vadd.f32 %v120, %v512
    %v521 = vadd.f32 %v123, %v513
    %v522 = vadd.f32 %v126, %v514
    %v523 = vadd.f32 %v129, %v515
    %v524 = vadd.f32 %v132, %v516
    %v525 = vadd.f32 %v135, %v517
    %v526 = vadd.f32 %v138, %v518
    %v527 = vadd.f32 %v141, %v519
    %v528 = vtanh.pop %v520
    %v529 = vtanh.pop %v521
    %v530 = vtanh.pop %v522
    %v531 = vtanh.pop %v523
    %v532 = vtanh.pop %v524
    %v533 = vtanh.pop %v525
    %v534 = vtanh.pop %v526
    %v535 = vtanh.pop %v527
    %v536 = vsub.f32 1.0, %v481
    %v537 = vsub.f32 1.0, %v483
    %v538 = vsub.f32 1.0, %v485
    %v539 = vsub.f32 1.0, %v487
    %v540 = vsub.f32 1.0, %v489
    %v541 = vsub.f32 1.0, %v491
    %v542 = vsub.f32 1.0, %v493
    %v543 = vsub.f32 1.0, %v495
    %v544 = vmul.f32 %v536, %v528
    %v545 = vmul.f32 %v537, %v529
    %v546 = vmul.f32 %v538, %v530
    %v547 = vmul.f32 %v539, %v531
    %v548 = vmul.f32 %v540, %v532
    %v549 = vmul.f32 %v541, %v533
    %v550 = vmul.f32 %v542, %v534
    %v551 = vmul.f32 %v543, %v535
    %v553 = vrot.slane %v52, 1
    %v554 = vrot.slane %v52, 2
    %v555 = vrot.slane %v52, 3
    %v556 = vrot.slane %v52, 4
    %v557 = vrot.slane %v52, 5
    %v558 = vrot.slane %v52, 6
    %v559 = vrot.slane %v52, 7
    %v568 = vmul.f32 %v481, %v52
    %v569 = vmul.f32 %v483, %v553
    %v570 = vmul.f32 %v485, %v554
    %v571 = vmul.f32 %v487, %v555
    %v572 = vmul.f32 %v489, %v556
    %v573 = vmul.f32 %v491, %v557
    %v574 = vmul.f32 %v493, %v558
    %v575 = vmul.f32 %v495, %v559
    %v576 = vadd.f32 %v544, %v568
    %v577 = vadd.f32 %v545, %v569
    %v578 = vadd.f32 %v546, %v570
    %v579 = vadd.f32 %v547, %v571
    %v580 = vadd.f32 %v548, %v572
    %v581 = vadd.f32 %v549, %v573
    %v582 = vadd.f32 %v550, %v574
    %v583 = vadd.f32 %v551, %v575
    %584 = vst [vmem:[#allocation8] sm:$0x1] %v576
    %585 = vst [vmem:[#allocation8 + $0x10] sm:$0x1] %v577
    %586 = vst [vmem:[#allocation8 + $0x20] sm:$0x1] %v578
    %587 = vst [vmem:[#allocation8 + $0x30] sm:$0x1] %v579
    %588 = vst [vmem:[#allocation8 + $0x40] sm:$0x1] %v580
    %589 = vst [vmem:[#allocation8 + $0x50] sm:$0x1] %v581
    %590 = vst [vmem:[#allocation8 + $0x60] sm:$0x1] %v582
    %591 = vst [vmem:[#allocation8 + $0x70] sm:$0x1] %v583
    %v592 = vld [vmem:[#allocation3] sm:$0x11]
    %v593 = vld [vmem:[#allocation3 + $0x8] sm:$0x1]
    %v594 = vld [vmem:[#allocation3 + $0x18] sm:$0x11]
    %v595 = vld [vmem:[#allocation3 + $0x20] sm:$0x1]
    %v596 = vld [vmem:[#allocation3 + $0x30] sm:$0x11]
    %v597 = vld [vmem:[#allocation3 + $0x38] sm:$0x1]
    %v598 = vld [vmem:[#allocation3 + $0x48] sm:$0x11]
    %v599 = vld [vmem:[#allocation3 + $0x50] sm:$0x1]
    %v600 = vld [vmem:[#allocation3 + $0x60] sm:$0x11]
    %v601 = vld [vmem:[#allocation3 + $0x68] sm:$0x1]
    %v602 = vld [vmem:[#allocation3 + $0x78] sm:$0x11]
    %v603 = vld [vmem:[#allocation3 + $0x80] sm:$0x1]
    %v604 = vld [vmem:[#allocation3 + $0x90] sm:$0x11]
    %v605 = vld [vmem:[#allocation3 + $0x98] sm:$0x1]
    %v606 = vld [vmem:[#allocation3 + $0xa8] sm:$0x11]
    %v607 = vld [vmem:[#allocation3 + $0xb0] sm:$0x1]
    %v608 = vunpack.c.l.bf16 %v592
    %v609 = vunpack.c.h.bf16 %v592
    %v610 = vunpack.c.l.bf16 %v593
    %v611 = vunpack.c.l.bf16 %v594
    %v612 = vunpack.c.h.bf16 %v594
    %v613 = vunpack.c.l.bf16 %v595
    %v614 = vunpack.c.l.bf16 %v596
    %v615 = vunpack.c.h.bf16 %v596
    %v616 = vunpack.c.l.bf16 %v597
    %v617 = vunpack.c.l.bf16 %v598
    %v618 = vunpack.c.h.bf16 %v598
    %v619 = vunpack.c.l.bf16 %v599
    %v620 = vunpack.c.l.bf16 %v600
    %v621 = vunpack.c.h.bf16 %v600
    %v622 = vunpack.c.l.bf16 %v601
    %v623 = vunpack.c.l.bf16 %v602
    %v624 = vunpack.c.h.bf16 %v602
    %v625 = vunpack.c.l.bf16 %v603
    %v626 = vunpack.c.l.bf16 %v604
    %v627 = vunpack.c.h.bf16 %v604
    %v628 = vunpack.c.l.bf16 %v605
    %v629 = vunpack.c.l.bf16 %v606
    %v630 = vunpack.c.h.bf16 %v606
    %v631 = vunpack.c.l.bf16 %v607
    %v632 = vpack.c.bf16 %v576, %v576
    %v633 = vpack.c.bf16 %v577, %v577
    %v634 = vpack.c.bf16 %v578, %v578
    %v635 = vpack.c.bf16 %v579, %v579
    %v636 = vpack.c.bf16 %v580, %v580
    %v637 = vpack.c.bf16 %v581, %v581
    %v638 = vpack.c.bf16 %v582, %v582
    %v639 = vpack.c.bf16 %v583, %v583
    %v648 = vunpack.c.l.b16 %v632
    %v649 = vunpack.c.l.b16 %v633
    %v650 = vunpack.c.l.b16 %v634
    %v651 = vunpack.c.l.b16 %v635
    %v652 = vunpack.c.l.b16 %v636
    %v653 = vunpack.c.l.b16 %v637
    %v654 = vunpack.c.l.b16 %v638
    %v655 = vunpack.c.l.b16 %v639
    %v656 = vrot.slane %v649, 7
    %vm657 = vcmask 1041409
    %v658 = vsel %vm657, %v656, %v648
    %v659 = vrot.slane %v650, 6
    %vm660 = vcmask 1042434
    %v661 = vsel %vm660, %v659, %v658
    %v662 = vrot.slane %v651, 5
    %vm663 = vcmask 1043459
    %v664 = vsel %vm663, %v662, %v661
    %v665 = vrot.slane %v652, 4
    %vm666 = vcmask 1044484
    %v667 = vsel %vm666, %v665, %v664
    %v668 = vrot.slane %v653, 3
    %vm669 = vcmask 1045509
    %v670 = vsel %vm669, %v668, %v667
    %v671 = vrot.slane %v654, 2
    %vm672 = vcmask 1046534
    %v673 = vsel %vm672, %v671, %v670
    %v674 = vrot.slane %v655, 1
    %vm675 = vcmask 1047559
    %v676 = vsel %vm675, %v674, %v673
    %v677 = vpack.c.b16 %v676, %v676
    %679 = vmatprep.subr.bf16.mxu0 %v224
    %680 = vmatpush1.bf16.msra.mxu0 %v223
    %681 = vmatprep.subr.bf16.mxu0 %v227
    %682 = vmatpush1.bf16.msra.mxu0 %v226
    %683 = vmatprep.subr.bf16.mxu0 %v230
    %684 = vmatpush1.bf16.msra.mxu0 %v229
    %685 = vmatprep.subr.bf16.mxu0 %v233
    %686 = vmatpush1.bf16.msra.mxu0 %v232
    %687 = vmatprep.subr.bf16.mxu0 %v236
    %688 = vmatpush1.bf16.msra.mxu0 %v235
    %689 = vmatprep.subr.bf16.mxu0 %v239
    %690 = vmatpush1.bf16.msra.mxu0 %v238
    %691 = vmatprep.subr.bf16.mxu0 %v242
    %692 = vmatpush1.bf16.msra.mxu0 %v241
    %693 = vmatprep.subr.bf16.mxu0 %v245
    %694 = vmatpush1.bf16.msra.mxu0 %v244
    %695 = vmatprep.subr.bf16.mxu0 0
    %696 = vmatpush1.bf16.msra.mxu0 0
    %697 = vmatprep.subr.bf16.mxu0 0
    %698 = vmatpush1.bf16.msra.mxu0 0
    %699 = vmatprep.subr.bf16.mxu0 0
    %700 = vmatpush1.bf16.msra.mxu0 0
    %701 = vmatprep.subr.bf16.mxu0 0
    %702 = vmatpush1.bf16.msra.mxu0 0
    %703 = vmatprep.subr.bf16.mxu0 0
    %704 = vmatpush1.bf16.msra.mxu0 0
    %705 = vmatprep.subr.bf16.mxu0 0
    %706 = vmatpush1.bf16.msra.mxu0 0
    %707 = vmatprep.subr.bf16.mxu0 0
    %708 = vmatpush1.bf16.msra.mxu0 0
    %709 = vmatprep.subr.bf16.mxu0 0
    %710 = vmatpush1.bf16.msra.mxu0 0
    %711 = vmatprep.mubr.bf16.mxu0 0
    %712 = vmatmul.mubr.bf16.gmra.mrb[0].mxu0 %v677
    %v713 = vpop.f32.mrb[0].mxu0
    %v714 = vadd.f32 %v90, %v713
    %v715 = vpop.f32.mrb[0].mxu0
    %v716 = vadd.f32 %v94, %v715
    %v717 = vpop.f32.mrb[0].mxu0
    %v718 = vpop.f32.mrb[0].mxu0
    %719 = vdwg.mxu0
    %720 = vmatprep.subr.bf16.mxu0 0
    %721 = vmatpush1.bf16.msra.mxu0 %v225
    %722 = vmatprep.subr.bf16.mxu0 0
    %723 = vmatpush1.bf16.msra.mxu0 %v228
    %724 = vmatprep.subr.bf16.mxu0 0
    %725 = vmatpush1.bf16.msra.mxu0 %v231
    %726 = vmatprep.subr.bf16.mxu0 0
    %727 = vmatpush1.bf16.msra.mxu0 %v234
    %728 = vmatprep.subr.bf16.mxu0 0
    %729 = vmatpush1.bf16.msra.mxu0 %v237
    %730 = vmatprep.subr.bf16.mxu0 0
    %731 = vmatpush1.bf16.msra.mxu0 %v240
    %732 = vmatprep.subr.bf16.mxu0 0
    %733 = vmatpush1.bf16.msra.mxu0 %v243
    %734 = vmatprep.subr.bf16.mxu0 0
    %735 = vmatpush1.bf16.msra.mxu0 %v246
    %736 = vmatprep.subr.bf16.mxu0 0
    %737 = vmatpush1.bf16.msra.mxu0 0
    %738 = vmatprep.subr.bf16.mxu0 0
    %739 = vmatpush1.bf16.msra.mxu0 0
    %740 = vmatprep.subr.bf16.mxu0 0
    %741 = vmatpush1.bf16.msra.mxu0 0
    %742 = vmatprep.subr.bf16.mxu0 0
    %743 = vmatpush1.bf16.msra.mxu0 0
    %744 = vmatprep.subr.bf16.mxu0 0
    %745 = vmatpush1.bf16.msra.mxu0 0
    %746 = vmatprep.subr.bf16.mxu0 0
    %747 = vmatpush1.bf16.msra.mxu0 0
    %748 = vmatprep.subr.bf16.mxu0 0
    %749 = vmatpush1.bf16.msra.mxu0 0
    %750 = vmatprep.subr.bf16.mxu0 0
    %751 = vmatpush1.bf16.msra.mxu0 0
    %752 = vmatprep.mubr.bf16.mxu0 0
    %753 = vmatmul.mubr.bf16.gmra.mrb[0].mxu0 %v677
    %v754 = vpop.f32.mrb[0].mxu0
    %v755 = vadd.f32 %v98, %v754
    %v756 = vpop.f32.mrb[0].mxu0
    %v757 = vpop.f32.mrb[0].mxu0
    %v758 = vpop.f32.mrb[0].mxu0
    %759 = vdwg.mxu0
    %v761 = vrot.slane %v714, 7
    %v762 = vrot.slane %v714, 1
    %v763 = vrot.slane %v714, 2
    %v764 = vrot.slane %v714, 3
    %v765 = vrot.slane %v714, 4
    %v766 = vrot.slane %v714, 5
    %v767 = vrot.slane %v714, 6
    %v776 = vadd.f32 %v608, %v761
    %v777 = vadd.f32 %v611, %v714
    %v778 = vadd.f32 %v614, %v762
    %v779 = vadd.f32 %v617, %v763
    %v780 = vadd.f32 %v620, %v764
    %v781 = vadd.f32 %v623, %v765
    %v782 = vadd.f32 %v626, %v766
    %v783 = vadd.f32 %v629, %v767
    %v784 = vxor.u32 %v776, 2147483648
    %v785 = vxor.u32 %v777, 2147483648
    %v786 = vxor.u32 %v778, 2147483648
    %v787 = vxor.u32 %v779, 2147483648
    %v788 = vxor.u32 %v780, 2147483648
    %v789 = vxor.u32 %v781, 2147483648
    %v790 = vxor.u32 %v782, 2147483648
    %v791 = vxor.u32 %v783, 2147483648
    %v792 = vmul.f32 %v784, 1.442695
    %v793 = vpow.pop %v792
    %v794 = vmul.f32 %v785, 1.442695
    %v795 = vpow.pop %v794
    %v796 = vmul.f32 %v786, 1.442695
    %v797 = vpow.pop %v796
    %v798 = vmul.f32 %v787, 1.442695
    %v799 = vpow.pop %v798
    %v800 = vmul.f32 %v788, 1.442695
    %v801 = vpow.pop %v800
    %v802 = vmul.f32 %v789, 1.442695
    %v803 = vpow.pop %v802
    %v804 = vmul.f32 %v790, 1.442695
    %v805 = vpow.pop %v804
    %v806 = vmul.f32 %v791, 1.442695
    %v807 = vpow.pop %v806
    %v808 = vadd.f32 %v793, 1.0
    %v809 = vadd.f32 %v795, 1.0
    %v810 = vadd.f32 %v797, 1.0
    %v811 = vadd.f32 %v799, 1.0
    %v812 = vadd.f32 %v801, 1.0
    %v813 = vadd.f32 %v803, 1.0
    %v814 = vadd.f32 %v805, 1.0
    %v815 = vadd.f32 %v807, 1.0
    %v816 = vrcp.pop %v808
    %v817 = vmul.f32 1.0, %v816
    %v818 = vrcp.pop %v809
    %v819 = vmul.f32 1.0, %v818
    %v820 = vrcp.pop %v810
    %v821 = vmul.f32 1.0, %v820
    %v822 = vrcp.pop %v811
    %v823 = vmul.f32 1.0, %v822
    %v824 = vrcp.pop %v812
    %v825 = vmul.f32 1.0, %v824
    %v826 = vrcp.pop %v813
    %v827 = vmul.f32 1.0, %v826
    %v828 = vrcp.pop %v814
    %v829 = vmul.f32 1.0, %v828
    %v830 = vrcp.pop %v815
    %v831 = vmul.f32 1.0, %v830
    %v833 = vrot.slane %v716, 7
    %v834 = vrot.slane %v716, 1
    %v835 = vrot.slane %v716, 2
    %v836 = vrot.slane %v716, 3
    %v837 = vrot.slane %v716, 4
    %v838 = vrot.slane %v716, 5
    %v839 = vrot.slane %v716, 6
    %v848 = vadd.f32 %v609, %v833
    %v849 = vadd.f32 %v612, %v716
    %v850 = vadd.f32 %v615, %v834
    %v851 = vadd.f32 %v618, %v835
    %v852 = vadd.f32 %v621, %v836
    %v853 = vadd.f32 %v624, %v837
    %v854 = vadd.f32 %v627, %v838
    %v855 = vadd.f32 %v630, %v839
    %v856 = vxor.u32 %v848, 2147483648
    %v857 = vxor.u32 %v849, 2147483648
    %v858 = vxor.u32 %v850, 2147483648
    %v859 = vxor.u32 %v851, 2147483648
    %v860 = vxor.u32 %v852, 2147483648
    %v861 = vxor.u32 %v853, 2147483648
    %v862 = vxor.u32 %v854, 2147483648
    %v863 = vxor.u32 %v855, 2147483648
    %v864 = vmul.f32 %v856, 1.442695
    %v865 = vpow.pop %v864
    %v866 = vmul.f32 %v857, 1.442695
    %v867 = vpow.pop %v866
    %v868 = vmul.f32 %v858, 1.442695
    %v869 = vpow.pop %v868
    %v870 = vmul.f32 %v859, 1.442695
    %v871 = vpow.pop %v870
    %v872 = vmul.f32 %v860, 1.442695
    %v873 = vpow.pop %v872
    %v874 = vmul.f32 %v861, 1.442695
    %v875 = vpow.pop %v874
    %v876 = vmul.f32 %v862, 1.442695
    %v877 = vpow.pop %v876
    %v878 = vmul.f32 %v863, 1.442695
    %v879 = vpow.pop %v878
    %v880 = vadd.f32 %v865, 1.0
    %v881 = vadd.f32 %v867, 1.0
    %v882 = vadd.f32 %v869, 1.0
    %v883 = vadd.f32 %v871, 1.0
    %v884 = vadd.f32 %v873, 1.0
    %v885 = vadd.f32 %v875, 1.0
    %v886 = vadd.f32 %v877, 1.0
    %v887 = vadd.f32 %v879, 1.0
    %v888 = vrcp.pop %v880
    %v889 = vmul.f32 1.0, %v888
    %v890 = vrcp.pop %v881
    %v891 = vmul.f32 1.0, %v890
    %v892 = vrcp.pop %v882
    %v893 = vmul.f32 1.0, %v892
    %v894 = vrcp.pop %v883
    %v895 = vmul.f32 1.0, %v894
    %v896 = vrcp.pop %v884
    %v897 = vmul.f32 1.0, %v896
    %v898 = vrcp.pop %v885
    %v899 = vmul.f32 1.0, %v898
    %v900 = vrcp.pop %v886
    %v901 = vmul.f32 1.0, %v900
    %v902 = vrcp.pop %v887
    %v903 = vmul.f32 1.0, %v902
    %v905 = vrot.slane %v755, 7
    %v906 = vrot.slane %v755, 1
    %v907 = vrot.slane %v755, 2
    %v908 = vrot.slane %v755, 3
    %v909 = vrot.slane %v755, 4
    %v910 = vrot.slane %v755, 5
    %v911 = vrot.slane %v755, 6
    %v920 = vmul.f32 %v817, %v905
    %v921 = vmul.f32 %v819, %v755
    %v922 = vmul.f32 %v821, %v906
    %v923 = vmul.f32 %v823, %v907
    %v924 = vmul.f32 %v825, %v908
    %v925 = vmul.f32 %v827, %v909
    %v926 = vmul.f32 %v829, %v910
    %v927 = vmul.f32 %v831, %v911
    %v928 = vadd.f32 %v610, %v920
    %v929 = vadd.f32 %v613, %v921
    %v930 = vadd.f32 %v616, %v922
    %v931 = vadd.f32 %v619, %v923
    %v932 = vadd.f32 %v622, %v924
    %v933 = vadd.f32 %v625, %v925
    %v934 = vadd.f32 %v628, %v926
    %v935 = vadd.f32 %v631, %v927
    %v936 = vtanh.pop %v928
    %v937 = vtanh.pop %v929
    %v938 = vtanh.pop %v930
    %v939 = vtanh.pop %v931
    %v940 = vtanh.pop %v932
    %v941 = vtanh.pop %v933
    %v942 = vtanh.pop %v934
    %v943 = vtanh.pop %v935
    %v944 = vsub.f32 1.0, %v889
    %v945 = vsub.f32 1.0, %v891
    %v946 = vsub.f32 1.0, %v893
    %v947 = vsub.f32 1.0, %v895
    %v948 = vsub.f32 1.0, %v897
    %v949 = vsub.f32 1.0, %v899
    %v950 = vsub.f32 1.0, %v901
    %v951 = vsub.f32 1.0, %v903
    %v952 = vmul.f32 %v944, %v936
    %v953 = vmul.f32 %v945, %v937
    %v954 = vmul.f32 %v946, %v938
    %v955 = vmul.f32 %v947, %v939
    %v956 = vmul.f32 %v948, %v940
    %v957 = vmul.f32 %v949, %v941
    %v958 = vmul.f32 %v950, %v942
    %v959 = vmul.f32 %v951, %v943
    %v968 = vrot.slane %v576, 7
    %v969 = vrot.slane %v577, 7
    %v970 = vrot.slane %v578, 7
    %v971 = vrot.slane %v579, 7
    %v972 = vrot.slane %v580, 7
    %v973 = vrot.slane %v581, 7
    %v974 = vrot.slane %v582, 7
    %v975 = vrot.slane %v583, 7
    %v984 = vmul.f32 %v889, %v968
    %v985 = vmul.f32 %v891, %v969
    %v986 = vmul.f32 %v893, %v970
    %v987 = vmul.f32 %v895, %v971
    %v988 = vmul.f32 %v897, %v972
    %v989 = vmul.f32 %v899, %v973
    %v990 = vmul.f32 %v901, %v974
    %v991 = vmul.f32 %v903, %v975
    %v992 = vadd.f32 %v952, %v984
    %v993 = vadd.f32 %v953, %v985
    %v994 = vadd.f32 %v954, %v986
    %v995 = vadd.f32 %v955, %v987
    %v996 = vadd.f32 %v956, %v988
    %v997 = vadd.f32 %v957, %v989
    %v998 = vadd.f32 %v958, %v990
    %v999 = vadd.f32 %v959, %v991
    %1000 = vst [vmem:[#allocation8] sm:$0x2] %v992
    %1001 = vst [vmem:[#allocation8 + $0x10] sm:$0x2] %v993
    %1002 = vst [vmem:[#allocation8 + $0x20] sm:$0x2] %v994
    %1003 = vst [vmem:[#allocation8 + $0x30] sm:$0x2] %v995
    %1004 = vst [vmem:[#allocation8 + $0x40] sm:$0x2] %v996
    %1005 = vst [vmem:[#allocation8 + $0x50] sm:$0x2] %v997
    %1006 = vst [vmem:[#allocation8 + $0x60] sm:$0x2] %v998
    %1007 = vst [vmem:[#allocation8 + $0x70] sm:$0x2] %v999
    %v1008 = vld [vmem:[#allocation3] sm:$0x22]
    %v1009 = vld [vmem:[#allocation3 + $0x8] sm:$0x2]
    %v1010 = vld [vmem:[#allocation3 + $0x18] sm:$0x22]
    %v1011 = vld [vmem:[#allocation3 + $0x20] sm:$0x2]
    %v1012 = vld [vmem:[#allocation3 + $0x30] sm:$0x22]
    %v1013 = vld [vmem:[#allocation3 + $0x38] sm:$0x2]
    %v1014 = vld [vmem:[#allocation3 + $0x48] sm:$0x22]
    %v1015 = vld [vmem:[#allocation3 + $0x50] sm:$0x2]
    %v1016 = vld [vmem:[#allocation3 + $0x60] sm:$0x22]
    %v1017 = vld [vmem:[#allocation3 + $0x68] sm:$0x2]
    %v1018 = vld [vmem:[#allocation3 + $0x78] sm:$0x22]
    %v1019 = vld [vmem:[#allocation3 + $0x80] sm:$0x2]
    %v1020 = vld [vmem:[#allocation3 + $0x90] sm:$0x22]
    %v1021 = vld [vmem:[#allocation3 + $0x98] sm:$0x2]
    %v1022 = vld [vmem:[#allocation3 + $0xa8] sm:$0x22]
    %v1023 = vld [vmem:[#allocation3 + $0xb0] sm:$0x2]
    %v1024 = vunpack.c.l.bf16 %v1008
    %v1025 = vunpack.c.h.bf16 %v1008
    %v1026 = vunpack.c.l.bf16 %v1009
    %v1027 = vunpack.c.l.bf16 %v1010
    %v1028 = vunpack.c.h.bf16 %v1010
    %v1029 = vunpack.c.l.bf16 %v1011
    %v1030 = vunpack.c.l.bf16 %v1012
    %v1031 = vunpack.c.h.bf16 %v1012
    %v1032 = vunpack.c.l.bf16 %v1013
    %v1033 = vunpack.c.l.bf16 %v1014
    %v1034 = vunpack.c.h.bf16 %v1014
    %v1035 = vunpack.c.l.bf16 %v1015
    %v1036 = vunpack.c.l.bf16 %v1016
    %v1037 = vunpack.c.h.bf16 %v1016
    %v1038 = vunpack.c.l.bf16 %v1017
    %v1039 = vunpack.c.l.bf16 %v1018
    %v1040 = vunpack.c.h.bf16 %v1018
    %v1041 = vunpack.c.l.bf16 %v1019
    %v1042 = vunpack.c.l.bf16 %v1020
    %v1043 = vunpack.c.h.bf16 %v1020
    %v1044 = vunpack.c.l.bf16 %v1021
    %v1045 = vunpack.c.l.bf16 %v1022
    %v1046 = vunpack.c.h.bf16 %v1022
    %v1047 = vunpack.c.l.bf16 %v1023
    %v1048 = vpack.c.bf16 %v992, %v992
    %v1049 = vpack.c.bf16 %v993, %v993
    %v1050 = vpack.c.bf16 %v994, %v994
    %v1051 = vpack.c.bf16 %v995, %v995
    %v1052 = vpack.c.bf16 %v996, %v996
    %v1053 = vpack.c.bf16 %v997, %v997
    %v1054 = vpack.c.bf16 %v998, %v998
    %v1055 = vpack.c.bf16 %v999, %v999
    %v1064 = vunpack.c.l.b16 %v1048
    %v1065 = vunpack.c.l.b16 %v1049
    %v1066 = vunpack.c.l.b16 %v1050
    %v1067 = vunpack.c.l.b16 %v1051
    %v1068 = vunpack.c.l.b16 %v1052
    %v1069 = vunpack.c.l.b16 %v1053
    %v1070 = vunpack.c.l.b16 %v1054
    %v1071 = vunpack.c.l.b16 %v1055
    %v1072 = vrot.slane %v1064, 1
    %v1073 = vsel %vm657, %v1065, %v1072
    %v1074 = vrot.slane %v1066, 7
    %v1075 = vsel %vm660, %v1074, %v1073
    %v1076 = vrot.slane %v1067, 6
    %v1077 = vsel %vm663, %v1076, %v1075
    %v1078 = vrot.slane %v1068, 5
    %v1079 = vsel %vm666, %v1078, %v1077
    %v1080 = vrot.slane %v1069, 4
    %v1081 = vsel %vm669, %v1080, %v1079
    %v1082 = vrot.slane %v1070, 3
    %v1083 = vsel %vm672, %v1082, %v1081
    %v1084 = vrot.slane %v1071, 2
    %v1085 = vsel %vm675, %v1084, %v1083
    %v1086 = vpack.c.b16 %v1085, %v1085
    %1088 = vmatprep.subr.bf16.mxu0 %v224
    %1089 = vmatpush1.bf16.msra.mxu0 %v223
    %1090 = vmatprep.subr.bf16.mxu0 %v227
    %1091 = vmatpush1.bf16.msra.mxu0 %v226
    %1092 = vmatprep.subr.bf16.mxu0 %v230
    %1093 = vmatpush1.bf16.msra.mxu0 %v229
    %1094 = vmatprep.subr.bf16.mxu0 %v233
    %1095 = vmatpush1.bf16.msra.mxu0 %v232
    %1096 = vmatprep.subr.bf16.mxu0 %v236
    %1097 = vmatpush1.bf16.msra.mxu0 %v235
    %1098 = vmatprep.subr.bf16.mxu0 %v239
    %1099 = vmatpush1.bf16.msra.mxu0 %v238
    %1100 = vmatprep.subr.bf16.mxu0 %v242
    %1101 = vmatpush1.bf16.msra.mxu0 %v241
    %1102 = vmatprep.subr.bf16.mxu0 %v245
    %1103 = vmatpush1.bf16.msra.mxu0 %v244
    %1104 = vmatprep.subr.bf16.mxu0 0
    %1105 = vmatpush1.bf16.msra.mxu0 0
    %1106 = vmatprep.subr.bf16.mxu0 0
    %1107 = vmatpush1.bf16.msra.mxu0 0
    %1108 = vmatprep.subr.bf16.mxu0 0
    %1109 = vmatpush1.bf16.msra.mxu0 0
    %1110 = vmatprep.subr.bf16.mxu0 0
    %1111 = vmatpush1.bf16.msra.mxu0 0
    %1112 = vmatprep.subr.bf16.mxu0 0
    %1113 = vmatpush1.bf16.msra.mxu0 0
    %1114 = vmatprep.subr.bf16.mxu0 0
    %1115 = vmatpush1.bf16.msra.mxu0 0
    %1116 = vmatprep.subr.bf16.mxu0 0
    %1117 = vmatpush1.bf16.msra.mxu0 0
    %1118 = vmatprep.subr.bf16.mxu0 0
    %1119 = vmatpush1.bf16.msra.mxu0 0
    %1120 = vmatprep.mubr.bf16.mxu0 0
    %1121 = vmatmul.mubr.bf16.gmra.mrb[0].mxu0 %v1086
    %v1122 = vpop.f32.mrb[0].mxu0
    %v1123 = vadd.f32 %v90, %v1122
    %v1124 = vpop.f32.mrb[0].mxu0
    %v1125 = vadd.f32 %v94, %v1124
    %v1126 = vpop.f32.mrb[0].mxu0
    %v1127 = vpop.f32.mrb[0].mxu0
    %1128 = vdwg.mxu0
    %1129 = vmatprep.subr.bf16.mxu0 0
    %1130 = vmatpush1.bf16.msra.mxu0 %v225
    %1131 = vmatprep.subr.bf16.mxu0 0
    %1132 = vmatpush1.bf16.msra.mxu0 %v228
    %1133 = vmatprep.subr.bf16.mxu0 0
    %1134 = vmatpush1.bf16.msra.mxu0 %v231
    %1135 = vmatprep.subr.bf16.mxu0 0
    %1136 = vmatpush1.bf16.msra.mxu0 %v234
    %1137 = vmatprep.subr.bf16.mxu0 0
    %1138 = vmatpush1.bf16.msra.mxu0 %v237
    %1139 = vmatprep.subr.bf16.mxu0 0
    %1140 = vmatpush1.bf16.msra.mxu0 %v240
    %1141 = vmatprep.subr.bf16.mxu0 0
    %1142 = vmatpush1.bf16.msra.mxu0 %v243
    %1143 = vmatprep.subr.bf16.mxu0 0
    %1144 = vmatpush1.bf16.msra.mxu0 %v246
    %1145 = vmatprep.subr.bf16.mxu0 0
    %1146 = vmatpush1.bf16.msra.mxu0 0
    %1147 = vmatprep.subr.bf16.mxu0 0
    %1148 = vmatpush1.bf16.msra.mxu0 0
    %1149 = vmatprep.subr.bf16.mxu0 0
    %1150 = vmatpush1.bf16.msra.mxu0 0
    %1151 = vmatprep.subr.bf16.mxu0 0
    %1152 = vmatpush1.bf16.msra.mxu0 0
    %1153 = vmatprep.subr.bf16.mxu0 0
    %1154 = vmatpush1.bf16.msra.mxu0 0
    %1155 = vmatprep.subr.bf16.mxu0 0
    %1156 = vmatpush1.bf16.msra.mxu0 0
    %1157 = vmatprep.subr.bf16.mxu0 0
    %1158 = vmatpush1.bf16.msra.mxu0 0
    %1159 = vmatprep.subr.bf16.mxu0 0
    %1160 = vmatpush1.bf16.msra.mxu0 0
    %1161 = vmatprep.mubr.bf16.mxu0 0
    %1162 = vmatmul.mubr.bf16.gmra.mrb[0].mxu0 %v1086
    %v1163 = vpop.f32.mrb[0].mxu0
    %v1164 = vadd.f32 %v98, %v1163
    %v1165 = vpop.f32.mrb[0].mxu0
    %v1166 = vpop.f32.mrb[0].mxu0
    %v1167 = vpop.f32.mrb[0].mxu0
    %1168 = vdwg.mxu0
    %v1170 = vrot.slane %v1123, 6
    %v1171 = vrot.slane %v1123, 7
    %v1172 = vrot.slane %v1123, 1
    %v1173 = vrot.slane %v1123, 2
    %v1174 = vrot.slane %v1123, 3
    %v1175 = vrot.slane %v1123, 4
    %v1176 = vrot.slane %v1123, 5
    %v1185 = vadd.f32 %v1024, %v1170
    %v1186 = vadd.f32 %v1027, %v1171
    %v1187 = vadd.f32 %v1030, %v1123
    %v1188 = vadd.f32 %v1033, %v1172
    %v1189 = vadd.f32 %v1036, %v1173
    %v1190 = vadd.f32 %v1039, %v1174
    %v1191 = vadd.f32 %v1042, %v1175
    %v1192 = vadd.f32 %v1045, %v1176
    %v1193 = vxor.u32 %v1185, 2147483648
    %v1194 = vxor.u32 %v1186, 2147483648
    %v1195 = vxor.u32 %v1187, 2147483648
    %v1196 = vxor.u32 %v1188, 2147483648
    %v1197 = vxor.u32 %v1189, 2147483648
    %v1198 = vxor.u32 %v1190, 2147483648
    %v1199 = vxor.u32 %v1191, 2147483648
    %v1200 = vxor.u32 %v1192, 2147483648
    %v1201 = vmul.f32 %v1193, 1.442695
    %v1202 = vpow.pop %v1201
    %v1203 = vmul.f32 %v1194, 1.442695
    %v1204 = vpow.pop %v1203
    %v1205 = vmul.f32 %v1195, 1.442695
    %v1206 = vpow.pop %v1205
    %v1207 = vmul.f32 %v1196, 1.442695
    %v1208 = vpow.pop %v1207
    %v1209 = vmul.f32 %v1197, 1.442695
    %v1210 = vpow.pop %v1209
    %v1211 = vmul.f32 %v1198, 1.442695
    %v1212 = vpow.pop %v1211
    %v1213 = vmul.f32 %v1199, 1.442695
    %v1214 = vpow.pop %v1213
    %v1215 = vmul.f32 %v1200, 1.442695
    %v1216 = vpow.pop %v1215
    %v1217 = vadd.f32 %v1202, 1.0
    %v1218 = vadd.f32 %v1204, 1.0
    %v1219 = vadd.f32 %v1206, 1.0
    %v1220 = vadd.f32 %v1208, 1.0
    %v1221 = vadd.f32 %v1210, 1.0
    %v1222 = vadd.f32 %v1212, 1.0
    %v1223 = vadd.f32 %v1214, 1.0
    %v1224 = vadd.f32 %v1216, 1.0
    %v1225 = vrcp.pop %v1217
    %v1226 = vmul.f32 1.0, %v1225
    %v1227 = vrcp.pop %v1218
    %v1228 = vmul.f32 1.0, %v1227
    %v1229 = vrcp.pop %v1219
    %v1230 = vmul.f32 1.0, %v1229
    %v1231 = vrcp.pop %v1220
    %v1232 = vmul.f32 1.0, %v1231
    %v1233 = vrcp.pop %v1221
    %v1234 = vmul.f32 1.0, %v1233
    %v1235 = vrcp.pop %v1222
    %v1236 = vmul.f32 1.0, %v1235
    %v1237 = vrcp.pop %v1223
    %v1238 = vmul.f32 1.0, %v1237
    %v1239 = vrcp.pop %v1224
    %v1240 = vmul.f32 1.0, %v1239
    %v1242 = vrot.slane %v1125, 6
    %v1243 = vrot.slane %v1125, 7
    %v1244 = vrot.slane %v1125, 1
    %v1245 = vrot.slane %v1125, 2
    %v1246 = vrot.slane %v1125, 3
    %v1247 = vrot.slane %v1125, 4
    %v1248 = vrot.slane %v1125, 5
    %v1257 = vadd.f32 %v1025, %v1242
    %v1258 = vadd.f32 %v1028, %v1243
    %v1259 = vadd.f32 %v1031, %v1125
    %v1260 = vadd.f32 %v1034, %v1244
    %v1261 = vadd.f32 %v1037, %v1245
    %v1262 = vadd.f32 %v1040, %v1246
    %v1263 = vadd.f32 %v1043, %v1247
    %v1264 = vadd.f32 %v1046, %v1248
    %v1265 = vxor.u32 %v1257, 2147483648
    %v1266 = vxor.u32 %v1258, 2147483648
    %v1267 = vxor.u32 %v1259, 2147483648
    %v1268 = vxor.u32 %v1260, 2147483648
    %v1269 = vxor.u32 %v1261, 2147483648
    %v1270 = vxor.u32 %v1262, 2147483648
    %v1271 = vxor.u32 %v1263, 2147483648
    %v1272 = vxor.u32 %v1264, 2147483648
    %v1273 = vmul.f32 %v1265, 1.442695
    %v1274 = vpow.pop %v1273
    %v1275 = vmul.f32 %v1266, 1.442695
    %v1276 = vpow.pop %v1275
    %v1277 = vmul.f32 %v1267, 1.442695
    %v1278 = vpow.pop %v1277
    %v1279 = vmul.f32 %v1268, 1.442695
    %v1280 = vpow.pop %v1279
    %v1281 = vmul.f32 %v1269, 1.442695
    %v1282 = vpow.pop %v1281
    %v1283 = vmul.f32 %v1270, 1.442695
    %v1284 = vpow.pop %v1283
    %v1285 = vmul.f32 %v1271, 1.442695
    %v1286 = vpow.pop %v1285
    %v1287 = vmul.f32 %v1272, 1.442695
    %v1288 = vpow.pop %v1287
    %v1289 = vadd.f32 %v1274, 1.0
    %v1290 = vadd.f32 %v1276, 1.0
    %v1291 = vadd.f32 %v1278, 1.0
    %v1292 = vadd.f32 %v1280, 1.0
    %v1293 = vadd.f32 %v1282, 1.0
    %v1294 = vadd.f32 %v1284, 1.0
    %v1295 = vadd.f32 %v1286, 1.0
    %v1296 = vadd.f32 %v1288, 1.0
    %v1297 = vrcp.pop %v1289
    %v1298 = vmul.f32 1.0, %v1297
    %v1299 = vrcp.pop %v1290
    %v1300 = vmul.f32 1.0, %v1299
    %v1301 = vrcp.pop %v1291
    %v1302 = vmul.f32 1.0, %v1301
    %v1303 = vrcp.pop %v1292
    %v1304 = vmul.f32 1.0, %v1303
    %v1305 = vrcp.pop %v1293
    %v1306 = vmul.f32 1.0, %v1305
    %v1307 = vrcp.pop %v1294
    %v1308 = vmul.f32 1.0, %v1307
    %v1309 = vrcp.pop %v1295
    %v1310 = vmul.f32 1.0, %v1309
    %v1311 = vrcp.pop %v1296
    %v1312 = vmul.f32 1.0, %v1311
    %v1314 = vrot.slane %v1164, 6
    %v1315 = vrot.slane %v1164, 7
    %v1316 = vrot.slane %v1164, 1
    %v1317 = vrot.slane %v1164, 2
    %v1318 = vrot.slane %v1164, 3
    %v1319 = vrot.slane %v1164, 4
    %v1320 = vrot.slane %v1164, 5
    %v1329 = vmul.f32 %v1226, %v1314
    %v1330 = vmul.f32 %v1228, %v1315
    %v1331 = vmul.f32 %v1230, %v1164
    %v1332 = vmul.f32 %v1232, %v1316
    %v1333 = vmul.f32 %v1234, %v1317
    %v1334 = vmul.f32 %v1236, %v1318
    %v1335 = vmul.f32 %v1238, %v1319
    %v1336 = vmul.f32 %v1240, %v1320
    %v1337 = vadd.f32 %v1026, %v1329
    %v1338 = vadd.f32 %v1029, %v1330
    %v1339 = vadd.f32 %v1032, %v1331
    %v1340 = vadd.f32 %v1035, %v1332
    %v1341 = vadd.f32 %v1038, %v1333
    %v1342 = vadd.f32 %v1041, %v1334
    %v1343 = vadd.f32 %v1044, %v1335
    %v1344 = vadd.f32 %v1047, %v1336
    %v1345 = vtanh.pop %v1337
    %v1346 = vtanh.pop %v1338
    %v1347 = vtanh.pop %v1339
    %v1348 = vtanh.pop %v1340
    %v1349 = vtanh.pop %v1341
    %v1350 = vtanh.pop %v1342
    %v1351 = vtanh.pop %v1343
    %v1352 = vtanh.pop %v1344
    %v1353 = vsub.f32 1.0, %v1298
    %v1354 = vsub.f32 1.0, %v1300
    %v1355 = vsub.f32 1.0, %v1302
    %v1356 = vsub.f32 1.0, %v1304
    %v1357 = vsub.f32 1.0, %v1306
    %v1358 = vsub.f32 1.0, %v1308
    %v1359 = vsub.f32 1.0, %v1310
    %v1360 = vsub.f32 1.0, %v1312
    %v1361 = vmul.f32 %v1353, %v1345
    %v1362 = vmul.f32 %v1354, %v1346
    %v1363 = vmul.f32 %v1355, %v1347
    %v1364 = vmul.f32 %v1356, %v1348
    %v1365 = vmul.f32 %v1357, %v1349
    %v1366 = vmul.f32 %v1358, %v1350
    %v1367 = vmul.f32 %v1359, %v1351
    %v1368 = vmul.f32 %v1360, %v1352
    %v1377 = vrot.slane %v992, 7
    %v1378 = vrot.slane %v993, 7
    %v1379 = vrot.slane %v994, 7
    %v1380 = vrot.slane %v995, 7
    %v1381 = vrot.slane %v996, 7
    %v1382 = vrot.slane %v997, 7
    %v1383 = vrot.slane %v998, 7
    %v1384 = vrot.slane %v999, 7
    %v1393 = vmul.f32 %v1298, %v1377
    %v1394 = vmul.f32 %v1300, %v1378
    %v1395 = vmul.f32 %v1302, %v1379
    %v1396 = vmul.f32 %v1304, %v1380
    %v1397 = vmul.f32 %v1306, %v1381
    %v1398 = vmul.f32 %v1308, %v1382
    %v1399 = vmul.f32 %v1310, %v1383
    %v1400 = vmul.f32 %v1312, %v1384
    %v1401 = vadd.f32 %v1361, %v1393
    %v1402 = vadd.f32 %v1362, %v1394
    %v1403 = vadd.f32 %v1363, %v1395
    %v1404 = vadd.f32 %v1364, %v1396
    %v1405 = vadd.f32 %v1365, %v1397
    %v1406 = vadd.f32 %v1366, %v1398
    %v1407 = vadd.f32 %v1367, %v1399
    %v1408 = vadd.f32 %v1368, %v1400
    %1409 = vst [vmem:[#allocation8] sm:$0x4] %v1401
    %1410 = vst [vmem:[#allocation8 + $0x10] sm:$0x4] %v1402
    %1411 = vst [vmem:[#allocation8 + $0x20] sm:$0x4] %v1403
    %1412 = vst [vmem:[#allocation8 + $0x30] sm:$0x4] %v1404
    %1413 = vst [vmem:[#allocation8 + $0x40] sm:$0x4] %v1405
    %1414 = vst [vmem:[#allocation8 + $0x50] sm:$0x4] %v1406
    %1415 = vst [vmem:[#allocation8 + $0x60] sm:$0x4] %v1407
    %1416 = vst [vmem:[#allocation8 + $0x70] sm:$0x4] %v1408
    %v1417 = vld [vmem:[#allocation3] sm:$0x22]
    %v1418 = vld [vmem:[#allocation3 + $0x8] sm:$0x2]
    %v1419 = vld [vmem:[#allocation3 + $0x18] sm:$0x22]
    %v1420 = vld [vmem:[#allocation3 + $0x20] sm:$0x2]
    %v1421 = vld [vmem:[#allocation3 + $0x30] sm:$0x22]
    %v1422 = vld [vmem:[#allocation3 + $0x38] sm:$0x2]
    %v1423 = vld [vmem:[#allocation3 + $0x48] sm:$0x22]
    %v1424 = vld [vmem:[#allocation3 + $0x50] sm:$0x2]
    %v1425 = vld [vmem:[#allocation3 + $0x60] sm:$0x22]
    %v1426 = vld [vmem:[#allocation3 + $0x68] sm:$0x2]
    %v1427 = vld [vmem:[#allocation3 + $0x78] sm:$0x22]
    %v1428 = vld [vmem:[#allocation3 + $0x80] sm:$0x2]
    %v1429 = vld [vmem:[#allocation3 + $0x90] sm:$0x22]
    %v1430 = vld [vmem:[#allocation3 + $0x98] sm:$0x2]
    %v1431 = vld [vmem:[#allocation3 + $0xa8] sm:$0x22]
    %v1432 = vld [vmem:[#allocation3 + $0xb0] sm:$0x2]
    %v1433 = vunpack.c.l.bf16 %v1417
    %v1434 = vunpack.c.h.bf16 %v1417
    %v1435 = vunpack.c.l.bf16 %v1418
    %v1436 = vunpack.c.l.bf16 %v1419
    %v1437 = vunpack.c.h.bf16 %v1419
    %v1438 = vunpack.c.l.bf16 %v1420
    %v1439 = vunpack.c.l.bf16 %v1421
    %v1440 = vunpack.c.h.bf16 %v1421
    %v1441 = vunpack.c.l.bf16 %v1422
    %v1442 = vunpack.c.l.bf16 %v1423
    %v1443 = vunpack.c.h.bf16 %v1423
    %v1444 = vunpack.c.l.bf16 %v1424
    %v1445 = vunpack.c.l.bf16 %v1425
    %v1446 = vunpack.c.h.bf16 %v1425
    %v1447 = vunpack.c.l.bf16 %v1426
    %v1448 = vunpack.c.l.bf16 %v1427
    %v1449 = vunpack.c.h.bf16 %v1427
    %v1450 = vunpack.c.l.bf16 %v1428
    %v1451 = vunpack.c.l.bf16 %v1429
    %v1452 = vunpack.c.h.bf16 %v1429
    %v1453 = vunpack.c.l.bf16 %v1430
    %v1454 = vunpack.c.l.bf16 %v1431
    %v1455 = vunpack.c.h.bf16 %v1431
    %v1456 = vunpack.c.l.bf16 %v1432
    %v1457 = vpack.c.bf16 %v1401, %v1401
    %v1458 = vpack.c.bf16 %v1402, %v1402
    %v1459 = vpack.c.bf16 %v1403, %v1403
    %v1460 = vpack.c.bf16 %v1404, %v1404
    %v1461 = vpack.c.bf16 %v1405, %v1405
    %v1462 = vpack.c.bf16 %v1406, %v1406
    %v1463 = vpack.c.bf16 %v1407, %v1407
    %v1464 = vpack.c.bf16 %v1408, %v1408
    %v1473 = vunpack.c.l.b16 %v1457
    %v1474 = vunpack.c.l.b16 %v1458
    %v1475 = vunpack.c.l.b16 %v1459
    %v1476 = vunpack.c.l.b16 %v1460
    %v1477 = vunpack.c.l.b16 %v1461
    %v1478 = vunpack.c.l.b16 %v1462
    %v1479 = vunpack.c.l.b16 %v1463
    %v1480 = vunpack.c.l.b16 %v1464
    %v1481 = vrot.slane %v1473, 2
    %v1482 = vrot.slane %v1474, 1
    %v1483 = vsel %vm657, %v1482, %v1481
    %v1484 = vsel %vm660, %v1475, %v1483
    %v1485 = vrot.slane %v1476, 7
    %v1486 = vsel %vm663, %v1485, %v1484
    %v1487 = vrot.slane %v1477, 6
    %v1488 = vsel %vm666, %v1487, %v1486
    %v1489 = vrot.slane %v1478, 5
    %v1490 = vsel %vm669, %v1489, %v1488
    %v1491 = vrot.slane %v1479, 4
    %v1492 = vsel %vm672, %v1491, %v1490
    %v1493 = vrot.slane %v1480, 3
    %v1494 = vsel %vm675, %v1493, %v1492
    %v1495 = vpack.c.b16 %v1494, %v1494
    %1497 = vmatprep.subr.bf16.mxu0 %v224
    %1498 = vmatpush1.bf16.msra.mxu0 %v223
    %1499 = vmatprep.subr.bf16.mxu0 %v227
    %1500 = vmatpush1.bf16.msra.mxu0 %v226
    %1501 = vmatprep.subr.bf16.mxu0 %v230
    %1502 = vmatpush1.bf16.msra.mxu0 %v229
    %1503 = vmatprep.subr.bf16.mxu0 %v233
    %1504 = vmatpush1.bf16.msra.mxu0 %v232
    %1505 = vmatprep.subr.bf16.mxu0 %v236
    %1506 = vmatpush1.bf16.msra.mxu0 %v235
    %1507 = vmatprep.subr.bf16.mxu0 %v239
    %1508 = vmatpush1.bf16.msra.mxu0 %v238
    %1509 = vmatprep.subr.bf16.mxu0 %v242
    %1510 = vmatpush1.bf16.msra.mxu0 %v241
    %1511 = vmatprep.subr.bf16.mxu0 %v245
    %1512 = vmatpush1.bf16.msra.mxu0 %v244
    %1513 = vmatprep.subr.bf16.mxu0 0
    %1514 = vmatpush1.bf16.msra.mxu0 0
    %1515 = vmatprep.subr.bf16.mxu0 0
    %1516 = vmatpush1.bf16.msra.mxu0 0
    %1517 = vmatprep.subr.bf16.mxu0 0
    %1518 = vmatpush1.bf16.msra.mxu0 0
    %1519 = vmatprep.subr.bf16.mxu0 0
    %1520 = vmatpush1.bf16.msra.mxu0 0
    %1521 = vmatprep.subr.bf16.mxu0 0
    %1522 = vmatpush1.bf16.msra.mxu0 0
    %1523 = vmatprep.subr.bf16.mxu0 0
    %1524 = vmatpush1.bf16.msra.mxu0 0
    %1525 = vmatprep.subr.bf16.mxu0 0
    %1526 = vmatpush1.bf16.msra.mxu0 0
    %1527 = vmatprep.subr.bf16.mxu0 0
    %1528 = vmatpush1.bf16.msra.mxu0 0
    %1529 = vmatprep.mubr.bf16.mxu0 0
    %1530 = vmatmul.mubr.bf16.gmra.mrb[0].mxu0 %v1495
    %v1531 = vpop.f32.mrb[0].mxu0
    %v1532 = vadd.f32 %v90, %v1531
    %v1533 = vpop.f32.mrb[0].mxu0
    %v1534 = vadd.f32 %v94, %v1533
    %v1535 = vpop.f32.mrb[0].mxu0
    %v1536 = vpop.f32.mrb[0].mxu0
    %1537 = vdwg.mxu0
    %1538 = vmatprep.subr.bf16.mxu0 0
    %1539 = vmatpush1.bf16.msra.mxu0 %v225
    %1540 = vmatprep.subr.bf16.mxu0 0
    %1541 = vmatpush1.bf16.msra.mxu0 %v228
    %1542 = vmatprep.subr.bf16.mxu0 0
    %1543 = vmatpush1.bf16.msra.mxu0 %v231
    %1544 = vmatprep.subr.bf16.mxu0 0
    %1545 = vmatpush1.bf16.msra.mxu0 %v234
    %1546 = vmatprep.subr.bf16.mxu0 0
    %1547 = vmatpush1.bf16.msra.mxu0 %v237
    %1548 = vmatprep.subr.bf16.mxu0 0
    %1549 = vmatpush1.bf16.msra.mxu0 %v240
    %1550 = vmatprep.subr.bf16.mxu0 0
    %1551 = vmatpush1.bf16.msra.mxu0 %v243
    %1552 = vmatprep.subr.bf16.mxu0 0
    %1553 = vmatpush1.bf16.msra.mxu0 %v246
    %1554 = vmatprep.subr.bf16.mxu0 0
    %1555 = vmatpush1.bf16.msra.mxu0 0
    %1556 = vmatprep.subr.bf16.mxu0 0
    %1557 = vmatpush1.bf16.msra.mxu0 0
    %1558 = vmatprep.subr.bf16.mxu0 0
    %1559 = vmatpush1.bf16.msra.mxu0 0
    %1560 = vmatprep.subr.bf16.mxu0 0
    %1561 = vmatpush1.bf16.msra.mxu0 0
    %1562 = vmatprep.subr.bf16.mxu0 0
    %1563 = vmatpush1.bf16.msra.mxu0 0
    %1564 = vmatprep.subr.bf16.mxu0 0
    %1565 = vmatpush1.bf16.msra.mxu0 0
    %1566 = vmatprep.subr.bf16.mxu0 0
    %1567 = vmatpush1.bf16.msra.mxu0 0
    %1568 = vmatprep.subr.bf16.mxu0 0
    %1569 = vmatpush1.bf16.msra.mxu0 0
    %1570 = vmatprep.mubr.bf16.mxu0 0
    %1571 = vmatmul.mubr.bf16.gmra.mrb[0].mxu0 %v1495
    %v1572 = vpop.f32.mrb[0].mxu0
    %v1573 = vadd.f32 %v98, %v1572
    %v1574 = vpop.f32.mrb[0].mxu0
    %v1575 = vpop.f32.mrb[0].mxu0
    %v1576 = vpop.f32.mrb[0].mxu0
    %1577 = vdwg.mxu0
    %v1579 = vrot.slane %v1532, 5
    %v1580 = vrot.slane %v1532, 6
    %v1581 = vrot.slane %v1532, 7
    %v1582 = vrot.slane %v1532, 1
    %v1583 = vrot.slane %v1532, 2
    %v1584 = vrot.slane %v1532, 3
    %v1585 = vrot.slane %v1532, 4
    %v1594 = vadd.f32 %v1433, %v1579
    %v1595 = vadd.f32 %v1436, %v1580
    %v1596 = vadd.f32 %v1439, %v1581
    %v1597 = vadd.f32 %v1442, %v1532
    %v1598 = vadd.f32 %v1445, %v1582
    %v1599 = vadd.f32 %v1448, %v1583
    %v1600 = vadd.f32 %v1451, %v1584
    %v1601 = vadd.f32 %v1454, %v1585
    %v1602 = vxor.u32 %v1594, 2147483648
    %v1603 = vxor.u32 %v1595, 2147483648
    %v1604 = vxor.u32 %v1596, 2147483648
    %v1605 = vxor.u32 %v1597, 2147483648
    %v1606 = vxor.u32 %v1598, 2147483648
    %v1607 = vxor.u32 %v1599, 2147483648
    %v1608 = vxor.u32 %v1600, 2147483648
    %v1609 = vxor.u32 %v1601, 2147483648
    %v1610 = vmul.f32 %v1602, 1.442695
    %v1611 = vpow.pop %v1610
    %v1612 = vmul.f32 %v1603, 1.442695
    %v1613 = vpow.pop %v1612
    %v1614 = vmul.f32 %v1604, 1.442695
    %v1615 = vpow.pop %v1614
    %v1616 = vmul.f32 %v1605, 1.442695
    %v1617 = vpow.pop %v1616
    %v1618 = vmul.f32 %v1606, 1.442695
    %v1619 = vpow.pop %v1618
    %v1620 = vmul.f32 %v1607, 1.442695
    %v1621 = vpow.pop %v1620
    %v1622 = vmul.f32 %v1608, 1.442695
    %v1623 = vpow.pop %v1622
    %v1624 = vmul.f32 %v1609, 1.442695
    %v1625 = vpow.pop %v1624
    %v1626 = vadd.f32 %v1611, 1.0
    %v1627 = vadd.f32 %v1613, 1.0
    %v1628 = vadd.f32 %v1615, 1.0
    %v1629 = vadd.f32 %v1617, 1.0
    %v1630 = vadd.f32 %v1619, 1.0
    %v1631 = vadd.f32 %v1621, 1.0
    %v1632 = vadd.f32 %v1623, 1.0
    %v1633 = vadd.f32 %v1625, 1.0
    %v1634 = vrcp.pop %v1626
    %v1635 = vmul.f32 1.0, %v1634
    %v1636 = vrcp.pop %v1627
    %v1637 = vmul.f32 1.0, %v1636
    %v1638 = vrcp.pop %v1628
    %v1639 = vmul.f32 1.0, %v1638
    %v1640 = vrcp.pop %v1629
    %v1641 = vmul.f32 1.0, %v1640
    %v1642 = vrcp.pop %v1630
    %v1643 = vmul.f32 1.0, %v1642
    %v1644 = vrcp.pop %v1631
    %v1645 = vmul.f32 1.0, %v1644
    %v1646 = vrcp.pop %v1632
    %v1647 = vmul.f32 1.0, %v1646
    %v1648 = vrcp.pop %v1633
    %v1649 = vmul.f32 1.0, %v1648
    %v1651 = vrot.slane %v1534, 5
    %v1652 = vrot.slane %v1534, 6
    %v1653 = vrot.slane %v1534, 7
    %v1654 = vrot.slane %v1534, 1
    %v1655 = vrot.slane %v1534, 2
    %v1656 = vrot.slane %v1534, 3
    %v1657 = vrot.slane %v1534, 4
    %v1666 = vadd.f32 %v1434, %v1651
    %v1667 = vadd.f32 %v1437, %v1652
    %v1668 = vadd.f32 %v1440, %v1653
    %v1669 = vadd.f32 %v1443, %v1534
    %v1670 = vadd.f32 %v1446, %v1654
    %v1671 = vadd.f32 %v1449, %v1655
    %v1672 = vadd.f32 %v1452, %v1656
    %v1673 = vadd.f32 %v1455, %v1657
    %v1674 = vxor.u32 %v1666, 2147483648
    %v1675 = vxor.u32 %v1667, 2147483648
    %v1676 = vxor.u32 %v1668, 2147483648
    %v1677 = vxor.u32 %v1669, 2147483648
    %v1678 = vxor.u32 %v1670, 2147483648
    %v1679 = vxor.u32 %v1671, 2147483648
    %v1680 = vxor.u32 %v1672, 2147483648
    %v1681 = vxor.u32 %v1673, 2147483648
    %v1682 = vmul.f32 %v1674, 1.442695
    %v1683 = vpow.pop %v1682
    %v1684 = vmul.f32 %v1675, 1.442695
    %v1685 = vpow.pop %v1684
    %v1686 = vmul.f32 %v1676, 1.442695
    %v1687 = vpow.pop %v1686
    %v1688 = vmul.f32 %v1677, 1.442695
    %v1689 = vpow.pop %v1688
    %v1690 = vmul.f32 %v1678, 1.442695
    %v1691 = vpow.pop %v1690
    %v1692 = vmul.f32 %v1679, 1.442695
    %v1693 = vpow.pop %v1692
    %v1694 = vmul.f32 %v1680, 1.442695
    %v1695 = vpow.pop %v1694
    %v1696 = vmul.f32 %v1681, 1.442695
    %v1697 = vpow.pop %v1696
    %v1698 = vadd.f32 %v1683, 1.0
    %v1699 = vadd.f32 %v1685, 1.0
    %v1700 = vadd.f32 %v1687, 1.0
    %v1701 = vadd.f32 %v1689, 1.0
    %v1702 = vadd.f32 %v1691, 1.0
    %v1703 = vadd.f32 %v1693, 1.0
    %v1704 = vadd.f32 %v1695, 1.0
    %v1705 = vadd.f32 %v1697, 1.0
    %v1706 = vrcp.pop %v1698
    %v1707 = vmul.f32 1.0, %v1706
    %v1708 = vrcp.pop %v1699
    %v1709 = vmul.f32 1.0, %v1708
    %v1710 = vrcp.pop %v1700
    %v1711 = vmul.f32 1.0, %v1710
    %v1712 = vrcp.pop %v1701
    %v1713 = vmul.f32 1.0, %v1712
    %v1714 = vrcp.pop %v1702
    %v1715 = vmul.f32 1.0, %v1714
    %v1716 = vrcp.pop %v1703
    %v1717 = vmul.f32 1.0, %v1716
    %v1718 = vrcp.pop %v1704
    %v1719 = vmul.f32 1.0, %v1718
    %v1720 = vrcp.pop %v1705
    %v1721 = vmul.f32 1.0, %v1720
    %v1723 = vrot.slane %v1573, 5
    %v1724 = vrot.slane %v1573, 6
    %v1725 = vrot.slane %v1573, 7
    %v1726 = vrot.slane %v1573, 1
    %v1727 = vrot.slane %v1573, 2
    %v1728 = vrot.slane %v1573, 3
    %v1729 = vrot.slane %v1573, 4
    %v1738 = vmul.f32 %v1635, %v1723
    %v1739 = vmul.f32 %v1637, %v1724
    %v1740 = vmul.f32 %v1639, %v1725
    %v1741 = vmul.f32 %v1641, %v1573
    %v1742 = vmul.f32 %v1643, %v1726
    %v1743 = vmul.f32 %v1645, %v1727
    %v1744 = vmul.f32 %v1647, %v1728
    %v1745 = vmul.f32 %v1649, %v1729
    %v1746 = vadd.f32 %v1435, %v1738
    %v1747 = vadd.f32 %v1438, %v1739
    %v1748 = vadd.f32 %v1441, %v1740
    %v1749 = vadd.f32 %v1444, %v1741
    %v1750 = vadd.f32 %v1447, %v1742
    %v1751 = vadd.f32 %v1450, %v1743
    %v1752 = vadd.f32 %v1453, %v1744
    %v1753 = vadd.f32 %v1456, %v1745
    %v1754 = vtanh.pop %v1746
    %v1755 = vtanh.pop %v1747
    %v1756 = vtanh.pop %v1748
    %v1757 = vtanh.pop %v1749
    %v1758 = vtanh.pop %v1750
    %v1759 = vtanh.pop %v1751
    %v1760 = vtanh.pop %v1752
    %v1761 = vtanh.pop %v1753
    %v1762 = vsub.f32 1.0, %v1707
    %v1763 = vsub.f32 1.0, %v1709
    %v1764 = vsub.f32 1.0, %v1711
    %v1765 = vsub.f32 1.0, %v1713
    %v1766 = vsub.f32 1.0, %v1715
    %v1767 = vsub.f32 1.0, %v1717
    %v1768 = vsub.f32 1.0, %v1719
    %v1769 = vsub.f32 1.0, %v1721
    %v1770 = vmul.f32 %v1762, %v1754
    %v1771 = vmul.f32 %v1763, %v1755
    %v1772 = vmul.f32 %v1764, %v1756
    %v1773 = vmul.f32 %v1765, %v1757
    %v1774 = vmul.f32 %v1766, %v1758
    %v1775 = vmul.f32 %v1767, %v1759
    %v1776 = vmul.f32 %v1768, %v1760
    %v1777 = vmul.f32 %v1769, %v1761
    %v1786 = vrot.slane %v1401, 7
    %v1787 = vrot.slane %v1402, 7
    %v1788 = vrot.slane %v1403, 7
    %v1789 = vrot.slane %v1404, 7
    %v1790 = vrot.slane %v1405, 7
    %v1791 = vrot.slane %v1406, 7
    %v1792 = vrot.slane %v1407, 7
    %v1793 = vrot.slane %v1408, 7
    %v1802 = vmul.f32 %v1707, %v1786
    %v1803 = vmul.f32 %v1709, %v1787
    %v1804 = vmul.f32 %v1711, %v1788
    %v1805 = vmul.f32 %v1713, %v1789
    %v1806 = vmul.f32 %v1715, %v1790
    %v1807 = vmul.f32 %v1717, %v1791
    %v1808 = vmul.f32 %v1719, %v1792
    %v1809 = vmul.f32 %v1721, %v1793
    %v1810 = vadd.f32 %v1770, %v1802
    %v1811 = vadd.f32 %v1771, %v1803
    %v1812 = vadd.f32 %v1772, %v1804
    %v1813 = vadd.f32 %v1773, %v1805
    %v1814 = vadd.f32 %v1774, %v1806
    %v1815 = vadd.f32 %v1775, %v1807
    %v1816 = vadd.f32 %v1776, %v1808
    %v1817 = vadd.f32 %v1777, %v1809
    %1818 = vst [vmem:[#allocation8] sm:$0x8] %v1810
    %1819 = vst [vmem:[#allocation8 + $0x10] sm:$0x8] %v1811
    %1820 = vst [vmem:[#allocation8 + $0x20] sm:$0x8] %v1812
    %1821 = vst [vmem:[#allocation8 + $0x30] sm:$0x8] %v1813
    %1822 = vst [vmem:[#allocation8 + $0x40] sm:$0x8] %v1814
    %1823 = vst [vmem:[#allocation8 + $0x50] sm:$0x8] %v1815
    %1824 = vst [vmem:[#allocation8 + $0x60] sm:$0x8] %v1816
    %1825 = vst [vmem:[#allocation8 + $0x70] sm:$0x8] %v1817
    %v1826 = vld [vmem:[#allocation3] sm:$0x44]
    %v1827 = vld [vmem:[#allocation3 + $0x8] sm:$0x4]
    %v1828 = vld [vmem:[#allocation3 + $0x18] sm:$0x44]
    %v1829 = vld [vmem:[#allocation3 + $0x20] sm:$0x4]
    %v1830 = vld [vmem:[#allocation3 + $0x30] sm:$0x44]
    %v1831 = vld [vmem:[#allocation3 + $0x38] sm:$0x4]
    %v1832 = vld [vmem:[#allocation3 + $0x48] sm:$0x44]
    %v1833 = vld [vmem:[#allocation3 + $0x50] sm:$0x4]
    %v1834 = vld [vmem:[#allocation3 + $0x60] sm:$0x44]
    %v1835 = vld [vmem:[#allocation3 + $0x68] sm:$0x4]
    %v1836 = vld [vmem:[#allocation3 + $0x78] sm:$0x44]
    %v1837 = vld [vmem:[#allocation3 + $0x80] sm:$0x4]
    %v1838 = vld [vmem:[#allocation3 + $0x90] sm:$0x44]
    %v1839 = vld [vmem:[#allocation3 + $0x98] sm:$0x4]
    %v1840 = vld [vmem:[#allocation3 + $0xa8] sm:$0x44]
    %v1841 = vld [vmem:[#allocation3 + $0xb0] sm:$0x4]
    %v1842 = vunpack.c.l.bf16 %v1826
    %v1843 = vunpack.c.h.bf16 %v1826
    %v1844 = vunpack.c.l.bf16 %v1827
    %v1845 = vunpack.c.l.bf16 %v1828
    %v1846 = vunpack.c.h.bf16 %v1828
    %v1847 = vunpack.c.l.bf16 %v1829
    %v1848 = vunpack.c.l.bf16 %v1830
    %v1849 = vunpack.c.h.bf16 %v1830
    %v1850 = vunpack.c.l.bf16 %v1831
    %v1851 = vunpack.c.l.bf16 %v1832
    %v1852 = vunpack.c.h.bf16 %v1832
    %v1853 = vunpack.c.l.bf16 %v1833
    %v1854 = vunpack.c.l.bf16 %v1834
    %v1855 = vunpack.c.h.bf16 %v1834
    %v1856 = vunpack.c.l.bf16 %v1835
    %v1857 = vunpack.c.l.bf16 %v1836
    %v1858 = vunpack.c.h.bf16 %v1836
    %v1859 = vunpack.c.l.bf16 %v1837
    %v1860 = vunpack.c.l.bf16 %v1838
    %v1861 = vunpack.c.h.bf16 %v1838
    %v1862 = vunpack.c.l.bf16 %v1839
    %v1863 = vunpack.c.l.bf16 %v1840
    %v1864 = vunpack.c.h.bf16 %v1840
    %v1865 = vunpack.c.l.bf16 %v1841
    %v1866 = vpack.c.bf16 %v1810, %v1810
    %v1867 = vpack.c.bf16 %v1811, %v1811
    %v1868 = vpack.c.bf16 %v1812, %v1812
    %v1869 = vpack.c.bf16 %v1813, %v1813
    %v1870 = vpack.c.bf16 %v1814, %v1814
    %v1871 = vpack.c.bf16 %v1815, %v1815
    %v1872 = vpack.c.bf16 %v1816, %v1816
    %v1873 = vpack.c.bf16 %v1817, %v1817
    %v1882 = vunpack.c.l.b16 %v1866
    %v1883 = vunpack.c.l.b16 %v1867
    %v1884 = vunpack.c.l.b16 %v1868
    %v1885 = vunpack.c.l.b16 %v1869
    %v1886 = vunpack.c.l.b16 %v1870
    %v1887 = vunpack.c.l.b16 %v1871
    %v1888 = vunpack.c.l.b16 %v1872
    %v1889 = vunpack.c.l.b16 %v1873
    %v1890 = vrot.slane %v1882, 3
    %v1891 = vrot.slane %v1883, 2
    %v1892 = vsel %vm657, %v1891, %v1890
    %v1893 = vrot.slane %v1884, 1
    %v1894 = vsel %vm660, %v1893, %v1892
    %v1895 = vsel %vm663, %v1885, %v1894
    %v1896 = vrot.slane %v1886, 7
    %v1897 = vsel %vm666, %v1896, %v1895
    %v1898 = vrot.slane %v1887, 6
    %v1899 = vsel %vm669, %v1898, %v1897
    %v1900 = vrot.slane %v1888, 5
    %v1901 = vsel %vm672, %v1900, %v1899
    %v1902 = vrot.slane %v1889, 4
    %v1903 = vsel %vm675, %v1902, %v1901
    %v1904 = vpack.c.b16 %v1903, %v1903
    %1906 = vmatprep.subr.bf16.mxu0 %v224
    %1907 = vmatpush1.bf16.msra.mxu0 %v223
    %1908 = vmatprep.subr.bf16.mxu0 %v227
    %1909 = vmatpush1.bf16.msra.mxu0 %v226
    %1910 = vmatprep.subr.bf16.mxu0 %v230
    %1911 = vmatpush1.bf16.msra.mxu0 %v229
    %1912 = vmatprep.subr.bf16.mxu0 %v233
    %1913 = vmatpush1.bf16.msra.mxu0 %v232
    %1914 = vmatprep.subr.bf16.mxu0 %v236
    %1915 = vmatpush1.bf16.msra.mxu0 %v235
    %1916 = vmatprep.subr.bf16.mxu0 %v239
    %1917 = vmatpush1.bf16.msra.mxu0 %v238
    %1918 = vmatprep.subr.bf16.mxu0 %v242
    %1919 = vmatpush1.bf16.msra.mxu0 %v241
    %1920 = vmatprep.subr.bf16.mxu0 %v245
    %1921 = vmatpush1.bf16.msra.mxu0 %v244
    %1922 = vmatprep.subr.bf16.mxu0 0
    %1923 = vmatpush1.bf16.msra.mxu0 0
    %1924 = vmatprep.subr.bf16.mxu0 0
    %1925 = vmatpush1.bf16.msra.mxu0 0
    %1926 = vmatprep.subr.bf16.mxu0 0
    %1927 = vmatpush1.bf16.msra.mxu0 0
    %1928 = vmatprep.subr.bf16.mxu0 0
    %1929 = vmatpush1.bf16.msra.mxu0 0
    %1930 = vmatprep.subr.bf16.mxu0 0
    %1931 = vmatpush1.bf16.msra.mxu0 0
    %1932 = vmatprep.subr.bf16.mxu0 0
    %1933 = vmatpush1.bf16.msra.mxu0 0
    %1934 = vmatprep.subr.bf16.mxu0 0
    %1935 = vmatpush1.bf16.msra.mxu0 0
    %1936 = vmatprep.subr.bf16.mxu0 0
    %1937 = vmatpush1.bf16.msra.mxu0 0
    %1938 = vmatprep.mubr.bf16.mxu0 0
    %1939 = vmatmul.mubr.bf16.gmra.mrb[0].mxu0 %v1904
    %v1940 = vpop.f32.mrb[0].mxu0
    %v1941 = vadd.f32 %v90, %v1940
    %v1942 = vpop.f32.mrb[0].mxu0
    %v1943 = vadd.f32 %v94, %v1942
    %v1944 = vpop.f32.mrb[0].mxu0
    %v1945 = vpop.f32.mrb[0].mxu0
    %1946 = vdwg.mxu0
    %1947 = vmatprep.subr.bf16.mxu0 0
    %1948 = vmatpush1.bf16.msra.mxu0 %v225
    %1949 = vmatprep.subr.bf16.mxu0 0
    %1950 = vmatpush1.bf16.msra.mxu0 %v228
    %1951 = vmatprep.subr.bf16.mxu0 0
    %1952 = vmatpush1.bf16.msra.mxu0 %v231
    %1953 = vmatprep.subr.bf16.mxu0 0
    %1954 = vmatpush1.bf16.msra.mxu0 %v234
    %1955 = vmatprep.subr.bf16.mxu0 0
    %1956 = vmatpush1.bf16.msra.mxu0 %v237
    %1957 = vmatprep.subr.bf16.mxu0 0
    %1958 = vmatpush1.bf16.msra.mxu0 %v240
    %1959 = vmatprep.subr.bf16.mxu0 0
    %1960 = vmatpush1.bf16.msra.mxu0 %v243
    %1961 = vmatprep.subr.bf16.mxu0 0
    %1962 = vmatpush1.bf16.msra.mxu0 %v246
    %1963 = vmatprep.subr.bf16.mxu0 0
    %1964 = vmatpush1.bf16.msra.mxu0 0
    %1965 = vmatprep.subr.bf16.mxu0 0
    %1966 = vmatpush1.bf16.msra.mxu0 0
    %1967 = vmatprep.subr.bf16.mxu0 0
    %1968 = vmatpush1.bf16.msra.mxu0 0
    %1969 = vmatprep.subr.bf16.mxu0 0
    %1970 = vmatpush1.bf16.msra.mxu0 0
    %1971 = vmatprep.subr.bf16.mxu0 0
    %1972 = vmatpush1.bf16.msra.mxu0 0
    %1973 = vmatprep.subr.bf16.mxu0 0
    %1974 = vmatpush1.bf16.msra.mxu0 0
    %1975 = vmatprep.subr.bf16.mxu0 0
    %1976 = vmatpush1.bf16.msra.mxu0 0
    %1977 = vmatprep.subr.bf16.mxu0 0
    %1978 = vmatpush1.bf16.msra.mxu0 0
    %1979 = vmatprep.mubr.bf16.mxu0 0
    %1980 = vmatmul.mubr.bf16.gmra.mrb[0].mxu0 %v1904
    %v1981 = vpop.f32.mrb[0].mxu0
    %v1982 = vadd.f32 %v98, %v1981
    %v1983 = vpop.f32.mrb[0].mxu0
    %v1984 = vpop.f32.mrb[0].mxu0
    %v1985 = vpop.f32.mrb[0].mxu0
    %1986 = vdwg.mxu0
    %v1988 = vrot.slane %v1941, 4
    %v1989 = vrot.slane %v1941, 5
    %v1990 = vrot.slane %v1941, 6
    %v1991 = vrot.slane %v1941, 7
    %v1992 = vrot.slane %v1941, 1
    %v1993 = vrot.slane %v1941, 2
    %v1994 = vrot.slane %v1941, 3
    %v2003 = vadd.f32 %v1842, %v1988
    %v2004 = vadd.f32 %v1845, %v1989
    %v2005 = vadd.f32 %v1848, %v1990
    %v2006 = vadd.f32 %v1851, %v1991
    %v2007 = vadd.f32 %v1854, %v1941
    %v2008 = vadd.f32 %v1857, %v1992
    %v2009 = vadd.f32 %v1860, %v1993
    %v2010 = vadd.f32 %v1863, %v1994
    %v2011 = vxor.u32 %v2003, 2147483648
    %v2012 = vxor.u32 %v2004, 2147483648
    %v2013 = vxor.u32 %v2005, 2147483648
    %v2014 = vxor.u32 %v2006, 2147483648
    %v2015 = vxor.u32 %v2007, 2147483648
    %v2016 = vxor.u32 %v2008, 2147483648
    %v2017 = vxor.u32 %v2009, 2147483648
    %v2018 = vxor.u32 %v2010, 2147483648
    %v2019 = vmul.f32 %v2011, 1.442695
    %v2020 = vpow.pop %v2019
    %v2021 = vmul.f32 %v2012, 1.442695
    %v2022 = vpow.pop %v2021
    %v2023 = vmul.f32 %v2013, 1.442695
    %v2024 = vpow.pop %v2023
    %v2025 = vmul.f32 %v2014, 1.442695
    %v2026 = vpow.pop %v2025
    %v2027 = vmul.f32 %v2015, 1.442695
    %v2028 = vpow.pop %v2027
    %v2029 = vmul.f32 %v2016, 1.442695
    %v2030 = vpow.pop %v2029
    %v2031 = vmul.f32 %v2017, 1.442695
    %v2032 = vpow.pop %v2031
    %v2033 = vmul.f32 %v2018, 1.442695
    %v2034 = vpow.pop %v2033
    %v2035 = vadd.f32 %v2020, 1.0
    %v2036 = vadd.f32 %v2022, 1.0
    %v2037 = vadd.f32 %v2024, 1.0
    %v2038 = vadd.f32 %v2026, 1.0
    %v2039 = vadd.f32 %v2028, 1.0
    %v2040 = vadd.f32 %v2030, 1.0
    %v2041 = vadd.f32 %v2032, 1.0
    %v2042 = vadd.f32 %v2034, 1.0
    %v2043 = vrcp.pop %v2035
    %v2044 = vmul.f32 1.0, %v2043
    %v2045 = vrcp.pop %v2036
    %v2046 = vmul.f32 1.0, %v2045
    %v2047 = vrcp.pop %v2037
    %v2048 = vmul.f32 1.0, %v2047
    %v2049 = vrcp.pop %v2038
    %v2050 = vmul.f32 1.0, %v2049
    %v2051 = vrcp.pop %v2039
    %v2052 = vmul.f32 1.0, %v2051
    %v2053 = vrcp.pop %v2040
    %v2054 = vmul.f32 1.0, %v2053
    %v2055 = vrcp.pop %v2041
    %v2056 = vmul.f32 1.0, %v2055
    %v2057 = vrcp.pop %v2042
    %v2058 = vmul.f32 1.0, %v2057
    %v2060 = vrot.slane %v1943, 4
    %v2061 = vrot.slane %v1943, 5
    %v2062 = vrot.slane %v1943, 6
    %v2063 = vrot.slane %v1943, 7
    %v2064 = vrot.slane %v1943, 1
    %v2065 = vrot.slane %v1943, 2
    %v2066 = vrot.slane %v1943, 3
    %v2075 = vadd.f32 %v1843, %v2060
    %v2076 = vadd.f32 %v1846, %v2061
    %v2077 = vadd.f32 %v1849, %v2062
    %v2078 = vadd.f32 %v1852, %v2063
    %v2079 = vadd.f32 %v1855, %v1943
    %v2080 = vadd.f32 %v1858, %v2064
    %v2081 = vadd.f32 %v1861, %v2065
    %v2082 = vadd.f32 %v1864, %v2066
    %v2083 = vxor.u32 %v2075, 2147483648
    %v2084 = vxor.u32 %v2076, 2147483648
    %v2085 = vxor.u32 %v2077, 2147483648
    %v2086 = vxor.u32 %v2078, 2147483648
    %v2087 = vxor.u32 %v2079, 2147483648
    %v2088 = vxor.u32 %v2080, 2147483648
    %v2089 = vxor.u32 %v2081, 2147483648
    %v2090 = vxor.u32 %v2082, 2147483648
    %v2091 = vmul.f32 %v2083, 1.442695
    %v2092 = vpow.pop %v2091
    %v2093 = vmul.f32 %v2084, 1.442695
    %v2094 = vpow.pop %v2093
    %v2095 = vmul.f32 %v2085, 1.442695
    %v2096 = vpow.pop %v2095
    %v2097 = vmul.f32 %v2086, 1.442695
    %v2098 = vpow.pop %v2097
    %v2099 = vmul.f32 %v2087, 1.442695
    %v2100 = vpow.pop %v2099
    %v2101 = vmul.f32 %v2088, 1.442695
    %v2102 = vpow.pop %v2101
    %v2103 = vmul.f32 %v2089, 1.442695
    %v2104 = vpow.pop %v2103
    %v2105 = vmul.f32 %v2090, 1.442695
    %v2106 = vpow.pop %v2105
    %v2107 = vadd.f32 %v2092, 1.0
    %v2108 = vadd.f32 %v2094, 1.0
    %v2109 = vadd.f32 %v2096, 1.0
    %v2110 = vadd.f32 %v2098, 1.0
    %v2111 = vadd.f32 %v2100, 1.0
    %v2112 = vadd.f32 %v2102, 1.0
    %v2113 = vadd.f32 %v2104, 1.0
    %v2114 = vadd.f32 %v2106, 1.0
    %v2115 = vrcp.pop %v2107
    %v2116 = vmul.f32 1.0, %v2115
    %v2117 = vrcp.pop %v2108
    %v2118 = vmul.f32 1.0, %v2117
    %v2119 = vrcp.pop %v2109
    %v2120 = vmul.f32 1.0, %v2119
    %v2121 = vrcp.pop %v2110
    %v2122 = vmul.f32 1.0, %v2121
    %v2123 = vrcp.pop %v2111
    %v2124 = vmul.f32 1.0, %v2123
    %v2125 = vrcp.pop %v2112
    %v2126 = vmul.f32 1.0, %v2125
    %v2127 = vrcp.pop %v2113
    %v2128 = vmul.f32 1.0, %v2127
    %v2129 = vrcp.pop %v2114
    %v2130 = vmul.f32 1.0, %v2129
    %v2132 = vrot.slane %v1982, 4
    %v2133 = vrot.slane %v1982, 5
    %v2134 = vrot.slane %v1982, 6
    %v2135 = vrot.slane %v1982, 7
    %v2136 = vrot.slane %v1982, 1
    %v2137 = vrot.slane %v1982, 2
    %v2138 = vrot.slane %v1982, 3
    %v2147 = vmul.f32 %v2044, %v2132
    %v2148 = vmul.f32 %v2046, %v2133
    %v2149 = vmul.f32 %v2048, %v2134
    %v2150 = vmul.f32 %v2050, %v2135
    %v2151 = vmul.f32 %v2052, %v1982
    %v2152 = vmul.f32 %v2054, %v2136
    %v2153 = vmul.f32 %v2056, %v2137
    %v2154 = vmul.f32 %v2058, %v2138
    %v2155 = vadd.f32 %v1844, %v2147
    %v2156 = vadd.f32 %v1847, %v2148
    %v2157 = vadd.f32 %v1850, %v2149
    %v2158 = vadd.f32 %v1853, %v2150
    %v2159 = vadd.f32 %v1856, %v2151
    %v2160 = vadd.f32 %v1859, %v2152
    %v2161 = vadd.f32 %v1862, %v2153
    %v2162 = vadd.f32 %v1865, %v2154
    %v2163 = vtanh.pop %v2155
    %v2164 = vtanh.pop %v2156
    %v2165 = vtanh.pop %v2157
    %v2166 = vtanh.pop %v2158
    %v2167 = vtanh.pop %v2159
    %v2168 = vtanh.pop %v2160
    %v2169 = vtanh.pop %v2161
    %v2170 = vtanh.pop %v2162
    %v2171 = vsub.f32 1.0, %v2116
    %v2172 = vsub.f32 1.0, %v2118
    %v2173 = vsub.f32 1.0, %v2120
    %v2174 = vsub.f32 1.0, %v2122
    %v2175 = vsub.f32 1.0, %v2124
    %v2176 = vsub.f32 1.0, %v2126
    %v2177 = vsub.f32 1.0, %v2128
    %v2178 = vsub.f32 1.0, %v2130
    %v2179 = vmul.f32 %v2171, %v2163
    %v2180 = vmul.f32 %v2172, %v2164
    %v2181 = vmul.f32 %v2173, %v2165
    %v2182 = vmul.f32 %v2174, %v2166
    %v2183 = vmul.f32 %v2175, %v2167
    %v2184 = vmul.f32 %v2176, %v2168
    %v2185 = vmul.f32 %v2177, %v2169
    %v2186 = vmul.f32 %v2178, %v2170
    %v2195 = vrot.slane %v1810, 7
    %v2196 = vrot.slane %v1811, 7
    %v2197 = vrot.slane %v1812, 7
    %v2198 = vrot.slane %v1813, 7
    %v2199 = vrot.slane %v1814, 7
    %v2200 = vrot.slane %v1815, 7
    %v2201 = vrot.slane %v1816, 7
    %v2202 = vrot.slane %v1817, 7
    %v2211 = vmul.f32 %v2116, %v2195
    %v2212 = vmul.f32 %v2118, %v2196
    %v2213 = vmul.f32 %v2120, %v2197
    %v2214 = vmul.f32 %v2122, %v2198
    %v2215 = vmul.f32 %v2124, %v2199
    %v2216 = vmul.f32 %v2126, %v2200
    %v2217 = vmul.f32 %v2128, %v2201
    %v2218 = vmul.f32 %v2130, %v2202
    %v2219 = vadd.f32 %v2179, %v2211
    %v2220 = vadd.f32 %v2180, %v2212
    %v2221 = vadd.f32 %v2181, %v2213
    %v2222 = vadd.f32 %v2182, %v2214
    %v2223 = vadd.f32 %v2183, %v2215
    %v2224 = vadd.f32 %v2184, %v2216
    %v2225 = vadd.f32 %v2185, %v2217
    %v2226 = vadd.f32 %v2186, %v2218
    %2227 = vst [vmem:[#allocation8] sm:$0x10] %v2219
    %2228 = vst [vmem:[#allocation8 + $0x10] sm:$0x10] %v2220
    %2229 = vst [vmem:[#allocation8 + $0x20] sm:$0x10] %v2221
    %2230 = vst [vmem:[#allocation8 + $0x30] sm:$0x10] %v2222
    %2231 = vst [vmem:[#allocation8 + $0x40] sm:$0x10] %v2223
    %2232 = vst [vmem:[#allocation8 + $0x50] sm:$0x10] %v2224
    %2233 = vst [vmem:[#allocation8 + $0x60] sm:$0x10] %v2225
    %2234 = vst [vmem:[#allocation8 + $0x70] sm:$0x10] %v2226
    %v2235 = vld [vmem:[#allocation3] sm:$0x44]
    %v2236 = vld [vmem:[#allocation3 + $0x8] sm:$0x4]
    %v2237 = vld [vmem:[#allocation3 + $0x18] sm:$0x44]
    %v2238 = vld [vmem:[#allocation3 + $0x20] sm:$0x4]
    %v2239 = vld [vmem:[#allocation3 + $0x30] sm:$0x44]
    %v2240 = vld [vmem:[#allocation3 + $0x38] sm:$0x4]
    %v2241 = vld [vmem:[#allocation3 + $0x48] sm:$0x44]
    %v2242 = vld [vmem:[#allocation3 + $0x50] sm:$0x4]
    %v2243 = vld [vmem:[#allocation3 + $0x60] sm:$0x44]
    %v2244 = vld [vmem:[#allocation3 + $0x68] sm:$0x4]
    %v2245 = vld [vmem:[#allocation3 + $0x78] sm:$0x44]
    %v2246 = vld [vmem:[#allocation3 + $0x80] sm:$0x4]
    %v2247 = vld [vmem:[#allocation3 + $0x90] sm:$0x44]
    %v2248 = vld [vmem:[#allocation3 + $0x98] sm:$0x4]
    %v2249 = vld [vmem:[#allocation3 + $0xa8] sm:$0x44]
    %v2250 = vld [vmem:[#allocation3 + $0xb0] sm:$0x4]
    %v2251 = vunpack.c.l.bf16 %v2235
    %v2252 = vunpack.c.h.bf16 %v2235
    %v2253 = vunpack.c.l.bf16 %v2236
    %v2254 = vunpack.c.l.bf16 %v2237
    %v2255 = vunpack.c.h.bf16 %v2237
    %v2256 = vunpack.c.l.bf16 %v2238
    %v2257 = vunpack.c.l.bf16 %v2239
    %v2258 = vunpack.c.h.bf16 %v2239
    %v2259 = vunpack.c.l.bf16 %v2240
    %v2260 = vunpack.c.l.bf16 %v2241
    %v2261 = vunpack.c.h.bf16 %v2241
    %v2262 = vunpack.c.l.bf16 %v2242
    %v2263 = vunpack.c.l.bf16 %v2243
    %v2264 = vunpack.c.h.bf16 %v2243
    %v2265 = vunpack.c.l.bf16 %v2244
    %v2266 = vunpack.c.l.bf16 %v2245
    %v2267 = vunpack.c.h.bf16 %v2245
    %v2268 = vunpack.c.l.bf16 %v2246
    %v2269 = vunpack.c.l.bf16 %v2247
    %v2270 = vunpack.c.h.bf16 %v2247
    %v2271 = vunpack.c.l.bf16 %v2248
    %v2272 = vunpack.c.l.bf16 %v2249
    %v2273 = vunpack.c.h.bf16 %v2249
    %v2274 = vunpack.c.l.bf16 %v2250
    %v2275 = vpack.c.bf16 %v2219, %v2219
    %v2276 = vpack.c.bf16 %v2220, %v2220
    %v2277 = vpack.c.bf16 %v2221, %v2221
    %v2278 = vpack.c.bf16 %v2222, %v2222
    %v2279 = vpack.c.bf16 %v2223, %v2223
    %v2280 = vpack.c.bf16 %v2224, %v2224
    %v2281 = vpack.c.bf16 %v2225, %v2225
    %v2282 = vpack.c.bf16 %v2226, %v2226
    %v2291 = vunpack.c.l.b16 %v2275
    %v2292 = vunpack.c.l.b16 %v2276
    %v2293 = vunpack.c.l.b16 %v2277
    %v2294 = vunpack.c.l.b16 %v2278
    %v2295 = vunpack.c.l.b16 %v2279
    %v2296 = vunpack.c.l.b16 %v2280
    %v2297 = vunpack.c.l.b16 %v2281
    %v2298 = vunpack.c.l.b16 %v2282
    %v2299 = vrot.slane %v2291, 4
    %v2300 = vrot.slane %v2292, 3
    %v2301 = vsel %vm657, %v2300, %v2299
    %v2302 = vrot.slane %v2293, 2
    %v2303 = vsel %vm660, %v2302, %v2301
    %v2304 = vrot.slane %v2294, 1
    %v2305 = vsel %vm663, %v2304, %v2303
    %v2306 = vsel %vm666, %v2295, %v2305
    %v2307 = vrot.slane %v2296, 7
    %v2308 = vsel %vm669, %v2307, %v2306
    %v2309 = vrot.slane %v2297, 6
    %v2310 = vsel %vm672, %v2309, %v2308
    %v2311 = vrot.slane %v2298, 5
    %v2312 = vsel %vm675, %v2311, %v2310
    %v2313 = vpack.c.b16 %v2312, %v2312
    %2315 = vmatprep.subr.bf16.mxu0 %v224
    %2316 = vmatpush1.bf16.msra.mxu0 %v223
    %2317 = vmatprep.subr.bf16.mxu0 %v227
    %2318 = vmatpush1.bf16.msra.mxu0 %v226
    %2319 = vmatprep.subr.bf16.mxu0 %v230
    %2320 = vmatpush1.bf16.msra.mxu0 %v229
    %2321 = vmatprep.subr.bf16.mxu0 %v233
    %2322 = vmatpush1.bf16.msra.mxu0 %v232
    %2323 = vmatprep.subr.bf16.mxu0 %v236
    %2324 = vmatpush1.bf16.msra.mxu0 %v235
    %2325 = vmatprep.subr.bf16.mxu0 %v239
    %2326 = vmatpush1.bf16.msra.mxu0 %v238
    %2327 = vmatprep.subr.bf16.mxu0 %v242
    %2328 = vmatpush1.bf16.msra.mxu0 %v241
    %2329 = vmatprep.subr.bf16.mxu0 %v245
    %2330 = vmatpush1.bf16.msra.mxu0 %v244
    %2331 = vmatprep.subr.bf16.mxu0 0
    %2332 = vmatpush1.bf16.msra.mxu0 0
    %2333 = vmatprep.subr.bf16.mxu0 0
    %2334 = vmatpush1.bf16.msra.mxu0 0
    %2335 = vmatprep.subr.bf16.mxu0 0
    %2336 = vmatpush1.bf16.msra.mxu0 0
    %2337 = vmatprep.subr.bf16.mxu0 0
    %2338 = vmatpush1.bf16.msra.mxu0 0
    %2339 = vmatprep.subr.bf16.mxu0 0
    %2340 = vmatpush1.bf16.msra.mxu0 0
    %2341 = vmatprep.subr.bf16.mxu0 0
    %2342 = vmatpush1.bf16.msra.mxu0 0
    %2343 = vmatprep.subr.bf16.mxu0 0
    %2344 = vmatpush1.bf16.msra.mxu0 0
    %2345 = vmatprep.subr.bf16.mxu0 0
    %2346 = vmatpush1.bf16.msra.mxu0 0
    %2347 = vmatprep.mubr.bf16.mxu0 0
    %2348 = vmatmul.mubr.bf16.gmra.mrb[0].mxu0 %v2313
    %v2349 = vpop.f32.mrb[0].mxu0
    %v2350 = vadd.f32 %v90, %v2349
    %v2351 = vpop.f32.mrb[0].mxu0
    %v2352 = vadd.f32 %v94, %v2351
    %v2353 = vpop.f32.mrb[0].mxu0
    %v2354 = vpop.f32.mrb[0].mxu0
    %2355 = vdwg.mxu0
    %2356 = vmatprep.subr.bf16.mxu0 0
    %2357 = vmatpush1.bf16.msra.mxu0 %v225
    %2358 = vmatprep.subr.bf16.mxu0 0
    %2359 = vmatpush1.bf16.msra.mxu0 %v228
    %2360 = vmatprep.subr.bf16.mxu0 0
    %2361 = vmatpush1.bf16.msra.mxu0 %v231
    %2362 = vmatprep.subr.bf16.mxu0 0
    %2363 = vmatpush1.bf16.msra.mxu0 %v234
    %2364 = vmatprep.subr.bf16.mxu0 0
    %2365 = vmatpush1.bf16.msra.mxu0 %v237
    %2366 = vmatprep.subr.bf16.mxu0 0
    %2367 = vmatpush1.bf16.msra.mxu0 %v240
    %2368 = vmatprep.subr.bf16.mxu0 0
    %2369 = vmatpush1.bf16.msra.mxu0 %v243
    %2370 = vmatprep.subr.bf16.mxu0 0
    %2371 = vmatpush1.bf16.msra.mxu0 %v246
    %2372 = vmatprep.subr.bf16.mxu0 0
    %2373 = vmatpush1.bf16.msra.mxu0 0
    %2374 = vmatprep.subr.bf16.mxu0 0
    %2375 = vmatpush1.bf16.msra.mxu0 0
    %2376 = vmatprep.subr.bf16.mxu0 0
    %2377 = vmatpush1.bf16.msra.mxu0 0
    %2378 = vmatprep.subr.bf16.mxu0 0
    %2379 = vmatpush1.bf16.msra.mxu0 0
    %2380 = vmatprep.subr.bf16.mxu0 0
    %2381 = vmatpush1.bf16.msra.mxu0 0
    %2382 = vmatprep.subr.bf16.mxu0 0
    %2383 = vmatpush1.bf16.msra.mxu0 0
    %2384 = vmatprep.subr.bf16.mxu0 0
    %2385 = vmatpush1.bf16.msra.mxu0 0
    %2386 = vmatprep.subr.bf16.mxu0 0
    %2387 = vmatpush1.bf16.msra.mxu0 0
    %2388 = vmatprep.mubr.bf16.mxu0 0
    %2389 = vmatmul.mubr.bf16.gmra.mrb[0].mxu0 %v2313
    %v2390 = vpop.f32.mrb[0].mxu0
    %v2391 = vadd.f32 %v98, %v2390
    %v2392 = vpop.f32.mrb[0].mxu0
    %v2393 = vpop.f32.mrb[0].mxu0
    %v2394 = vpop.f32.mrb[0].mxu0
    %2395 = vdwg.mxu0
    %v2397 = vrot.slane %v2350, 3
    %v2398 = vrot.slane %v2350, 4
    %v2399 = vrot.slane %v2350, 5
    %v2400 = vrot.slane %v2350, 6
    %v2401 = vrot.slane %v2350, 7
    %v2402 = vrot.slane %v2350, 1
    %v2403 = vrot.slane %v2350, 2
    %v2412 = vadd.f32 %v2251, %v2397
    %v2413 = vadd.f32 %v2254, %v2398
    %v2414 = vadd.f32 %v2257, %v2399
    %v2415 = vadd.f32 %v2260, %v2400
    %v2416 = vadd.f32 %v2263, %v2401
    %v2417 = vadd.f32 %v2266, %v2350
    %v2418 = vadd.f32 %v2269, %v2402
    %v2419 = vadd.f32 %v2272, %v2403
    %v2420 = vxor.u32 %v2412, 2147483648
    %v2421 = vxor.u32 %v2413, 2147483648
    %v2422 = vxor.u32 %v2414, 2147483648
    %v2423 = vxor.u32 %v2415, 2147483648
    %v2424 = vxor.u32 %v2416, 2147483648
    %v2425 = vxor.u32 %v2417, 2147483648
    %v2426 = vxor.u32 %v2418, 2147483648
    %v2427 = vxor.u32 %v2419, 2147483648
    %v2428 = vmul.f32 %v2420, 1.442695
    %v2429 = vpow.pop %v2428
    %v2430 = vmul.f32 %v2421, 1.442695
    %v2431 = vpow.pop %v2430
    %v2432 = vmul.f32 %v2422, 1.442695
    %v2433 = vpow.pop %v2432
    %v2434 = vmul.f32 %v2423, 1.442695
    %v2435 = vpow.pop %v2434
    %v2436 = vmul.f32 %v2424, 1.442695
    %v2437 = vpow.pop %v2436
    %v2438 = vmul.f32 %v2425, 1.442695
    %v2439 = vpow.pop %v2438
    %v2440 = vmul.f32 %v2426, 1.442695
    %v2441 = vpow.pop %v2440
    %v2442 = vmul.f32 %v2427, 1.442695
    %v2443 = vpow.pop %v2442
    %v2444 = vadd.f32 %v2429, 1.0
    %v2445 = vadd.f32 %v2431, 1.0
    %v2446 = vadd.f32 %v2433, 1.0
    %v2447 = vadd.f32 %v2435, 1.0
    %v2448 = vadd.f32 %v2437, 1.0
    %v2449 = vadd.f32 %v2439, 1.0
    %v2450 = vadd.f32 %v2441, 1.0
    %v2451 = vadd.f32 %v2443, 1.0
    %v2452 = vrcp.pop %v2444
    %v2453 = vmul.f32 1.0, %v2452
    %v2454 = vrcp.pop %v2445
    %v2455 = vmul.f32 1.0, %v2454
    %v2456 = vrcp.pop %v2446
    %v2457 = vmul.f32 1.0, %v2456
    %v2458 = vrcp.pop %v2447
    %v2459 = vmul.f32 1.0, %v2458
    %v2460 = vrcp.pop %v2448
    %v2461 = vmul.f32 1.0, %v2460
    %v2462 = vrcp.pop %v2449
    %v2463 = vmul.f32 1.0, %v2462
    %v2464 = vrcp.pop %v2450
    %v2465 = vmul.f32 1.0, %v2464
    %v2466 = vrcp.pop %v2451
    %v2467 = vmul.f32 1.0, %v2466
    %v2469 = vrot.slane %v2352, 3
    %v2470 = vrot.slane %v2352, 4
    %v2471 = vrot.slane %v2352, 5
    %v2472 = vrot.slane %v2352, 6
    %v2473 = vrot.slane %v2352, 7
    %v2474 = vrot.slane %v2352, 1
    %v2475 = vrot.slane %v2352, 2
    %v2484 = vadd.f32 %v2252, %v2469
    %v2485 = vadd.f32 %v2255, %v2470
    %v2486 = vadd.f32 %v2258, %v2471
    %v2487 = vadd.f32 %v2261, %v2472
    %v2488 = vadd.f32 %v2264, %v2473
    %v2489 = vadd.f32 %v2267, %v2352
    %v2490 = vadd.f32 %v2270, %v2474
    %v2491 = vadd.f32 %v2273, %v2475
    %v2492 = vxor.u32 %v2484, 2147483648
    %v2493 = vxor.u32 %v2485, 2147483648
    %v2494 = vxor.u32 %v2486, 2147483648
    %v2495 = vxor.u32 %v2487, 2147483648
    %v2496 = vxor.u32 %v2488, 2147483648
    %v2497 = vxor.u32 %v2489, 2147483648
    %v2498 = vxor.u32 %v2490, 2147483648
    %v2499 = vxor.u32 %v2491, 2147483648
    %v2500 = vmul.f32 %v2492, 1.442695
    %v2501 = vpow.pop %v2500
    %v2502 = vmul.f32 %v2493, 1.442695
    %v2503 = vpow.pop %v2502
    %v2504 = vmul.f32 %v2494, 1.442695
    %v2505 = vpow.pop %v2504
    %v2506 = vmul.f32 %v2495, 1.442695
    %v2507 = vpow.pop %v2506
    %v2508 = vmul.f32 %v2496, 1.442695
    %v2509 = vpow.pop %v2508
    %v2510 = vmul.f32 %v2497, 1.442695
    %v2511 = vpow.pop %v2510
    %v2512 = vmul.f32 %v2498, 1.442695
    %v2513 = vpow.pop %v2512
    %v2514 = vmul.f32 %v2499, 1.442695
    %v2515 = vpow.pop %v2514
    %v2516 = vadd.f32 %v2501, 1.0
    %v2517 = vadd.f32 %v2503, 1.0
    %v2518 = vadd.f32 %v2505, 1.0
    %v2519 = vadd.f32 %v2507, 1.0
    %v2520 = vadd.f32 %v2509, 1.0
    %v2521 = vadd.f32 %v2511, 1.0
    %v2522 = vadd.f32 %v2513, 1.0
    %v2523 = vadd.f32 %v2515, 1.0
    %v2524 = vrcp.pop %v2516
    %v2525 = vmul.f32 1.0, %v2524
    %v2526 = vrcp.pop %v2517
    %v2527 = vmul.f32 1.0, %v2526
    %v2528 = vrcp.pop %v2518
    %v2529 = vmul.f32 1.0, %v2528
    %v2530 = vrcp.pop %v2519
    %v2531 = vmul.f32 1.0, %v2530
    %v2532 = vrcp.pop %v2520
    %v2533 = vmul.f32 1.0, %v2532
    %v2534 = vrcp.pop %v2521
    %v2535 = vmul.f32 1.0, %v2534
    %v2536 = vrcp.pop %v2522
    %v2537 = vmul.f32 1.0, %v2536
    %v2538 = vrcp.pop %v2523
    %v2539 = vmul.f32 1.0, %v2538
    %v2541 = vrot.slane %v2391, 3
    %v2542 = vrot.slane %v2391, 4
    %v2543 = vrot.slane %v2391, 5
    %v2544 = vrot.slane %v2391, 6
    %v2545 = vrot.slane %v2391, 7
    %v2546 = vrot.slane %v2391, 1
    %v2547 = vrot.slane %v2391, 2
    %v2556 = vmul.f32 %v2453, %v2541
    %v2557 = vmul.f32 %v2455, %v2542
    %v2558 = vmul.f32 %v2457, %v2543
    %v2559 = vmul.f32 %v2459, %v2544
    %v2560 = vmul.f32 %v2461, %v2545
    %v2561 = vmul.f32 %v2463, %v2391
    %v2562 = vmul.f32 %v2465, %v2546
    %v2563 = vmul.f32 %v2467, %v2547
    %v2564 = vadd.f32 %v2253, %v2556
    %v2565 = vadd.f32 %v2256, %v2557
    %v2566 = vadd.f32 %v2259, %v2558
    %v2567 = vadd.f32 %v2262, %v2559
    %v2568 = vadd.f32 %v2265, %v2560
    %v2569 = vadd.f32 %v2268, %v2561
    %v2570 = vadd.f32 %v2271, %v2562
    %v2571 = vadd.f32 %v2274, %v2563
    %v2572 = vtanh.pop %v2564
    %v2573 = vtanh.pop %v2565
    %v2574 = vtanh.pop %v2566
    %v2575 = vtanh.pop %v2567
    %v2576 = vtanh.pop %v2568
    %v2577 = vtanh.pop %v2569
    %v2578 = vtanh.pop %v2570
    %v2579 = vtanh.pop %v2571
    %v2580 = vsub.f32 1.0, %v2525
    %v2581 = vsub.f32 1.0, %v2527
    %v2582 = vsub.f32 1.0, %v2529
    %v2583 = vsub.f32 1.0, %v2531
    %v2584 = vsub.f32 1.0, %v2533
    %v2585 = vsub.f32 1.0, %v2535
    %v2586 = vsub.f32 1.0, %v2537
    %v2587 = vsub.f32 1.0, %v2539
    %v2588 = vmul.f32 %v2580, %v2572
    %v2589 = vmul.f32 %v2581, %v2573
    %v2590 = vmul.f32 %v2582, %v2574
    %v2591 = vmul.f32 %v2583, %v2575
    %v2592 = vmul.f32 %v2584, %v2576
    %v2593 = vmul.f32 %v2585, %v2577
    %v2594 = vmul.f32 %v2586, %v2578
    %v2595 = vmul.f32 %v2587, %v2579
    %v2604 = vrot.slane %v2219, 7
    %v2605 = vrot.slane %v2220, 7
    %v2606 = vrot.slane %v2221, 7
    %v2607 = vrot.slane %v2222, 7
    %v2608 = vrot.slane %v2223, 7
    %v2609 = vrot.slane %v2224, 7
    %v2610 = vrot.slane %v2225, 7
    %v2611 = vrot.slane %v2226, 7
    %v2620 = vmul.f32 %v2525, %v2604
    %v2621 = vmul.f32 %v2527, %v2605
    %v2622 = vmul.f32 %v2529, %v2606
    %v2623 = vmul.f32 %v2531, %v2607
    %v2624 = vmul.f32 %v2533, %v2608
    %v2625 = vmul.f32 %v2535, %v2609
    %v2626 = vmul.f32 %v2537, %v2610
    %v2627 = vmul.f32 %v2539, %v2611
    %v2628 = vadd.f32 %v2588, %v2620
    %v2629 = vadd.f32 %v2589, %v2621
    %v2630 = vadd.f32 %v2590, %v2622
    %v2631 = vadd.f32 %v2591, %v2623
    %v2632 = vadd.f32 %v2592, %v2624
    %v2633 = vadd.f32 %v2593, %v2625
    %v2634 = vadd.f32 %v2594, %v2626
    %v2635 = vadd.f32 %v2595, %v2627
    %2636 = vst [vmem:[#allocation8] sm:$0x20] %v2628
    %2637 = vst [vmem:[#allocation8 + $0x10] sm:$0x20] %v2629
    %2638 = vst [vmem:[#allocation8 + $0x20] sm:$0x20] %v2630
    %2639 = vst [vmem:[#allocation8 + $0x30] sm:$0x20] %v2631
    %2640 = vst [vmem:[#allocation8 + $0x40] sm:$0x20] %v2632
    %2641 = vst [vmem:[#allocation8 + $0x50] sm:$0x20] %v2633
    %2642 = vst [vmem:[#allocation8 + $0x60] sm:$0x20] %v2634
    %2643 = vst [vmem:[#allocation8 + $0x70] sm:$0x20] %v2635
    %v2644 = vld [vmem:[#allocation3] sm:$0x88]
    %v2645 = vld [vmem:[#allocation3 + $0x8] sm:$0x8]
    %v2646 = vld [vmem:[#allocation3 + $0x18] sm:$0x88]
    %v2647 = vld [vmem:[#allocation3 + $0x20] sm:$0x8]
    %v2648 = vld [vmem:[#allocation3 + $0x30] sm:$0x88]
    %v2649 = vld [vmem:[#allocation3 + $0x38] sm:$0x8]
    %v2650 = vld [vmem:[#allocation3 + $0x48] sm:$0x88]
    %v2651 = vld [vmem:[#allocation3 + $0x50] sm:$0x8]
    %v2652 = vld [vmem:[#allocation3 + $0x60] sm:$0x88]
    %v2653 = vld [vmem:[#allocation3 + $0x68] sm:$0x8]
    %v2654 = vld [vmem:[#allocation3 + $0x78] sm:$0x88]
    %v2655 = vld [vmem:[#allocation3 + $0x80] sm:$0x8]
    %v2656 = vld [vmem:[#allocation3 + $0x90] sm:$0x88]
    %v2657 = vld [vmem:[#allocation3 + $0x98] sm:$0x8]
    %v2658 = vld [vmem:[#allocation3 + $0xa8] sm:$0x88]
    %v2659 = vld [vmem:[#allocation3 + $0xb0] sm:$0x8]
    %v2660 = vunpack.c.l.bf16 %v2644
    %v2661 = vunpack.c.h.bf16 %v2644
    %v2662 = vunpack.c.l.bf16 %v2645
    %v2663 = vunpack.c.l.bf16 %v2646
    %v2664 = vunpack.c.h.bf16 %v2646
    %v2665 = vunpack.c.l.bf16 %v2647
    %v2666 = vunpack.c.l.bf16 %v2648
    %v2667 = vunpack.c.h.bf16 %v2648
    %v2668 = vunpack.c.l.bf16 %v2649
    %v2669 = vunpack.c.l.bf16 %v2650
    %v2670 = vunpack.c.h.bf16 %v2650
    %v2671 = vunpack.c.l.bf16 %v2651
    %v2672 = vunpack.c.l.bf16 %v2652
    %v2673 = vunpack.c.h.bf16 %v2652
    %v2674 = vunpack.c.l.bf16 %v2653
    %v2675 = vunpack.c.l.bf16 %v2654
    %v2676 = vunpack.c.h.bf16 %v2654
    %v2677 = vunpack.c.l.bf16 %v2655
    %v2678 = vunpack.c.l.bf16 %v2656
    %v2679 = vunpack.c.h.bf16 %v2656
    %v2680 = vunpack.c.l.bf16 %v2657
    %v2681 = vunpack.c.l.bf16 %v2658
    %v2682 = vunpack.c.h.bf16 %v2658
    %v2683 = vunpack.c.l.bf16 %v2659
    %v2684 = vpack.c.bf16 %v2628, %v2628
    %v2685 = vpack.c.bf16 %v2629, %v2629
    %v2686 = vpack.c.bf16 %v2630, %v2630
    %v2687 = vpack.c.bf16 %v2631, %v2631
    %v2688 = vpack.c.bf16 %v2632, %v2632
    %v2689 = vpack.c.bf16 %v2633, %v2633
    %v2690 = vpack.c.bf16 %v2634, %v2634
    %v2691 = vpack.c.bf16 %v2635, %v2635
    %v2700 = vunpack.c.l.b16 %v2684
    %v2701 = vunpack.c.l.b16 %v2685
    %v2702 = vunpack.c.l.b16 %v2686
    %v2703 = vunpack.c.l.b16 %v2687
    %v2704 = vunpack.c.l.b16 %v2688
    %v2705 = vunpack.c.l.b16 %v2689
    %v2706 = vunpack.c.l.b16 %v2690
    %v2707 = vunpack.c.l.b16 %v2691
    %v2708 = vrot.slane %v2700, 5
    %v2709 = vrot.slane %v2701, 4
    %v2710 = vsel %vm657, %v2709, %v2708
    %v2711 = vrot.slane %v2702, 3
    %v2712 = vsel %vm660, %v2711, %v2710
    %v2713 = vrot.slane %v2703, 2
    %v2714 = vsel %vm663, %v2713, %v2712
    %v2715 = vrot.slane %v2704, 1
    %v2716 = vsel %vm666, %v2715, %v2714
    %v2717 = vsel %vm669, %v2705, %v2716
    %v2718 = vrot.slane %v2706, 7
    %v2719 = vsel %vm672, %v2718, %v2717
    %v2720 = vrot.slane %v2707, 6
    %v2721 = vsel %vm675, %v2720, %v2719
    %v2722 = vpack.c.b16 %v2721, %v2721
    %2724 = vmatprep.subr.bf16.mxu0 %v224
    %2725 = vmatpush1.bf16.msra.mxu0 %v223
    %2726 = vmatprep.subr.bf16.mxu0 %v227
    %2727 = vmatpush1.bf16.msra.mxu0 %v226
    %2728 = vmatprep.subr.bf16.mxu0 %v230
    %2729 = vmatpush1.bf16.msra.mxu0 %v229
    %2730 = vmatprep.subr.bf16.mxu0 %v233
    %2731 = vmatpush1.bf16.msra.mxu0 %v232
    %2732 = vmatprep.subr.bf16.mxu0 %v236
    %2733 = vmatpush1.bf16.msra.mxu0 %v235
    %2734 = vmatprep.subr.bf16.mxu0 %v239
    %2735 = vmatpush1.bf16.msra.mxu0 %v238
    %2736 = vmatprep.subr.bf16.mxu0 %v242
    %2737 = vmatpush1.bf16.msra.mxu0 %v241
    %2738 = vmatprep.subr.bf16.mxu0 %v245
    %2739 = vmatpush1.bf16.msra.mxu0 %v244
    %2740 = vmatprep.subr.bf16.mxu0 0
    %2741 = vmatpush1.bf16.msra.mxu0 0
    %2742 = vmatprep.subr.bf16.mxu0 0
    %2743 = vmatpush1.bf16.msra.mxu0 0
    %2744 = vmatprep.subr.bf16.mxu0 0
    %2745 = vmatpush1.bf16.msra.mxu0 0
    %2746 = vmatprep.subr.bf16.mxu0 0
    %2747 = vmatpush1.bf16.msra.mxu0 0
    %2748 = vmatprep.subr.bf16.mxu0 0
    %2749 = vmatpush1.bf16.msra.mxu0 0
    %2750 = vmatprep.subr.bf16.mxu0 0
    %2751 = vmatpush1.bf16.msra.mxu0 0
    %2752 = vmatprep.subr.bf16.mxu0 0
    %2753 = vmatpush1.bf16.msra.mxu0 0
    %2754 = vmatprep.subr.bf16.mxu0 0
    %2755 = vmatpush1.bf16.msra.mxu0 0
    %2756 = vmatprep.mubr.bf16.mxu0 0
    %2757 = vmatmul.mubr.bf16.gmra.mrb[0].mxu0 %v2722
    %v2758 = vpop.f32.mrb[0].mxu0
    %v2759 = vadd.f32 %v90, %v2758
    %v2760 = vpop.f32.mrb[0].mxu0
    %v2761 = vadd.f32 %v94, %v2760
    %v2762 = vpop.f32.mrb[0].mxu0
    %v2763 = vpop.f32.mrb[0].mxu0
    %2764 = vdwg.mxu0
    %2765 = vmatprep.subr.bf16.mxu0 0
    %2766 = vmatpush1.bf16.msra.mxu0 %v225
    %2767 = vmatprep.subr.bf16.mxu0 0
    %2768 = vmatpush1.bf16.msra.mxu0 %v228
    %2769 = vmatprep.subr.bf16.mxu0 0
    %2770 = vmatpush1.bf16.msra.mxu0 %v231
    %2771 = vmatprep.subr.bf16.mxu0 0
    %2772 = vmatpush1.bf16.msra.mxu0 %v234
    %2773 = vmatprep.subr.bf16.mxu0 0
    %2774 = vmatpush1.bf16.msra.mxu0 %v237
    %2775 = vmatprep.subr.bf16.mxu0 0
    %2776 = vmatpush1.bf16.msra.mxu0 %v240
    %2777 = vmatprep.subr.bf16.mxu0 0
    %2778 = vmatpush1.bf16.msra.mxu0 %v243
    %2779 = vmatprep.subr.bf16.mxu0 0
    %2780 = vmatpush1.bf16.msra.mxu0 %v246
    %2781 = vmatprep.subr.bf16.mxu0 0
    %2782 = vmatpush1.bf16.msra.mxu0 0
    %2783 = vmatprep.subr.bf16.mxu0 0
    %2784 = vmatpush1.bf16.msra.mxu0 0
    %2785 = vmatprep.subr.bf16.mxu0 0
    %2786 = vmatpush1.bf16.msra.mxu0 0
    %2787 = vmatprep.subr.bf16.mxu0 0
    %2788 = vmatpush1.bf16.msra.mxu0 0
    %2789 = vmatprep.subr.bf16.mxu0 0
    %2790 = vmatpush1.bf16.msra.mxu0 0
    %2791 = vmatprep.subr.bf16.mxu0 0
    %2792 = vmatpush1.bf16.msra.mxu0 0
    %2793 = vmatprep.subr.bf16.mxu0 0
    %2794 = vmatpush1.bf16.msra.mxu0 0
    %2795 = vmatprep.subr.bf16.mxu0 0
    %2796 = vmatpush1.bf16.msra.mxu0 0
    %2797 = vmatprep.mubr.bf16.mxu0 0
    %2798 = vmatmul.mubr.bf16.gmra.mrb[0].mxu0 %v2722
    %v2799 = vpop.f32.mrb[0].mxu0
    %v2800 = vadd.f32 %v98, %v2799
    %v2801 = vpop.f32.mrb[0].mxu0
    %v2802 = vpop.f32.mrb[0].mxu0
    %v2803 = vpop.f32.mrb[0].mxu0
    %2804 = vdwg.mxu0
    %v2806 = vrot.slane %v2759, 2
    %v2807 = vrot.slane %v2759, 3
    %v2808 = vrot.slane %v2759, 4
    %v2809 = vrot.slane %v2759, 5
    %v2810 = vrot.slane %v2759, 6
    %v2811 = vrot.slane %v2759, 7
    %v2812 = vrot.slane %v2759, 1
    %v2821 = vadd.f32 %v2660, %v2806
    %v2822 = vadd.f32 %v2663, %v2807
    %v2823 = vadd.f32 %v2666, %v2808
    %v2824 = vadd.f32 %v2669, %v2809
    %v2825 = vadd.f32 %v2672, %v2810
    %v2826 = vadd.f32 %v2675, %v2811
    %v2827 = vadd.f32 %v2678, %v2759
    %v2828 = vadd.f32 %v2681, %v2812
    %v2829 = vxor.u32 %v2821, 2147483648
    %v2830 = vxor.u32 %v2822, 2147483648
    %v2831 = vxor.u32 %v2823, 2147483648
    %v2832 = vxor.u32 %v2824, 2147483648
    %v2833 = vxor.u32 %v2825, 2147483648
    %v2834 = vxor.u32 %v2826, 2147483648
    %v2835 = vxor.u32 %v2827, 2147483648
    %v2836 = vxor.u32 %v2828, 2147483648
    %v2837 = vmul.f32 %v2829, 1.442695
    %v2838 = vpow.pop %v2837
    %v2839 = vmul.f32 %v2830, 1.442695
    %v2840 = vpow.pop %v2839
    %v2841 = vmul.f32 %v2831, 1.442695
    %v2842 = vpow.pop %v2841
    %v2843 = vmul.f32 %v2832, 1.442695
    %v2844 = vpow.pop %v2843
    %v2845 = vmul.f32 %v2833, 1.442695
    %v2846 = vpow.pop %v2845
    %v2847 = vmul.f32 %v2834, 1.442695
    %v2848 = vpow.pop %v2847
    %v2849 = vmul.f32 %v2835, 1.442695
    %v2850 = vpow.pop %v2849
    %v2851 = vmul.f32 %v2836, 1.442695
    %v2852 = vpow.pop %v2851
    %v2853 = vadd.f32 %v2838, 1.0
    %v2854 = vadd.f32 %v2840, 1.0
    %v2855 = vadd.f32 %v2842, 1.0
    %v2856 = vadd.f32 %v2844, 1.0
    %v2857 = vadd.f32 %v2846, 1.0
    %v2858 = vadd.f32 %v2848, 1.0
    %v2859 = vadd.f32 %v2850, 1.0
    %v2860 = vadd.f32 %v2852, 1.0
    %v2861 = vrcp.pop %v2853
    %v2862 = vmul.f32 1.0, %v2861
    %v2863 = vrcp.pop %v2854
    %v2864 = vmul.f32 1.0, %v2863
    %v2865 = vrcp.pop %v2855
    %v2866 = vmul.f32 1.0, %v2865
    %v2867 = vrcp.pop %v2856
    %v2868 = vmul.f32 1.0, %v2867
    %v2869 = vrcp.pop %v2857
    %v2870 = vmul.f32 1.0, %v2869
    %v2871 = vrcp.pop %v2858
    %v2872 = vmul.f32 1.0, %v2871
    %v2873 = vrcp.pop %v2859
    %v2874 = vmul.f32 1.0, %v2873
    %v2875 = vrcp.pop %v2860
    %v2876 = vmul.f32 1.0, %v2875
    %v2878 = vrot.slane %v2761, 2
    %v2879 = vrot.slane %v2761, 3
    %v2880 = vrot.slane %v2761, 4
    %v2881 = vrot.slane %v2761, 5
    %v2882 = vrot.slane %v2761, 6
    %v2883 = vrot.slane %v2761, 7
    %v2884 = vrot.slane %v2761, 1
    %v2893 = vadd.f32 %v2661, %v2878
    %v2894 = vadd.f32 %v2664, %v2879
    %v2895 = vadd.f32 %v2667, %v2880
    %v2896 = vadd.f32 %v2670, %v2881
    %v2897 = vadd.f32 %v2673, %v2882
    %v2898 = vadd.f32 %v2676, %v2883
    %v2899 = vadd.f32 %v2679, %v2761
    %v2900 = vadd.f32 %v2682, %v2884
    %v2901 = vxor.u32 %v2893, 2147483648
    %v2902 = vxor.u32 %v2894, 2147483648
    %v2903 = vxor.u32 %v2895, 2147483648
    %v2904 = vxor.u32 %v2896, 2147483648
    %v2905 = vxor.u32 %v2897, 2147483648
    %v2906 = vxor.u32 %v2898, 2147483648
    %v2907 = vxor.u32 %v2899, 2147483648
    %v2908 = vxor.u32 %v2900, 2147483648
    %v2909 = vmul.f32 %v2901, 1.442695
    %v2910 = vpow.pop %v2909
    %v2911 = vmul.f32 %v2902, 1.442695
    %v2912 = vpow.pop %v2911
    %v2913 = vmul.f32 %v2903, 1.442695
    %v2914 = vpow.pop %v2913
    %v2915 = vmul.f32 %v2904, 1.442695
    %v2916 = vpow.pop %v2915
    %v2917 = vmul.f32 %v2905, 1.442695
    %v2918 = vpow.pop %v2917
    %v2919 = vmul.f32 %v2906, 1.442695
    %v2920 = vpow.pop %v2919
    %v2921 = vmul.f32 %v2907, 1.442695
    %v2922 = vpow.pop %v2921
    %v2923 = vmul.f32 %v2908, 1.442695
    %v2924 = vpow.pop %v2923
    %v2925 = vadd.f32 %v2910, 1.0
    %v2926 = vadd.f32 %v2912, 1.0
    %v2927 = vadd.f32 %v2914, 1.0
    %v2928 = vadd.f32 %v2916, 1.0
    %v2929 = vadd.f32 %v2918, 1.0
    %v2930 = vadd.f32 %v2920, 1.0
    %v2931 = vadd.f32 %v2922, 1.0
    %v2932 = vadd.f32 %v2924, 1.0
    %v2933 = vrcp.pop %v2925
    %v2934 = vmul.f32 1.0, %v2933
    %v2935 = vrcp.pop %v2926
    %v2936 = vmul.f32 1.0, %v2935
    %v2937 = vrcp.pop %v2927
    %v2938 = vmul.f32 1.0, %v2937
    %v2939 = vrcp.pop %v2928
    %v2940 = vmul.f32 1.0, %v2939
    %v2941 = vrcp.pop %v2929
    %v2942 = vmul.f32 1.0, %v2941
    %v2943 = vrcp.pop %v2930
    %v2944 = vmul.f32 1.0, %v2943
    %v2945 = vrcp.pop %v2931
    %v2946 = vmul.f32 1.0, %v2945
    %v2947 = vrcp.pop %v2932
    %v2948 = vmul.f32 1.0, %v2947
    %v2950 = vrot.slane %v2800, 2
    %v2951 = vrot.slane %v2800, 3
    %v2952 = vrot.slane %v2800, 4
    %v2953 = vrot.slane %v2800, 5
    %v2954 = vrot.slane %v2800, 6
    %v2955 = vrot.slane %v2800, 7
    %v2956 = vrot.slane %v2800, 1
    %v2965 = vmul.f32 %v2862, %v2950
    %v2966 = vmul.f32 %v2864, %v2951
    %v2967 = vmul.f32 %v2866, %v2952
    %v2968 = vmul.f32 %v2868, %v2953
    %v2969 = vmul.f32 %v2870, %v2954
    %v2970 = vmul.f32 %v2872, %v2955
    %v2971 = vmul.f32 %v2874, %v2800
    %v2972 = vmul.f32 %v2876, %v2956
    %v2973 = vadd.f32 %v2662, %v2965
    %v2974 = vadd.f32 %v2665, %v2966
    %v2975 = vadd.f32 %v2668, %v2967
    %v2976 = vadd.f32 %v2671, %v2968
    %v2977 = vadd.f32 %v2674, %v2969
    %v2978 = vadd.f32 %v2677, %v2970
    %v2979 = vadd.f32 %v2680, %v2971
    %v2980 = vadd.f32 %v2683, %v2972
    %v2981 = vtanh.pop %v2973
    %v2982 = vtanh.pop %v2974
    %v2983 = vtanh.pop %v2975
    %v2984 = vtanh.pop %v2976
    %v2985 = vtanh.pop %v2977
    %v2986 = vtanh.pop %v2978
    %v2987 = vtanh.pop %v2979
    %v2988 = vtanh.pop %v2980
    %v2989 = vsub.f32 1.0, %v2934
    %v2990 = vsub.f32 1.0, %v2936
    %v2991 = vsub.f32 1.0, %v2938
    %v2992 = vsub.f32 1.0, %v2940
    %v2993 = vsub.f32 1.0, %v2942
    %v2994 = vsub.f32 1.0, %v2944
    %v2995 = vsub.f32 1.0, %v2946
    %v2996 = vsub.f32 1.0, %v2948
    %v2997 = vmul.f32 %v2989, %v2981
    %v2998 = vmul.f32 %v2990, %v2982
    %v2999 = vmul.f32 %v2991, %v2983
    %v3000 = vmul.f32 %v2992, %v2984
    %v3001 = vmul.f32 %v2993, %v2985
    %v3002 = vmul.f32 %v2994, %v2986
    %v3003 = vmul.f32 %v2995, %v2987
    %v3004 = vmul.f32 %v2996, %v2988
    %v3013 = vrot.slane %v2628, 7
    %v3014 = vrot.slane %v2629, 7
    %v3015 = vrot.slane %v2630, 7
    %v3016 = vrot.slane %v2631, 7
    %v3017 = vrot.slane %v2632, 7
    %v3018 = vrot.slane %v2633, 7
    %v3019 = vrot.slane %v2634, 7
    %v3020 = vrot.slane %v2635, 7
    %v3029 = vmul.f32 %v2934, %v3013
    %v3030 = vmul.f32 %v2936, %v3014
    %v3031 = vmul.f32 %v2938, %v3015
    %v3032 = vmul.f32 %v2940, %v3016
    %v3033 = vmul.f32 %v2942, %v3017
    %v3034 = vmul.f32 %v2944, %v3018
    %v3035 = vmul.f32 %v2946, %v3019
    %v3036 = vmul.f32 %v2948, %v3020
    %v3037 = vadd.f32 %v2997, %v3029
    %v3038 = vadd.f32 %v2998, %v3030
    %v3039 = vadd.f32 %v2999, %v3031
    %v3040 = vadd.f32 %v3000, %v3032
    %v3041 = vadd.f32 %v3001, %v3033
    %v3042 = vadd.f32 %v3002, %v3034
    %v3043 = vadd.f32 %v3003, %v3035
    %v3044 = vadd.f32 %v3004, %v3036
    %3045 = vst [vmem:[#allocation8] sm:$0x40] %v3037
    %3046 = vst [vmem:[#allocation8 + $0x10] sm:$0x40] %v3038
    %3047 = vst [vmem:[#allocation8 + $0x20] sm:$0x40] %v3039
    %3048 = vst [vmem:[#allocation8 + $0x30] sm:$0x40] %v3040
    %3049 = vst [vmem:[#allocation8 + $0x40] sm:$0x40] %v3041
    %3050 = vst [vmem:[#allocation8 + $0x50] sm:$0x40] %v3042
    %3051 = vst [vmem:[#allocation8 + $0x60] sm:$0x40] %v3043
    %3052 = vst [vmem:[#allocation8 + $0x70] sm:$0x40] %v3044
    %v3053 = vld [vmem:[#allocation3] sm:$0x88]
    %v3054 = vld [vmem:[#allocation3 + $0x8] sm:$0x8]
    %v3055 = vld [vmem:[#allocation3 + $0x18] sm:$0x88]
    %v3056 = vld [vmem:[#allocation3 + $0x20] sm:$0x8]
    %v3057 = vld [vmem:[#allocation3 + $0x30] sm:$0x88]
    %v3058 = vld [vmem:[#allocation3 + $0x38] sm:$0x8]
    %v3059 = vld [vmem:[#allocation3 + $0x48] sm:$0x88]
    %v3060 = vld [vmem:[#allocation3 + $0x50] sm:$0x8]
    %v3061 = vld [vmem:[#allocation3 + $0x60] sm:$0x88]
    %v3062 = vld [vmem:[#allocation3 + $0x68] sm:$0x8]
    %v3063 = vld [vmem:[#allocation3 + $0x78] sm:$0x88]
    %v3064 = vld [vmem:[#allocation3 + $0x80] sm:$0x8]
    %v3065 = vld [vmem:[#allocation3 + $0x90] sm:$0x88]
    %v3066 = vld [vmem:[#allocation3 + $0x98] sm:$0x8]
    %v3067 = vld [vmem:[#allocation3 + $0xa8] sm:$0x88]
    %v3068 = vld [vmem:[#allocation3 + $0xb0] sm:$0x8]
    %v3069 = vunpack.c.l.bf16 %v3053
    %v3070 = vunpack.c.h.bf16 %v3053
    %v3071 = vunpack.c.l.bf16 %v3054
    %v3072 = vunpack.c.l.bf16 %v3055
    %v3073 = vunpack.c.h.bf16 %v3055
    %v3074 = vunpack.c.l.bf16 %v3056
    %v3075 = vunpack.c.l.bf16 %v3057
    %v3076 = vunpack.c.h.bf16 %v3057
    %v3077 = vunpack.c.l.bf16 %v3058
    %v3078 = vunpack.c.l.bf16 %v3059
    %v3079 = vunpack.c.h.bf16 %v3059
    %v3080 = vunpack.c.l.bf16 %v3060
    %v3081 = vunpack.c.l.bf16 %v3061
    %v3082 = vunpack.c.h.bf16 %v3061
    %v3083 = vunpack.c.l.bf16 %v3062
    %v3084 = vunpack.c.l.bf16 %v3063
    %v3085 = vunpack.c.h.bf16 %v3063
    %v3086 = vunpack.c.l.bf16 %v3064
    %v3087 = vunpack.c.l.bf16 %v3065
    %v3088 = vunpack.c.h.bf16 %v3065
    %v3089 = vunpack.c.l.bf16 %v3066
    %v3090 = vunpack.c.l.bf16 %v3067
    %v3091 = vunpack.c.h.bf16 %v3067
    %v3092 = vunpack.c.l.bf16 %v3068
    %v3093 = vpack.c.bf16 %v3037, %v3037
    %v3094 = vpack.c.bf16 %v3038, %v3038
    %v3095 = vpack.c.bf16 %v3039, %v3039
    %v3096 = vpack.c.bf16 %v3040, %v3040
    %v3097 = vpack.c.bf16 %v3041, %v3041
    %v3098 = vpack.c.bf16 %v3042, %v3042
    %v3099 = vpack.c.bf16 %v3043, %v3043
    %v3100 = vpack.c.bf16 %v3044, %v3044
    %v3109 = vunpack.c.l.b16 %v3093
    %v3110 = vunpack.c.l.b16 %v3094
    %v3111 = vunpack.c.l.b16 %v3095
    %v3112 = vunpack.c.l.b16 %v3096
    %v3113 = vunpack.c.l.b16 %v3097
    %v3114 = vunpack.c.l.b16 %v3098
    %v3115 = vunpack.c.l.b16 %v3099
    %v3116 = vunpack.c.l.b16 %v3100
    %v3117 = vrot.slane %v3109, 6
    %v3118 = vrot.slane %v3110, 5
    %v3119 = vsel %vm657, %v3118, %v3117
    %v3120 = vrot.slane %v3111, 4
    %v3121 = vsel %vm660, %v3120, %v3119
    %v3122 = vrot.slane %v3112, 3
    %v3123 = vsel %vm663, %v3122, %v3121
    %v3124 = vrot.slane %v3113, 2
    %v3125 = vsel %vm666, %v3124, %v3123
    %v3126 = vrot.slane %v3114, 1
    %v3127 = vsel %vm669, %v3126, %v3125
    %v3128 = vsel %vm672, %v3115, %v3127
    %v3129 = vrot.slane %v3116, 7
    %v3130 = vsel %vm675, %v3129, %v3128
    %v3131 = vpack.c.b16 %v3130, %v3130
    %3133 = vmatprep.subr.bf16.mxu0 %v224
    %3134 = vmatpush1.bf16.msra.mxu0 %v223
    %3135 = vmatprep.subr.bf16.mxu0 %v227
    %3136 = vmatpush1.bf16.msra.mxu0 %v226
    %3137 = vmatprep.subr.bf16.mxu0 %v230
    %3138 = vmatpush1.bf16.msra.mxu0 %v229
    %3139 = vmatprep.subr.bf16.mxu0 %v233
    %3140 = vmatpush1.bf16.msra.mxu0 %v232
    %3141 = vmatprep.subr.bf16.mxu0 %v236
    %3142 = vmatpush1.bf16.msra.mxu0 %v235
    %3143 = vmatprep.subr.bf16.mxu0 %v239
    %3144 = vmatpush1.bf16.msra.mxu0 %v238
    %3145 = vmatprep.subr.bf16.mxu0 %v242
    %3146 = vmatpush1.bf16.msra.mxu0 %v241
    %3147 = vmatprep.subr.bf16.mxu0 %v245
    %3148 = vmatpush1.bf16.msra.mxu0 %v244
    %3149 = vmatprep.subr.bf16.mxu0 0
    %3150 = vmatpush1.bf16.msra.mxu0 0
    %3151 = vmatprep.subr.bf16.mxu0 0
    %3152 = vmatpush1.bf16.msra.mxu0 0
    %3153 = vmatprep.subr.bf16.mxu0 0
    %3154 = vmatpush1.bf16.msra.mxu0 0
    %3155 = vmatprep.subr.bf16.mxu0 0
    %3156 = vmatpush1.bf16.msra.mxu0 0
    %3157 = vmatprep.subr.bf16.mxu0 0
    %3158 = vmatpush1.bf16.msra.mxu0 0
    %3159 = vmatprep.subr.bf16.mxu0 0
    %3160 = vmatpush1.bf16.msra.mxu0 0
    %3161 = vmatprep.subr.bf16.mxu0 0
    %3162 = vmatpush1.bf16.msra.mxu0 0
    %3163 = vmatprep.subr.bf16.mxu0 0
    %3164 = vmatpush1.bf16.msra.mxu0 0
    %3165 = vmatprep.mubr.bf16.mxu0 0
    %3166 = vmatmul.mubr.bf16.gmra.mrb[0].mxu0 %v3131
    %v3167 = vpop.f32.mrb[0].mxu0
    %v3168 = vadd.f32 %v90, %v3167
    %v3169 = vpop.f32.mrb[0].mxu0
    %v3170 = vadd.f32 %v94, %v3169
    %v3171 = vpop.f32.mrb[0].mxu0
    %v3172 = vpop.f32.mrb[0].mxu0
    %3173 = vdwg.mxu0
    %3174 = vmatprep.subr.bf16.mxu0 0
    %3175 = vmatpush1.bf16.msra.mxu0 %v225
    %3176 = vmatprep.subr.bf16.mxu0 0
    %3177 = vmatpush1.bf16.msra.mxu0 %v228
    %3178 = vmatprep.subr.bf16.mxu0 0
    %3179 = vmatpush1.bf16.msra.mxu0 %v231
    %3180 = vmatprep.subr.bf16.mxu0 0
    %3181 = vmatpush1.bf16.msra.mxu0 %v234
    %3182 = vmatprep.subr.bf16.mxu0 0
    %3183 = vmatpush1.bf16.msra.mxu0 %v237
    %3184 = vmatprep.subr.bf16.mxu0 0
    %3185 = vmatpush1.bf16.msra.mxu0 %v240
    %3186 = vmatprep.subr.bf16.mxu0 0
    %3187 = vmatpush1.bf16.msra.mxu0 %v243
    %3188 = vmatprep.subr.bf16.mxu0 0
    %3189 = vmatpush1.bf16.msra.mxu0 %v246
    %3190 = vmatprep.subr.bf16.mxu0 0
    %3191 = vmatpush1.bf16.msra.mxu0 0
    %3192 = vmatprep.subr.bf16.mxu0 0
    %3193 = vmatpush1.bf16.msra.mxu0 0
    %3194 = vmatprep.subr.bf16.mxu0 0
    %3195 = vmatpush1.bf16.msra.mxu0 0
    %3196 = vmatprep.subr.bf16.mxu0 0
    %3197 = vmatpush1.bf16.msra.mxu0 0
    %3198 = vmatprep.subr.bf16.mxu0 0
    %3199 = vmatpush1.bf16.msra.mxu0 0
    %3200 = vmatprep.subr.bf16.mxu0 0
    %3201 = vmatpush1.bf16.msra.mxu0 0
    %3202 = vmatprep.subr.bf16.mxu0 0
    %3203 = vmatpush1.bf16.msra.mxu0 0
    %3204 = vmatprep.subr.bf16.mxu0 0
    %3205 = vmatpush1.bf16.msra.mxu0 0
    %3206 = vmatprep.mubr.bf16.mxu0 0
    %3207 = vmatmul.mubr.bf16.gmra.mrb[0].mxu0 %v3131
    %v3208 = vpop.f32.mrb[0].mxu0
    %v3209 = vadd.f32 %v98, %v3208
    %v3210 = vpop.f32.mrb[0].mxu0
    %v3211 = vpop.f32.mrb[0].mxu0
    %v3212 = vpop.f32.mrb[0].mxu0
    %3213 = vdwg.mxu0
    %v3215 = vrot.slane %v3168, 1
    %v3216 = vrot.slane %v3168, 2
    %v3217 = vrot.slane %v3168, 3
    %v3218 = vrot.slane %v3168, 4
    %v3219 = vrot.slane %v3168, 5
    %v3220 = vrot.slane %v3168, 6
    %v3221 = vrot.slane %v3168, 7
    %v3230 = vadd.f32 %v3069, %v3215
    %v3231 = vadd.f32 %v3072, %v3216
    %v3232 = vadd.f32 %v3075, %v3217
    %v3233 = vadd.f32 %v3078, %v3218
    %v3234 = vadd.f32 %v3081, %v3219
    %v3235 = vadd.f32 %v3084, %v3220
    %v3236 = vadd.f32 %v3087, %v3221
    %v3237 = vadd.f32 %v3090, %v3168
    %v3238 = vxor.u32 %v3230, 2147483648
    %v3239 = vxor.u32 %v3231, 2147483648
    %v3240 = vxor.u32 %v3232, 2147483648
    %v3241 = vxor.u32 %v3233, 2147483648
    %v3242 = vxor.u32 %v3234, 2147483648
    %v3243 = vxor.u32 %v3235, 2147483648
    %v3244 = vxor.u32 %v3236, 2147483648
    %v3245 = vxor.u32 %v3237, 2147483648
    %v3246 = vmul.f32 %v3238, 1.442695
    %v3247 = vpow.pop %v3246
    %v3248 = vmul.f32 %v3239, 1.442695
    %v3249 = vpow.pop %v3248
    %v3250 = vmul.f32 %v3240, 1.442695
    %v3251 = vpow.pop %v3250
    %v3252 = vmul.f32 %v3241, 1.442695
    %v3253 = vpow.pop %v3252
    %v3254 = vmul.f32 %v3242, 1.442695
    %v3255 = vpow.pop %v3254
    %v3256 = vmul.f32 %v3243, 1.442695
    %v3257 = vpow.pop %v3256
    %v3258 = vmul.f32 %v3244, 1.442695
    %v3259 = vpow.pop %v3258
    %v3260 = vmul.f32 %v3245, 1.442695
    %v3261 = vpow.pop %v3260
    %v3262 = vadd.f32 %v3247, 1.0
    %v3263 = vadd.f32 %v3249, 1.0
    %v3264 = vadd.f32 %v3251, 1.0
    %v3265 = vadd.f32 %v3253, 1.0
    %v3266 = vadd.f32 %v3255, 1.0
    %v3267 = vadd.f32 %v3257, 1.0
    %v3268 = vadd.f32 %v3259, 1.0
    %v3269 = vadd.f32 %v3261, 1.0
    %v3270 = vrcp.pop %v3262
    %v3271 = vmul.f32 1.0, %v3270
    %v3272 = vrcp.pop %v3263
    %v3273 = vmul.f32 1.0, %v3272
    %v3274 = vrcp.pop %v3264
    %v3275 = vmul.f32 1.0, %v3274
    %v3276 = vrcp.pop %v3265
    %v3277 = vmul.f32 1.0, %v3276
    %v3278 = vrcp.pop %v3266
    %v3279 = vmul.f32 1.0, %v3278
    %v3280 = vrcp.pop %v3267
    %v3281 = vmul.f32 1.0, %v3280
    %v3282 = vrcp.pop %v3268
    %v3283 = vmul.f32 1.0, %v3282
    %v3284 = vrcp.pop %v3269
    %v3285 = vmul.f32 1.0, %v3284
    %v3287 = vrot.slane %v3170, 1
    %v3288 = vrot.slane %v3170, 2
    %v3289 = vrot.slane %v3170, 3
    %v3290 = vrot.slane %v3170, 4
    %v3291 = vrot.slane %v3170, 5
    %v3292 = vrot.slane %v3170, 6
    %v3293 = vrot.slane %v3170, 7
    %v3302 = vadd.f32 %v3070, %v3287
    %v3303 = vadd.f32 %v3073, %v3288
    %v3304 = vadd.f32 %v3076, %v3289
    %v3305 = vadd.f32 %v3079, %v3290
    %v3306 = vadd.f32 %v3082, %v3291
    %v3307 = vadd.f32 %v3085, %v3292
    %v3308 = vadd.f32 %v3088, %v3293
    %v3309 = vadd.f32 %v3091, %v3170
    %v3310 = vxor.u32 %v3302, 2147483648
    %v3311 = vxor.u32 %v3303, 2147483648
    %v3312 = vxor.u32 %v3304, 2147483648
    %v3313 = vxor.u32 %v3305, 2147483648
    %v3314 = vxor.u32 %v3306, 2147483648
    %v3315 = vxor.u32 %v3307, 2147483648
    %v3316 = vxor.u32 %v3308, 2147483648
    %v3317 = vxor.u32 %v3309, 2147483648
    %v3318 = vmul.f32 %v3310, 1.442695
    %v3319 = vpow.pop %v3318
    %v3320 = vmul.f32 %v3311, 1.442695
    %v3321 = vpow.pop %v3320
    %v3322 = vmul.f32 %v3312, 1.442695
    %v3323 = vpow.pop %v3322
    %v3324 = vmul.f32 %v3313, 1.442695
    %v3325 = vpow.pop %v3324
    %v3326 = vmul.f32 %v3314, 1.442695
    %v3327 = vpow.pop %v3326
    %v3328 = vmul.f32 %v3315, 1.442695
    %v3329 = vpow.pop %v3328
    %v3330 = vmul.f32 %v3316, 1.442695
    %v3331 = vpow.pop %v3330
    %v3332 = vmul.f32 %v3317, 1.442695
    %v3333 = vpow.pop %v3332
    %v3334 = vadd.f32 %v3319, 1.0
    %v3335 = vadd.f32 %v3321, 1.0
    %v3336 = vadd.f32 %v3323, 1.0
    %v3337 = vadd.f32 %v3325, 1.0
    %v3338 = vadd.f32 %v3327, 1.0
    %v3339 = vadd.f32 %v3329, 1.0
    %v3340 = vadd.f32 %v3331, 1.0
    %v3341 = vadd.f32 %v3333, 1.0
    %v3342 = vrcp.pop %v3334
    %v3343 = vmul.f32 1.0, %v3342
    %v3344 = vrcp.pop %v3335
    %v3345 = vmul.f32 1.0, %v3344
    %v3346 = vrcp.pop %v3336
    %v3347 = vmul.f32 1.0, %v3346
    %v3348 = vrcp.pop %v3337
    %v3349 = vmul.f32 1.0, %v3348
    %v3350 = vrcp.pop %v3338
    %v3351 = vmul.f32 1.0, %v3350
    %v3352 = vrcp.pop %v3339
    %v3353 = vmul.f32 1.0, %v3352
    %v3354 = vrcp.pop %v3340
    %v3355 = vmul.f32 1.0, %v3354
    %v3356 = vrcp.pop %v3341
    %v3357 = vmul.f32 1.0, %v3356
    %v3359 = vrot.slane %v3209, 1
    %v3360 = vrot.slane %v3209, 2
    %v3361 = vrot.slane %v3209, 3
    %v3362 = vrot.slane %v3209, 4
    %v3363 = vrot.slane %v3209, 5
    %v3364 = vrot.slane %v3209, 6
    %v3365 = vrot.slane %v3209, 7
    %v3374 = vmul.f32 %v3271, %v3359
    %v3375 = vmul.f32 %v3273, %v3360
    %v3376 = vmul.f32 %v3275, %v3361
    %v3377 = vmul.f32 %v3277, %v3362
    %v3378 = vmul.f32 %v3279, %v3363
    %v3379 = vmul.f32 %v3281, %v3364
    %v3380 = vmul.f32 %v3283, %v3365
    %v3381 = vmul.f32 %v3285, %v3209
    %v3382 = vadd.f32 %v3071, %v3374
    %v3383 = vadd.f32 %v3074, %v3375
    %v3384 = vadd.f32 %v3077, %v3376
    %v3385 = vadd.f32 %v3080, %v3377
    %v3386 = vadd.f32 %v3083, %v3378
    %v3387 = vadd.f32 %v3086, %v3379
    %v3388 = vadd.f32 %v3089, %v3380
    %v3389 = vadd.f32 %v3092, %v3381
    %v3390 = vtanh.pop %v3382
    %v3391 = vtanh.pop %v3383
    %v3392 = vtanh.pop %v3384
    %v3393 = vtanh.pop %v3385
    %v3394 = vtanh.pop %v3386
    %v3395 = vtanh.pop %v3387
    %v3396 = vtanh.pop %v3388
    %v3397 = vtanh.pop %v3389
    %v3398 = vsub.f32 1.0, %v3343
    %v3399 = vsub.f32 1.0, %v3345
    %v3400 = vsub.f32 1.0, %v3347
    %v3401 = vsub.f32 1.0, %v3349
    %v3402 = vsub.f32 1.0, %v3351
    %v3403 = vsub.f32 1.0, %v3353
    %v3404 = vsub.f32 1.0, %v3355
    %v3405 = vsub.f32 1.0, %v3357
    %v3406 = vmul.f32 %v3398, %v3390
    %v3407 = vmul.f32 %v3399, %v3391
    %v3408 = vmul.f32 %v3400, %v3392
    %v3409 = vmul.f32 %v3401, %v3393
    %v3410 = vmul.f32 %v3402, %v3394
    %v3411 = vmul.f32 %v3403, %v3395
    %v3412 = vmul.f32 %v3404, %v3396
    %v3413 = vmul.f32 %v3405, %v3397
    %v3422 = vrot.slane %v3037, 7
    %v3423 = vrot.slane %v3038, 7
    %v3424 = vrot.slane %v3039, 7
    %v3425 = vrot.slane %v3040, 7
    %v3426 = vrot.slane %v3041, 7
    %v3427 = vrot.slane %v3042, 7
    %v3428 = vrot.slane %v3043, 7
    %v3429 = vrot.slane %v3044, 7
    %v3438 = vmul.f32 %v3343, %v3422
    %v3439 = vmul.f32 %v3345, %v3423
    %v3440 = vmul.f32 %v3347, %v3424
    %v3441 = vmul.f32 %v3349, %v3425
    %v3442 = vmul.f32 %v3351, %v3426
    %v3443 = vmul.f32 %v3353, %v3427
    %v3444 = vmul.f32 %v3355, %v3428
    %v3445 = vmul.f32 %v3357, %v3429
    %v3446 = vadd.f32 %v3406, %v3438
    %v3447 = vadd.f32 %v3407, %v3439
    %v3448 = vadd.f32 %v3408, %v3440
    %v3449 = vadd.f32 %v3409, %v3441
    %v3450 = vadd.f32 %v3410, %v3442
    %v3451 = vadd.f32 %v3411, %v3443
    %v3452 = vadd.f32 %v3412, %v3444
    %v3453 = vadd.f32 %v3413, %v3445
    %3454 = vst [vmem:[#allocation8] sm:$0x80] %v3446
    %3455 = vst [vmem:[#allocation8 + $0x10] sm:$0x80] %v3447
    %3456 = vst [vmem:[#allocation8 + $0x20] sm:$0x80] %v3448
    %3457 = vst [vmem:[#allocation8 + $0x30] sm:$0x80] %v3449
    %3458 = vst [vmem:[#allocation8 + $0x40] sm:$0x80] %v3450
    %3459 = vst [vmem:[#allocation8 + $0x50] sm:$0x80] %v3451
    %3460 = vst [vmem:[#allocation8 + $0x60] sm:$0x80] %v3452
    %3461 = vst [vmem:[#allocation8 + $0x70] sm:$0x80] %v3453
    %v3462 = vld [vmem:[#allocation3 + $0xc] sm:$0x11]
    %v3463 = vld [vmem:[#allocation3 + $0x14] sm:$0x1]
    %v3464 = vld [vmem:[#allocation3 + $0x24] sm:$0x11]
    %v3465 = vld [vmem:[#allocation3 + $0x2c] sm:$0x1]
    %v3466 = vld [vmem:[#allocation3 + $0x3c] sm:$0x11]
    %v3467 = vld [vmem:[#allocation3 + $0x44] sm:$0x1]
    %v3468 = vld [vmem:[#allocation3 + $0x54] sm:$0x11]
    %v3469 = vld [vmem:[#allocation3 + $0x5c] sm:$0x1]
    %v3470 = vld [vmem:[#allocation3 + $0x6c] sm:$0x11]
    %v3471 = vld [vmem:[#allocation3 + $0x74] sm:$0x1]
    %v3472 = vld [vmem:[#allocation3 + $0x84] sm:$0x11]
    %v3473 = vld [vmem:[#allocation3 + $0x8c] sm:$0x1]
    %v3474 = vld [vmem:[#allocation3 + $0x9c] sm:$0x11]
    %v3475 = vld [vmem:[#allocation3 + $0xa4] sm:$0x1]
    %v3476 = vld [vmem:[#allocation3 + $0xb4] sm:$0x11]
    %v3477 = vld [vmem:[#allocation3 + $0xbc] sm:$0x1]
    %v3478 = vunpack.c.l.bf16 %v3462
    %v3479 = vunpack.c.h.bf16 %v3462
    %v3480 = vunpack.c.l.bf16 %v3463
    %v3481 = vunpack.c.l.bf16 %v3464
    %v3482 = vunpack.c.h.bf16 %v3464
    %v3483 = vunpack.c.l.bf16 %v3465
    %v3484 = vunpack.c.l.bf16 %v3466
    %v3485 = vunpack.c.h.bf16 %v3466
    %v3486 = vunpack.c.l.bf16 %v3467
    %v3487 = vunpack.c.l.bf16 %v3468
    %v3488 = vunpack.c.h.bf16 %v3468
    %v3489 = vunpack.c.l.bf16 %v3469
    %v3490 = vunpack.c.l.bf16 %v3470
    %v3491 = vunpack.c.h.bf16 %v3470
    %v3492 = vunpack.c.l.bf16 %v3471
    %v3493 = vunpack.c.l.bf16 %v3472
    %v3494 = vunpack.c.h.bf16 %v3472
    %v3495 = vunpack.c.l.bf16 %v3473
    %v3496 = vunpack.c.l.bf16 %v3474
    %v3497 = vunpack.c.h.bf16 %v3474
    %v3498 = vunpack.c.l.bf16 %v3475
    %v3499 = vunpack.c.l.bf16 %v3476
    %v3500 = vunpack.c.h.bf16 %v3476
    %v3501 = vunpack.c.l.bf16 %v3477
    %v3502 = vpack.c.bf16 %v3446, %v3446
    %v3503 = vpack.c.bf16 %v3447, %v3447
    %v3504 = vpack.c.bf16 %v3448, %v3448
    %v3505 = vpack.c.bf16 %v3449, %v3449
    %v3506 = vpack.c.bf16 %v3450, %v3450
    %v3507 = vpack.c.bf16 %v3451, %v3451
    %v3508 = vpack.c.bf16 %v3452, %v3452
    %v3509 = vpack.c.bf16 %v3453, %v3453
    %v3518 = vunpack.c.l.b16 %v3502
    %v3519 = vunpack.c.l.b16 %v3503
    %v3520 = vunpack.c.l.b16 %v3504
    %v3521 = vunpack.c.l.b16 %v3505
    %v3522 = vunpack.c.l.b16 %v3506
    %v3523 = vunpack.c.l.b16 %v3507
    %v3524 = vunpack.c.l.b16 %v3508
    %v3525 = vunpack.c.l.b16 %v3509
    %v3526 = vrot.slane %v3518, 7
    %v3527 = vrot.slane %v3519, 6
    %v3528 = vsel %vm657, %v3527, %v3526
    %v3529 = vrot.slane %v3520, 5
    %v3530 = vsel %vm660, %v3529, %v3528
    %v3531 = vrot.slane %v3521, 4
    %v3532 = vsel %vm663, %v3531, %v3530
    %v3533 = vrot.slane %v3522, 3
    %v3534 = vsel %vm666, %v3533, %v3532
    %v3535 = vrot.slane %v3523, 2
    %v3536 = vsel %vm669, %v3535, %v3534
    %v3537 = vrot.slane %v3524, 1
    %v3538 = vsel %vm672, %v3537, %v3536
    %v3539 = vsel %vm675, %v3525, %v3538
    %v3540 = vpack.c.b16 %v3539, %v3539
    %3542 = vmatprep.subr.bf16.mxu0 %v224
    %3543 = vmatpush1.bf16.msra.mxu0 %v223
    %3544 = vmatprep.subr.bf16.mxu0 %v227
    %3545 = vmatpush1.bf16.msra.mxu0 %v226
    %3546 = vmatprep.subr.bf16.mxu0 %v230
    %3547 = vmatpush1.bf16.msra.mxu0 %v229
    %3548 = vmatprep.subr.bf16.mxu0 %v233
    %3549 = vmatpush1.bf16.msra.mxu0 %v232
    %3550 = vmatprep.subr.bf16.mxu0 %v236
    %3551 = vmatpush1.bf16.msra.mxu0 %v235
    %3552 = vmatprep.subr.bf16.mxu0 %v239
    %3553 = vmatpush1.bf16.msra.mxu0 %v238
    %3554 = vmatprep.subr.bf16.mxu0 %v242
    %3555 = vmatpush1.bf16.msra.mxu0 %v241
    %3556 = vmatprep.subr.bf16.mxu0 %v245
    %3557 = vmatpush1.bf16.msra.mxu0 %v244
    %3558 = vmatprep.subr.bf16.mxu0 0
    %3559 = vmatpush1.bf16.msra.mxu0 0
    %3560 = vmatprep.subr.bf16.mxu0 0
    %3561 = vmatpush1.bf16.msra.mxu0 0
    %3562 = vmatprep.subr.bf16.mxu0 0
    %3563 = vmatpush1.bf16.msra.mxu0 0
    %3564 = vmatprep.subr.bf16.mxu0 0
    %3565 = vmatpush1.bf16.msra.mxu0 0
    %3566 = vmatprep.subr.bf16.mxu0 0
    %3567 = vmatpush1.bf16.msra.mxu0 0
    %3568 = vmatprep.subr.bf16.mxu0 0
    %3569 = vmatpush1.bf16.msra.mxu0 0
    %3570 = vmatprep.subr.bf16.mxu0 0
    %3571 = vmatpush1.bf16.msra.mxu0 0
    %3572 = vmatprep.subr.bf16.mxu0 0
    %3573 = vmatpush1.bf16.msra.mxu0 0
    %3574 = vmatprep.mubr.bf16.mxu0 0
    %3575 = vmatmul.mubr.bf16.gmra.mrb[0].mxu0 %v3540
    %v3576 = vpop.f32.mrb[0].mxu0
    %v3577 = vadd.f32 %v90, %v3576
    %v3578 = vpop.f32.mrb[0].mxu0
    %v3579 = vadd.f32 %v94, %v3578
    %v3580 = vpop.f32.mrb[0].mxu0
    %v3581 = vpop.f32.mrb[0].mxu0
    %3582 = vdwg.mxu0
    %3583 = vmatprep.subr.bf16.mxu0 0
    %3584 = vmatpush1.bf16.msra.mxu0 %v225
    %3585 = vmatprep.subr.bf16.mxu0 0
    %3586 = vmatpush1.bf16.msra.mxu0 %v228
    %3587 = vmatprep.subr.bf16.mxu0 0
    %3588 = vmatpush1.bf16.msra.mxu0 %v231
    %3589 = vmatprep.subr.bf16.mxu0 0
    %3590 = vmatpush1.bf16.msra.mxu0 %v234
    %3591 = vmatprep.subr.bf16.mxu0 0
    %3592 = vmatpush1.bf16.msra.mxu0 %v237
    %3593 = vmatprep.subr.bf16.mxu0 0
    %3594 = vmatpush1.bf16.msra.mxu0 %v240
    %3595 = vmatprep.subr.bf16.mxu0 0
    %3596 = vmatpush1.bf16.msra.mxu0 %v243
    %3597 = vmatprep.subr.bf16.mxu0 0
    %3598 = vmatpush1.bf16.msra.mxu0 %v246
    %3599 = vmatprep.subr.bf16.mxu0 0
    %3600 = vmatpush1.bf16.msra.mxu0 0
    %3601 = vmatprep.subr.bf16.mxu0 0
    %3602 = vmatpush1.bf16.msra.mxu0 0
    %3603 = vmatprep.subr.bf16.mxu0 0
    %3604 = vmatpush1.bf16.msra.mxu0 0
    %3605 = vmatprep.subr.bf16.mxu0 0
    %3606 = vmatpush1.bf16.msra.mxu0 0
    %3607 = vmatprep.subr.bf16.mxu0 0
    %3608 = vmatpush1.bf16.msra.mxu0 0
    %3609 = vmatprep.subr.bf16.mxu0 0
    %3610 = vmatpush1.bf16.msra.mxu0 0
    %3611 = vmatprep.subr.bf16.mxu0 0
    %3612 = vmatpush1.bf16.msra.mxu0 0
    %3613 = vmatprep.subr.bf16.mxu0 0
    %3614 = vmatpush1.bf16.msra.mxu0 0
    %3615 = vmatprep.mubr.bf16.mxu0 0
    %3616 = vmatmul.mubr.bf16.gmra.mrb[0].mxu0 %v3540
    %v3617 = vpop.f32.mrb[0].mxu0
    %v3618 = vadd.f32 %v98, %v3617
    %v3619 = vpop.f32.mrb[0].mxu0
    %v3620 = vpop.f32.mrb[0].mxu0
    %v3621 = vpop.f32.mrb[0].mxu0
    %3622 = vdwg.mxu0
    %v3624 = vrot.slane %v3577, 1
    %v3625 = vrot.slane %v3577, 2
    %v3626 = vrot.slane %v3577, 3
    %v3627 = vrot.slane %v3577, 4
    %v3628 = vrot.slane %v3577, 5
    %v3629 = vrot.slane %v3577, 6
    %v3630 = vrot.slane %v3577, 7
    %v3639 = vadd.f32 %v3478, %v3577
    %v3640 = vadd.f32 %v3481, %v3624
    %v3641 = vadd.f32 %v3484, %v3625
    %v3642 = vadd.f32 %v3487, %v3626
    %v3643 = vadd.f32 %v3490, %v3627
    %v3644 = vadd.f32 %v3493, %v3628
    %v3645 = vadd.f32 %v3496, %v3629
    %v3646 = vadd.f32 %v3499, %v3630
    %v3647 = vxor.u32 %v3639, 2147483648
    %v3648 = vxor.u32 %v3640, 2147483648
    %v3649 = vxor.u32 %v3641, 2147483648
    %v3650 = vxor.u32 %v3642, 2147483648
    %v3651 = vxor.u32 %v3643, 2147483648
    %v3652 = vxor.u32 %v3644, 2147483648
    %v3653 = vxor.u32 %v3645, 2147483648
    %v3654 = vxor.u32 %v3646, 2147483648
    %v3655 = vmul.f32 %v3647, 1.442695
    %v3656 = vpow.pop %v3655
    %v3657 = vmul.f32 %v3648, 1.442695
    %v3658 = vpow.pop %v3657
    %v3659 = vmul.f32 %v3649, 1.442695
    %v3660 = vpow.pop %v3659
    %v3661 = vmul.f32 %v3650, 1.442695
    %v3662 = vpow.pop %v3661
    %v3663 = vmul.f32 %v3651, 1.442695
    %v3664 = vpow.pop %v3663
    %v3665 = vmul.f32 %v3652, 1.442695
    %v3666 = vpow.pop %v3665
    %v3667 = vmul.f32 %v3653, 1.442695
    %v3668 = vpow.pop %v3667
    %v3669 = vmul.f32 %v3654, 1.442695
    %v3670 = vpow.pop %v3669
    %v3671 = vadd.f32 %v3656, 1.0
    %v3672 = vadd.f32 %v3658, 1.0
    %v3673 = vadd.f32 %v3660, 1.0
    %v3674 = vadd.f32 %v3662, 1.0
    %v3675 = vadd.f32 %v3664, 1.0
    %v3676 = vadd.f32 %v3666, 1.0
    %v3677 = vadd.f32 %v3668, 1.0
    %v3678 = vadd.f32 %v3670, 1.0
    %v3679 = vrcp.pop %v3671
    %v3680 = vmul.f32 1.0, %v3679
    %v3681 = vrcp.pop %v3672
    %v3682 = vmul.f32 1.0, %v3681
    %v3683 = vrcp.pop %v3673
    %v3684 = vmul.f32 1.0, %v3683
    %v3685 = vrcp.pop %v3674
    %v3686 = vmul.f32 1.0, %v3685
    %v3687 = vrcp.pop %v3675
    %v3688 = vmul.f32 1.0, %v3687
    %v3689 = vrcp.pop %v3676
    %v3690 = vmul.f32 1.0, %v3689
    %v3691 = vrcp.pop %v3677
    %v3692 = vmul.f32 1.0, %v3691
    %v3693 = vrcp.pop %v3678
    %v3694 = vmul.f32 1.0, %v3693
    %v3696 = vrot.slane %v3579, 1
    %v3697 = vrot.slane %v3579, 2
    %v3698 = vrot.slane %v3579, 3
    %v3699 = vrot.slane %v3579, 4
    %v3700 = vrot.slane %v3579, 5
    %v3701 = vrot.slane %v3579, 6
    %v3702 = vrot.slane %v3579, 7
    %v3711 = vadd.f32 %v3479, %v3579
    %v3712 = vadd.f32 %v3482, %v3696
    %v3713 = vadd.f32 %v3485, %v3697
    %v3714 = vadd.f32 %v3488, %v3698
    %v3715 = vadd.f32 %v3491, %v3699
    %v3716 = vadd.f32 %v3494, %v3700
    %v3717 = vadd.f32 %v3497, %v3701
    %v3718 = vadd.f32 %v3500, %v3702
    %v3719 = vxor.u32 %v3711, 2147483648
    %v3720 = vxor.u32 %v3712, 2147483648
    %v3721 = vxor.u32 %v3713, 2147483648
    %v3722 = vxor.u32 %v3714, 2147483648
    %v3723 = vxor.u32 %v3715, 2147483648
    %v3724 = vxor.u32 %v3716, 2147483648
    %v3725 = vxor.u32 %v3717, 2147483648
    %v3726 = vxor.u32 %v3718, 2147483648
    %v3727 = vmul.f32 %v3719, 1.442695
    %v3728 = vpow.pop %v3727
    %v3729 = vmul.f32 %v3720, 1.442695
    %v3730 = vpow.pop %v3729
    %v3731 = vmul.f32 %v3721, 1.442695
    %v3732 = vpow.pop %v3731
    %v3733 = vmul.f32 %v3722, 1.442695
    %v3734 = vpow.pop %v3733
    %v3735 = vmul.f32 %v3723, 1.442695
    %v3736 = vpow.pop %v3735
    %v3737 = vmul.f32 %v3724, 1.442695
    %v3738 = vpow.pop %v3737
    %v3739 = vmul.f32 %v3725, 1.442695
    %v3740 = vpow.pop %v3739
    %v3741 = vmul.f32 %v3726, 1.442695
    %v3742 = vpow.pop %v3741
    %v3743 = vadd.f32 %v3728, 1.0
    %v3744 = vadd.f32 %v3730, 1.0
    %v3745 = vadd.f32 %v3732, 1.0
    %v3746 = vadd.f32 %v3734, 1.0
    %v3747 = vadd.f32 %v3736, 1.0
    %v3748 = vadd.f32 %v3738, 1.0
    %v3749 = vadd.f32 %v3740, 1.0
    %v3750 = vadd.f32 %v3742, 1.0
    %v3751 = vrcp.pop %v3743
    %v3752 = vmul.f32 1.0, %v3751
    %v3753 = vrcp.pop %v3744
    %v3754 = vmul.f32 1.0, %v3753
    %v3755 = vrcp.pop %v3745
    %v3756 = vmul.f32 1.0, %v3755
    %v3757 = vrcp.pop %v3746
    %v3758 = vmul.f32 1.0, %v3757
    %v3759 = vrcp.pop %v3747
    %v3760 = vmul.f32 1.0, %v3759
    %v3761 = vrcp.pop %v3748
    %v3762 = vmul.f32 1.0, %v3761
    %v3763 = vrcp.pop %v3749
    %v3764 = vmul.f32 1.0, %v3763
    %v3765 = vrcp.pop %v3750
    %v3766 = vmul.f32 1.0, %v3765
    %v3768 = vrot.slane %v3618, 1
    %v3769 = vrot.slane %v3618, 2
    %v3770 = vrot.slane %v3618, 3
    %v3771 = vrot.slane %v3618, 4
    %v3772 = vrot.slane %v3618, 5
    %v3773 = vrot.slane %v3618, 6
    %v3774 = vrot.slane %v3618, 7
    %v3783 = vmul.f32 %v3680, %v3618
    %v3784 = vmul.f32 %v3682, %v3768
    %v3785 = vmul.f32 %v3684, %v3769
    %v3786 = vmul.f32 %v3686, %v3770
    %v3787 = vmul.f32 %v3688, %v3771
    %v3788 = vmul.f32 %v3690, %v3772
    %v3789 = vmul.f32 %v3692, %v3773
    %v3790 = vmul.f32 %v3694, %v3774
    %v3791 = vadd.f32 %v3480, %v3783
    %v3792 = vadd.f32 %v3483, %v3784
    %v3793 = vadd.f32 %v3486, %v3785
    %v3794 = vadd.f32 %v3489, %v3786
    %v3795 = vadd.f32 %v3492, %v3787
    %v3796 = vadd.f32 %v3495, %v3788
    %v3797 = vadd.f32 %v3498, %v3789
    %v3798 = vadd.f32 %v3501, %v3790
    %v3799 = vtanh.pop %v3791
    %v3800 = vtanh.pop %v3792
    %v3801 = vtanh.pop %v3793
    %v3802 = vtanh.pop %v3794
    %v3803 = vtanh.pop %v3795
    %v3804 = vtanh.pop %v3796
    %v3805 = vtanh.pop %v3797
    %v3806 = vtanh.pop %v3798
    %v3807 = vsub.f32 1.0, %v3752
    %v3808 = vsub.f32 1.0, %v3754
    %v3809 = vsub.f32 1.0, %v3756
    %v3810 = vsub.f32 1.0, %v3758
    %v3811 = vsub.f32 1.0, %v3760
    %v3812 = vsub.f32 1.0, %v3762
    %v3813 = vsub.f32 1.0, %v3764
    %v3814 = vsub.f32 1.0, %v3766
    %v3815 = vmul.f32 %v3807, %v3799
    %v3816 = vmul.f32 %v3808, %v3800
    %v3817 = vmul.f32 %v3809, %v3801
    %v3818 = vmul.f32 %v3810, %v3802
    %v3819 = vmul.f32 %v3811, %v3803
    %v3820 = vmul.f32 %v3812, %v3804
    %v3821 = vmul.f32 %v3813, %v3805
    %v3822 = vmul.f32 %v3814, %v3806
    %v3831 = vrot.slane %v3446, 7
    %v3832 = vrot.slane %v3447, 7
    %v3833 = vrot.slane %v3448, 7
    %v3834 = vrot.slane %v3449, 7
    %v3835 = vrot.slane %v3450, 7
    %v3836 = vrot.slane %v3451, 7
    %v3837 = vrot.slane %v3452, 7
    %v3838 = vrot.slane %v3453, 7
    %v3847 = vmul.f32 %v3752, %v3831
    %v3848 = vmul.f32 %v3754, %v3832
    %v3849 = vmul.f32 %v3756, %v3833
    %v3850 = vmul.f32 %v3758, %v3834
    %v3851 = vmul.f32 %v3760, %v3835
    %v3852 = vmul.f32 %v3762, %v3836
    %v3853 = vmul.f32 %v3764, %v3837
    %v3854 = vmul.f32 %v3766, %v3838
    %v3855 = vadd.f32 %v3815, %v3847
    %v3856 = vadd.f32 %v3816, %v3848
    %v3857 = vadd.f32 %v3817, %v3849
    %v3858 = vadd.f32 %v3818, %v3850
    %v3859 = vadd.f32 %v3819, %v3851
    %v3860 = vadd.f32 %v3820, %v3852
    %v3861 = vadd.f32 %v3821, %v3853
    %v3862 = vadd.f32 %v3822, %v3854
    %3863 = vst [vmem:[#allocation8 + $0x8] sm:$0x1] %v3855
    %3864 = vst [vmem:[#allocation8 + $0x18] sm:$0x1] %v3856
    %3865 = vst [vmem:[#allocation8 + $0x28] sm:$0x1] %v3857
    %3866 = vst [vmem:[#allocation8 + $0x38] sm:$0x1] %v3858
    %3867 = vst [vmem:[#allocation8 + $0x48] sm:$0x1] %v3859
    %3868 = vst [vmem:[#allocation8 + $0x58] sm:$0x1] %v3860
    %3869 = vst [vmem:[#allocation8 + $0x68] sm:$0x1] %v3861
    %3870 = vst [vmem:[#allocation8 + $0x78] sm:$0x1] %v3862
    %v3871 = vld [vmem:[#allocation3 + $0xc] sm:$0x11]
    %v3872 = vld [vmem:[#allocation3 + $0x14] sm:$0x1]
    %v3873 = vld [vmem:[#allocation3 + $0x24] sm:$0x11]
    %v3874 = vld [vmem:[#allocation3 + $0x2c] sm:$0x1]
    %v3875 = vld [vmem:[#allocation3 + $0x3c] sm:$0x11]
    %v3876 = vld [vmem:[#allocation3 + $0x44] sm:$0x1]
    %v3877 = vld [vmem:[#allocation3 + $0x54] sm:$0x11]
    %v3878 = vld [vmem:[#allocation3 + $0x5c] sm:$0x1]
    %v3879 = vld [vmem:[#allocation3 + $0x6c] sm:$0x11]
    %v3880 = vld [vmem:[#allocation3 + $0x74] sm:$0x1]
    %v3881 = vld [vmem:[#allocation3 + $0x84] sm:$0x11]
    %v3882 = vld [vmem:[#allocation3 + $0x8c] sm:$0x1]
    %v3883 = vld [vmem:[#allocation3 + $0x9c] sm:$0x11]
    %v3884 = vld [vmem:[#allocation3 + $0xa4] sm:$0x1]
    %v3885 = vld [vmem:[#allocation3 + $0xb4] sm:$0x11]
    %v3886 = vld [vmem:[#allocation3 + $0xbc] sm:$0x1]
    %v3887 = vunpack.c.l.bf16 %v3871
    %v3888 = vunpack.c.h.bf16 %v3871
    %v3889 = vunpack.c.l.bf16 %v3872
    %v3890 = vunpack.c.l.bf16 %v3873
    %v3891 = vunpack.c.h.bf16 %v3873
    %v3892 = vunpack.c.l.bf16 %v3874
    %v3893 = vunpack.c.l.bf16 %v3875
    %v3894 = vunpack.c.h.bf16 %v3875
    %v3895 = vunpack.c.l.bf16 %v3876
    %v3896 = vunpack.c.l.bf16 %v3877
    %v3897 = vunpack.c.h.bf16 %v3877
    %v3898 = vunpack.c.l.bf16 %v3878
    %v3899 = vunpack.c.l.bf16 %v3879
    %v3900 = vunpack.c.h.bf16 %v3879
    %v3901 = vunpack.c.l.bf16 %v3880
    %v3902 = vunpack.c.l.bf16 %v3881
    %v3903 = vunpack.c.h.bf16 %v3881
    %v3904 = vunpack.c.l.bf16 %v3882
    %v3905 = vunpack.c.l.bf16 %v3883
    %v3906 = vunpack.c.h.bf16 %v3883
    %v3907 = vunpack.c.l.bf16 %v3884
    %v3908 = vunpack.c.l.bf16 %v3885
    %v3909 = vunpack.c.h.bf16 %v3885
    %v3910 = vunpack.c.l.bf16 %v3886
    %v3911 = vpack.c.bf16 %v3855, %v3855
    %v3912 = vpack.c.bf16 %v3856, %v3856
    %v3913 = vpack.c.bf16 %v3857, %v3857
    %v3914 = vpack.c.bf16 %v3858, %v3858
    %v3915 = vpack.c.bf16 %v3859, %v3859
    %v3916 = vpack.c.bf16 %v3860, %v3860
    %v3917 = vpack.c.bf16 %v3861, %v3861
    %v3918 = vpack.c.bf16 %v3862, %v3862
    %v3927 = vunpack.c.l.b16 %v3911
    %v3928 = vunpack.c.l.b16 %v3912
    %v3929 = vunpack.c.l.b16 %v3913
    %v3930 = vunpack.c.l.b16 %v3914
    %v3931 = vunpack.c.l.b16 %v3915
    %v3932 = vunpack.c.l.b16 %v3916
    %v3933 = vunpack.c.l.b16 %v3917
    %v3934 = vunpack.c.l.b16 %v3918
    %v3935 = vrot.slane %v3928, 7
    %v3936 = vsel %vm657, %v3935, %v3927
    %v3937 = vrot.slane %v3929, 6
    %v3938 = vsel %vm660, %v3937, %v3936
    %v3939 = vrot.slane %v3930, 5
    %v3940 = vsel %vm663, %v3939, %v3938
    %v3941 = vrot.slane %v3931, 4
    %v3942 = vsel %vm666, %v3941, %v3940
    %v3943 = vrot.slane %v3932, 3
    %v3944 = vsel %vm669, %v3943, %v3942
    %v3945 = vrot.slane %v3933, 2
    %v3946 = vsel %vm672, %v3945, %v3944
    %v3947 = vrot.slane %v3934, 1
    %v3948 = vsel %vm675, %v3947, %v3946
    %v3949 = vpack.c.b16 %v3948, %v3948
    %3951 = vmatprep.subr.bf16.mxu0 %v224
    %3952 = vmatpush1.bf16.msra.mxu0 %v223
    %3953 = vmatprep.subr.bf16.mxu0 %v227
    %3954 = vmatpush1.bf16.msra.mxu0 %v226
    %3955 = vmatprep.subr.bf16.mxu0 %v230
    %3956 = vmatpush1.bf16.msra.mxu0 %v229
    %3957 = vmatprep.subr.bf16.mxu0 %v233
    %3958 = vmatpush1.bf16.msra.mxu0 %v232
    %3959 = vmatprep.subr.bf16.mxu0 %v236
    %3960 = vmatpush1.bf16.msra.mxu0 %v235
    %3961 = vmatprep.subr.bf16.mxu0 %v239
    %3962 = vmatpush1.bf16.msra.mxu0 %v238
    %3963 = vmatprep.subr.bf16.mxu0 %v242
    %3964 = vmatpush1.bf16.msra.mxu0 %v241
    %3965 = vmatprep.subr.bf16.mxu0 %v245
    %3966 = vmatpush1.bf16.msra.mxu0 %v244
    %3967 = vmatprep.subr.bf16.mxu0 0
    %3968 = vmatpush1.bf16.msra.mxu0 0
    %3969 = vmatprep.subr.bf16.mxu0 0
    %3970 = vmatpush1.bf16.msra.mxu0 0
    %3971 = vmatprep.subr.bf16.mxu0 0
    %3972 = vmatpush1.bf16.msra.mxu0 0
    %3973 = vmatprep.subr.bf16.mxu0 0
    %3974 = vmatpush1.bf16.msra.mxu0 0
    %3975 = vmatprep.subr.bf16.mxu0 0
    %3976 = vmatpush1.bf16.msra.mxu0 0
    %3977 = vmatprep.subr.bf16.mxu0 0
    %3978 = vmatpush1.bf16.msra.mxu0 0
    %3979 = vmatprep.subr.bf16.mxu0 0
    %3980 = vmatpush1.bf16.msra.mxu0 0
    %3981 = vmatprep.subr.bf16.mxu0 0
    %3982 = vmatpush1.bf16.msra.mxu0 0
    %3983 = vmatprep.mubr.bf16.mxu0 0
    %3984 = vmatmul.mubr.bf16.gmra.mrb[0].mxu0 %v3949
    %v3985 = vpop.f32.mrb[0].mxu0
    %v3986 = vadd.f32 %v90, %v3985
    %v3987 = vpop.f32.mrb[0].mxu0
    %v3988 = vadd.f32 %v94, %v3987
    %v3989 = vpop.f32.mrb[0].mxu0
    %v3990 = vpop.f32.mrb[0].mxu0
    %3991 = vdwg.mxu0
    %3992 = vmatprep.subr.bf16.mxu0 0
    %3993 = vmatpush1.bf16.msra.mxu0 %v225
    %3994 = vmatprep.subr.bf16.mxu0 0
    %3995 = vmatpush1.bf16.msra.mxu0 %v228
    %3996 = vmatprep.subr.bf16.mxu0 0
    %3997 = vmatpush1.bf16.msra.mxu0 %v231
    %3998 = vmatprep.subr.bf16.mxu0 0
    %3999 = vmatpush1.bf16.msra.mxu0 %v234
    %4000 = vmatprep.subr.bf16.mxu0 0
    %4001 = vmatpush1.bf16.msra.mxu0 %v237
    %4002 = vmatprep.subr.bf16.mxu0 0
    %4003 = vmatpush1.bf16.msra.mxu0 %v240
    %4004 = vmatprep.subr.bf16.mxu0 0
    %4005 = vmatpush1.bf16.msra.mxu0 %v243
    %4006 = vmatprep.subr.bf16.mxu0 0
    %4007 = vmatpush1.bf16.msra.mxu0 %v246
    %4008 = vmatprep.subr.bf16.mxu0 0
    %4009 = vmatpush1.bf16.msra.mxu0 0
    %4010 = vmatprep.subr.bf16.mxu0 0
    %4011 = vmatpush1.bf16.msra.mxu0 0
    %4012 = vmatprep.subr.bf16.mxu0 0
    %4013 = vmatpush1.bf16.msra.mxu0 0
    %4014 = vmatprep.subr.bf16.mxu0 0
    %4015 = vmatpush1.bf16.msra.mxu0 0
    %4016 = vmatprep.subr.bf16.mxu0 0
    %4017 = vmatpush1.bf16.msra.mxu0 0
    %4018 = vmatprep.subr.bf16.mxu0 0
    %4019 = vmatpush1.bf16.msra.mxu0 0
    %4020 = vmatprep.subr.bf16.mxu0 0
    %4021 = vmatpush1.bf16.msra.mxu0 0
    %4022 = vmatprep.subr.bf16.mxu0 0
    %4023 = vmatpush1.bf16.msra.mxu0 0
    %4024 = vmatprep.mubr.bf16.mxu0 0
    %4025 = vmatmul.mubr.bf16.gmra.mrb[0].mxu0 %v3949
    %v4026 = vpop.f32.mrb[0].mxu0
    %v4027 = vadd.f32 %v98, %v4026
    %v4028 = vpop.f32.mrb[0].mxu0
    %v4029 = vpop.f32.mrb[0].mxu0
    %v4030 = vpop.f32.mrb[0].mxu0
    %4031 = vdwg.mxu0
    %v4033 = vrot.slane %v3986, 7
    %v4034 = vrot.slane %v3986, 1
    %v4035 = vrot.slane %v3986, 2
    %v4036 = vrot.slane %v3986, 3
    %v4037 = vrot.slane %v3986, 4
    %v4038 = vrot.slane %v3986, 5
    %v4039 = vrot.slane %v3986, 6
    %v4048 = vadd.f32 %v3887, %v4033
    %v4049 = vadd.f32 %v3890, %v3986
    %v4050 = vadd.f32 %v3893, %v4034
    %v4051 = vadd.f32 %v3896, %v4035
    %v4052 = vadd.f32 %v3899, %v4036
    %v4053 = vadd.f32 %v3902, %v4037
    %v4054 = vadd.f32 %v3905, %v4038
    %v4055 = vadd.f32 %v3908, %v4039
    %v4056 = vxor.u32 %v4048, 2147483648
    %v4057 = vxor.u32 %v4049, 2147483648
    %v4058 = vxor.u32 %v4050, 2147483648
    %v4059 = vxor.u32 %v4051, 2147483648
    %v4060 = vxor.u32 %v4052, 2147483648
    %v4061 = vxor.u32 %v4053, 2147483648
    %v4062 = vxor.u32 %v4054, 2147483648
    %v4063 = vxor.u32 %v4055, 2147483648
    %v4064 = vmul.f32 %v4056, 1.442695
    %v4065 = vpow.pop %v4064
    %v4066 = vmul.f32 %v4057, 1.442695
    %v4067 = vpow.pop %v4066
    %v4068 = vmul.f32 %v4058, 1.442695
    %v4069 = vpow.pop %v4068
    %v4070 = vmul.f32 %v4059, 1.442695
    %v4071 = vpow.pop %v4070
    %v4072 = vmul.f32 %v4060, 1.442695
    %v4073 = vpow.pop %v4072
    %v4074 = vmul.f32 %v4061, 1.442695
    %v4075 = vpow.pop %v4074
    %v4076 = vmul.f32 %v4062, 1.442695
    %v4077 = vpow.pop %v4076
    %v4078 = vmul.f32 %v4063, 1.442695
    %v4079 = vpow.pop %v4078
    %v4080 = vadd.f32 %v4065, 1.0
    %v4081 = vadd.f32 %v4067, 1.0
    %v4082 = vadd.f32 %v4069, 1.0
    %v4083 = vadd.f32 %v4071, 1.0
    %v4084 = vadd.f32 %v4073, 1.0
    %v4085 = vadd.f32 %v4075, 1.0
    %v4086 = vadd.f32 %v4077, 1.0
    %v4087 = vadd.f32 %v4079, 1.0
    %v4088 = vrcp.pop %v4080
    %v4089 = vmul.f32 1.0, %v4088
    %v4090 = vrcp.pop %v4081
    %v4091 = vmul.f32 1.0, %v4090
    %v4092 = vrcp.pop %v4082
    %v4093 = vmul.f32 1.0, %v4092
    %v4094 = vrcp.pop %v4083
    %v4095 = vmul.f32 1.0, %v4094
    %v4096 = vrcp.pop %v4084
    %v4097 = vmul.f32 1.0, %v4096
    %v4098 = vrcp.pop %v4085
    %v4099 = vmul.f32 1.0, %v4098
    %v4100 = vrcp.pop %v4086
    %v4101 = vmul.f32 1.0, %v4100
    %v4102 = vrcp.pop %v4087
    %v4103 = vmul.f32 1.0, %v4102
    %v4105 = vrot.slane %v3988, 7
    %v4106 = vrot.slane %v3988, 1
    %v4107 = vrot.slane %v3988, 2
    %v4108 = vrot.slane %v3988, 3
    %v4109 = vrot.slane %v3988, 4
    %v4110 = vrot.slane %v3988, 5
    %v4111 = vrot.slane %v3988, 6
    %v4120 = vadd.f32 %v3888, %v4105
    %v4121 = vadd.f32 %v3891, %v3988
    %v4122 = vadd.f32 %v3894, %v4106
    %v4123 = vadd.f32 %v3897, %v4107
    %v4124 = vadd.f32 %v3900, %v4108
    %v4125 = vadd.f32 %v3903, %v4109
    %v4126 = vadd.f32 %v3906, %v4110
    %v4127 = vadd.f32 %v3909, %v4111
    %v4128 = vxor.u32 %v4120, 2147483648
    %v4129 = vxor.u32 %v4121, 2147483648
    %v4130 = vxor.u32 %v4122, 2147483648
    %v4131 = vxor.u32 %v4123, 2147483648
    %v4132 = vxor.u32 %v4124, 2147483648
    %v4133 = vxor.u32 %v4125, 2147483648
    %v4134 = vxor.u32 %v4126, 2147483648
    %v4135 = vxor.u32 %v4127, 2147483648
    %v4136 = vmul.f32 %v4128, 1.442695
    %v4137 = vpow.pop %v4136
    %v4138 = vmul.f32 %v4129, 1.442695
    %v4139 = vpow.pop %v4138
    %v4140 = vmul.f32 %v4130, 1.442695
    %v4141 = vpow.pop %v4140
    %v4142 = vmul.f32 %v4131, 1.442695
    %v4143 = vpow.pop %v4142
    %v4144 = vmul.f32 %v4132, 1.442695
    %v4145 = vpow.pop %v4144
    %v4146 = vmul.f32 %v4133, 1.442695
    %v4147 = vpow.pop %v4146
    %v4148 = vmul.f32 %v4134, 1.442695
    %v4149 = vpow.pop %v4148
    %v4150 = vmul.f32 %v4135, 1.442695
    %v4151 = vpow.pop %v4150
    %v4152 = vadd.f32 %v4137, 1.0
    %v4153 = vadd.f32 %v4139, 1.0
    %v4154 = vadd.f32 %v4141, 1.0
    %v4155 = vadd.f32 %v4143, 1.0
    %v4156 = vadd.f32 %v4145, 1.0
    %v4157 = vadd.f32 %v4147, 1.0
    %v4158 = vadd.f32 %v4149, 1.0
    %v4159 = vadd.f32 %v4151, 1.0
    %v4160 = vrcp.pop %v4152
    %v4161 = vmul.f32 1.0, %v4160
    %v4162 = vrcp.pop %v4153
    %v4163 = vmul.f32 1.0, %v4162
    %v4164 = vrcp.pop %v4154
    %v4165 = vmul.f32 1.0, %v4164
    %v4166 = vrcp.pop %v4155
    %v4167 = vmul.f32 1.0, %v4166
    %v4168 = vrcp.pop %v4156
    %v4169 = vmul.f32 1.0, %v4168
    %v4170 = vrcp.pop %v4157
    %v4171 = vmul.f32 1.0, %v4170
    %v4172 = vrcp.pop %v4158
    %v4173 = vmul.f32 1.0, %v4172
    %v4174 = vrcp.pop %v4159
    %v4175 = vmul.f32 1.0, %v4174
    %v4177 = vrot.slane %v4027, 7
    %v4178 = vrot.slane %v4027, 1
    %v4179 = vrot.slane %v4027, 2
    %v4180 = vrot.slane %v4027, 3
    %v4181 = vrot.slane %v4027, 4
    %v4182 = vrot.slane %v4027, 5
    %v4183 = vrot.slane %v4027, 6
    %v4192 = vmul.f32 %v4089, %v4177
    %v4193 = vmul.f32 %v4091, %v4027
    %v4194 = vmul.f32 %v4093, %v4178
    %v4195 = vmul.f32 %v4095, %v4179
    %v4196 = vmul.f32 %v4097, %v4180
    %v4197 = vmul.f32 %v4099, %v4181
    %v4198 = vmul.f32 %v4101, %v4182
    %v4199 = vmul.f32 %v4103, %v4183
    %v4200 = vadd.f32 %v3889, %v4192
    %v4201 = vadd.f32 %v3892, %v4193
    %v4202 = vadd.f32 %v3895, %v4194
    %v4203 = vadd.f32 %v3898, %v4195
    %v4204 = vadd.f32 %v3901, %v4196
    %v4205 = vadd.f32 %v3904, %v4197
    %v4206 = vadd.f32 %v3907, %v4198
    %v4207 = vadd.f32 %v3910, %v4199
    %v4208 = vtanh.pop %v4200
    %v4209 = vtanh.pop %v4201
    %v4210 = vtanh.pop %v4202
    %v4211 = vtanh.pop %v4203
    %v4212 = vtanh.pop %v4204
    %v4213 = vtanh.pop %v4205
    %v4214 = vtanh.pop %v4206
    %v4215 = vtanh.pop %v4207
    %v4216 = vsub.f32 1.0, %v4161
    %v4217 = vsub.f32 1.0, %v4163
    %v4218 = vsub.f32 1.0, %v4165
    %v4219 = vsub.f32 1.0, %v4167
    %v4220 = vsub.f32 1.0, %v4169
    %v4221 = vsub.f32 1.0, %v4171
    %v4222 = vsub.f32 1.0, %v4173
    %v4223 = vsub.f32 1.0, %v4175
    %v4224 = vmul.f32 %v4216, %v4208
    %v4225 = vmul.f32 %v4217, %v4209
    %v4226 = vmul.f32 %v4218, %v4210
    %v4227 = vmul.f32 %v4219, %v4211
    %v4228 = vmul.f32 %v4220, %v4212
    %v4229 = vmul.f32 %v4221, %v4213
    %v4230 = vmul.f32 %v4222, %v4214
    %v4231 = vmul.f32 %v4223, %v4215
    %v4240 = vrot.slane %v3855, 7
    %v4241 = vrot.slane %v3856, 7
    %v4242 = vrot.slane %v3857, 7
    %v4243 = vrot.slane %v3858, 7
    %v4244 = vrot.slane %v3859, 7
    %v4245 = vrot.slane %v3860, 7
    %v4246 = vrot.slane %v3861, 7
    %v4247 = vrot.slane %v3862, 7
    %v4256 = vmul.f32 %v4161, %v4240
    %v4257 = vmul.f32 %v4163, %v4241
    %v4258 = vmul.f32 %v4165, %v4242
    %v4259 = vmul.f32 %v4167, %v4243
    %v4260 = vmul.f32 %v4169, %v4244
    %v4261 = vmul.f32 %v4171, %v4245
    %v4262 = vmul.f32 %v4173, %v4246
    %v4263 = vmul.f32 %v4175, %v4247
    %v4264 = vadd.f32 %v4224, %v4256
    %v4265 = vadd.f32 %v4225, %v4257
    %v4266 = vadd.f32 %v4226, %v4258
    %v4267 = vadd.f32 %v4227, %v4259
    %v4268 = vadd.f32 %v4228, %v4260
    %v4269 = vadd.f32 %v4229, %v4261
    %v4270 = vadd.f32 %v4230, %v4262
    %v4271 = vadd.f32 %v4231, %v4263
    %4272 = vst [vmem:[#allocation8 + $0x8] sm:$0x2] %v4264
    %4273 = vst [vmem:[#allocation8 + $0x18] sm:$0x2] %v4265
    %4274 = vst [vmem:[#allocation8 + $0x28] sm:$0x2] %v4266
    %4275 = vst [vmem:[#allocation8 + $0x38] sm:$0x2] %v4267
    %4276 = vst [vmem:[#allocation8 + $0x48] sm:$0x2] %v4268
    %4277 = vst [vmem:[#allocation8 + $0x58] sm:$0x2] %v4269
    %4278 = vst [vmem:[#allocation8 + $0x68] sm:$0x2] %v4270
    %4279 = vst [vmem:[#allocation8 + $0x78] sm:$0x2] %v4271
    %v4280 = vld [vmem:[#allocation3 + $0xc] sm:$0x22]
    %v4281 = vld [vmem:[#allocation3 + $0x14] sm:$0x2]
    %v4282 = vld [vmem:[#allocation3 + $0x24] sm:$0x22]
    %v4283 = vld [vmem:[#allocation3 + $0x2c] sm:$0x2]
    %v4284 = vld [vmem:[#allocation3 + $0x3c] sm:$0x22]
    %v4285 = vld [vmem:[#allocation3 + $0x44] sm:$0x2]
    %v4286 = vld [vmem:[#allocation3 + $0x54] sm:$0x22]
    %v4287 = vld [vmem:[#allocation3 + $0x5c] sm:$0x2]
    %v4288 = vld [vmem:[#allocation3 + $0x6c] sm:$0x22]
    %v4289 = vld [vmem:[#allocation3 + $0x74] sm:$0x2]
    %v4290 = vld [vmem:[#allocation3 + $0x84] sm:$0x22]
    %v4291 = vld [vmem:[#allocation3 + $0x8c] sm:$0x2]
    %v4292 = vld [vmem:[#allocation3 + $0x9c] sm:$0x22]
    %v4293 = vld [vmem:[#allocation3 + $0xa4] sm:$0x2]
    %v4294 = vld [vmem:[#allocation3 + $0xb4] sm:$0x22]
    %v4295 = vld [vmem:[#allocation3 + $0xbc] sm:$0x2]
    %v4296 = vunpack.c.l.bf16 %v4280
    %v4297 = vunpack.c.h.bf16 %v4280
    %v4298 = vunpack.c.l.bf16 %v4281
    %v4299 = vunpack.c.l.bf16 %v4282
    %v4300 = vunpack.c.h.bf16 %v4282
    %v4301 = vunpack.c.l.bf16 %v4283
    %v4302 = vunpack.c.l.bf16 %v4284
    %v4303 = vunpack.c.h.bf16 %v4284
    %v4304 = vunpack.c.l.bf16 %v4285
    %v4305 = vunpack.c.l.bf16 %v4286
    %v4306 = vunpack.c.h.bf16 %v4286
    %v4307 = vunpack.c.l.bf16 %v4287
    %v4308 = vunpack.c.l.bf16 %v4288
    %v4309 = vunpack.c.h.bf16 %v4288
    %v4310 = vunpack.c.l.bf16 %v4289
    %v4311 = vunpack.c.l.bf16 %v4290
    %v4312 = vunpack.c.h.bf16 %v4290
    %v4313 = vunpack.c.l.bf16 %v4291
    %v4314 = vunpack.c.l.bf16 %v4292
    %v4315 = vunpack.c.h.bf16 %v4292
    %v4316 = vunpack.c.l.bf16 %v4293
    %v4317 = vunpack.c.l.bf16 %v4294
    %v4318 = vunpack.c.h.bf16 %v4294
    %v4319 = vunpack.c.l.bf16 %v4295
    %v4320 = vpack.c.bf16 %v4264, %v4264
    %v4321 = vpack.c.bf16 %v4265, %v4265
    %v4322 = vpack.c.bf16 %v4266, %v4266
    %v4323 = vpack.c.bf16 %v4267, %v4267
    %v4324 = vpack.c.bf16 %v4268, %v4268
    %v4325 = vpack.c.bf16 %v4269, %v4269
    %v4326 = vpack.c.bf16 %v4270, %v4270
    %v4327 = vpack.c.bf16 %v4271, %v4271
    %v4336 = vunpack.c.l.b16 %v4320
    %v4337 = vunpack.c.l.b16 %v4321
    %v4338 = vunpack.c.l.b16 %v4322
    %v4339 = vunpack.c.l.b16 %v4323
    %v4340 = vunpack.c.l.b16 %v4324
    %v4341 = vunpack.c.l.b16 %v4325
    %v4342 = vunpack.c.l.b16 %v4326
    %v4343 = vunpack.c.l.b16 %v4327
    %v4344 = vrot.slane %v4336, 1
    %v4345 = vsel %vm657, %v4337, %v4344
    %v4346 = vrot.slane %v4338, 7
    %v4347 = vsel %vm660, %v4346, %v4345
    %v4348 = vrot.slane %v4339, 6
    %v4349 = vsel %vm663, %v4348, %v4347
    %v4350 = vrot.slane %v4340, 5
    %v4351 = vsel %vm666, %v4350, %v4349
    %v4352 = vrot.slane %v4341, 4
    %v4353 = vsel %vm669, %v4352, %v4351
    %v4354 = vrot.slane %v4342, 3
    %v4355 = vsel %vm672, %v4354, %v4353
    %v4356 = vrot.slane %v4343, 2
    %v4357 = vsel %vm675, %v4356, %v4355
    %v4358 = vpack.c.b16 %v4357, %v4357
    %4360 = vmatprep.subr.bf16.mxu0 %v224
    %4361 = vmatpush1.bf16.msra.mxu0 %v223
    %4362 = vmatprep.subr.bf16.mxu0 %v227
    %4363 = vmatpush1.bf16.msra.mxu0 %v226
    %4364 = vmatprep.subr.bf16.mxu0 %v230
    %4365 = vmatpush1.bf16.msra.mxu0 %v229
    %4366 = vmatprep.subr.bf16.mxu0 %v233
    %4367 = vmatpush1.bf16.msra.mxu0 %v232
    %4368 = vmatprep.subr.bf16.mxu0 %v236
    %4369 = vmatpush1.bf16.msra.mxu0 %v235
    %4370 = vmatprep.subr.bf16.mxu0 %v239
    %4371 = vmatpush1.bf16.msra.mxu0 %v238
    %4372 = vmatprep.subr.bf16.mxu0 %v242
    %4373 = vmatpush1.bf16.msra.mxu0 %v241
    %4374 = vmatprep.subr.bf16.mxu0 %v245
    %4375 = vmatpush1.bf16.msra.mxu0 %v244
    %4376 = vmatprep.subr.bf16.mxu0 0
    %4377 = vmatpush1.bf16.msra.mxu0 0
    %4378 = vmatprep.subr.bf16.mxu0 0
    %4379 = vmatpush1.bf16.msra.mxu0 0
    %4380 = vmatprep.subr.bf16.mxu0 0
    %4381 = vmatpush1.bf16.msra.mxu0 0
    %4382 = vmatprep.subr.bf16.mxu0 0
    %4383 = vmatpush1.bf16.msra.mxu0 0
    %4384 = vmatprep.subr.bf16.mxu0 0
    %4385 = vmatpush1.bf16.msra.mxu0 0
    %4386 = vmatprep.subr.bf16.mxu0 0
    %4387 = vmatpush1.bf16.msra.mxu0 0
    %4388 = vmatprep.subr.bf16.mxu0 0
    %4389 = vmatpush1.bf16.msra.mxu0 0
    %4390 = vmatprep.subr.bf16.mxu0 0
    %4391 = vmatpush1.bf16.msra.mxu0 0
    %4392 = vmatprep.mubr.bf16.mxu0 0
    %4393 = vmatmul.mubr.bf16.gmra.mrb[0].mxu0 %v4358
    %v4394 = vpop.f32.mrb[0].mxu0
    %v4395 = vadd.f32 %v90, %v4394
    %v4396 = vpop.f32.mrb[0].mxu0
    %v4397 = vadd.f32 %v94, %v4396
    %v4398 = vpop.f32.mrb[0].mxu0
    %v4399 = vpop.f32.mrb[0].mxu0
    %4400 = vdwg.mxu0
    %4401 = vmatprep.subr.bf16.mxu0 0
    %4402 = vmatpush1.bf16.msra.mxu0 %v225
    %4403 = vmatprep.subr.bf16.mxu0 0
    %4404 = vmatpush1.bf16.msra.mxu0 %v228
    %4405 = vmatprep.subr.bf16.mxu0 0
    %4406 = vmatpush1.bf16.msra.mxu0 %v231
    %4407 = vmatprep.subr.bf16.mxu0 0
    %4408 = vmatpush1.bf16.msra.mxu0 %v234
    %4409 = vmatprep.subr.bf16.mxu0 0
    %4410 = vmatpush1.bf16.msra.mxu0 %v237
    %4411 = vmatprep.subr.bf16.mxu0 0
    %4412 = vmatpush1.bf16.msra.mxu0 %v240
    %4413 = vmatprep.subr.bf16.mxu0 0
    %4414 = vmatpush1.bf16.msra.mxu0 %v243
    %4415 = vmatprep.subr.bf16.mxu0 0
    %4416 = vmatpush1.bf16.msra.mxu0 %v246
    %4417 = vmatprep.subr.bf16.mxu0 0
    %4418 = vmatpush1.bf16.msra.mxu0 0
    %4419 = vmatprep.subr.bf16.mxu0 0
    %4420 = vmatpush1.bf16.msra.mxu0 0
    %4421 = vmatprep.subr.bf16.mxu0 0
    %4422 = vmatpush1.bf16.msra.mxu0 0
    %4423 = vmatprep.subr.bf16.mxu0 0
    %4424 = vmatpush1.bf16.msra.mxu0 0
    %4425 = vmatprep.subr.bf16.mxu0 0
    %4426 = vmatpush1.bf16.msra.mxu0 0
    %4427 = vmatprep.subr.bf16.mxu0 0
    %4428 = vmatpush1.bf16.msra.mxu0 0
    %4429 = vmatprep.subr.bf16.mxu0 0
    %4430 = vmatpush1.bf16.msra.mxu0 0
    %4431 = vmatprep.subr.bf16.mxu0 0
    %4432 = vmatpush1.bf16.msra.mxu0 0
    %4433 = vmatprep.mubr.bf16.mxu0 0
    %4434 = vmatmul.mubr.bf16.gmra.mrb[0].mxu0 %v4358
    %v4435 = vpop.f32.mrb[0].mxu0
    %v4436 = vadd.f32 %v98, %v4435
    %v4437 = vpop.f32.mrb[0].mxu0
    %v4438 = vpop.f32.mrb[0].mxu0
    %v4439 = vpop.f32.mrb[0].mxu0
    %4440 = vdwg.mxu0
    %v4442 = vrot.slane %v4395, 6
    %v4443 = vrot.slane %v4395, 7
    %v4444 = vrot.slane %v4395, 1
    %v4445 = vrot.slane %v4395, 2
    %v4446 = vrot.slane %v4395, 3
    %v4447 = vrot.slane %v4395, 4
    %v4448 = vrot.slane %v4395, 5
    %v4457 = vadd.f32 %v4296, %v4442
    %v4458 = vadd.f32 %v4299, %v4443
    %v4459 = vadd.f32 %v4302, %v4395
    %v4460 = vadd.f32 %v4305, %v4444
    %v4461 = vadd.f32 %v4308, %v4445
    %v4462 = vadd.f32 %v4311, %v4446
    %v4463 = vadd.f32 %v4314, %v4447
    %v4464 = vadd.f32 %v4317, %v4448
    %v4465 = vxor.u32 %v4457, 2147483648
    %v4466 = vxor.u32 %v4458, 2147483648
    %v4467 = vxor.u32 %v4459, 2147483648
    %v4468 = vxor.u32 %v4460, 2147483648
    %v4469 = vxor.u32 %v4461, 2147483648
    %v4470 = vxor.u32 %v4462, 2147483648
    %v4471 = vxor.u32 %v4463, 2147483648
    %v4472 = vxor.u32 %v4464, 2147483648
    %v4473 = vmul.f32 %v4465, 1.442695
    %v4474 = vpow.pop %v4473
    %v4475 = vmul.f32 %v4466, 1.442695
    %v4476 = vpow.pop %v4475
    %v4477 = vmul.f32 %v4467, 1.442695
    %v4478 = vpow.pop %v4477
    %v4479 = vmul.f32 %v4468, 1.442695
    %v4480 = vpow.pop %v4479
    %v4481 = vmul.f32 %v4469, 1.442695
    %v4482 = vpow.pop %v4481
    %v4483 = vmul.f32 %v4470, 1.442695
    %v4484 = vpow.pop %v4483
    %v4485 = vmul.f32 %v4471, 1.442695
    %v4486 = vpow.pop %v4485
    %v4487 = vmul.f32 %v4472, 1.442695
    %v4488 = vpow.pop %v4487
    %v4489 = vadd.f32 %v4474, 1.0
    %v4490 = vadd.f32 %v4476, 1.0
    %v4491 = vadd.f32 %v4478, 1.0
    %v4492 = vadd.f32 %v4480, 1.0
    %v4493 = vadd.f32 %v4482, 1.0
    %v4494 = vadd.f32 %v4484, 1.0
    %v4495 = vadd.f32 %v4486, 1.0
    %v4496 = vadd.f32 %v4488, 1.0
    %v4497 = vrcp.pop %v4489
    %v4498 = vmul.f32 1.0, %v4497
    %v4499 = vrcp.pop %v4490
    %v4500 = vmul.f32 1.0, %v4499
    %v4501 = vrcp.pop %v4491
    %v4502 = vmul.f32 1.0, %v4501
    %v4503 = vrcp.pop %v4492
    %v4504 = vmul.f32 1.0, %v4503
    %v4505 = vrcp.pop %v4493
    %v4506 = vmul.f32 1.0, %v4505
    %v4507 = vrcp.pop %v4494
    %v4508 = vmul.f32 1.0, %v4507
    %v4509 = vrcp.pop %v4495
    %v4510 = vmul.f32 1.0, %v4509
    %v4511 = vrcp.pop %v4496
    %v4512 = vmul.f32 1.0, %v4511
    %v4514 = vrot.slane %v4397, 6
    %v4515 = vrot.slane %v4397, 7
    %v4516 = vrot.slane %v4397, 1
    %v4517 = vrot.slane %v4397, 2
    %v4518 = vrot.slane %v4397, 3
    %v4519 = vrot.slane %v4397, 4
    %v4520 = vrot.slane %v4397, 5
    %v4529 = vadd.f32 %v4297, %v4514
    %v4530 = vadd.f32 %v4300, %v4515
    %v4531 = vadd.f32 %v4303, %v4397
    %v4532 = vadd.f32 %v4306, %v4516
    %v4533 = vadd.f32 %v4309, %v4517
    %v4534 = vadd.f32 %v4312, %v4518
    %v4535 = vadd.f32 %v4315, %v4519
    %v4536 = vadd.f32 %v4318, %v4520
    %v4537 = vxor.u32 %v4529, 2147483648
    %v4538 = vxor.u32 %v4530, 2147483648
    %v4539 = vxor.u32 %v4531, 2147483648
    %v4540 = vxor.u32 %v4532, 2147483648
    %v4541 = vxor.u32 %v4533, 2147483648
    %v4542 = vxor.u32 %v4534, 2147483648
    %v4543 = vxor.u32 %v4535, 2147483648
    %v4544 = vxor.u32 %v4536, 2147483648
    %v4545 = vmul.f32 %v4537, 1.442695
    %v4546 = vpow.pop %v4545
    %v4547 = vmul.f32 %v4538, 1.442695
    %v4548 = vpow.pop %v4547
    %v4549 = vmul.f32 %v4539, 1.442695
    %v4550 = vpow.pop %v4549
    %v4551 = vmul.f32 %v4540, 1.442695
    %v4552 = vpow.pop %v4551
    %v4553 = vmul.f32 %v4541, 1.442695
    %v4554 = vpow.pop %v4553
    %v4555 = vmul.f32 %v4542, 1.442695
    %v4556 = vpow.pop %v4555
    %v4557 = vmul.f32 %v4543, 1.442695
    %v4558 = vpow.pop %v4557
    %v4559 = vmul.f32 %v4544, 1.442695
    %v4560 = vpow.pop %v4559
    %v4561 = vadd.f32 %v4546, 1.0
    %v4562 = vadd.f32 %v4548, 1.0
    %v4563 = vadd.f32 %v4550, 1.0
    %v4564 = vadd.f32 %v4552, 1.0
    %v4565 = vadd.f32 %v4554, 1.0
    %v4566 = vadd.f32 %v4556, 1.0
    %v4567 = vadd.f32 %v4558, 1.0
    %v4568 = vadd.f32 %v4560, 1.0
    %v4569 = vrcp.pop %v4561
    %v4570 = vmul.f32 1.0, %v4569
    %v4571 = vrcp.pop %v4562
    %v4572 = vmul.f32 1.0, %v4571
    %v4573 = vrcp.pop %v4563
    %v4574 = vmul.f32 1.0, %v4573
    %v4575 = vrcp.pop %v4564
    %v4576 = vmul.f32 1.0, %v4575
    %v4577 = vrcp.pop %v4565
    %v4578 = vmul.f32 1.0, %v4577
    %v4579 = vrcp.pop %v4566
    %v4580 = vmul.f32 1.0, %v4579
    %v4581 = vrcp.pop %v4567
    %v4582 = vmul.f32 1.0, %v4581
    %v4583 = vrcp.pop %v4568
    %v4584 = vmul.f32 1.0, %v4583
    %v4586 = vrot.slane %v4436, 6
    %v4587 = vrot.slane %v4436, 7
    %v4588 = vrot.slane %v4436, 1
    %v4589 = vrot.slane %v4436, 2
    %v4590 = vrot.slane %v4436, 3
    %v4591 = vrot.slane %v4436, 4
    %v4592 = vrot.slane %v4436, 5
    %v4601 = vmul.f32 %v4498, %v4586
    %v4602 = vmul.f32 %v4500, %v4587
    %v4603 = vmul.f32 %v4502, %v4436
    %v4604 = vmul.f32 %v4504, %v4588
    %v4605 = vmul.f32 %v4506, %v4589
    %v4606 = vmul.f32 %v4508, %v4590
    %v4607 = vmul.f32 %v4510, %v4591
    %v4608 = vmul.f32 %v4512, %v4592
    %v4609 = vadd.f32 %v4298, %v4601
    %v4610 = vadd.f32 %v4301, %v4602
    %v4611 = vadd.f32 %v4304, %v4603
    %v4612 = vadd.f32 %v4307, %v4604
    %v4613 = vadd.f32 %v4310, %v4605
    %v4614 = vadd.f32 %v4313, %v4606
    %v4615 = vadd.f32 %v4316, %v4607
    %v4616 = vadd.f32 %v4319, %v4608
    %v4617 = vtanh.pop %v4609
    %v4618 = vtanh.pop %v4610
    %v4619 = vtanh.pop %v4611
    %v4620 = vtanh.pop %v4612
    %v4621 = vtanh.pop %v4613
    %v4622 = vtanh.pop %v4614
    %v4623 = vtanh.pop %v4615
    %v4624 = vtanh.pop %v4616
    %v4625 = vsub.f32 1.0, %v4570
    %v4626 = vsub.f32 1.0, %v4572
    %v4627 = vsub.f32 1.0, %v4574
    %v4628 = vsub.f32 1.0, %v4576
    %v4629 = vsub.f32 1.0, %v4578
    %v4630 = vsub.f32 1.0, %v4580
    %v4631 = vsub.f32 1.0, %v4582
    %v4632 = vsub.f32 1.0, %v4584
    %v4633 = vmul.f32 %v4625, %v4617
    %v4634 = vmul.f32 %v4626, %v4618
    %v4635 = vmul.f32 %v4627, %v4619
    %v4636 = vmul.f32 %v4628, %v4620
    %v4637 = vmul.f32 %v4629, %v4621
    %v4638 = vmul.f32 %v4630, %v4622
    %v4639 = vmul.f32 %v4631, %v4623
    %v4640 = vmul.f32 %v4632, %v4624
    %v4649 = vrot.slane %v4264, 7
    %v4650 = vrot.slane %v4265, 7
    %v4651 = vrot.slane %v4266, 7
    %v4652 = vrot.slane %v4267, 7
    %v4653 = vrot.slane %v4268, 7
    %v4654 = vrot.slane %v4269, 7
    %v4655 = vrot.slane %v4270, 7
    %v4656 = vrot.slane %v4271, 7
    %v4665 = vmul.f32 %v4570, %v4649
    %v4666 = vmul.f32 %v4572, %v4650
    %v4667 = vmul.f32 %v4574, %v4651
    %v4668 = vmul.f32 %v4576, %v4652
    %v4669 = vmul.f32 %v4578, %v4653
    %v4670 = vmul.f32 %v4580, %v4654
    %v4671 = vmul.f32 %v4582, %v4655
    %v4672 = vmul.f32 %v4584, %v4656
    %v4673 = vadd.f32 %v4633, %v4665
    %v4674 = vadd.f32 %v4634, %v4666
    %v4675 = vadd.f32 %v4635, %v4667
    %v4676 = vadd.f32 %v4636, %v4668
    %v4677 = vadd.f32 %v4637, %v4669
    %v4678 = vadd.f32 %v4638, %v4670
    %v4679 = vadd.f32 %v4639, %v4671
    %v4680 = vadd.f32 %v4640, %v4672
    %4681 = vst [vmem:[#allocation8 + $0x8] sm:$0x4] %v4673
    %4682 = vst [vmem:[#allocation8 + $0x18] sm:$0x4] %v4674
    %4683 = vst [vmem:[#allocation8 + $0x28] sm:$0x4] %v4675
    %4684 = vst [vmem:[#allocation8 + $0x38] sm:$0x4] %v4676
    %4685 = vst [vmem:[#allocation8 + $0x48] sm:$0x4] %v4677
    %4686 = vst [vmem:[#allocation8 + $0x58] sm:$0x4] %v4678
    %4687 = vst [vmem:[#allocation8 + $0x68] sm:$0x4] %v4679
    %4688 = vst [vmem:[#allocation8 + $0x78] sm:$0x4] %v4680
    %v4689 = vld [vmem:[#allocation3 + $0xc] sm:$0x22]
    %v4690 = vld [vmem:[#allocation3 + $0x14] sm:$0x2]
    %v4691 = vld [vmem:[#allocation3 + $0x24] sm:$0x22]
    %v4692 = vld [vmem:[#allocation3 + $0x2c] sm:$0x2]
    %v4693 = vld [vmem:[#allocation3 + $0x3c] sm:$0x22]
    %v4694 = vld [vmem:[#allocation3 + $0x44] sm:$0x2]
    %v4695 = vld [vmem:[#allocation3 + $0x54] sm:$0x22]
    %v4696 = vld [vmem:[#allocation3 + $0x5c] sm:$0x2]
    %v4697 = vld [vmem:[#allocation3 + $0x6c] sm:$0x22]
    %v4698 = vld [vmem:[#allocation3 + $0x74] sm:$0x2]
    %v4699 = vld [vmem:[#allocation3 + $0x84] sm:$0x22]
    %v4700 = vld [vmem:[#allocation3 + $0x8c] sm:$0x2]
    %v4701 = vld [vmem:[#allocation3 + $0x9c] sm:$0x22]
    %v4702 = vld [vmem:[#allocation3 + $0xa4] sm:$0x2]
    %v4703 = vld [vmem:[#allocation3 + $0xb4] sm:$0x22]
    %v4704 = vld [vmem:[#allocation3 + $0xbc] sm:$0x2]
    %v4705 = vunpack.c.l.bf16 %v4689
    %v4706 = vunpack.c.h.bf16 %v4689
    %v4707 = vunpack.c.l.bf16 %v4690
    %v4708 = vunpack.c.l.bf16 %v4691
    %v4709 = vunpack.c.h.bf16 %v4691
    %v4710 = vunpack.c.l.bf16 %v4692
    %v4711 = vunpack.c.l.bf16 %v4693
    %v4712 = vunpack.c.h.bf16 %v4693
    %v4713 = vunpack.c.l.bf16 %v4694
    %v4714 = vunpack.c.l.bf16 %v4695
    %v4715 = vunpack.c.h.bf16 %v4695
    %v4716 = vunpack.c.l.bf16 %v4696
    %v4717 = vunpack.c.l.bf16 %v4697
    %v4718 = vunpack.c.h.bf16 %v4697
    %v4719 = vunpack.c.l.bf16 %v4698
    %v4720 = vunpack.c.l.bf16 %v4699
    %v4721 = vunpack.c.h.bf16 %v4699
    %v4722 = vunpack.c.l.bf16 %v4700
    %v4723 = vunpack.c.l.bf16 %v4701
    %v4724 = vunpack.c.h.bf16 %v4701
    %v4725 = vunpack.c.l.bf16 %v4702
    %v4726 = vunpack.c.l.bf16 %v4703
    %v4727 = vunpack.c.h.bf16 %v4703
    %v4728 = vunpack.c.l.bf16 %v4704
    %v4729 = vpack.c.bf16 %v4673, %v4673
    %v4730 = vpack.c.bf16 %v4674, %v4674
    %v4731 = vpack.c.bf16 %v4675, %v4675
    %v4732 = vpack.c.bf16 %v4676, %v4676
    %v4733 = vpack.c.bf16 %v4677, %v4677
    %v4734 = vpack.c.bf16 %v4678, %v4678
    %v4735 = vpack.c.bf16 %v4679, %v4679
    %v4736 = vpack.c.bf16 %v4680, %v4680
    %v4745 = vunpack.c.l.b16 %v4729
    %v4746 = vunpack.c.l.b16 %v4730
    %v4747 = vunpack.c.l.b16 %v4731
    %v4748 = vunpack.c.l.b16 %v4732
    %v4749 = vunpack.c.l.b16 %v4733
    %v4750 = vunpack.c.l.b16 %v4734
    %v4751 = vunpack.c.l.b16 %v4735
    %v4752 = vunpack.c.l.b16 %v4736
    %v4753 = vrot.slane %v4745, 2
    %v4754 = vrot.slane %v4746, 1
    %v4755 = vsel %vm657, %v4754, %v4753
    %v4756 = vsel %vm660, %v4747, %v4755
    %v4757 = vrot.slane %v4748, 7
    %v4758 = vsel %vm663, %v4757, %v4756
    %v4759 = vrot.slane %v4749, 6
    %v4760 = vsel %vm666, %v4759, %v4758
    %v4761 = vrot.slane %v4750, 5
    %v4762 = vsel %vm669, %v4761, %v4760
    %v4763 = vrot.slane %v4751, 4
    %v4764 = vsel %vm672, %v4763, %v4762
    %v4765 = vrot.slane %v4752, 3
    %v4766 = vsel %vm675, %v4765, %v4764
    %v4767 = vpack.c.b16 %v4766, %v4766
    %4769 = vmatprep.subr.bf16.mxu0 %v224
    %4770 = vmatpush1.bf16.msra.mxu0 %v223
    %4771 = vmatprep.subr.bf16.mxu0 %v227
    %4772 = vmatpush1.bf16.msra.mxu0 %v226
    %4773 = vmatprep.subr.bf16.mxu0 %v230
    %4774 = vmatpush1.bf16.msra.mxu0 %v229
    %4775 = vmatprep.subr.bf16.mxu0 %v233
    %4776 = vmatpush1.bf16.msra.mxu0 %v232
    %4777 = vmatprep.subr.bf16.mxu0 %v236
    %4778 = vmatpush1.bf16.msra.mxu0 %v235
    %4779 = vmatprep.subr.bf16.mxu0 %v239
    %4780 = vmatpush1.bf16.msra.mxu0 %v238
    %4781 = vmatprep.subr.bf16.mxu0 %v242
    %4782 = vmatpush1.bf16.msra.mxu0 %v241
    %4783 = vmatprep.subr.bf16.mxu0 %v245
    %4784 = vmatpush1.bf16.msra.mxu0 %v244
    %4785 = vmatprep.subr.bf16.mxu0 0
    %4786 = vmatpush1.bf16.msra.mxu0 0
    %4787 = vmatprep.subr.bf16.mxu0 0
    %4788 = vmatpush1.bf16.msra.mxu0 0
    %4789 = vmatprep.subr.bf16.mxu0 0
    %4790 = vmatpush1.bf16.msra.mxu0 0
    %4791 = vmatprep.subr.bf16.mxu0 0
    %4792 = vmatpush1.bf16.msra.mxu0 0
    %4793 = vmatprep.subr.bf16.mxu0 0
    %4794 = vmatpush1.bf16.msra.mxu0 0
    %4795 = vmatprep.subr.bf16.mxu0 0
    %4796 = vmatpush1.bf16.msra.mxu0 0
    %4797 = vmatprep.subr.bf16.mxu0 0
    %4798 = vmatpush1.bf16.msra.mxu0 0
    %4799 = vmatprep.subr.bf16.mxu0 0
    %4800 = vmatpush1.bf16.msra.mxu0 0
    %4801 = vmatprep.mubr.bf16.mxu0 0
    %4802 = vmatmul.mubr.bf16.gmra.mrb[0].mxu0 %v4767
    %v4803 = vpop.f32.mrb[0].mxu0
    %v4804 = vadd.f32 %v90, %v4803
    %v4805 = vpop.f32.mrb[0].mxu0
    %v4806 = vadd.f32 %v94, %v4805
    %v4807 = vpop.f32.mrb[0].mxu0
    %v4808 = vpop.f32.mrb[0].mxu0
    %4809 = vdwg.mxu0
    %4810 = vmatprep.subr.bf16.mxu0 0
    %4811 = vmatpush1.bf16.msra.mxu0 %v225
    %4812 = vmatprep.subr.bf16.mxu0 0
    %4813 = vmatpush1.bf16.msra.mxu0 %v228
    %4814 = vmatprep.subr.bf16.mxu0 0
    %4815 = vmatpush1.bf16.msra.mxu0 %v231
    %4816 = vmatprep.subr.bf16.mxu0 0
    %4817 = vmatpush1.bf16.msra.mxu0 %v234
    %4818 = vmatprep.subr.bf16.mxu0 0
    %4819 = vmatpush1.bf16.msra.mxu0 %v237
    %4820 = vmatprep.subr.bf16.mxu0 0
    %4821 = vmatpush1.bf16.msra.mxu0 %v240
    %4822 = vmatprep.subr.bf16.mxu0 0
    %4823 = vmatpush1.bf16.msra.mxu0 %v243
    %4824 = vmatprep.subr.bf16.mxu0 0
    %4825 = vmatpush1.bf16.msra.mxu0 %v246
    %4826 = vmatprep.subr.bf16.mxu0 0
    %4827 = vmatpush1.bf16.msra.mxu0 0
    %4828 = vmatprep.subr.bf16.mxu0 0
    %4829 = vmatpush1.bf16.msra.mxu0 0
    %4830 = vmatprep.subr.bf16.mxu0 0
    %4831 = vmatpush1.bf16.msra.mxu0 0
    %4832 = vmatprep.subr.bf16.mxu0 0
    %4833 = vmatpush1.bf16.msra.mxu0 0
    %4834 = vmatprep.subr.bf16.mxu0 0
    %4835 = vmatpush1.bf16.msra.mxu0 0
    %4836 = vmatprep.subr.bf16.mxu0 0
    %4837 = vmatpush1.bf16.msra.mxu0 0
    %4838 = vmatprep.subr.bf16.mxu0 0
    %4839 = vmatpush1.bf16.msra.mxu0 0
    %4840 = vmatprep.subr.bf16.mxu0 0
    %4841 = vmatpush1.bf16.msra.mxu0 0
    %4842 = vmatprep.mubr.bf16.mxu0 0
    %4843 = vmatmul.mubr.bf16.gmra.mrb[0].mxu0 %v4767
    %v4844 = vpop.f32.mrb[0].mxu0
    %v4845 = vadd.f32 %v98, %v4844
    %v4846 = vpop.f32.mrb[0].mxu0
    %v4847 = vpop.f32.mrb[0].mxu0
    %v4848 = vpop.f32.mrb[0].mxu0
    %4849 = vdwg.mxu0
    %v4851 = vrot.slane %v4804, 5
    %v4852 = vrot.slane %v4804, 6
    %v4853 = vrot.slane %v4804, 7
    %v4854 = vrot.slane %v4804, 1
    %v4855 = vrot.slane %v4804, 2
    %v4856 = vrot.slane %v4804, 3
    %v4857 = vrot.slane %v4804, 4
    %v4866 = vadd.f32 %v4705, %v4851
    %v4867 = vadd.f32 %v4708, %v4852
    %v4868 = vadd.f32 %v4711, %v4853
    %v4869 = vadd.f32 %v4714, %v4804
    %v4870 = vadd.f32 %v4717, %v4854
    %v4871 = vadd.f32 %v4720, %v4855
    %v4872 = vadd.f32 %v4723, %v4856
    %v4873 = vadd.f32 %v4726, %v4857
    %v4874 = vxor.u32 %v4866, 2147483648
    %v4875 = vxor.u32 %v4867, 2147483648
    %v4876 = vxor.u32 %v4868, 2147483648
    %v4877 = vxor.u32 %v4869, 2147483648
    %v4878 = vxor.u32 %v4870, 2147483648
    %v4879 = vxor.u32 %v4871, 2147483648
    %v4880 = vxor.u32 %v4872, 2147483648
    %v4881 = vxor.u32 %v4873, 2147483648
    %v4882 = vmul.f32 %v4874, 1.442695
    %v4883 = vpow.pop %v4882
    %v4884 = vmul.f32 %v4875, 1.442695
    %v4885 = vpow.pop %v4884
    %v4886 = vmul.f32 %v4876, 1.442695
    %v4887 = vpow.pop %v4886
    %v4888 = vmul.f32 %v4877, 1.442695
    %v4889 = vpow.pop %v4888
    %v4890 = vmul.f32 %v4878, 1.442695
    %v4891 = vpow.pop %v4890
    %v4892 = vmul.f32 %v4879, 1.442695
    %v4893 = vpow.pop %v4892
    %v4894 = vmul.f32 %v4880, 1.442695
    %v4895 = vpow.pop %v4894
    %v4896 = vmul.f32 %v4881, 1.442695
    %v4897 = vpow.pop %v4896
    %v4898 = vadd.f32 %v4883, 1.0
    %v4899 = vadd.f32 %v4885, 1.0
    %v4900 = vadd.f32 %v4887, 1.0
    %v4901 = vadd.f32 %v4889, 1.0
    %v4902 = vadd.f32 %v4891, 1.0
    %v4903 = vadd.f32 %v4893, 1.0
    %v4904 = vadd.f32 %v4895, 1.0
    %v4905 = vadd.f32 %v4897, 1.0
    %v4906 = vrcp.pop %v4898
    %v4907 = vmul.f32 1.0, %v4906
    %v4908 = vrcp.pop %v4899
    %v4909 = vmul.f32 1.0, %v4908
    %v4910 = vrcp.pop %v4900
    %v4911 = vmul.f32 1.0, %v4910
    %v4912 = vrcp.pop %v4901
    %v4913 = vmul.f32 1.0, %v4912
    %v4914 = vrcp.pop %v4902
    %v4915 = vmul.f32 1.0, %v4914
    %v4916 = vrcp.pop %v4903
    %v4917 = vmul.f32 1.0, %v4916
    %v4918 = vrcp.pop %v4904
    %v4919 = vmul.f32 1.0, %v4918
    %v4920 = vrcp.pop %v4905
    %v4921 = vmul.f32 1.0, %v4920
    %v4923 = vrot.slane %v4806, 5
    %v4924 = vrot.slane %v4806, 6
    %v4925 = vrot.slane %v4806, 7
    %v4926 = vrot.slane %v4806, 1
    %v4927 = vrot.slane %v4806, 2
    %v4928 = vrot.slane %v4806, 3
    %v4929 = vrot.slane %v4806, 4
    %v4938 = vadd.f32 %v4706, %v4923
    %v4939 = vadd.f32 %v4709, %v4924
    %v4940 = vadd.f32 %v4712, %v4925
    %v4941 = vadd.f32 %v4715, %v4806
    %v4942 = vadd.f32 %v4718, %v4926
    %v4943 = vadd.f32 %v4721, %v4927
    %v4944 = vadd.f32 %v4724, %v4928
    %v4945 = vadd.f32 %v4727, %v4929
    %v4946 = vxor.u32 %v4938, 2147483648
    %v4947 = vxor.u32 %v4939, 2147483648
    %v4948 = vxor.u32 %v4940, 2147483648
    %v4949 = vxor.u32 %v4941, 2147483648
    %v4950 = vxor.u32 %v4942, 2147483648
    %v4951 = vxor.u32 %v4943, 2147483648
    %v4952 = vxor.u32 %v4944, 2147483648
    %v4953 = vxor.u32 %v4945, 2147483648
    %v4954 = vmul.f32 %v4946, 1.442695
    %v4955 = vpow.pop %v4954
    %v4956 = vmul.f32 %v4947, 1.442695
    %v4957 = vpow.pop %v4956
    %v4958 = vmul.f32 %v4948, 1.442695
    %v4959 = vpow.pop %v4958
    %v4960 = vmul.f32 %v4949, 1.442695
    %v4961 = vpow.pop %v4960
    %v4962 = vmul.f32 %v4950, 1.442695
    %v4963 = vpow.pop %v4962
    %v4964 = vmul.f32 %v4951, 1.442695
    %v4965 = vpow.pop %v4964
    %v4966 = vmul.f32 %v4952, 1.442695
    %v4967 = vpow.pop %v4966
    %v4968 = vmul.f32 %v4953, 1.442695
    %v4969 = vpow.pop %v4968
    %v4970 = vadd.f32 %v4955, 1.0
    %v4971 = vadd.f32 %v4957, 1.0
    %v4972 = vadd.f32 %v4959, 1.0
    %v4973 = vadd.f32 %v4961, 1.0
    %v4974 = vadd.f32 %v4963, 1.0
    %v4975 = vadd.f32 %v4965, 1.0
    %v4976 = vadd.f32 %v4967, 1.0
    %v4977 = vadd.f32 %v4969, 1.0
    %v4978 = vrcp.pop %v4970
    %v4979 = vmul.f32 1.0, %v4978
    %v4980 = vrcp.pop %v4971
    %v4981 = vmul.f32 1.0, %v4980
    %v4982 = vrcp.pop %v4972
    %v4983 = vmul.f32 1.0, %v4982
    %v4984 = vrcp.pop %v4973
    %v4985 = vmul.f32 1.0, %v4984
    %v4986 = vrcp.pop %v4974
    %v4987 = vmul.f32 1.0, %v4986
    %v4988 = vrcp.pop %v4975
    %v4989 = vmul.f32 1.0, %v4988
    %v4990 = vrcp.pop %v4976
    %v4991 = vmul.f32 1.0, %v4990
    %v4992 = vrcp.pop %v4977
    %v4993 = vmul.f32 1.0, %v4992
    %v4995 = vrot.slane %v4845, 5
    %v4996 = vrot.slane %v4845, 6
    %v4997 = vrot.slane %v4845, 7
    %v4998 = vrot.slane %v4845, 1
    %v4999 = vrot.slane %v4845, 2
    %v5000 = vrot.slane %v4845, 3
    %v5001 = vrot.slane %v4845, 4
    %v5010 = vmul.f32 %v4907, %v4995
    %v5011 = vmul.f32 %v4909, %v4996
    %v5012 = vmul.f32 %v4911, %v4997
    %v5013 = vmul.f32 %v4913, %v4845
    %v5014 = vmul.f32 %v4915, %v4998
    %v5015 = vmul.f32 %v4917, %v4999
    %v5016 = vmul.f32 %v4919, %v5000
    %v5017 = vmul.f32 %v4921, %v5001
    %v5018 = vadd.f32 %v4707, %v5010
    %v5019 = vadd.f32 %v4710, %v5011
    %v5020 = vadd.f32 %v4713, %v5012
    %v5021 = vadd.f32 %v4716, %v5013
    %v5022 = vadd.f32 %v4719, %v5014
    %v5023 = vadd.f32 %v4722, %v5015
    %v5024 = vadd.f32 %v4725, %v5016
    %v5025 = vadd.f32 %v4728, %v5017
    %v5026 = vtanh.pop %v5018
    %v5027 = vtanh.pop %v5019
    %v5028 = vtanh.pop %v5020
    %v5029 = vtanh.pop %v5021
    %v5030 = vtanh.pop %v5022
    %v5031 = vtanh.pop %v5023
    %v5032 = vtanh.pop %v5024
    %v5033 = vtanh.pop %v5025
    %v5034 = vsub.f32 1.0, %v4979
    %v5035 = vsub.f32 1.0, %v4981
    %v5036 = vsub.f32 1.0, %v4983
    %v5037 = vsub.f32 1.0, %v4985
    %v5038 = vsub.f32 1.0, %v4987
    %v5039 = vsub.f32 1.0, %v4989
    %v5040 = vsub.f32 1.0, %v4991
    %v5041 = vsub.f32 1.0, %v4993
    %v5042 = vmul.f32 %v5034, %v5026
    %v5043 = vmul.f32 %v5035, %v5027
    %v5044 = vmul.f32 %v5036, %v5028
    %v5045 = vmul.f32 %v5037, %v5029
    %v5046 = vmul.f32 %v5038, %v5030
    %v5047 = vmul.f32 %v5039, %v5031
    %v5048 = vmul.f32 %v5040, %v5032
    %v5049 = vmul.f32 %v5041, %v5033
    %v5058 = vrot.slane %v4673, 7
    %v5059 = vrot.slane %v4674, 7
    %v5060 = vrot.slane %v4675, 7
    %v5061 = vrot.slane %v4676, 7
    %v5062 = vrot.slane %v4677, 7
    %v5063 = vrot.slane %v4678, 7
    %v5064 = vrot.slane %v4679, 7
    %v5065 = vrot.slane %v4680, 7
    %v5074 = vmul.f32 %v4979, %v5058
    %v5075 = vmul.f32 %v4981, %v5059
    %v5076 = vmul.f32 %v4983, %v5060
    %v5077 = vmul.f32 %v4985, %v5061
    %v5078 = vmul.f32 %v4987, %v5062
    %v5079 = vmul.f32 %v4989, %v5063
    %v5080 = vmul.f32 %v4991, %v5064
    %v5081 = vmul.f32 %v4993, %v5065
    %v5082 = vadd.f32 %v5042, %v5074
    %v5083 = vadd.f32 %v5043, %v5075
    %v5084 = vadd.f32 %v5044, %v5076
    %v5085 = vadd.f32 %v5045, %v5077
    %v5086 = vadd.f32 %v5046, %v5078
    %v5087 = vadd.f32 %v5047, %v5079
    %v5088 = vadd.f32 %v5048, %v5080
    %v5089 = vadd.f32 %v5049, %v5081
    %5090 = vst [vmem:[#allocation8 + $0x8] sm:$0x8] %v5082
    %5091 = vst [vmem:[#allocation8 + $0x18] sm:$0x8] %v5083
    %5092 = vst [vmem:[#allocation8 + $0x28] sm:$0x8] %v5084
    %5093 = vst [vmem:[#allocation8 + $0x38] sm:$0x8] %v5085
    %5094 = vst [vmem:[#allocation8 + $0x48] sm:$0x8] %v5086
    %5095 = vst [vmem:[#allocation8 + $0x58] sm:$0x8] %v5087
    %5096 = vst [vmem:[#allocation8 + $0x68] sm:$0x8] %v5088
    %5097 = vst [vmem:[#allocation8 + $0x78] sm:$0x8] %v5089
    %v5098 = vld [vmem:[#allocation3 + $0xc] sm:$0x44]
    %v5099 = vld [vmem:[#allocation3 + $0x14] sm:$0x4]
    %v5100 = vld [vmem:[#allocation3 + $0x24] sm:$0x44]
    %v5101 = vld [vmem:[#allocation3 + $0x2c] sm:$0x4]
    %v5102 = vld [vmem:[#allocation3 + $0x3c] sm:$0x44]
    %v5103 = vld [vmem:[#allocation3 + $0x44] sm:$0x4]
    %v5104 = vld [vmem:[#allocation3 + $0x54] sm:$0x44]
    %v5105 = vld [vmem:[#allocation3 + $0x5c] sm:$0x4]
    %v5106 = vld [vmem:[#allocation3 + $0x6c] sm:$0x44]
    %v5107 = vld [vmem:[#allocation3 + $0x74] sm:$0x4]
    %v5108 = vld [vmem:[#allocation3 + $0x84] sm:$0x44]
    %v5109 = vld [vmem:[#allocation3 + $0x8c] sm:$0x4]
    %v5110 = vld [vmem:[#allocation3 + $0x9c] sm:$0x44]
    %v5111 = vld [vmem:[#allocation3 + $0xa4] sm:$0x4]
    %v5112 = vld [vmem:[#allocation3 + $0xb4] sm:$0x44]
    %v5113 = vld [vmem:[#allocation3 + $0xbc] sm:$0x4]
    %v5114 = vunpack.c.l.bf16 %v5098
    %v5115 = vunpack.c.h.bf16 %v5098
    %v5116 = vunpack.c.l.bf16 %v5099
    %v5117 = vunpack.c.l.bf16 %v5100
    %v5118 = vunpack.c.h.bf16 %v5100
    %v5119 = vunpack.c.l.bf16 %v5101
    %v5120 = vunpack.c.l.bf16 %v5102
    %v5121 = vunpack.c.h.bf16 %v5102
    %v5122 = vunpack.c.l.bf16 %v5103
    %v5123 = vunpack.c.l.bf16 %v5104
    %v5124 = vunpack.c.h.bf16 %v5104
    %v5125 = vunpack.c.l.bf16 %v5105
    %v5126 = vunpack.c.l.bf16 %v5106
    %v5127 = vunpack.c.h.bf16 %v5106
    %v5128 = vunpack.c.l.bf16 %v5107
    %v5129 = vunpack.c.l.bf16 %v5108
    %v5130 = vunpack.c.h.bf16 %v5108
    %v5131 = vunpack.c.l.bf16 %v5109
    %v5132 = vunpack.c.l.bf16 %v5110
    %v5133 = vunpack.c.h.bf16 %v5110
    %v5134 = vunpack.c.l.bf16 %v5111
    %v5135 = vunpack.c.l.bf16 %v5112
    %v5136 = vunpack.c.h.bf16 %v5112
    %v5137 = vunpack.c.l.bf16 %v5113
    %v5138 = vpack.c.bf16 %v5082, %v5082
    %v5139 = vpack.c.bf16 %v5083, %v5083
    %v5140 = vpack.c.bf16 %v5084, %v5084
    %v5141 = vpack.c.bf16 %v5085, %v5085
    %v5142 = vpack.c.bf16 %v5086, %v5086
    %v5143 = vpack.c.bf16 %v5087, %v5087
    %v5144 = vpack.c.bf16 %v5088, %v5088
    %v5145 = vpack.c.bf16 %v5089, %v5089
    %v5154 = vunpack.c.l.b16 %v5138
    %v5155 = vunpack.c.l.b16 %v5139
    %v5156 = vunpack.c.l.b16 %v5140
    %v5157 = vunpack.c.l.b16 %v5141
    %v5158 = vunpack.c.l.b16 %v5142
    %v5159 = vunpack.c.l.b16 %v5143
    %v5160 = vunpack.c.l.b16 %v5144
    %v5161 = vunpack.c.l.b16 %v5145
    %v5162 = vrot.slane %v5154, 3
    %v5163 = vrot.slane %v5155, 2
    %v5164 = vsel %vm657, %v5163, %v5162
    %v5165 = vrot.slane %v5156, 1
    %v5166 = vsel %vm660, %v5165, %v5164
    %v5167 = vsel %vm663, %v5157, %v5166
    %v5168 = vrot.slane %v5158, 7
    %v5169 = vsel %vm666, %v5168, %v5167
    %v5170 = vrot.slane %v5159, 6
    %v5171 = vsel %vm669, %v5170, %v5169
    %v5172 = vrot.slane %v5160, 5
    %v5173 = vsel %vm672, %v5172, %v5171
    %v5174 = vrot.slane %v5161, 4
    %v5175 = vsel %vm675, %v5174, %v5173
    %v5176 = vpack.c.b16 %v5175, %v5175
    %5178 = vmatprep.subr.bf16.mxu0 %v224
    %5179 = vmatpush1.bf16.msra.mxu0 %v223
    %5180 = vmatprep.subr.bf16.mxu0 %v227
    %5181 = vmatpush1.bf16.msra.mxu0 %v226
    %5182 = vmatprep.subr.bf16.mxu0 %v230
    %5183 = vmatpush1.bf16.msra.mxu0 %v229
    %5184 = vmatprep.subr.bf16.mxu0 %v233
    %5185 = vmatpush1.bf16.msra.mxu0 %v232
    %5186 = vmatprep.subr.bf16.mxu0 %v236
    %5187 = vmatpush1.bf16.msra.mxu0 %v235
    %5188 = vmatprep.subr.bf16.mxu0 %v239
    %5189 = vmatpush1.bf16.msra.mxu0 %v238
    %5190 = vmatprep.subr.bf16.mxu0 %v242
    %5191 = vmatpush1.bf16.msra.mxu0 %v241
    %5192 = vmatprep.subr.bf16.mxu0 %v245
    %5193 = vmatpush1.bf16.msra.mxu0 %v244
    %5194 = vmatprep.subr.bf16.mxu0 0
    %5195 = vmatpush1.bf16.msra.mxu0 0
    %5196 = vmatprep.subr.bf16.mxu0 0
    %5197 = vmatpush1.bf16.msra.mxu0 0
    %5198 = vmatprep.subr.bf16.mxu0 0
    %5199 = vmatpush1.bf16.msra.mxu0 0
    %5200 = vmatprep.subr.bf16.mxu0 0
    %5201 = vmatpush1.bf16.msra.mxu0 0
    %5202 = vmatprep.subr.bf16.mxu0 0
    %5203 = vmatpush1.bf16.msra.mxu0 0
    %5204 = vmatprep.subr.bf16.mxu0 0
    %5205 = vmatpush1.bf16.msra.mxu0 0
    %5206 = vmatprep.subr.bf16.mxu0 0
    %5207 = vmatpush1.bf16.msra.mxu0 0
    %5208 = vmatprep.subr.bf16.mxu0 0
    %5209 = vmatpush1.bf16.msra.mxu0 0
    %5210 = vmatprep.mubr.bf16.mxu0 0
    %5211 = vmatmul.mubr.bf16.gmra.mrb[0].mxu0 %v5176
    %v5212 = vpop.f32.mrb[0].mxu0
    %v5213 = vadd.f32 %v90, %v5212
    %v5214 = vpop.f32.mrb[0].mxu0
    %v5215 = vadd.f32 %v94, %v5214
    %v5216 = vpop.f32.mrb[0].mxu0
    %v5217 = vpop.f32.mrb[0].mxu0
    %5218 = vdwg.mxu0
    %5219 = vmatprep.subr.bf16.mxu0 0
    %5220 = vmatpush1.bf16.msra.mxu0 %v225
    %5221 = vmatprep.subr.bf16.mxu0 0
    %5222 = vmatpush1.bf16.msra.mxu0 %v228
    %5223 = vmatprep.subr.bf16.mxu0 0
    %5224 = vmatpush1.bf16.msra.mxu0 %v231
    %5225 = vmatprep.subr.bf16.mxu0 0
    %5226 = vmatpush1.bf16.msra.mxu0 %v234
    %5227 = vmatprep.subr.bf16.mxu0 0
    %5228 = vmatpush1.bf16.msra.mxu0 %v237
    %5229 = vmatprep.subr.bf16.mxu0 0
    %5230 = vmatpush1.bf16.msra.mxu0 %v240
    %5231 = vmatprep.subr.bf16.mxu0 0
    %5232 = vmatpush1.bf16.msra.mxu0 %v243
    %5233 = vmatprep.subr.bf16.mxu0 0
    %5234 = vmatpush1.bf16.msra.mxu0 %v246
    %5235 = vmatprep.subr.bf16.mxu0 0
    %5236 = vmatpush1.bf16.msra.mxu0 0
    %5237 = vmatprep.subr.bf16.mxu0 0
    %5238 = vmatpush1.bf16.msra.mxu0 0
    %5239 = vmatprep.subr.bf16.mxu0 0
    %5240 = vmatpush1.bf16.msra.mxu0 0
    %5241 = vmatprep.subr.bf16.mxu0 0
    %5242 = vmatpush1.bf16.msra.mxu0 0
    %5243 = vmatprep.subr.bf16.mxu0 0
    %5244 = vmatpush1.bf16.msra.mxu0 0
    %5245 = vmatprep.subr.bf16.mxu0 0
    %5246 = vmatpush1.bf16.msra.mxu0 0
    %5247 = vmatprep.subr.bf16.mxu0 0
    %5248 = vmatpush1.bf16.msra.mxu0 0
    %5249 = vmatprep.subr.bf16.mxu0 0
    %5250 = vmatpush1.bf16.msra.mxu0 0
    %5251 = vmatprep.mubr.bf16.mxu0 0
    %5252 = vmatmul.mubr.bf16.gmra.mrb[0].mxu0 %v5176
    %v5253 = vpop.f32.mrb[0].mxu0
    %v5254 = vadd.f32 %v98, %v5253
    %v5255 = vpop.f32.mrb[0].mxu0
    %v5256 = vpop.f32.mrb[0].mxu0
    %v5257 = vpop.f32.mrb[0].mxu0
    %5258 = vdwg.mxu0
    %v5260 = vrot.slane %v5213, 4
    %v5261 = vrot.slane %v5213, 5
    %v5262 = vrot.slane %v5213, 6
    %v5263 = vrot.slane %v5213, 7
    %v5264 = vrot.slane %v5213, 1
    %v5265 = vrot.slane %v5213, 2
    %v5266 = vrot.slane %v5213, 3
    %v5275 = vadd.f32 %v5114, %v5260
    %v5276 = vadd.f32 %v5117, %v5261
    %v5277 = vadd.f32 %v5120, %v5262
    %v5278 = vadd.f32 %v5123, %v5263
    %v5279 = vadd.f32 %v5126, %v5213
    %v5280 = vadd.f32 %v5129, %v5264
    %v5281 = vadd.f32 %v5132, %v5265
    %v5282 = vadd.f32 %v5135, %v5266
    %v5283 = vxor.u32 %v5275, 2147483648
    %v5284 = vxor.u32 %v5276, 2147483648
    %v5285 = vxor.u32 %v5277, 2147483648
    %v5286 = vxor.u32 %v5278, 2147483648
    %v5287 = vxor.u32 %v5279, 2147483648
    %v5288 = vxor.u32 %v5280, 2147483648
    %v5289 = vxor.u32 %v5281, 2147483648
    %v5290 = vxor.u32 %v5282, 2147483648
    %v5291 = vmul.f32 %v5283, 1.442695
    %v5292 = vpow.pop %v5291
    %v5293 = vmul.f32 %v5284, 1.442695
    %v5294 = vpow.pop %v5293
    %v5295 = vmul.f32 %v5285, 1.442695
    %v5296 = vpow.pop %v5295
    %v5297 = vmul.f32 %v5286, 1.442695
    %v5298 = vpow.pop %v5297
    %v5299 = vmul.f32 %v5287, 1.442695
    %v5300 = vpow.pop %v5299
    %v5301 = vmul.f32 %v5288, 1.442695
    %v5302 = vpow.pop %v5301
    %v5303 = vmul.f32 %v5289, 1.442695
    %v5304 = vpow.pop %v5303
    %v5305 = vmul.f32 %v5290, 1.442695
    %v5306 = vpow.pop %v5305
    %v5307 = vadd.f32 %v5292, 1.0
    %v5308 = vadd.f32 %v5294, 1.0
    %v5309 = vadd.f32 %v5296, 1.0
    %v5310 = vadd.f32 %v5298, 1.0
    %v5311 = vadd.f32 %v5300, 1.0
    %v5312 = vadd.f32 %v5302, 1.0
    %v5313 = vadd.f32 %v5304, 1.0
    %v5314 = vadd.f32 %v5306, 1.0
    %v5315 = vrcp.pop %v5307
    %v5316 = vmul.f32 1.0, %v5315
    %v5317 = vrcp.pop %v5308
    %v5318 = vmul.f32 1.0, %v5317
    %v5319 = vrcp.pop %v5309
    %v5320 = vmul.f32 1.0, %v5319
    %v5321 = vrcp.pop %v5310
    %v5322 = vmul.f32 1.0, %v5321
    %v5323 = vrcp.pop %v5311
    %v5324 = vmul.f32 1.0, %v5323
    %v5325 = vrcp.pop %v5312
    %v5326 = vmul.f32 1.0, %v5325
    %v5327 = vrcp.pop %v5313
    %v5328 = vmul.f32 1.0, %v5327
    %v5329 = vrcp.pop %v5314
    %v5330 = vmul.f32 1.0, %v5329
    %v5332 = vrot.slane %v5215, 4
    %v5333 = vrot.slane %v5215, 5
    %v5334 = vrot.slane %v5215, 6
    %v5335 = vrot.slane %v5215, 7
    %v5336 = vrot.slane %v5215, 1
    %v5337 = vrot.slane %v5215, 2
    %v5338 = vrot.slane %v5215, 3
    %v5347 = vadd.f32 %v5115, %v5332
    %v5348 = vadd.f32 %v5118, %v5333
    %v5349 = vadd.f32 %v5121, %v5334
    %v5350 = vadd.f32 %v5124, %v5335
    %v5351 = vadd.f32 %v5127, %v5215
    %v5352 = vadd.f32 %v5130, %v5336
    %v5353 = vadd.f32 %v5133, %v5337
    %v5354 = vadd.f32 %v5136, %v5338
    %v5355 = vxor.u32 %v5347, 2147483648
    %v5356 = vxor.u32 %v5348, 2147483648
    %v5357 = vxor.u32 %v5349, 2147483648
    %v5358 = vxor.u32 %v5350, 2147483648
    %v5359 = vxor.u32 %v5351, 2147483648
    %v5360 = vxor.u32 %v5352, 2147483648
    %v5361 = vxor.u32 %v5353, 2147483648
    %v5362 = vxor.u32 %v5354, 2147483648
    %v5363 = vmul.f32 %v5355, 1.442695
    %v5364 = vpow.pop %v5363
    %v5365 = vmul.f32 %v5356, 1.442695
    %v5366 = vpow.pop %v5365
    %v5367 = vmul.f32 %v5357, 1.442695
    %v5368 = vpow.pop %v5367
    %v5369 = vmul.f32 %v5358, 1.442695
    %v5370 = vpow.pop %v5369
    %v5371 = vmul.f32 %v5359, 1.442695
    %v5372 = vpow.pop %v5371
    %v5373 = vmul.f32 %v5360, 1.442695
    %v5374 = vpow.pop %v5373
    %v5375 = vmul.f32 %v5361, 1.442695
    %v5376 = vpow.pop %v5375
    %v5377 = vmul.f32 %v5362, 1.442695
    %v5378 = vpow.pop %v5377
    %v5379 = vadd.f32 %v5364, 1.0
    %v5380 = vadd.f32 %v5366, 1.0
    %v5381 = vadd.f32 %v5368, 1.0
    %v5382 = vadd.f32 %v5370, 1.0
    %v5383 = vadd.f32 %v5372, 1.0
    %v5384 = vadd.f32 %v5374, 1.0
    %v5385 = vadd.f32 %v5376, 1.0
    %v5386 = vadd.f32 %v5378, 1.0
    %v5387 = vrcp.pop %v5379
    %v5388 = vmul.f32 1.0, %v5387
    %v5389 = vrcp.pop %v5380
    %v5390 = vmul.f32 1.0, %v5389
    %v5391 = vrcp.pop %v5381
    %v5392 = vmul.f32 1.0, %v5391
    %v5393 = vrcp.pop %v5382
    %v5394 = vmul.f32 1.0, %v5393
    %v5395 = vrcp.pop %v5383
    %v5396 = vmul.f32 1.0, %v5395
    %v5397 = vrcp.pop %v5384
    %v5398 = vmul.f32 1.0, %v5397
    %v5399 = vrcp.pop %v5385
    %v5400 = vmul.f32 1.0, %v5399
    %v5401 = vrcp.pop %v5386
    %v5402 = vmul.f32 1.0, %v5401
    %v5404 = vrot.slane %v5254, 4
    %v5405 = vrot.slane %v5254, 5
    %v5406 = vrot.slane %v5254, 6
    %v5407 = vrot.slane %v5254, 7
    %v5408 = vrot.slane %v5254, 1
    %v5409 = vrot.slane %v5254, 2
    %v5410 = vrot.slane %v5254, 3
    %v5419 = vmul.f32 %v5316, %v5404
    %v5420 = vmul.f32 %v5318, %v5405
    %v5421 = vmul.f32 %v5320, %v5406
    %v5422 = vmul.f32 %v5322, %v5407
    %v5423 = vmul.f32 %v5324, %v5254
    %v5424 = vmul.f32 %v5326, %v5408
    %v5425 = vmul.f32 %v5328, %v5409
    %v5426 = vmul.f32 %v5330, %v5410
    %v5427 = vadd.f32 %v5116, %v5419
    %v5428 = vadd.f32 %v5119, %v5420
    %v5429 = vadd.f32 %v5122, %v5421
    %v5430 = vadd.f32 %v5125, %v5422
    %v5431 = vadd.f32 %v5128, %v5423
    %v5432 = vadd.f32 %v5131, %v5424
    %v5433 = vadd.f32 %v5134, %v5425
    %v5434 = vadd.f32 %v5137, %v5426
    %v5435 = vtanh.pop %v5427
    %v5436 = vtanh.pop %v5428
    %v5437 = vtanh.pop %v5429
    %v5438 = vtanh.pop %v5430
    %v5439 = vtanh.pop %v5431
    %v5440 = vtanh.pop %v5432
    %v5441 = vtanh.pop %v5433
    %v5442 = vtanh.pop %v5434
    %v5443 = vsub.f32 1.0, %v5388
    %v5444 = vsub.f32 1.0, %v5390
    %v5445 = vsub.f32 1.0, %v5392
    %v5446 = vsub.f32 1.0, %v5394
    %v5447 = vsub.f32 1.0, %v5396
    %v5448 = vsub.f32 1.0, %v5398
    %v5449 = vsub.f32 1.0, %v5400
    %v5450 = vsub.f32 1.0, %v5402
    %v5451 = vmul.f32 %v5443, %v5435
    %v5452 = vmul.f32 %v5444, %v5436
    %v5453 = vmul.f32 %v5445, %v5437
    %v5454 = vmul.f32 %v5446, %v5438
    %v5455 = vmul.f32 %v5447, %v5439
    %v5456 = vmul.f32 %v5448, %v5440
    %v5457 = vmul.f32 %v5449, %v5441
    %v5458 = vmul.f32 %v5450, %v5442
    %v5467 = vrot.slane %v5082, 7
    %v5468 = vrot.slane %v5083, 7
    %v5469 = vrot.slane %v5084, 7
    %v5470 = vrot.slane %v5085, 7
    %v5471 = vrot.slane %v5086, 7
    %v5472 = vrot.slane %v5087, 7
    %v5473 = vrot.slane %v5088, 7
    %v5474 = vrot.slane %v5089, 7
    %v5483 = vmul.f32 %v5388, %v5467
    %v5484 = vmul.f32 %v5390, %v5468
    %v5485 = vmul.f32 %v5392, %v5469
    %v5486 = vmul.f32 %v5394, %v5470
    %v5487 = vmul.f32 %v5396, %v5471
    %v5488 = vmul.f32 %v5398, %v5472
    %v5489 = vmul.f32 %v5400, %v5473
    %v5490 = vmul.f32 %v5402, %v5474
    %v5491 = vadd.f32 %v5451, %v5483
    %v5492 = vadd.f32 %v5452, %v5484
    %v5493 = vadd.f32 %v5453, %v5485
    %v5494 = vadd.f32 %v5454, %v5486
    %v5495 = vadd.f32 %v5455, %v5487
    %v5496 = vadd.f32 %v5456, %v5488
    %v5497 = vadd.f32 %v5457, %v5489
    %v5498 = vadd.f32 %v5458, %v5490
    %5499 = vst [vmem:[#allocation8 + $0x8] sm:$0x10] %v5491
    %5500 = vst [vmem:[#allocation8 + $0x18] sm:$0x10] %v5492
    %5501 = vst [vmem:[#allocation8 + $0x28] sm:$0x10] %v5493
    %5502 = vst [vmem:[#allocation8 + $0x38] sm:$0x10] %v5494
    %5503 = vst [vmem:[#allocation8 + $0x48] sm:$0x10] %v5495
    %5504 = vst [vmem:[#allocation8 + $0x58] sm:$0x10] %v5496
    %5505 = vst [vmem:[#allocation8 + $0x68] sm:$0x10] %v5497
    %5506 = vst [vmem:[#allocation8 + $0x78] sm:$0x10] %v5498
    %v5507 = vld [vmem:[#allocation3 + $0xc] sm:$0x44]
    %v5508 = vld [vmem:[#allocation3 + $0x14] sm:$0x4]
    %v5509 = vld [vmem:[#allocation3 + $0x24] sm:$0x44]
    %v5510 = vld [vmem:[#allocation3 + $0x2c] sm:$0x4]
    %v5511 = vld [vmem:[#allocation3 + $0x3c] sm:$0x44]
    %v5512 = vld [vmem:[#allocation3 + $0x44] sm:$0x4]
    %v5513 = vld [vmem:[#allocation3 + $0x54] sm:$0x44]
    %v5514 = vld [vmem:[#allocation3 + $0x5c] sm:$0x4]
    %v5515 = vld [vmem:[#allocation3 + $0x6c] sm:$0x44]
    %v5516 = vld [vmem:[#allocation3 + $0x74] sm:$0x4]
    %v5517 = vld [vmem:[#allocation3 + $0x84] sm:$0x44]
    %v5518 = vld [vmem:[#allocation3 + $0x8c] sm:$0x4]
    %v5519 = vld [vmem:[#allocation3 + $0x9c] sm:$0x44]
    %v5520 = vld [vmem:[#allocation3 + $0xa4] sm:$0x4]
    %v5521 = vld [vmem:[#allocation3 + $0xb4] sm:$0x44]
    %v5522 = vld [vmem:[#allocation3 + $0xbc] sm:$0x4]
    %v5523 = vunpack.c.l.bf16 %v5507
    %v5524 = vunpack.c.h.bf16 %v5507
    %v5525 = vunpack.c.l.bf16 %v5508
    %v5526 = vunpack.c.l.bf16 %v5509
    %v5527 = vunpack.c.h.bf16 %v5509
    %v5528 = vunpack.c.l.bf16 %v5510
    %v5529 = vunpack.c.l.bf16 %v5511
    %v5530 = vunpack.c.h.bf16 %v5511
    %v5531 = vunpack.c.l.bf16 %v5512
    %v5532 = vunpack.c.l.bf16 %v5513
    %v5533 = vunpack.c.h.bf16 %v5513
    %v5534 = vunpack.c.l.bf16 %v5514
    %v5535 = vunpack.c.l.bf16 %v5515
    %v5536 = vunpack.c.h.bf16 %v5515
    %v5537 = vunpack.c.l.bf16 %v5516
    %v5538 = vunpack.c.l.bf16 %v5517
    %v5539 = vunpack.c.h.bf16 %v5517
    %v5540 = vunpack.c.l.bf16 %v5518
    %v5541 = vunpack.c.l.bf16 %v5519
    %v5542 = vunpack.c.h.bf16 %v5519
    %v5543 = vunpack.c.l.bf16 %v5520
    %v5544 = vunpack.c.l.bf16 %v5521
    %v5545 = vunpack.c.h.bf16 %v5521
    %v5546 = vunpack.c.l.bf16 %v5522
    %v5547 = vpack.c.bf16 %v5491, %v5491
    %v5548 = vpack.c.bf16 %v5492, %v5492
    %v5549 = vpack.c.bf16 %v5493, %v5493
    %v5550 = vpack.c.bf16 %v5494, %v5494
    %v5551 = vpack.c.bf16 %v5495, %v5495
    %v5552 = vpack.c.bf16 %v5496, %v5496
    %v5553 = vpack.c.bf16 %v5497, %v5497
    %v5554 = vpack.c.bf16 %v5498, %v5498
    %v5563 = vunpack.c.l.b16 %v5547
    %v5564 = vunpack.c.l.b16 %v5548
    %v5565 = vunpack.c.l.b16 %v5549
    %v5566 = vunpack.c.l.b16 %v5550
    %v5567 = vunpack.c.l.b16 %v5551
    %v5568 = vunpack.c.l.b16 %v5552
    %v5569 = vunpack.c.l.b16 %v5553
    %v5570 = vunpack.c.l.b16 %v5554
    %v5571 = vrot.slane %v5563, 4
    %v5572 = vrot.slane %v5564, 3
    %v5573 = vsel %vm657, %v5572, %v5571
    %v5574 = vrot.slane %v5565, 2
    %v5575 = vsel %vm660, %v5574, %v5573
    %v5576 = vrot.slane %v5566, 1
    %v5577 = vsel %vm663, %v5576, %v5575
    %v5578 = vsel %vm666, %v5567, %v5577
    %v5579 = vrot.slane %v5568, 7
    %v5580 = vsel %vm669, %v5579, %v5578
    %v5581 = vrot.slane %v5569, 6
    %v5582 = vsel %vm672, %v5581, %v5580
    %v5583 = vrot.slane %v5570, 5
    %v5584 = vsel %vm675, %v5583, %v5582
    %v5585 = vpack.c.b16 %v5584, %v5584
    %5587 = vmatprep.subr.bf16.mxu0 %v224
    %5588 = vmatpush1.bf16.msra.mxu0 %v223
    %5589 = vmatprep.subr.bf16.mxu0 %v227
    %5590 = vmatpush1.bf16.msra.mxu0 %v226
    %5591 = vmatprep.subr.bf16.mxu0 %v230
    %5592 = vmatpush1.bf16.msra.mxu0 %v229
    %5593 = vmatprep.subr.bf16.mxu0 %v233
    %5594 = vmatpush1.bf16.msra.mxu0 %v232
    %5595 = vmatprep.subr.bf16.mxu0 %v236
    %5596 = vmatpush1.bf16.msra.mxu0 %v235
    %5597 = vmatprep.subr.bf16.mxu0 %v239
    %5598 = vmatpush1.bf16.msra.mxu0 %v238
    %5599 = vmatprep.subr.bf16.mxu0 %v242
    %5600 = vmatpush1.bf16.msra.mxu0 %v241
    %5601 = vmatprep.subr.bf16.mxu0 %v245
    %5602 = vmatpush1.bf16.msra.mxu0 %v244
    %5603 = vmatprep.subr.bf16.mxu0 0
    %5604 = vmatpush1.bf16.msra.mxu0 0
    %5605 = vmatprep.subr.bf16.mxu0 0
    %5606 = vmatpush1.bf16.msra.mxu0 0
    %5607 = vmatprep.subr.bf16.mxu0 0
    %5608 = vmatpush1.bf16.msra.mxu0 0
    %5609 = vmatprep.subr.bf16.mxu0 0
    %5610 = vmatpush1.bf16.msra.mxu0 0
    %5611 = vmatprep.subr.bf16.mxu0 0
    %5612 = vmatpush1.bf16.msra.mxu0 0
    %5613 = vmatprep.subr.bf16.mxu0 0
    %5614 = vmatpush1.bf16.msra.mxu0 0
    %5615 = vmatprep.subr.bf16.mxu0 0
    %5616 = vmatpush1.bf16.msra.mxu0 0
    %5617 = vmatprep.subr.bf16.mxu0 0
    %5618 = vmatpush1.bf16.msra.mxu0 0
    %5619 = vmatprep.mubr.bf16.mxu0 0
    %5620 = vmatmul.mubr.bf16.gmra.mrb[0].mxu0 %v5585
    %v5621 = vpop.f32.mrb[0].mxu0
    %v5622 = vadd.f32 %v90, %v5621
    %v5623 = vpop.f32.mrb[0].mxu0
    %v5624 = vadd.f32 %v94, %v5623
    %v5625 = vpop.f32.mrb[0].mxu0
    %v5626 = vpop.f32.mrb[0].mxu0
    %5627 = vdwg.mxu0
    %5628 = vmatprep.subr.bf16.mxu0 0
    %5629 = vmatpush1.bf16.msra.mxu0 %v225
    %5630 = vmatprep.subr.bf16.mxu0 0
    %5631 = vmatpush1.bf16.msra.mxu0 %v228
    %5632 = vmatprep.subr.bf16.mxu0 0
    %5633 = vmatpush1.bf16.msra.mxu0 %v231
    %5634 = vmatprep.subr.bf16.mxu0 0
    %5635 = vmatpush1.bf16.msra.mxu0 %v234
    %5636 = vmatprep.subr.bf16.mxu0 0
    %5637 = vmatpush1.bf16.msra.mxu0 %v237
    %5638 = vmatprep.subr.bf16.mxu0 0
    %5639 = vmatpush1.bf16.msra.mxu0 %v240
    %5640 = vmatprep.subr.bf16.mxu0 0
    %5641 = vmatpush1.bf16.msra.mxu0 %v243
    %5642 = vmatprep.subr.bf16.mxu0 0
    %5643 = vmatpush1.bf16.msra.mxu0 %v246
    %5644 = vmatprep.subr.bf16.mxu0 0
    %5645 = vmatpush1.bf16.msra.mxu0 0
    %5646 = vmatprep.subr.bf16.mxu0 0
    %5647 = vmatpush1.bf16.msra.mxu0 0
    %5648 = vmatprep.subr.bf16.mxu0 0
    %5649 = vmatpush1.bf16.msra.mxu0 0
    %5650 = vmatprep.subr.bf16.mxu0 0
    %5651 = vmatpush1.bf16.msra.mxu0 0
    %5652 = vmatprep.subr.bf16.mxu0 0
    %5653 = vmatpush1.bf16.msra.mxu0 0
    %5654 = vmatprep.subr.bf16.mxu0 0
    %5655 = vmatpush1.bf16.msra.mxu0 0
    %5656 = vmatprep.subr.bf16.mxu0 0
    %5657 = vmatpush1.bf16.msra.mxu0 0
    %5658 = vmatprep.subr.bf16.mxu0 0
    %5659 = vmatpush1.bf16.msra.mxu0 0
    %5660 = vmatprep.mubr.bf16.mxu0 0
    %5661 = vmatmul.mubr.bf16.gmra.mrb[0].mxu0 %v5585
    %v5662 = vpop.f32.mrb[0].mxu0
    %v5663 = vadd.f32 %v98, %v5662
    %v5664 = vpop.f32.mrb[0].mxu0
    %v5665 = vpop.f32.mrb[0].mxu0
    %v5666 = vpop.f32.mrb[0].mxu0
    %5667 = vdwg.mxu0
    %v5669 = vrot.slane %v5622, 3
    %v5670 = vrot.slane %v5622, 4
    %v5671 = vrot.slane %v5622, 5
    %v5672 = vrot.slane %v5622, 6
    %v5673 = vrot.slane %v5622, 7
    %v5674 = vrot.slane %v5622, 1
    %v5675 = vrot.slane %v5622, 2
    %v5684 = vadd.f32 %v5523, %v5669
    %v5685 = vadd.f32 %v5526, %v5670
    %v5686 = vadd.f32 %v5529, %v5671
    %v5687 = vadd.f32 %v5532, %v5672
    %v5688 = vadd.f32 %v5535, %v5673
    %v5689 = vadd.f32 %v5538, %v5622
    %v5690 = vadd.f32 %v5541, %v5674
    %v5691 = vadd.f32 %v5544, %v5675
    %v5692 = vxor.u32 %v5684, 2147483648
    %v5693 = vxor.u32 %v5685, 2147483648
    %v5694 = vxor.u32 %v5686, 2147483648
    %v5695 = vxor.u32 %v5687, 2147483648
    %v5696 = vxor.u32 %v5688, 2147483648
    %v5697 = vxor.u32 %v5689, 2147483648
    %v5698 = vxor.u32 %v5690, 2147483648
    %v5699 = vxor.u32 %v5691, 2147483648
    %v5700 = vmul.f32 %v5692, 1.442695
    %v5701 = vpow.pop %v5700
    %v5702 = vmul.f32 %v5693, 1.442695
    %v5703 = vpow.pop %v5702
    %v5704 = vmul.f32 %v5694, 1.442695
    %v5705 = vpow.pop %v5704
    %v5706 = vmul.f32 %v5695, 1.442695
    %v5707 = vpow.pop %v5706
    %v5708 = vmul.f32 %v5696, 1.442695
    %v5709 = vpow.pop %v5708
    %v5710 = vmul.f32 %v5697, 1.442695
    %v5711 = vpow.pop %v5710
    %v5712 = vmul.f32 %v5698, 1.442695
    %v5713 = vpow.pop %v5712
    %v5714 = vmul.f32 %v5699, 1.442695
    %v5715 = vpow.pop %v5714
    %v5716 = vadd.f32 %v5701, 1.0
    %v5717 = vadd.f32 %v5703, 1.0
    %v5718 = vadd.f32 %v5705, 1.0
    %v5719 = vadd.f32 %v5707, 1.0
    %v5720 = vadd.f32 %v5709, 1.0
    %v5721 = vadd.f32 %v5711, 1.0
    %v5722 = vadd.f32 %v5713, 1.0
    %v5723 = vadd.f32 %v5715, 1.0
    %v5724 = vrcp.pop %v5716
    %v5725 = vmul.f32 1.0, %v5724
    %v5726 = vrcp.pop %v5717
    %v5727 = vmul.f32 1.0, %v5726
    %v5728 = vrcp.pop %v5718
    %v5729 = vmul.f32 1.0, %v5728
    %v5730 = vrcp.pop %v5719
    %v5731 = vmul.f32 1.0, %v5730
    %v5732 = vrcp.pop %v5720
    %v5733 = vmul.f32 1.0, %v5732
    %v5734 = vrcp.pop %v5721
    %v5735 = vmul.f32 1.0, %v5734
    %v5736 = vrcp.pop %v5722
    %v5737 = vmul.f32 1.0, %v5736
    %v5738 = vrcp.pop %v5723
    %v5739 = vmul.f32 1.0, %v5738
    %v5741 = vrot.slane %v5624, 3
    %v5742 = vrot.slane %v5624, 4
    %v5743 = vrot.slane %v5624, 5
    %v5744 = vrot.slane %v5624, 6
    %v5745 = vrot.slane %v5624, 7
    %v5746 = vrot.slane %v5624, 1
    %v5747 = vrot.slane %v5624, 2
    %v5756 = vadd.f32 %v5524, %v5741
    %v5757 = vadd.f32 %v5527, %v5742
    %v5758 = vadd.f32 %v5530, %v5743
    %v5759 = vadd.f32 %v5533, %v5744
    %v5760 = vadd.f32 %v5536, %v5745
    %v5761 = vadd.f32 %v5539, %v5624
    %v5762 = vadd.f32 %v5542, %v5746
    %v5763 = vadd.f32 %v5545, %v5747
    %v5764 = vxor.u32 %v5756, 2147483648
    %v5765 = vxor.u32 %v5757, 2147483648
    %v5766 = vxor.u32 %v5758, 2147483648
    %v5767 = vxor.u32 %v5759, 2147483648
    %v5768 = vxor.u32 %v5760, 2147483648
    %v5769 = vxor.u32 %v5761, 2147483648
    %v5770 = vxor.u32 %v5762, 2147483648
    %v5771 = vxor.u32 %v5763, 2147483648
    %v5772 = vmul.f32 %v5764, 1.442695
    %v5773 = vpow.pop %v5772
    %v5774 = vmul.f32 %v5765, 1.442695
    %v5775 = vpow.pop %v5774
    %v5776 = vmul.f32 %v5766, 1.442695
    %v5777 = vpow.pop %v5776
    %v5778 = vmul.f32 %v5767, 1.442695
    %v5779 = vpow.pop %v5778
    %v5780 = vmul.f32 %v5768, 1.442695
    %v5781 = vpow.pop %v5780
    %v5782 = vmul.f32 %v5769, 1.442695
    %v5783 = vpow.pop %v5782
    %v5784 = vmul.f32 %v5770, 1.442695
    %v5785 = vpow.pop %v5784
    %v5786 = vmul.f32 %v5771, 1.442695
    %v5787 = vpow.pop %v5786
    %v5788 = vadd.f32 %v5773, 1.0
    %v5789 = vadd.f32 %v5775, 1.0
    %v5790 = vadd.f32 %v5777, 1.0
    %v5791 = vadd.f32 %v5779, 1.0
    %v5792 = vadd.f32 %v5781, 1.0
    %v5793 = vadd.f32 %v5783, 1.0
    %v5794 = vadd.f32 %v5785, 1.0
    %v5795 = vadd.f32 %v5787, 1.0
    %v5796 = vrcp.pop %v5788
    %v5797 = vmul.f32 1.0, %v5796
    %v5798 = vrcp.pop %v5789
    %v5799 = vmul.f32 1.0, %v5798
    %v5800 = vrcp.pop %v5790
    %v5801 = vmul.f32 1.0, %v5800
    %v5802 = vrcp.pop %v5791
    %v5803 = vmul.f32 1.0, %v5802
    %v5804 = vrcp.pop %v5792
    %v5805 = vmul.f32 1.0, %v5804
    %v5806 = vrcp.pop %v5793
    %v5807 = vmul.f32 1.0, %v5806
    %v5808 = vrcp.pop %v5794
    %v5809 = vmul.f32 1.0, %v5808
    %v5810 = vrcp.pop %v5795
    %v5811 = vmul.f32 1.0, %v5810
    %v5813 = vrot.slane %v5663, 3
    %v5814 = vrot.slane %v5663, 4
    %v5815 = vrot.slane %v5663, 5
    %v5816 = vrot.slane %v5663, 6
    %v5817 = vrot.slane %v5663, 7
    %v5818 = vrot.slane %v5663, 1
    %v5819 = vrot.slane %v5663, 2
    %v5828 = vmul.f32 %v5725, %v5813
    %v5829 = vmul.f32 %v5727, %v5814
    %v5830 = vmul.f32 %v5729, %v5815
    %v5831 = vmul.f32 %v5731, %v5816
    %v5832 = vmul.f32 %v5733, %v5817
    %v5833 = vmul.f32 %v5735, %v5663
    %v5834 = vmul.f32 %v5737, %v5818
    %v5835 = vmul.f32 %v5739, %v5819
    %v5836 = vadd.f32 %v5525, %v5828
    %v5837 = vadd.f32 %v5528, %v5829
    %v5838 = vadd.f32 %v5531, %v5830
    %v5839 = vadd.f32 %v5534, %v5831
    %v5840 = vadd.f32 %v5537, %v5832
    %v5841 = vadd.f32 %v5540, %v5833
    %v5842 = vadd.f32 %v5543, %v5834
    %v5843 = vadd.f32 %v5546, %v5835
    %v5844 = vtanh.pop %v5836
    %v5845 = vtanh.pop %v5837
    %v5846 = vtanh.pop %v5838
    %v5847 = vtanh.pop %v5839
    %v5848 = vtanh.pop %v5840
    %v5849 = vtanh.pop %v5841
    %v5850 = vtanh.pop %v5842
    %v5851 = vtanh.pop %v5843
    %v5852 = vsub.f32 1.0, %v5797
    %v5853 = vsub.f32 1.0, %v5799
    %v5854 = vsub.f32 1.0, %v5801
    %v5855 = vsub.f32 1.0, %v5803
    %v5856 = vsub.f32 1.0, %v5805
    %v5857 = vsub.f32 1.0, %v5807
    %v5858 = vsub.f32 1.0, %v5809
    %v5859 = vsub.f32 1.0, %v5811
    %v5860 = vmul.f32 %v5852, %v5844
    %v5861 = vmul.f32 %v5853, %v5845
    %v5862 = vmul.f32 %v5854, %v5846
    %v5863 = vmul.f32 %v5855, %v5847
    %v5864 = vmul.f32 %v5856, %v5848
    %v5865 = vmul.f32 %v5857, %v5849
    %v5866 = vmul.f32 %v5858, %v5850
    %v5867 = vmul.f32 %v5859, %v5851
    %v5876 = vrot.slane %v5491, 7
    %v5877 = vrot.slane %v5492, 7
    %v5878 = vrot.slane %v5493, 7
    %v5879 = vrot.slane %v5494, 7
    %v5880 = vrot.slane %v5495, 7
    %v5881 = vrot.slane %v5496, 7
    %v5882 = vrot.slane %v5497, 7
    %v5883 = vrot.slane %v5498, 7
    %v5892 = vmul.f32 %v5797, %v5876
    %v5893 = vmul.f32 %v5799, %v5877
    %v5894 = vmul.f32 %v5801, %v5878
    %v5895 = vmul.f32 %v5803, %v5879
    %v5896 = vmul.f32 %v5805, %v5880
    %v5897 = vmul.f32 %v5807, %v5881
    %v5898 = vmul.f32 %v5809, %v5882
    %v5899 = vmul.f32 %v5811, %v5883
    %v5900 = vadd.f32 %v5860, %v5892
    %v5901 = vadd.f32 %v5861, %v5893
    %v5902 = vadd.f32 %v5862, %v5894
    %v5903 = vadd.f32 %v5863, %v5895
    %v5904 = vadd.f32 %v5864, %v5896
    %v5905 = vadd.f32 %v5865, %v5897
    %v5906 = vadd.f32 %v5866, %v5898
    %v5907 = vadd.f32 %v5867, %v5899
    %5908 = vst [vmem:[#allocation8 + $0x8] sm:$0x20] %v5900
    %5909 = vst [vmem:[#allocation8 + $0x18] sm:$0x20] %v5901
    %5910 = vst [vmem:[#allocation8 + $0x28] sm:$0x20] %v5902
    %5911 = vst [vmem:[#allocation8 + $0x38] sm:$0x20] %v5903
    %5912 = vst [vmem:[#allocation8 + $0x48] sm:$0x20] %v5904
    %5913 = vst [vmem:[#allocation8 + $0x58] sm:$0x20] %v5905
    %5914 = vst [vmem:[#allocation8 + $0x68] sm:$0x20] %v5906
    %5915 = vst [vmem:[#allocation8 + $0x78] sm:$0x20] %v5907
    %v5916 = vld [vmem:[#allocation3 + $0xc] sm:$0x88]
    %v5917 = vld [vmem:[#allocation3 + $0x14] sm:$0x8]
    %v5918 = vld [vmem:[#allocation3 + $0x24] sm:$0x88]
    %v5919 = vld [vmem:[#allocation3 + $0x2c] sm:$0x8]
    %v5920 = vld [vmem:[#allocation3 + $0x3c] sm:$0x88]
    %v5921 = vld [vmem:[#allocation3 + $0x44] sm:$0x8]
    %v5922 = vld [vmem:[#allocation3 + $0x54] sm:$0x88]
    %v5923 = vld [vmem:[#allocation3 + $0x5c] sm:$0x8]
    %v5924 = vld [vmem:[#allocation3 + $0x6c] sm:$0x88]
    %v5925 = vld [vmem:[#allocation3 + $0x74] sm:$0x8]
    %v5926 = vld [vmem:[#allocation3 + $0x84] sm:$0x88]
    %v5927 = vld [vmem:[#allocation3 + $0x8c] sm:$0x8]
    %v5928 = vld [vmem:[#allocation3 + $0x9c] sm:$0x88]
    %v5929 = vld [vmem:[#allocation3 + $0xa4] sm:$0x8]
    %v5930 = vld [vmem:[#allocation3 + $0xb4] sm:$0x88]
    %v5931 = vld [vmem:[#allocation3 + $0xbc] sm:$0x8]
    %v5932 = vunpack.c.l.bf16 %v5916
    %v5933 = vunpack.c.h.bf16 %v5916
    %v5934 = vunpack.c.l.bf16 %v5917
    %v5935 = vunpack.c.l.bf16 %v5918
    %v5936 = vunpack.c.h.bf16 %v5918
    %v5937 = vunpack.c.l.bf16 %v5919
    %v5938 = vunpack.c.l.bf16 %v5920
    %v5939 = vunpack.c.h.bf16 %v5920
    %v5940 = vunpack.c.l.bf16 %v5921
    %v5941 = vunpack.c.l.bf16 %v5922
    %v5942 = vunpack.c.h.bf16 %v5922
    %v5943 = vunpack.c.l.bf16 %v5923
    %v5944 = vunpack.c.l.bf16 %v5924
    %v5945 = vunpack.c.h.bf16 %v5924
    %v5946 = vunpack.c.l.bf16 %v5925
    %v5947 = vunpack.c.l.bf16 %v5926
    %v5948 = vunpack.c.h.bf16 %v5926
    %v5949 = vunpack.c.l.bf16 %v5927
    %v5950 = vunpack.c.l.bf16 %v5928
    %v5951 = vunpack.c.h.bf16 %v5928
    %v5952 = vunpack.c.l.bf16 %v5929
    %v5953 = vunpack.c.l.bf16 %v5930
    %v5954 = vunpack.c.h.bf16 %v5930
    %v5955 = vunpack.c.l.bf16 %v5931
    %v5956 = vpack.c.bf16 %v5900, %v5900
    %v5957 = vpack.c.bf16 %v5901, %v5901
    %v5958 = vpack.c.bf16 %v5902, %v5902
    %v5959 = vpack.c.bf16 %v5903, %v5903
    %v5960 = vpack.c.bf16 %v5904, %v5904
    %v5961 = vpack.c.bf16 %v5905, %v5905
    %v5962 = vpack.c.bf16 %v5906, %v5906
    %v5963 = vpack.c.bf16 %v5907, %v5907
    %v5972 = vunpack.c.l.b16 %v5956
    %v5973 = vunpack.c.l.b16 %v5957
    %v5974 = vunpack.c.l.b16 %v5958
    %v5975 = vunpack.c.l.b16 %v5959
    %v5976 = vunpack.c.l.b16 %v5960
    %v5977 = vunpack.c.l.b16 %v5961
    %v5978 = vunpack.c.l.b16 %v5962
    %v5979 = vunpack.c.l.b16 %v5963
    %v5980 = vrot.slane %v5972, 5
    %v5981 = vrot.slane %v5973, 4
    %v5982 = vsel %vm657, %v5981, %v5980
    %v5983 = vrot.slane %v5974, 3
    %v5984 = vsel %vm660, %v5983, %v5982
    %v5985 = vrot.slane %v5975, 2
    %v5986 = vsel %vm663, %v5985, %v5984
    %v5987 = vrot.slane %v5976, 1
    %v5988 = vsel %vm666, %v5987, %v5986
    %v5989 = vsel %vm669, %v5977, %v5988
    %v5990 = vrot.slane %v5978, 7
    %v5991 = vsel %vm672, %v5990, %v5989
    %v5992 = vrot.slane %v5979, 6
    %v5993 = vsel %vm675, %v5992, %v5991
    %v5994 = vpack.c.b16 %v5993, %v5993
    %5996 = vmatprep.subr.bf16.mxu0 %v224
    %5997 = vmatpush1.bf16.msra.mxu0 %v223
    %5998 = vmatprep.subr.bf16.mxu0 %v227
    %5999 = vmatpush1.bf16.msra.mxu0 %v226
    %6000 = vmatprep.subr.bf16.mxu0 %v230
    %6001 = vmatpush1.bf16.msra.mxu0 %v229
    %6002 = vmatprep.subr.bf16.mxu0 %v233
    %6003 = vmatpush1.bf16.msra.mxu0 %v232
    %6004 = vmatprep.subr.bf16.mxu0 %v236
    %6005 = vmatpush1.bf16.msra.mxu0 %v235
    %6006 = vmatprep.subr.bf16.mxu0 %v239
    %6007 = vmatpush1.bf16.msra.mxu0 %v238
    %6008 = vmatprep.subr.bf16.mxu0 %v242
    %6009 = vmatpush1.bf16.msra.mxu0 %v241
    %6010 = vmatprep.subr.bf16.mxu0 %v245
    %6011 = vmatpush1.bf16.msra.mxu0 %v244
    %6012 = vmatprep.subr.bf16.mxu0 0
    %6013 = vmatpush1.bf16.msra.mxu0 0
    %6014 = vmatprep.subr.bf16.mxu0 0
    %6015 = vmatpush1.bf16.msra.mxu0 0
    %6016 = vmatprep.subr.bf16.mxu0 0
    %6017 = vmatpush1.bf16.msra.mxu0 0
    %6018 = vmatprep.subr.bf16.mxu0 0
    %6019 = vmatpush1.bf16.msra.mxu0 0
    %6020 = vmatprep.subr.bf16.mxu0 0
    %6021 = vmatpush1.bf16.msra.mxu0 0
    %6022 = vmatprep.subr.bf16.mxu0 0
    %6023 = vmatpush1.bf16.msra.mxu0 0
    %6024 = vmatprep.subr.bf16.mxu0 0
    %6025 = vmatpush1.bf16.msra.mxu0 0
    %6026 = vmatprep.subr.bf16.mxu0 0
    %6027 = vmatpush1.bf16.msra.mxu0 0
    %6028 = vmatprep.mubr.bf16.mxu0 0
    %6029 = vmatmul.mubr.bf16.gmra.mrb[0].mxu0 %v5994
    %v6030 = vpop.f32.mrb[0].mxu0
    %v6031 = vadd.f32 %v90, %v6030
    %v6032 = vpop.f32.mrb[0].mxu0
    %v6033 = vadd.f32 %v94, %v6032
    %v6034 = vpop.f32.mrb[0].mxu0
    %v6035 = vpop.f32.mrb[0].mxu0
    %6036 = vdwg.mxu0
    %6037 = vmatprep.subr.bf16.mxu0 0
    %6038 = vmatpush1.bf16.msra.mxu0 %v225
    %6039 = vmatprep.subr.bf16.mxu0 0
    %6040 = vmatpush1.bf16.msra.mxu0 %v228
    %6041 = vmatprep.subr.bf16.mxu0 0
    %6042 = vmatpush1.bf16.msra.mxu0 %v231
    %6043 = vmatprep.subr.bf16.mxu0 0
    %6044 = vmatpush1.bf16.msra.mxu0 %v234
    %6045 = vmatprep.subr.bf16.mxu0 0
    %6046 = vmatpush1.bf16.msra.mxu0 %v237
    %6047 = vmatprep.subr.bf16.mxu0 0
    %6048 = vmatpush1.bf16.msra.mxu0 %v240
    %6049 = vmatprep.subr.bf16.mxu0 0
    %6050 = vmatpush1.bf16.msra.mxu0 %v243
    %6051 = vmatprep.subr.bf16.mxu0 0
    %6052 = vmatpush1.bf16.msra.mxu0 %v246
    %6053 = vmatprep.subr.bf16.mxu0 0
    %6054 = vmatpush1.bf16.msra.mxu0 0
    %6055 = vmatprep.subr.bf16.mxu0 0
    %6056 = vmatpush1.bf16.msra.mxu0 0
    %6057 = vmatprep.subr.bf16.mxu0 0
    %6058 = vmatpush1.bf16.msra.mxu0 0
    %6059 = vmatprep.subr.bf16.mxu0 0
    %6060 = vmatpush1.bf16.msra.mxu0 0
    %6061 = vmatprep.subr.bf16.mxu0 0
    %6062 = vmatpush1.bf16.msra.mxu0 0
    %6063 = vmatprep.subr.bf16.mxu0 0
    %6064 = vmatpush1.bf16.msra.mxu0 0
    %6065 = vmatprep.subr.bf16.mxu0 0
    %6066 = vmatpush1.bf16.msra.mxu0 0
    %6067 = vmatprep.subr.bf16.mxu0 0
    %6068 = vmatpush1.bf16.msra.mxu0 0
    %6069 = vmatprep.mubr.bf16.mxu0 0
    %6070 = vmatmul.mubr.bf16.gmra.mrb[0].mxu0 %v5994
    %v6071 = vpop.f32.mrb[0].mxu0
    %v6072 = vadd.f32 %v98, %v6071
    %v6073 = vpop.f32.mrb[0].mxu0
    %v6074 = vpop.f32.mrb[0].mxu0
    %v6075 = vpop.f32.mrb[0].mxu0
    %6076 = vdwg.mxu0
    %v6078 = vrot.slane %v6031, 2
    %v6079 = vrot.slane %v6031, 3
    %v6080 = vrot.slane %v6031, 4
    %v6081 = vrot.slane %v6031, 5
    %v6082 = vrot.slane %v6031, 6
    %v6083 = vrot.slane %v6031, 7
    %v6084 = vrot.slane %v6031, 1
    %v6093 = vadd.f32 %v5932, %v6078
    %v6094 = vadd.f32 %v5935, %v6079
    %v6095 = vadd.f32 %v5938, %v6080
    %v6096 = vadd.f32 %v5941, %v6081
    %v6097 = vadd.f32 %v5944, %v6082
    %v6098 = vadd.f32 %v5947, %v6083
    %v6099 = vadd.f32 %v5950, %v6031
    %v6100 = vadd.f32 %v5953, %v6084
    %v6101 = vxor.u32 %v6093, 2147483648
    %v6102 = vxor.u32 %v6094, 2147483648
    %v6103 = vxor.u32 %v6095, 2147483648
    %v6104 = vxor.u32 %v6096, 2147483648
    %v6105 = vxor.u32 %v6097, 2147483648
    %v6106 = vxor.u32 %v6098, 2147483648
    %v6107 = vxor.u32 %v6099, 2147483648
    %v6108 = vxor.u32 %v6100, 2147483648
    %v6109 = vmul.f32 %v6101, 1.442695
    %v6110 = vpow.pop %v6109
    %v6111 = vmul.f32 %v6102, 1.442695
    %v6112 = vpow.pop %v6111
    %v6113 = vmul.f32 %v6103, 1.442695
    %v6114 = vpow.pop %v6113
    %v6115 = vmul.f32 %v6104, 1.442695
    %v6116 = vpow.pop %v6115
    %v6117 = vmul.f32 %v6105, 1.442695
    %v6118 = vpow.pop %v6117
    %v6119 = vmul.f32 %v6106, 1.442695
    %v6120 = vpow.pop %v6119
    %v6121 = vmul.f32 %v6107, 1.442695
    %v6122 = vpow.pop %v6121
    %v6123 = vmul.f32 %v6108, 1.442695
    %v6124 = vpow.pop %v6123
    %v6125 = vadd.f32 %v6110, 1.0
    %v6126 = vadd.f32 %v6112, 1.0
    %v6127 = vadd.f32 %v6114, 1.0
    %v6128 = vadd.f32 %v6116, 1.0
    %v6129 = vadd.f32 %v6118, 1.0
    %v6130 = vadd.f32 %v6120, 1.0
    %v6131 = vadd.f32 %v6122, 1.0
    %v6132 = vadd.f32 %v6124, 1.0
    %v6133 = vrcp.pop %v6125
    %v6134 = vmul.f32 1.0, %v6133
    %v6135 = vrcp.pop %v6126
    %v6136 = vmul.f32 1.0, %v6135
    %v6137 = vrcp.pop %v6127
    %v6138 = vmul.f32 1.0, %v6137
    %v6139 = vrcp.pop %v6128
    %v6140 = vmul.f32 1.0, %v6139
    %v6141 = vrcp.pop %v6129
    %v6142 = vmul.f32 1.0, %v6141
    %v6143 = vrcp.pop %v6130
    %v6144 = vmul.f32 1.0, %v6143
    %v6145 = vrcp.pop %v6131
    %v6146 = vmul.f32 1.0, %v6145
    %v6147 = vrcp.pop %v6132
    %v6148 = vmul.f32 1.0, %v6147
    %v6150 = vrot.slane %v6033, 2
    %v6151 = vrot.slane %v6033, 3
    %v6152 = vrot.slane %v6033, 4
    %v6153 = vrot.slane %v6033, 5
    %v6154 = vrot.slane %v6033, 6
    %v6155 = vrot.slane %v6033, 7
    %v6156 = vrot.slane %v6033, 1
    %v6165 = vadd.f32 %v5933, %v6150
    %v6166 = vadd.f32 %v5936, %v6151
    %v6167 = vadd.f32 %v5939, %v6152
    %v6168 = vadd.f32 %v5942, %v6153
    %v6169 = vadd.f32 %v5945, %v6154
    %v6170 = vadd.f32 %v5948, %v6155
    %v6171 = vadd.f32 %v5951, %v6033
    %v6172 = vadd.f32 %v5954, %v6156
    %v6173 = vxor.u32 %v6165, 2147483648
    %v6174 = vxor.u32 %v6166, 2147483648
    %v6175 = vxor.u32 %v6167, 2147483648
    %v6176 = vxor.u32 %v6168, 2147483648
    %v6177 = vxor.u32 %v6169, 2147483648
    %v6178 = vxor.u32 %v6170, 2147483648
    %v6179 = vxor.u32 %v6171, 2147483648
    %v6180 = vxor.u32 %v6172, 2147483648
    %v6181 = vmul.f32 %v6173, 1.442695
    %v6182 = vpow.pop %v6181
    %v6183 = vmul.f32 %v6174, 1.442695
    %v6184 = vpow.pop %v6183
    %v6185 = vmul.f32 %v6175, 1.442695
    %v6186 = vpow.pop %v6185
    %v6187 = vmul.f32 %v6176, 1.442695
    %v6188 = vpow.pop %v6187
    %v6189 = vmul.f32 %v6177, 1.442695
    %v6190 = vpow.pop %v6189
    %v6191 = vmul.f32 %v6178, 1.442695
    %v6192 = vpow.pop %v6191
    %v6193 = vmul.f32 %v6179, 1.442695
    %v6194 = vpow.pop %v6193
    %v6195 = vmul.f32 %v6180, 1.442695
    %v6196 = vpow.pop %v6195
    %v6197 = vadd.f32 %v6182, 1.0
    %v6198 = vadd.f32 %v6184, 1.0
    %v6199 = vadd.f32 %v6186, 1.0
    %v6200 = vadd.f32 %v6188, 1.0
    %v6201 = vadd.f32 %v6190, 1.0
    %v6202 = vadd.f32 %v6192, 1.0
    %v6203 = vadd.f32 %v6194, 1.0
    %v6204 = vadd.f32 %v6196, 1.0
    %v6205 = vrcp.pop %v6197
    %v6206 = vmul.f32 1.0, %v6205
    %v6207 = vrcp.pop %v6198
    %v6208 = vmul.f32 1.0, %v6207
    %v6209 = vrcp.pop %v6199
    %v6210 = vmul.f32 1.0, %v6209
    %v6211 = vrcp.pop %v6200
    %v6212 = vmul.f32 1.0, %v6211
    %v6213 = vrcp.pop %v6201
    %v6214 = vmul.f32 1.0, %v6213
    %v6215 = vrcp.pop %v6202
    %v6216 = vmul.f32 1.0, %v6215
    %v6217 = vrcp.pop %v6203
    %v6218 = vmul.f32 1.0, %v6217
    %v6219 = vrcp.pop %v6204
    %v6220 = vmul.f32 1.0, %v6219
    %v6222 = vrot.slane %v6072, 2
    %v6223 = vrot.slane %v6072, 3
    %v6224 = vrot.slane %v6072, 4
    %v6225 = vrot.slane %v6072, 5
    %v6226 = vrot.slane %v6072, 6
    %v6227 = vrot.slane %v6072, 7
    %v6228 = vrot.slane %v6072, 1
    %v6237 = vmul.f32 %v6134, %v6222
    %v6238 = vmul.f32 %v6136, %v6223
    %v6239 = vmul.f32 %v6138, %v6224
    %v6240 = vmul.f32 %v6140, %v6225
    %v6241 = vmul.f32 %v6142, %v6226
    %v6242 = vmul.f32 %v6144, %v6227
    %v6243 = vmul.f32 %v6146, %v6072
    %v6244 = vmul.f32 %v6148, %v6228
    %v6245 = vadd.f32 %v5934, %v6237
    %v6246 = vadd.f32 %v5937, %v6238
    %v6247 = vadd.f32 %v5940, %v6239
    %v6248 = vadd.f32 %v5943, %v6240
    %v6249 = vadd.f32 %v5946, %v6241
    %v6250 = vadd.f32 %v5949, %v6242
    %v6251 = vadd.f32 %v5952, %v6243
    %v6252 = vadd.f32 %v5955, %v6244
    %v6253 = vtanh.pop %v6245
    %v6254 = vtanh.pop %v6246
    %v6255 = vtanh.pop %v6247
    %v6256 = vtanh.pop %v6248
    %v6257 = vtanh.pop %v6249
    %v6258 = vtanh.pop %v6250
    %v6259 = vtanh.pop %v6251
    %v6260 = vtanh.pop %v6252
    %v6261 = vsub.f32 1.0, %v6206
    %v6262 = vsub.f32 1.0, %v6208
    %v6263 = vsub.f32 1.0, %v6210
    %v6264 = vsub.f32 1.0, %v6212
    %v6265 = vsub.f32 1.0, %v6214
    %v6266 = vsub.f32 1.0, %v6216
    %v6267 = vsub.f32 1.0, %v6218
    %v6268 = vsub.f32 1.0, %v6220
    %v6269 = vmul.f32 %v6261, %v6253
    %v6270 = vmul.f32 %v6262, %v6254
    %v6271 = vmul.f32 %v6263, %v6255
    %v6272 = vmul.f32 %v6264, %v6256
    %v6273 = vmul.f32 %v6265, %v6257
    %v6274 = vmul.f32 %v6266, %v6258
    %v6275 = vmul.f32 %v6267, %v6259
    %v6276 = vmul.f32 %v6268, %v6260
    %v6285 = vrot.slane %v5900, 7
    %v6286 = vrot.slane %v5901, 7
    %v6287 = vrot.slane %v5902, 7
    %v6288 = vrot.slane %v5903, 7
    %v6289 = vrot.slane %v5904, 7
    %v6290 = vrot.slane %v5905, 7
    %v6291 = vrot.slane %v5906, 7
    %v6292 = vrot.slane %v5907, 7
    %v6301 = vmul.f32 %v6206, %v6285
    %v6302 = vmul.f32 %v6208, %v6286
    %v6303 = vmul.f32 %v6210, %v6287
    %v6304 = vmul.f32 %v6212, %v6288
    %v6305 = vmul.f32 %v6214, %v6289
    %v6306 = vmul.f32 %v6216, %v6290
    %v6307 = vmul.f32 %v6218, %v6291
    %v6308 = vmul.f32 %v6220, %v6292
    %v6309 = vadd.f32 %v6269, %v6301
    %v6310 = vadd.f32 %v6270, %v6302
    %v6311 = vadd.f32 %v6271, %v6303
    %v6312 = vadd.f32 %v6272, %v6304
    %v6313 = vadd.f32 %v6273, %v6305
    %v6314 = vadd.f32 %v6274, %v6306
    %v6315 = vadd.f32 %v6275, %v6307
    %v6316 = vadd.f32 %v6276, %v6308
    %6317 = vst [vmem:[#allocation8 + $0x8] sm:$0x40] %v6309
    %6318 = vst [vmem:[#allocation8 + $0x18] sm:$0x40] %v6310
    %6319 = vst [vmem:[#allocation8 + $0x28] sm:$0x40] %v6311
    %6320 = vst [vmem:[#allocation8 + $0x38] sm:$0x40] %v6312
    %6321 = vst [vmem:[#allocation8 + $0x48] sm:$0x40] %v6313
    %6322 = vst [vmem:[#allocation8 + $0x58] sm:$0x40] %v6314
    %6323 = vst [vmem:[#allocation8 + $0x68] sm:$0x40] %v6315
    %6324 = vst [vmem:[#allocation8 + $0x78] sm:$0x40] %v6316
    %v6325 = vld [vmem:[#allocation3 + $0xc] sm:$0x88]
    %v6326 = vld [vmem:[#allocation3 + $0x14] sm:$0x8]
    %v6327 = vld [vmem:[#allocation3 + $0x24] sm:$0x88]
    %v6328 = vld [vmem:[#allocation3 + $0x2c] sm:$0x8]
    %v6329 = vld [vmem:[#allocation3 + $0x3c] sm:$0x88]
    %v6330 = vld [vmem:[#allocation3 + $0x44] sm:$0x8]
    %v6331 = vld [vmem:[#allocation3 + $0x54] sm:$0x88]
    %v6332 = vld [vmem:[#allocation3 + $0x5c] sm:$0x8]
    %v6333 = vld [vmem:[#allocation3 + $0x6c] sm:$0x88]
    %v6334 = vld [vmem:[#allocation3 + $0x74] sm:$0x8]
    %v6335 = vld [vmem:[#allocation3 + $0x84] sm:$0x88]
    %v6336 = vld [vmem:[#allocation3 + $0x8c] sm:$0x8]
    %v6337 = vld [vmem:[#allocation3 + $0x9c] sm:$0x88]
    %v6338 = vld [vmem:[#allocation3 + $0xa4] sm:$0x8]
    %v6339 = vld [vmem:[#allocation3 + $0xb4] sm:$0x88]
    %v6340 = vld [vmem:[#allocation3 + $0xbc] sm:$0x8]
    %v6341 = vunpack.c.l.bf16 %v6325
    %v6342 = vunpack.c.h.bf16 %v6325
    %v6343 = vunpack.c.l.bf16 %v6326
    %v6344 = vunpack.c.l.bf16 %v6327
    %v6345 = vunpack.c.h.bf16 %v6327
    %v6346 = vunpack.c.l.bf16 %v6328
    %v6347 = vunpack.c.l.bf16 %v6329
    %v6348 = vunpack.c.h.bf16 %v6329
    %v6349 = vunpack.c.l.bf16 %v6330
    %v6350 = vunpack.c.l.bf16 %v6331
    %v6351 = vunpack.c.h.bf16 %v6331
    %v6352 = vunpack.c.l.bf16 %v6332
    %v6353 = vunpack.c.l.bf16 %v6333
    %v6354 = vunpack.c.h.bf16 %v6333
    %v6355 = vunpack.c.l.bf16 %v6334
    %v6356 = vunpack.c.l.bf16 %v6335
    %v6357 = vunpack.c.h.bf16 %v6335
    %v6358 = vunpack.c.l.bf16 %v6336
    %v6359 = vunpack.c.l.bf16 %v6337
    %v6360 = vunpack.c.h.bf16 %v6337
    %v6361 = vunpack.c.l.bf16 %v6338
    %v6362 = vunpack.c.l.bf16 %v6339
    %v6363 = vunpack.c.h.bf16 %v6339
    %v6364 = vunpack.c.l.bf16 %v6340
    %v6365 = vpack.c.bf16 %v6309, %v6309
    %v6366 = vpack.c.bf16 %v6310, %v6310
    %v6367 = vpack.c.bf16 %v6311, %v6311
    %v6368 = vpack.c.bf16 %v6312, %v6312
    %v6369 = vpack.c.bf16 %v6313, %v6313
    %v6370 = vpack.c.bf16 %v6314, %v6314
    %v6371 = vpack.c.bf16 %v6315, %v6315
    %v6372 = vpack.c.bf16 %v6316, %v6316
    %v6381 = vunpack.c.l.b16 %v6365
    %v6382 = vunpack.c.l.b16 %v6366
    %v6383 = vunpack.c.l.b16 %v6367
    %v6384 = vunpack.c.l.b16 %v6368
    %v6385 = vunpack.c.l.b16 %v6369
    %v6386 = vunpack.c.l.b16 %v6370
    %v6387 = vunpack.c.l.b16 %v6371
    %v6388 = vunpack.c.l.b16 %v6372
    %v6389 = vrot.slane %v6381, 6
    %v6390 = vrot.slane %v6382, 5
    %v6391 = vsel %vm657, %v6390, %v6389
    %v6392 = vrot.slane %v6383, 4
    %v6393 = vsel %vm660, %v6392, %v6391
    %v6394 = vrot.slane %v6384, 3
    %v6395 = vsel %vm663, %v6394, %v6393
    %v6396 = vrot.slane %v6385, 2
    %v6397 = vsel %vm666, %v6396, %v6395
    %v6398 = vrot.slane %v6386, 1
    %v6399 = vsel %vm669, %v6398, %v6397
    %v6400 = vsel %vm672, %v6387, %v6399
    %v6401 = vrot.slane %v6388, 7
    %v6402 = vsel %vm675, %v6401, %v6400
    %v6403 = vpack.c.b16 %v6402, %v6402
    %6405 = vmatprep.subr.bf16.mxu0 %v224
    %6406 = vmatpush1.bf16.msra.mxu0 %v223
    %6407 = vmatprep.subr.bf16.mxu0 %v227
    %6408 = vmatpush1.bf16.msra.mxu0 %v226
    %6409 = vmatprep.subr.bf16.mxu0 %v230
    %6410 = vmatpush1.bf16.msra.mxu0 %v229
    %6411 = vmatprep.subr.bf16.mxu0 %v233
    %6412 = vmatpush1.bf16.msra.mxu0 %v232
    %6413 = vmatprep.subr.bf16.mxu0 %v236
    %6414 = vmatpush1.bf16.msra.mxu0 %v235
    %6415 = vmatprep.subr.bf16.mxu0 %v239
    %6416 = vmatpush1.bf16.msra.mxu0 %v238
    %6417 = vmatprep.subr.bf16.mxu0 %v242
    %6418 = vmatpush1.bf16.msra.mxu0 %v241
    %6419 = vmatprep.subr.bf16.mxu0 %v245
    %6420 = vmatpush1.bf16.msra.mxu0 %v244
    %6421 = vmatprep.subr.bf16.mxu0 0
    %6422 = vmatpush1.bf16.msra.mxu0 0
    %6423 = vmatprep.subr.bf16.mxu0 0
    %6424 = vmatpush1.bf16.msra.mxu0 0
    %6425 = vmatprep.subr.bf16.mxu0 0
    %6426 = vmatpush1.bf16.msra.mxu0 0
    %6427 = vmatprep.subr.bf16.mxu0 0
    %6428 = vmatpush1.bf16.msra.mxu0 0
    %6429 = vmatprep.subr.bf16.mxu0 0
    %6430 = vmatpush1.bf16.msra.mxu0 0
    %6431 = vmatprep.subr.bf16.mxu0 0
    %6432 = vmatpush1.bf16.msra.mxu0 0
    %6433 = vmatprep.subr.bf16.mxu0 0
    %6434 = vmatpush1.bf16.msra.mxu0 0
    %6435 = vmatprep.subr.bf16.mxu0 0
    %6436 = vmatpush1.bf16.msra.mxu0 0
    %6437 = vmatprep.mubr.bf16.mxu0 0
    %6438 = vmatmul.mubr.bf16.gmra.mrb[0].mxu0 %v6403
    %v6439 = vpop.f32.mrb[0].mxu0
    %v6440 = vadd.f32 %v90, %v6439
    %v6441 = vpop.f32.mrb[0].mxu0
    %v6442 = vadd.f32 %v94, %v6441
    %v6443 = vpop.f32.mrb[0].mxu0
    %v6444 = vpop.f32.mrb[0].mxu0
    %6445 = vdwg.mxu0
    %6446 = vmatprep.subr.bf16.mxu0 0
    %6447 = vmatpush1.bf16.msra.mxu0 %v225
    %6448 = vmatprep.subr.bf16.mxu0 0
    %6449 = vmatpush1.bf16.msra.mxu0 %v228
    %6450 = vmatprep.subr.bf16.mxu0 0
    %6451 = vmatpush1.bf16.msra.mxu0 %v231
    %6452 = vmatprep.subr.bf16.mxu0 0
    %6453 = vmatpush1.bf16.msra.mxu0 %v234
    %6454 = vmatprep.subr.bf16.mxu0 0
    %6455 = vmatpush1.bf16.msra.mxu0 %v237
    %6456 = vmatprep.subr.bf16.mxu0 0
    %6457 = vmatpush1.bf16.msra.mxu0 %v240
    %6458 = vmatprep.subr.bf16.mxu0 0
    %6459 = vmatpush1.bf16.msra.mxu0 %v243
    %6460 = vmatprep.subr.bf16.mxu0 0
    %6461 = vmatpush1.bf16.msra.mxu0 %v246
    %6462 = vmatprep.subr.bf16.mxu0 0
    %6463 = vmatpush1.bf16.msra.mxu0 0
    %6464 = vmatprep.subr.bf16.mxu0 0
    %6465 = vmatpush1.bf16.msra.mxu0 0
    %6466 = vmatprep.subr.bf16.mxu0 0
    %6467 = vmatpush1.bf16.msra.mxu0 0
    %6468 = vmatprep.subr.bf16.mxu0 0
    %6469 = vmatpush1.bf16.msra.mxu0 0
    %6470 = vmatprep.subr.bf16.mxu0 0
    %6471 = vmatpush1.bf16.msra.mxu0 0
    %6472 = vmatprep.subr.bf16.mxu0 0
    %6473 = vmatpush1.bf16.msra.mxu0 0
    %6474 = vmatprep.subr.bf16.mxu0 0
    %6475 = vmatpush1.bf16.msra.mxu0 0
    %6476 = vmatprep.subr.bf16.mxu0 0
    %6477 = vmatpush1.bf16.msra.mxu0 0
    %6478 = vmatprep.mubr.bf16.mxu0 0
    %6479 = vmatmul.mubr.bf16.gmra.mrb[0].mxu0 %v6403
    %v6480 = vpop.f32.mrb[0].mxu0
    %v6481 = vadd.f32 %v98, %v6480
    %v6482 = vpop.f32.mrb[0].mxu0
    %v6483 = vpop.f32.mrb[0].mxu0
    %v6484 = vpop.f32.mrb[0].mxu0
    %6485 = vdwg.mxu0
    %v6487 = vrot.slane %v6440, 1
    %v6488 = vrot.slane %v6440, 2
    %v6489 = vrot.slane %v6440, 3
    %v6490 = vrot.slane %v6440, 4
    %v6491 = vrot.slane %v6440, 5
    %v6492 = vrot.slane %v6440, 6
    %v6493 = vrot.slane %v6440, 7
    %v6502 = vadd.f32 %v6341, %v6487
    %v6503 = vadd.f32 %v6344, %v6488
    %v6504 = vadd.f32 %v6347, %v6489
    %v6505 = vadd.f32 %v6350, %v6490
    %v6506 = vadd.f32 %v6353, %v6491
    %v6507 = vadd.f32 %v6356, %v6492
    %v6508 = vadd.f32 %v6359, %v6493
    %v6509 = vadd.f32 %v6362, %v6440
    %v6510 = vxor.u32 %v6502, 2147483648
    %v6511 = vxor.u32 %v6503, 2147483648
    %v6512 = vxor.u32 %v6504, 2147483648
    %v6513 = vxor.u32 %v6505, 2147483648
    %v6514 = vxor.u32 %v6506, 2147483648
    %v6515 = vxor.u32 %v6507, 2147483648
    %v6516 = vxor.u32 %v6508, 2147483648
    %v6517 = vxor.u32 %v6509, 2147483648
    %v6518 = vmul.f32 %v6510, 1.442695
    %v6519 = vpow.pop %v6518
    %v6520 = vmul.f32 %v6511, 1.442695
    %v6521 = vpow.pop %v6520
    %v6522 = vmul.f32 %v6512, 1.442695
    %v6523 = vpow.pop %v6522
    %v6524 = vmul.f32 %v6513, 1.442695
    %v6525 = vpow.pop %v6524
    %v6526 = vmul.f32 %v6514, 1.442695
    %v6527 = vpow.pop %v6526
    %v6528 = vmul.f32 %v6515, 1.442695
    %v6529 = vpow.pop %v6528
    %v6530 = vmul.f32 %v6516, 1.442695
    %v6531 = vpow.pop %v6530
    %v6532 = vmul.f32 %v6517, 1.442695
    %v6533 = vpow.pop %v6532
    %v6534 = vadd.f32 %v6519, 1.0
    %v6535 = vadd.f32 %v6521, 1.0
    %v6536 = vadd.f32 %v6523, 1.0
    %v6537 = vadd.f32 %v6525, 1.0
    %v6538 = vadd.f32 %v6527, 1.0
    %v6539 = vadd.f32 %v6529, 1.0
    %v6540 = vadd.f32 %v6531, 1.0
    %v6541 = vadd.f32 %v6533, 1.0
    %v6542 = vrcp.pop %v6534
    %v6543 = vmul.f32 1.0, %v6542
    %v6544 = vrcp.pop %v6535
    %v6545 = vmul.f32 1.0, %v6544
    %v6546 = vrcp.pop %v6536
    %v6547 = vmul.f32 1.0, %v6546
    %v6548 = vrcp.pop %v6537
    %v6549 = vmul.f32 1.0, %v6548
    %v6550 = vrcp.pop %v6538
    %v6551 = vmul.f32 1.0, %v6550
    %v6552 = vrcp.pop %v6539
    %v6553 = vmul.f32 1.0, %v6552
    %v6554 = vrcp.pop %v6540
    %v6555 = vmul.f32 1.0, %v6554
    %v6556 = vrcp.pop %v6541
    %v6557 = vmul.f32 1.0, %v6556
    %v6559 = vrot.slane %v6442, 1
    %v6560 = vrot.slane %v6442, 2
    %v6561 = vrot.slane %v6442, 3
    %v6562 = vrot.slane %v6442, 4
    %v6563 = vrot.slane %v6442, 5
    %v6564 = vrot.slane %v6442, 6
    %v6565 = vrot.slane %v6442, 7
    %v6574 = vadd.f32 %v6342, %v6559
    %v6575 = vadd.f32 %v6345, %v6560
    %v6576 = vadd.f32 %v6348, %v6561
    %v6577 = vadd.f32 %v6351, %v6562
    %v6578 = vadd.f32 %v6354, %v6563
    %v6579 = vadd.f32 %v6357, %v6564
    %v6580 = vadd.f32 %v6360, %v6565
    %v6581 = vadd.f32 %v6363, %v6442
    %v6582 = vxor.u32 %v6574, 2147483648
    %v6583 = vxor.u32 %v6575, 2147483648
    %v6584 = vxor.u32 %v6576, 2147483648
    %v6585 = vxor.u32 %v6577, 2147483648
    %v6586 = vxor.u32 %v6578, 2147483648
    %v6587 = vxor.u32 %v6579, 2147483648
    %v6588 = vxor.u32 %v6580, 2147483648
    %v6589 = vxor.u32 %v6581, 2147483648
    %v6590 = vmul.f32 %v6582, 1.442695
    %v6591 = vpow.pop %v6590
    %v6592 = vmul.f32 %v6583, 1.442695
    %v6593 = vpow.pop %v6592
    %v6594 = vmul.f32 %v6584, 1.442695
    %v6595 = vpow.pop %v6594
    %v6596 = vmul.f32 %v6585, 1.442695
    %v6597 = vpow.pop %v6596
    %v6598 = vmul.f32 %v6586, 1.442695
    %v6599 = vpow.pop %v6598
    %v6600 = vmul.f32 %v6587, 1.442695
    %v6601 = vpow.pop %v6600
    %v6602 = vmul.f32 %v6588, 1.442695
    %v6603 = vpow.pop %v6602
    %v6604 = vmul.f32 %v6589, 1.442695
    %v6605 = vpow.pop %v6604
    %v6606 = vadd.f32 %v6591, 1.0
    %v6607 = vadd.f32 %v6593, 1.0
    %v6608 = vadd.f32 %v6595, 1.0
    %v6609 = vadd.f32 %v6597, 1.0
    %v6610 = vadd.f32 %v6599, 1.0
    %v6611 = vadd.f32 %v6601, 1.0
    %v6612 = vadd.f32 %v6603, 1.0
    %v6613 = vadd.f32 %v6605, 1.0
    %v6614 = vrcp.pop %v6606
    %v6615 = vmul.f32 1.0, %v6614
    %v6616 = vrcp.pop %v6607
    %v6617 = vmul.f32 1.0, %v6616
    %v6618 = vrcp.pop %v6608
    %v6619 = vmul.f32 1.0, %v6618
    %v6620 = vrcp.pop %v6609
    %v6621 = vmul.f32 1.0, %v6620
    %v6622 = vrcp.pop %v6610
    %v6623 = vmul.f32 1.0, %v6622
    %v6624 = vrcp.pop %v6611
    %v6625 = vmul.f32 1.0, %v6624
    %v6626 = vrcp.pop %v6612
    %v6627 = vmul.f32 1.0, %v6626
    %v6628 = vrcp.pop %v6613
    %v6629 = vmul.f32 1.0, %v6628
    %v6631 = vrot.slane %v6481, 1
    %v6632 = vrot.slane %v6481, 2
    %v6633 = vrot.slane %v6481, 3
    %v6634 = vrot.slane %v6481, 4
    %v6635 = vrot.slane %v6481, 5
    %v6636 = vrot.slane %v6481, 6
    %v6637 = vrot.slane %v6481, 7
    %v6646 = vmul.f32 %v6543, %v6631
    %v6647 = vmul.f32 %v6545, %v6632
    %v6648 = vmul.f32 %v6547, %v6633
    %v6649 = vmul.f32 %v6549, %v6634
    %v6650 = vmul.f32 %v6551, %v6635
    %v6651 = vmul.f32 %v6553, %v6636
    %v6652 = vmul.f32 %v6555, %v6637
    %v6653 = vmul.f32 %v6557, %v6481
    %v6654 = vadd.f32 %v6343, %v6646
    %v6655 = vadd.f32 %v6346, %v6647
    %v6656 = vadd.f32 %v6349, %v6648
    %v6657 = vadd.f32 %v6352, %v6649
    %v6658 = vadd.f32 %v6355, %v6650
    %v6659 = vadd.f32 %v6358, %v6651
    %v6660 = vadd.f32 %v6361, %v6652
    %v6661 = vadd.f32 %v6364, %v6653
    %v6662 = vtanh.pop %v6654
    %v6663 = vtanh.pop %v6655
    %v6664 = vtanh.pop %v6656
    %v6665 = vtanh.pop %v6657
    %v6666 = vtanh.pop %v6658
    %v6667 = vtanh.pop %v6659
    %v6668 = vtanh.pop %v6660
    %v6669 = vtanh.pop %v6661
    %v6670 = vsub.f32 1.0, %v6615
    %v6671 = vsub.f32 1.0, %v6617
    %v6672 = vsub.f32 1.0, %v6619
    %v6673 = vsub.f32 1.0, %v6621
    %v6674 = vsub.f32 1.0, %v6623
    %v6675 = vsub.f32 1.0, %v6625
    %v6676 = vsub.f32 1.0, %v6627
    %v6677 = vsub.f32 1.0, %v6629
    %v6678 = vmul.f32 %v6670, %v6662
    %v6679 = vmul.f32 %v6671, %v6663
    %v6680 = vmul.f32 %v6672, %v6664
    %v6681 = vmul.f32 %v6673, %v6665
    %v6682 = vmul.f32 %v6674, %v6666
    %v6683 = vmul.f32 %v6675, %v6667
    %v6684 = vmul.f32 %v6676, %v6668
    %v6685 = vmul.f32 %v6677, %v6669
    %v6694 = vrot.slane %v6309, 7
    %v6695 = vrot.slane %v6310, 7
    %v6696 = vrot.slane %v6311, 7
    %v6697 = vrot.slane %v6312, 7
    %v6698 = vrot.slane %v6313, 7
    %v6699 = vrot.slane %v6314, 7
    %v6700 = vrot.slane %v6315, 7
    %v6701 = vrot.slane %v6316, 7
    %v6710 = vmul.f32 %v6615, %v6694
    %v6711 = vmul.f32 %v6617, %v6695
    %v6712 = vmul.f32 %v6619, %v6696
    %v6713 = vmul.f32 %v6621, %v6697
    %v6714 = vmul.f32 %v6623, %v6698
    %v6715 = vmul.f32 %v6625, %v6699
    %v6716 = vmul.f32 %v6627, %v6700
    %v6717 = vmul.f32 %v6629, %v6701
    %v6718 = vadd.f32 %v6678, %v6710
    %v6719 = vadd.f32 %v6679, %v6711
    %v6720 = vadd.f32 %v6680, %v6712
    %v6721 = vadd.f32 %v6681, %v6713
    %v6722 = vadd.f32 %v6682, %v6714
    %v6723 = vadd.f32 %v6683, %v6715
    %v6724 = vadd.f32 %v6684, %v6716
    %v6725 = vadd.f32 %v6685, %v6717
    %6726 = vst [vmem:[#allocation8 + $0x8] sm:$0x80] %v6718
    %6727 = vst [vmem:[#allocation8 + $0x18] sm:$0x80] %v6719
    %6728 = vst [vmem:[#allocation8 + $0x28] sm:$0x80] %v6720
    %6729 = vst [vmem:[#allocation8 + $0x38] sm:$0x80] %v6721
    %6730 = vst [vmem:[#allocation8 + $0x48] sm:$0x80] %v6722
    %6731 = vst [vmem:[#allocation8 + $0x58] sm:$0x80] %v6723
    %6732 = vst [vmem:[#allocation8 + $0x68] sm:$0x80] %v6724
    %6733 = vst [vmem:[#allocation8 + $0x78] sm:$0x80] %v6725
    %v6742 = vrot.slane %v6719, 7
    %v6743 = vrot.slane %v6720, 6
    %v6744 = vsel %vm657, %v6743, %v6742
    %v6745 = vrot.slane %v6721, 5
    %v6746 = vsel %vm660, %v6745, %v6744
    %v6747 = vrot.slane %v6722, 4
    %v6748 = vsel %vm663, %v6747, %v6746
    %v6749 = vrot.slane %v6723, 3
    %v6750 = vsel %vm666, %v6749, %v6748
    %v6751 = vrot.slane %v6724, 2
    %v6752 = vsel %vm669, %v6751, %v6750
    %v6753 = vrot.slane %v6725, 1
    %v6754 = vsel %vm672, %v6753, %v6752
    %6757 = vst [vmem:[#allocation2 - $0x7] sm:$0x80] %v6718
    %6758 = vst [vmem:[#allocation2 + $0x1] sm:$0x7f] %v6754
    %v6759 = vld [vmem:[%s1] sm:$0xff]
    %v6760 = vlaneseq
    %v6761 = vand.u32 %v6760, 127
    %s6762 = smul.u32 0, 16
    %v6763 = vstv %s6762
    %v6764 = vadd.s32 %v6761, %v6763
    %6765 = vset.pattern.permute.xlu0 0
    %6766 = vperm.xlu0 %6765, %v6759
    %v6767 = vpop.permute.xlu0 %6766
    %vm6768 = vcmp.lt.s32.totalorder %v6764, %v6767
    %v6769 = vsel %vm6768, 1, 0
    %v6770 = vcvt.s32.f32 %v6769
    %v6771 = vld [vmem:[#allocation8] sm:$0xff]
    %v6772 = vld [vmem:[#allocation8 + $0x8] sm:$0xff]
    %v6773 = vld [vmem:[#allocation8 + $0x10] sm:$0xff]
    %v6774 = vld [vmem:[#allocation8 + $0x18] sm:$0xff]
    %v6775 = vld [vmem:[#allocation8 + $0x20] sm:$0xff]
    %v6776 = vld [vmem:[#allocation8 + $0x28] sm:$0xff]
    %v6777 = vld [vmem:[#allocation8 + $0x30] sm:$0xff]
    %v6778 = vld [vmem:[#allocation8 + $0x38] sm:$0xff]
    %v6779 = vld [vmem:[#allocation8 + $0x40] sm:$0xff]
    %v6780 = vld [vmem:[#allocation8 + $0x48] sm:$0xff]
    %v6781 = vld [vmem:[#allocation8 + $0x50] sm:$0xff]
    %v6782 = vld [vmem:[#allocation8 + $0x58] sm:$0xff]
    %v6783 = vld [vmem:[#allocation8 + $0x60] sm:$0xff]
    %v6784 = vld [vmem:[#allocation8 + $0x68] sm:$0xff]
    %v6785 = vld [vmem:[#allocation8 + $0x70] sm:$0xff]
    %v6786 = vld [vmem:[#allocation8 + $0x78] sm:$0xff]
    %v6787 = vlaneseq
    %v6788 = vshrl.u32 %v6787, 7
    %v6789 = vsub.s32 0, %v6788
    %v6790 = vrot.slane %v6770, %v6789
    %6792 = vbcast.lane.b32.xlu0 %v6790, 256
    %v6793 = vpop.permute.xlu0 %6792
    %s6795 = sor.u32 256, 8
    %6796 = vbcast.lane.b32.xlu0 %v6790, %s6795
    %v6797 = vpop.permute.xlu0 %6796
    %v6798 = vlaneseq
    %v6799 = vshrl.u32 %v6798, 7
    %v6800 = vsub.s32 1, %v6799
    %v6801 = vrot.slane %v6770, %v6800
    %6803 = vbcast.lane.b32.xlu0 %v6801, 256
    %v6804 = vpop.permute.xlu0 %6803
    %s6806 = sor.u32 256, 8
    %6807 = vbcast.lane.b32.xlu0 %v6801, %s6806
    %v6808 = vpop.permute.xlu0 %6807
    %v6809 = vlaneseq
    %v6810 = vshrl.u32 %v6809, 7
    %v6811 = vsub.s32 2, %v6810
    %v6812 = vrot.slane %v6770, %v6811
    %6814 = vbcast.lane.b32.xlu0 %v6812, 256
    %v6815 = vpop.permute.xlu0 %6814
    %s6817 = sor.u32 256, 8
    %6818 = vbcast.lane.b32.xlu0 %v6812, %s6817
    %v6819 = vpop.permute.xlu0 %6818
    %v6820 = vlaneseq
    %v6821 = vshrl.u32 %v6820, 7
    %v6822 = vsub.s32 3, %v6821
    %v6823 = vrot.slane %v6770, %v6822
    %6825 = vbcast.lane.b32.xlu0 %v6823, 256
    %v6826 = vpop.permute.xlu0 %6825
    %s6828 = sor.u32 256, 8
    %6829 = vbcast.lane.b32.xlu0 %v6823, %s6828
    %v6830 = vpop.permute.xlu0 %6829
    %v6831 = vlaneseq
    %v6832 = vshrl.u32 %v6831, 7
    %v6833 = vsub.s32 4, %v6832
    %v6834 = vrot.slane %v6770, %v6833
    %6836 = vbcast.lane.b32.xlu0 %v6834, 256
    %v6837 = vpop.permute.xlu0 %6836
    %s6839 = sor.u32 256, 8
    %6840 = vbcast.lane.b32.xlu0 %v6834, %s6839
    %v6841 = vpop.permute.xlu0 %6840
    %v6842 = vlaneseq
    %v6843 = vshrl.u32 %v6842, 7
    %v6844 = vsub.s32 5, %v6843
    %v6845 = vrot.slane %v6770, %v6844
    %6847 = vbcast.lane.b32.xlu0 %v6845, 256
    %v6848 = vpop.permute.xlu0 %6847
    %s6850 = sor.u32 256, 8
    %6851 = vbcast.lane.b32.xlu0 %v6845, %s6850
    %v6852 = vpop.permute.xlu0 %6851
    %v6853 = vlaneseq
    %v6854 = vshrl.u32 %v6853, 7
    %v6855 = vsub.s32 6, %v6854
    %v6856 = vrot.slane %v6770, %v6855
    %6858 = vbcast.lane.b32.xlu0 %v6856, 256
    %v6859 = vpop.permute.xlu0 %6858
    %s6861 = sor.u32 256, 8
    %6862 = vbcast.lane.b32.xlu0 %v6856, %s6861
    %v6863 = vpop.permute.xlu0 %6862
    %v6864 = vlaneseq
    %v6865 = vshrl.u32 %v6864, 7
    %v6866 = vsub.s32 7, %v6865
    %v6867 = vrot.slane %v6770, %v6866
    %6869 = vbcast.lane.b32.xlu0 %v6867, 256
    %v6870 = vpop.permute.xlu0 %6869
    %s6872 = sor.u32 256, 8
    %6873 = vbcast.lane.b32.xlu0 %v6867, %s6872
    %v6874 = vpop.permute.xlu0 %6873
    %v6875 = vmul.f32 %v6771, %v6793
    %v6876 = vmul.f32 %v6772, %v6797
    %v6877 = vmul.f32 %v6773, %v6804
    %v6878 = vmul.f32 %v6774, %v6808
    %v6879 = vmul.f32 %v6775, %v6815
    %v6880 = vmul.f32 %v6776, %v6819
    %v6881 = vmul.f32 %v6777, %v6826
    %v6882 = vmul.f32 %v6778, %v6830
    %v6883 = vmul.f32 %v6779, %v6837
    %v6884 = vmul.f32 %v6780, %v6841
    %v6885 = vmul.f32 %v6781, %v6848
    %v6886 = vmul.f32 %v6782, %v6852
    %v6887 = vmul.f32 %v6783, %v6859
    %v6888 = vmul.f32 %v6784, %v6863
    %v6889 = vmul.f32 %v6785, %v6870
    %v6890 = vmul.f32 %v6786, %v6874
    %6891 = vst [vmem:[#allocation8] sm:$0xff] %v6875
    %6892 = vst [vmem:[#allocation8 + $0x8] sm:$0xff] %v6876
    %6893 = vst [vmem:[#allocation8 + $0x10] sm:$0xff] %v6877
    %6894 = vst [vmem:[#allocation8 + $0x18] sm:$0xff] %v6878
    %6895 = vst [vmem:[#allocation8 + $0x20] sm:$0xff] %v6879
    %6896 = vst [vmem:[#allocation8 + $0x28] sm:$0xff] %v6880
    %6897 = vst [vmem:[#allocation8 + $0x30] sm:$0xff] %v6881
    %6898 = vst [vmem:[#allocation8 + $0x38] sm:$0xff] %v6882
    %6899 = vst [vmem:[#allocation8 + $0x40] sm:$0xff] %v6883
    %6900 = vst [vmem:[#allocation8 + $0x48] sm:$0xff] %v6884
    %6901 = vst [vmem:[#allocation8 + $0x50] sm:$0xff] %v6885
    %6902 = vst [vmem:[#allocation8 + $0x58] sm:$0xff] %v6886
    %6903 = vst [vmem:[#allocation8 + $0x60] sm:$0xff] %v6887
    %6904 = vst [vmem:[#allocation8 + $0x68] sm:$0xff] %v6888
    %6905 = vst [vmem:[#allocation8 + $0x70] sm:$0xff] %v6889
    %6906 = vst [vmem:[#allocation8 + $0x78] sm:$0xff] %v6890
    // Predicated region
    $region30: #{tpu_custom_call.1} parent=1 // pred_check
      _
    $region31: #{tpu_custom_call.1} parent=1 // pred_check_branch
      %6908 = sbr.rel (0) target = $region33
    $region32: #{tpu_custom_call.1} parent=1 // pred_region
      %s6910 = ssub.s32 2048, 2048
      %6911 = vsyncadd [#allocation5], %s6910
      %s6912 = sshll.u32 [#allocation8], 4
      %s6913 = int_to_ptr.vmem [resolvable:$true] %s6912
      %6918 = dma.vmem_to_hbm [thread:$0]  %s6913, 2048, %s4, [#allocation5], 128, 128, 8
    $region33: #{tpu_custom_call.1} parent=1 // pred_fallthru
      _
    // Predicated region
    $region34: #{tpu_custom_call.1} parent=1 // pred_check
      _
    $region35: #{tpu_custom_call.1} parent=1 // pred_check_branch
      %6920 = sbr.rel (0) target = $region37
    $region36: #{tpu_custom_call.1} parent=1 // pred_region
      %6921 = dma.done [#allocation5], 2048
    $region37: #{tpu_custom_call.1} parent=1 // pred_fallthru
      _
    %6922 = vsyncpa [#allocation4], 1
    %6923 = vsyncpa [#allocation7], 1
    %6924 = vsyncpa [#allocation5], 1

</llo_original>
